<compile_context>
chip_gen: v6e
topology: v6e:2x2x1
jax: 0.10.0
libtpu: 0.0.40
codegen_flags: <defaults>
</compile_context>

<pallas_src>
import numpy as np

import jax
import jax.numpy as jnp
from jax import lax
from jax.experimental import pallas as pl
from jax.experimental.pallas import tpu as pltpu

GROUP = 8                                                        # images per conv grid step
_OFFS = tuple(28 * i + j for i in range(3) for j in range(3))    # conv1 im2col offsets


# -----------------------------------------------------------------------------
# Kernel 1: conv1 -> relu -> pool -> conv2 -> relu -> pool  (8 images / step,
# images packed into lanes: stage-1 lanes = 32ch x 8img, stage-2 = 64ch x 8img)
# -----------------------------------------------------------------------------
def _convpool_kernel(xp_ref, w1_ref, b1_ref, s1_ref, w2_ref, b2_ref, s2_ref, out_ref):
    f32, bf16 = jnp.float32, jnp.bfloat16

    # ---- conv1: one MXU dot over im2col patches, block-diag over 8 images ----
    # xp: (728, 72) with column 9*b + k = patch value; w1: (72, 256) block-diag.
    # Output row r = 28*oh + ow (ow in {26,27} is wrap garbage, never pooled).
    c1 = jnp.dot(xp_ref[...], w1_ref[...], preferred_element_type=f32)   # (728, 256)
    c1 = jnp.maximum(c1 + b1_ref[...], 0.0)

    # ---- maxpool 2x2/2 on the 26x26 valid grid (lane-packed, dense vregs) ----
    h1 = jnp.maximum(c1[:-1, :], c1[1:, :])                              # (727, 256)
    v1 = jnp.maximum(h1[:-28, :], h1[28:, :])                            # (699, 256)
    # 0/1 selection matmul compacts rows 56*ph+2*pw into 13x13 row-major order
    # (rows 169..170 of s1 are zero so conv2's shifted slices stay in bounds).
    p1 = jnp.dot(s1_ref[...], v1.astype(bf16),
                 preferred_element_type=f32).astype(bf16)                # (171, 256)

    # ---- conv2: implicit GEMM, 9 offsets, block-diag 32ch->64ch per image ----
    acc2 = jnp.zeros((143, 512), f32)
    for i in range(3):
        for j in range(3):
            k = 3 * i + j
            acc2 = acc2 + jnp.dot(p1[13 * i + j: 13 * i + j + 143, :], w2_ref[k],
                                  preferred_element_type=f32)
    c2 = jnp.maximum(acc2 + b2_ref[...], 0.0)                            # (143, 512)

    # ---- maxpool 2x2/2 on the 11x11 valid grid ----
    h2 = jnp.maximum(c2[:-1, :], c2[1:, :])                              # (142, 512)
    v2 = jnp.maximum(h2[:-13, :], h2[13:, :])                            # (129, 512)

    # Gather the 25 pooled 5x5 positions (rows 26*ph+2*pw) into rows 0..24
    # (rows 25..31 zero pad); lanes stay 64*img + channel.
    out_ref[...] = jnp.dot(s2_ref[...], v2, preferred_element_type=f32)  # (32, 512)


# -----------------------------------------------------------------------------
# Kernel 2: fc1 -> relu -> fc2 as batched matmuls over row tiles of images
# -----------------------------------------------------------------------------
def _fc_kernel(f_ref, w1_ref, b1_ref, w2_ref, b2_ref, out_ref):
    h = jnp.dot(f_ref[...].astype(jnp.bfloat16), w1_ref[...],
                preferred_element_type=jnp.float32)                      # (TB, 128)
    h = jnp.maximum(h + b1_ref[...], 0.0)
    out_ref[...] = jnp.dot(h, w2_ref[...],
                           preferred_element_type=jnp.float32) + b2_ref[...]


# -----------------------------------------------------------------------------
# One-time weight repacking (block-diag / selection constants, done at init)
# -----------------------------------------------------------------------------
def prepare_params(p):
    G = GROUP

    w1 = np.asarray(p["conv1_w"], np.float32).reshape(32, 9).T           # (9, 32) [k, c]
    w1bd = np.zeros((9 * G, 32 * G), np.float32)
    for b in range(G):
        w1bd[9 * b: 9 * b + 9, 32 * b: 32 * b + 32] = w1
    b1p = np.tile(np.asarray(p["conv1_b"], np.float32).reshape(1, 32), (1, G))

    w2 = np.asarray(p["conv2_w"], np.float32).transpose(2, 3, 1, 0).reshape(9, 32, 64)
    w2bd = np.zeros((9, 32 * G, 64 * G), np.float32)
    for b in range(G):
        w2bd[:, 32 * b: 32 * b + 32, 64 * b: 64 * b + 64] = w2
    b2p = np.tile(np.asarray(p["conv2_b"], np.float32).reshape(1, 64), (1, G))

    s1 = np.zeros((171, 699), np.float32)          # pool1 compaction (rows 169..170 zero)
    for ph in range(13):
        for pw in range(13):
            s1[13 * ph + pw, 56 * ph + 2 * pw] = 1.0

    s2 = np.zeros((32, 129), np.float32)           # pool2 5x5 gather (rows 25..31 zero)
    for ph in range(5):
        for pw in range(5):
            s2[5 * ph + pw, 26 * ph + 2 * pw] = 1.0

    # fc1: PyTorch flatten order is (c, ph, pw); kernel feature col is 32*c + q.
    fc1 = np.asarray(p["fc1_w"], np.float32).reshape(128, 64, 25)        # [o, c, q]
    wf1p = np.zeros((64, 32, 128), np.float32)
    wf1p[:, :25, :] = fc1.transpose(1, 2, 0)
    wf1p = wf1p.reshape(64 * 32, 128)                                    # (2048, 128)

    return {
        "w1bd": jnp.asarray(w1bd),
        "b1p": jnp.asarray(b1p),
        "s1": jnp.asarray(s1, jnp.bfloat16),
        "w2bd": jnp.asarray(w2bd, jnp.bfloat16),
        "b2p": jnp.asarray(b2p),
        "s2": jnp.asarray(s2),
        "wf1p": jnp.asarray(wf1p, jnp.bfloat16),
        "bf1": jnp.asarray(np.asarray(p["fc1_b"], np.float32).reshape(1, 128)),
        "wf2": jnp.asarray(np.asarray(p["fc2_w"], np.float32).T),
        "bf2": jnp.asarray(np.asarray(p["fc2_b"], np.float32).reshape(1, 10)),
    }


# -----------------------------------------------------------------------------
# Forward pass: two pallas_calls, batched grids
# -----------------------------------------------------------------------------
@jax.jit
def neural_network_forward(x, kp):
    n = x.shape[0]
    # Pad batch to a multiple of 16 -> conv grid has an even number (>=2) of steps.
    npad = max(2 * GROUP, ((n + 2 * GROUP - 1) // (2 * GROUP)) * (2 * GROUP))
    ng = npad // GROUP

    # im2col in XLA: patches[n, r, k] = xflat[n, r + 28*i + j], then lane-pack
    # 8 images per step -> (Ng*728, 72) with column 9*b + k.
    xf = jnp.pad(x.astype(jnp.float32).reshape(n, 28 * 28), ((0, npad - n), (0, 8)))
    patches = jnp.stack([xf[:, o: o + 728] for o in _OFFS], axis=-1)     # (NP, 728, 9)
    xp = patches.reshape(ng, GROUP, 728, 9).transpose(0, 2, 1, 3).reshape(ng * 728, 72)

    qsel = pl.pallas_call(
        _convpool_kernel,
        out_shape=jax.ShapeDtypeStruct((ng * 32, 512), jnp.float32),
        grid=(ng,),
        in_specs=[
            pl.BlockSpec((728, 72), lambda g: (g, 0)),          # im2col patches (per step)
            pl.BlockSpec((72, 256), lambda g: (0, 0)),          # conv1 block-diag weight
            pl.BlockSpec((1, 256), lambda g: (0, 0)),           # conv1 bias (lane-packed)
            pl.BlockSpec((171, 699), lambda g: (0, 0)),         # pool1 selection (bf16)
            pl.BlockSpec((9, 256, 512), lambda g: (0, 0, 0)),   # conv2 block-diag weights
            pl.BlockSpec((1, 512), lambda g: (0, 0)),           # conv2 bias (lane-packed)
            pl.BlockSpec((32, 129), lambda g: (0, 0)),          # pool2 5x5 gather
        ],
        out_specs=pl.BlockSpec((32, 512), lambda g: (g, 0)),
        compiler_params=pltpu.CompilerParams(
            dimension_semantics=("parallel",),
            vmem_limit_bytes=48 * 1024 * 1024),
    )(xp, kp["w1bd"], kp["b1p"], kp["s1"], kp["w2bd"], kp["b2p"], kp["s2"])

    # Flatten reorg (lanes -> image rows) as a free XLA transpose between kernels:
    # feature column = 32*channel + spatial_q (q>=25 columns are zero).
    feats = qsel.reshape(ng, 32, GROUP, 64).transpose(0, 2, 3, 1).reshape(npad, 2048)

    tb = 128 if npad >= 128 else npad
    np_fc = ((npad + tb - 1) // tb) * tb
    if np_fc != npad:
        feats = jnp.pad(feats, ((0, np_fc - npad), (0, 0)))

    out = pl.pallas_call(
        _fc_kernel,
        out_shape=jax.ShapeDtypeStruct((np_fc, 10), jnp.float32),
        grid=(np_fc // tb,),
        in_specs=[
            pl.BlockSpec((tb, 2048), lambda t: (t, 0)),
            pl.BlockSpec((2048, 128), lambda t: (0, 0)),
            pl.BlockSpec((1, 128), lambda t: (0, 0)),
            pl.BlockSpec((128, 10), lambda t: (0, 0)),
            pl.BlockSpec((1, 10), lambda t: (0, 0)),
        ],
        out_specs=pl.BlockSpec((tb, 10), lambda t: (t, 0)),
        compiler_params=pltpu.CompilerParams(dimension_semantics=("parallel",)),
    )(feats, kp["wf1p"], kp["bf1"], kp["wf2"], kp["bf2"])
    return out[:n]


# -----------------------------------------------------------------------------
# Parameter init (PyTorch layouts) and a pure-JAX reference for validation
# -----------------------------------------------------------------------------
def init_params(key):
    ks = jax.random.split(key, 8)

    def u(k, shape, fan_in):
        bound = 1.0 / np.sqrt(fan_in)
        return jax.random.uniform(k, shape, jnp.float32, -bound, bound)

    return {
        "conv1_w": u(ks[0], (32, 1, 3, 3), 9),
        "conv1_b": u(ks[1], (32,), 9),
        "conv2_w": u(ks[2], (64, 32, 3, 3), 32 * 9),
        "conv2_b": u(ks[3], (64,), 32 * 9),
        "fc1_w": u(ks[4], (128, 64 * 5 * 5), 64 * 5 * 5),
        "fc1_b": u(ks[5], (128,), 64 * 5 * 5),
        "fc2_w": u(ks[6], (10, 128), 128),
        "fc2_b": u(ks[7], (10,), 128),
    }


def _pool2x2_ref(y):
    h = (y.shape[2] // 2) * 2
    w = (y.shape[3] // 2) * 2
    y = y[:, :, :h, :w]
    return jnp.maximum(
        jnp.maximum(y[:, :, 0::2, 0::2], y[:, :, 0::2, 1::2]),
        jnp.maximum(y[:, :, 1::2, 0::2], y[:, :, 1::2, 1::2]))


def reference_forward(x, p):
    dn = ("NCHW", "OIHW", "NCHW")
    y = lax.conv_general_dilated(x, p["conv1_w"], (1, 1), "VALID", dimension_numbers=dn)
    y = jax.nn.relu(y + p["conv1_b"][None, :, None, None])
    y = _pool2x2_ref(y)
    y = lax.conv_general_dilated(y, p["conv2_w"], (1, 1), "VALID", dimension_numbers=dn)
    y = jax.nn.relu(y + p["conv2_b"][None, :, None, None])
    y = _pool2x2_ref(y)
    y = y.reshape(y.shape[0], -1)
    y = jax.nn.relu(y @ p["fc1_w"].T + p["fc1_b"])
    return y @ p["fc2_w"].T + p["fc2_b"]


if __name__ == "__main__":
    key_x, key_p = jax.random.split(jax.random.PRNGKey(0))
    params = init_params(key_p)          # PyTorch-layout parameters
    kparams = prepare_params(params)     # kernel-layout (hoisted, done once)

    # Shapes implied by the module: fc1 expects 64*5*5, i.e. 28x28 inputs.
    x = jax.random.normal(key_x, (2, 1, 28, 28), jnp.float32)

    out = neural_network_forward(x, kparams)
    jax.block_until_ready(out)

    assert out.shape == (2, 10), out.shape
    assert out.dtype == jnp.float32
    assert bool(jnp.all(jnp.isfinite(out)))

    ref = reference_forward(x, params)
    max_err = float(jnp.max(jnp.abs(out - ref)))
    assert bool(jnp.allclose(out, ref, atol=2e-2, rtol=2e-2)), max_err

    print("KERNEL_OK")
</pallas_src>

<mosaic_0001>
module attributes {stable_mosaic.version = 11 : i64} {
  func.func @_convpool_kernel(%arg0: i32, %arg1: memref<728x72xf32, #tpu.memory_space<vmem>>, %arg2: memref<72x256xf32, #tpu.memory_space<vmem>>, %arg3: memref<1x256xf32, #tpu.memory_space<vmem>>, %arg4: memref<171x699xbf16, #tpu.memory_space<vmem>>, %arg5: memref<9x256x512xbf16, #tpu.memory_space<vmem>>, %arg6: memref<1x512xf32, #tpu.memory_space<vmem>>, %arg7: memref<32x129xf32, #tpu.memory_space<vmem>>, %arg8: memref<32x512xf32, #tpu.memory_space<vmem>>) attributes {dimension_semantics = [#tpu.dimension_semantics<parallel>], iteration_bounds = array<i64: 2>, scalar_prefetch = 0 : i64, scratch_operands = 0 : i64, tpu.core_type = #tpu.core_type<tc>, window_params = [{transform_indices = @transform_0, window_bounds = array<i64: 728, 72>}, {pipeline_mode = #tpu.pipeline_mode<synchronous>, transform_indices = @transform_1, window_bounds = array<i64: 72, 256>}, {pipeline_mode = #tpu.pipeline_mode<synchronous>, transform_indices = @transform_2, window_bounds = array<i64: 1, 256>}, {pipeline_mode = #tpu.pipeline_mode<synchronous>, transform_indices = @transform_3, window_bounds = array<i64: 171, 699>}, {pipeline_mode = #tpu.pipeline_mode<synchronous>, transform_indices = @transform_4, window_bounds = array<i64: 9, 256, 512>}, {pipeline_mode = #tpu.pipeline_mode<synchronous>, transform_indices = @transform_5, window_bounds = array<i64: 1, 512>}, {pipeline_mode = #tpu.pipeline_mode<synchronous>, transform_indices = @transform_6, window_bounds = array<i64: 32, 129>}, {transform_indices = @transform_7, window_bounds = array<i64: 32, 512>}]} {
    %c0 = arith.constant 0 : index
    %c0_0 = arith.constant 0 : index
    %0 = vector.load %arg1[%c0, %c0_0] : memref<728x72xf32, #tpu.memory_space<vmem>>, vector<728x72xf32>
    %c0_1 = arith.constant 0 : index
    %c0_2 = arith.constant 0 : index
    %1 = vector.load %arg2[%c0_1, %c0_2] : memref<72x256xf32, #tpu.memory_space<vmem>>, vector<72x256xf32>
    %cst = arith.constant dense<0.000000e+00> : vector<728x256xf32>
    %2 = tpu.matmul %0, %1, %cst {dimension_numbers = #tpu.dot_dimension_numbers<[1], [0], [0], [1], [0, 0, 1, 1], [], []>} : vector<728x72xf32>, vector<72x256xf32>, vector<728x256xf32> -> vector<728x256xf32>
    %c0_3 = arith.constant 0 : index
    %c0_4 = arith.constant 0 : index
    %3 = vector.load %arg3[%c0_3, %c0_4] : memref<1x256xf32, #tpu.memory_space<vmem>>, vector<1x256xf32>
    %4 = vector.broadcast %3 : vector<1x256xf32> to vector<728x256xf32>
    %5 = arith.addf %2, %4 : vector<728x256xf32>
    %cst_5 = arith.constant 0.000000e+00 : f32
    %6 = vector.broadcast %cst_5 : f32 to vector<728x256xf32>
    %7 = arith.maximumf %5, %6 : vector<728x256xf32>
    %8 = vector.extract_strided_slice %7 {offsets = [0, 0], sizes = [727, 256], strides = [1, 1]} : vector<728x256xf32> to vector<727x256xf32>
    %9 = vector.extract_strided_slice %7 {offsets = [1, 0], sizes = [727, 256], strides = [1, 1]} : vector<728x256xf32> to vector<727x256xf32>
    %10 = arith.maximumf %8, %9 : vector<727x256xf32>
    %11 = vector.extract_strided_slice %10 {offsets = [0, 0], sizes = [699, 256], strides = [1, 1]} : vector<727x256xf32> to vector<699x256xf32>
    %12 = vector.extract_strided_slice %10 {offsets = [28, 0], sizes = [699, 256], strides = [1, 1]} : vector<727x256xf32> to vector<699x256xf32>
    %13 = arith.maximumf %11, %12 : vector<699x256xf32>
    %c0_6 = arith.constant 0 : index
    %c0_7 = arith.constant 0 : index
    %14 = vector.load %arg4[%c0_6, %c0_7] : memref<171x699xbf16, #tpu.memory_space<vmem>>, vector<171x699xbf16>
    %15 = arith.truncf %13 : vector<699x256xf32> to vector<699x256xbf16>
    %cst_8 = arith.constant dense<0.000000e+00> : vector<171x256xf32>
    %16 = tpu.matmul %14, %15, %cst_8 {dimension_numbers = #tpu.dot_dimension_numbers<[1], [0], [0], [1], [0, 0, 1, 1], [], []>} : vector<171x699xbf16>, vector<699x256xbf16>, vector<171x256xf32> -> vector<171x256xf32>
    %17 = arith.truncf %16 : vector<171x256xf32> to vector<171x256xbf16>
    %cst_9 = arith.constant 0.000000e+00 : f32
    %18 = vector.broadcast %cst_9 : f32 to vector<143x512xf32>
    %19 = vector.extract_strided_slice %17 {offsets = [0, 0], sizes = [143, 256], strides = [1, 1]} : vector<171x256xbf16> to vector<143x256xbf16>
    %c0_10 = arith.constant 0 : index
    %c0_11 = arith.constant 0 : index
    %c0_12 = arith.constant 0 : index
    %20 = vector.load %arg5[%c0_10, %c0_11, %c0_12] : memref<9x256x512xbf16, #tpu.memory_space<vmem>>, vector<1x256x512xbf16>
    %21 = vector.shape_cast %20 : vector<1x256x512xbf16> to vector<256x512xbf16>
    %cst_13 = arith.constant dense<0.000000e+00> : vector<143x512xf32>
    %22 = tpu.matmul %19, %21, %cst_13 {dimension_numbers = #tpu.dot_dimension_numbers<[1], [0], [0], [1], [0, 0, 1, 1], [], []>} : vector<143x256xbf16>, vector<256x512xbf16>, vector<143x512xf32> -> vector<143x512xf32>
    %23 = arith.addf %18, %22 : vector<143x512xf32>
    %24 = vector.extract_strided_slice %17 {offsets = [1, 0], sizes = [143, 256], strides = [1, 1]} : vector<171x256xbf16> to vector<143x256xbf16>
    %c1 = arith.constant 1 : index
    %c0_14 = arith.constant 0 : index
    %c0_15 = arith.constant 0 : index
    %25 = vector.load %arg5[%c1, %c0_14, %c0_15] : memref<9x256x512xbf16, #tpu.memory_space<vmem>>, vector<1x256x512xbf16>
    %26 = vector.shape_cast %25 : vector<1x256x512xbf16> to vector<256x512xbf16>
    %cst_16 = arith.constant dense<0.000000e+00> : vector<143x512xf32>
    %27 = tpu.matmul %24, %26, %cst_16 {dimension_numbers = #tpu.dot_dimension_numbers<[1], [0], [0], [1], [0, 0, 1, 1], [], []>} : vector<143x256xbf16>, vector<256x512xbf16>, vector<143x512xf32> -> vector<143x512xf32>
    %28 = arith.addf %23, %27 : vector<143x512xf32>
    %29 = vector.extract_strided_slice %17 {offsets = [2, 0], sizes = [143, 256], strides = [1, 1]} : vector<171x256xbf16> to vector<143x256xbf16>
    %c2 = arith.constant 2 : index
    %c0_17 = arith.constant 0 : index
    %c0_18 = arith.constant 0 : index
    %30 = vector.load %arg5[%c2, %c0_17, %c0_18] : memref<9x256x512xbf16, #tpu.memory_space<vmem>>, vector<1x256x512xbf16>
    %31 = vector.shape_cast %30 : vector<1x256x512xbf16> to vector<256x512xbf16>
    %cst_19 = arith.constant dense<0.000000e+00> : vector<143x512xf32>
    %32 = tpu.matmul %29, %31, %cst_19 {dimension_numbers = #tpu.dot_dimension_numbers<[1], [0], [0], [1], [0, 0, 1, 1], [], []>} : vector<143x256xbf16>, vector<256x512xbf16>, vector<143x512xf32> -> vector<143x512xf32>
    %33 = arith.addf %28, %32 : vector<143x512xf32>
    %34 = vector.extract_strided_slice %17 {offsets = [13, 0], sizes = [143, 256], strides = [1, 1]} : vector<171x256xbf16> to vector<143x256xbf16>
    %c3 = arith.constant 3 : index
    %c0_20 = arith.constant 0 : index
    %c0_21 = arith.constant 0 : index
    %35 = vector.load %arg5[%c3, %c0_20, %c0_21] : memref<9x256x512xbf16, #tpu.memory_space<vmem>>, vector<1x256x512xbf16>
    %36 = vector.shape_cast %35 : vector<1x256x512xbf16> to vector<256x512xbf16>
    %cst_22 = arith.constant dense<0.000000e+00> : vector<143x512xf32>
    %37 = tpu.matmul %34, %36, %cst_22 {dimension_numbers = #tpu.dot_dimension_numbers<[1], [0], [0], [1], [0, 0, 1, 1], [], []>} : vector<143x256xbf16>, vector<256x512xbf16>, vector<143x512xf32> -> vector<143x512xf32>
    %38 = arith.addf %33, %37 : vector<143x512xf32>
    %39 = vector.extract_strided_slice %17 {offsets = [14, 0], sizes = [143, 256], strides = [1, 1]} : vector<171x256xbf16> to vector<143x256xbf16>
    %c4 = arith.constant 4 : index
    %c0_23 = arith.constant 0 : index
    %c0_24 = arith.constant 0 : index
    %40 = vector.load %arg5[%c4, %c0_23, %c0_24] : memref<9x256x512xbf16, #tpu.memory_space<vmem>>, vector<1x256x512xbf16>
    %41 = vector.shape_cast %40 : vector<1x256x512xbf16> to vector<256x512xbf16>
    %cst_25 = arith.constant dense<0.000000e+00> : vector<143x512xf32>
    %42 = tpu.matmul %39, %41, %cst_25 {dimension_numbers = #tpu.dot_dimension_numbers<[1], [0], [0], [1], [0, 0, 1, 1], [], []>} : vector<143x256xbf16>, vector<256x512xbf16>, vector<143x512xf32> -> vector<143x512xf32>
    %43 = arith.addf %38, %42 : vector<143x512xf32>
    %44 = vector.extract_strided_slice %17 {offsets = [15, 0], sizes = [143, 256], strides = [1, 1]} : vector<171x256xbf16> to vector<143x256xbf16>
    %c5 = arith.constant 5 : index
    %c0_26 = arith.constant 0 : index
    %c0_27 = arith.constant 0 : index
    %45 = vector.load %arg5[%c5, %c0_26, %c0_27] : memref<9x256x512xbf16, #tpu.memory_space<vmem>>, vector<1x256x512xbf16>
    %46 = vector.shape_cast %45 : vector<1x256x512xbf16> to vector<256x512xbf16>
    %cst_28 = arith.constant dense<0.000000e+00> : vector<143x512xf32>
    %47 = tpu.matmul %44, %46, %cst_28 {dimension_numbers = #tpu.dot_dimension_numbers<[1], [0], [0], [1], [0, 0, 1, 1], [], []>} : vector<143x256xbf16>, vector<256x512xbf16>, vector<143x512xf32> -> vector<143x512xf32>
    %48 = arith.addf %43, %47 : vector<143x512xf32>
    %49 = vector.extract_strided_slice %17 {offsets = [26, 0], sizes = [143, 256], strides = [1, 1]} : vector<171x256xbf16> to vector<143x256xbf16>
    %c6 = arith.constant 6 : index
    %c0_29 = arith.constant 0 : index
    %c0_30 = arith.constant 0 : index
    %50 = vector.load %arg5[%c6, %c0_29, %c0_30] : memref<9x256x512xbf16, #tpu.memory_space<vmem>>, vector<1x256x512xbf16>
    %51 = vector.shape_cast %50 : vector<1x256x512xbf16> to vector<256x512xbf16>
    %cst_31 = arith.constant dense<0.000000e+00> : vector<143x512xf32>
    %52 = tpu.matmul %49, %51, %cst_31 {dimension_numbers = #tpu.dot_dimension_numbers<[1], [0], [0], [1], [0, 0, 1, 1], [], []>} : vector<143x256xbf16>, vector<256x512xbf16>, vector<143x512xf32> -> vector<143x512xf32>
    %53 = arith.addf %48, %52 : vector<143x512xf32>
    %54 = vector.extract_strided_slice %17 {offsets = [27, 0], sizes = [143, 256], strides = [1, 1]} : vector<171x256xbf16> to vector<143x256xbf16>
    %c7 = arith.constant 7 : index
    %c0_32 = arith.constant 0 : index
    %c0_33 = arith.constant 0 : index
    %55 = vector.load %arg5[%c7, %c0_32, %c0_33] : memref<9x256x512xbf16, #tpu.memory_space<vmem>>, vector<1x256x512xbf16>
    %56 = vector.shape_cast %55 : vector<1x256x512xbf16> to vector<256x512xbf16>
    %cst_34 = arith.constant dense<0.000000e+00> : vector<143x512xf32>
    %57 = tpu.matmul %54, %56, %cst_34 {dimension_numbers = #tpu.dot_dimension_numbers<[1], [0], [0], [1], [0, 0, 1, 1], [], []>} : vector<143x256xbf16>, vector<256x512xbf16>, vector<143x512xf32> -> vector<143x512xf32>
    %58 = arith.addf %53, %57 : vector<143x512xf32>
    %59 = vector.extract_strided_slice %17 {offsets = [28, 0], sizes = [143, 256], strides = [1, 1]} : vector<171x256xbf16> to vector<143x256xbf16>
    %c8 = arith.constant 8 : index
    %c0_35 = arith.constant 0 : index
    %c0_36 = arith.constant 0 : index
    %60 = vector.load %arg5[%c8, %c0_35, %c0_36] : memref<9x256x512xbf16, #tpu.memory_space<vmem>>, vector<1x256x512xbf16>
    %61 = vector.shape_cast %60 : vector<1x256x512xbf16> to vector<256x512xbf16>
    %cst_37 = arith.constant dense<0.000000e+00> : vector<143x512xf32>
    %62 = tpu.matmul %59, %61, %cst_37 {dimension_numbers = #tpu.dot_dimension_numbers<[1], [0], [0], [1], [0, 0, 1, 1], [], []>} : vector<143x256xbf16>, vector<256x512xbf16>, vector<143x512xf32> -> vector<143x512xf32>
    %63 = arith.addf %58, %62 : vector<143x512xf32>
    %c0_38 = arith.constant 0 : index
    %c0_39 = arith.constant 0 : index
    %64 = vector.load %arg6[%c0_38, %c0_39] : memref<1x512xf32, #tpu.memory_space<vmem>>, vector<1x512xf32>
    %65 = vector.broadcast %64 : vector<1x512xf32> to vector<143x512xf32>
    %66 = arith.addf %63, %65 : vector<143x512xf32>
    %cst_40 = arith.constant 0.000000e+00 : f32
    %67 = vector.broadcast %cst_40 : f32 to vector<143x512xf32>
    %68 = arith.maximumf %66, %67 : vector<143x512xf32>
    %69 = vector.extract_strided_slice %68 {offsets = [0, 0], sizes = [142, 512], strides = [1, 1]} : vector<143x512xf32> to vector<142x512xf32>
    %70 = vector.extract_strided_slice %68 {offsets = [1, 0], sizes = [142, 512], strides = [1, 1]} : vector<143x512xf32> to vector<142x512xf32>
    %71 = arith.maximumf %69, %70 : vector<142x512xf32>
    %72 = vector.extract_strided_slice %71 {offsets = [0, 0], sizes = [129, 512], strides = [1, 1]} : vector<142x512xf32> to vector<129x512xf32>
    %73 = vector.extract_strided_slice %71 {offsets = [13, 0], sizes = [129, 512], strides = [1, 1]} : vector<142x512xf32> to vector<129x512xf32>
    %74 = arith.maximumf %72, %73 : vector<129x512xf32>
    %c0_41 = arith.constant 0 : index
    %c0_42 = arith.constant 0 : index
    %75 = vector.load %arg7[%c0_41, %c0_42] : memref<32x129xf32, #tpu.memory_space<vmem>>, vector<32x129xf32>
    %cst_43 = arith.constant dense<0.000000e+00> : vector<32x512xf32>
    %76 = tpu.matmul %75, %74, %cst_43 {dimension_numbers = #tpu.dot_dimension_numbers<[1], [0], [0], [1], [0, 0, 1, 1], [], []>} : vector<32x129xf32>, vector<129x512xf32>, vector<32x512xf32> -> vector<32x512xf32>
    %c0_44 = arith.constant 0 : index
    %c0_45 = arith.constant 0 : index
    %77 = vector.load %arg8[%c0_44, %c0_45] : memref<32x512xf32, #tpu.memory_space<vmem>>, vector<32x512xf32>
    tpu.vector_store %arg8[%c0_44, %c0_45], %76 {strides = array<i32>} : memref<32x512xf32, #tpu.memory_space<vmem>>, vector<32x512xf32>,
    return
  }
  func.func @transform_0(%arg0: i32) -> (i32, i32) {
    %c0_i32 = arith.constant 0 : i32
    %c0_i32_0 = arith.constant 0 : i32
    return %arg0, %c0_i32 : i32, i32
  }
  func.func @transform_1(%arg0: i32) -> (i32, i32) {
    %c0_i32 = arith.constant 0 : i32
    %c0_i32_0 = arith.constant 0 : i32
    %c0_i32_1 = arith.constant 0 : i32
    return %c0_i32, %c0_i32_0 : i32, i32
  }
  func.func @transform_2(%arg0: i32) -> (i32, i32) {
    %c0_i32 = arith.constant 0 : i32
    %c0_i32_0 = arith.constant 0 : i32
    %c0_i32_1 = arith.constant 0 : i32
    return %c0_i32, %c0_i32_0 : i32, i32
  }
  func.func @transform_3(%arg0: i32) -> (i32, i32) {
    %c0_i32 = arith.constant 0 : i32
    %c0_i32_0 = arith.constant 0 : i32
    %c0_i32_1 = arith.constant 0 : i32
    return %c0_i32, %c0_i32_0 : i32, i32
  }
  func.func @transform_4(%arg0: i32) -> (i32, i32, i32) {
    %c0_i32 = arith.constant 0 : i32
    %c0_i32_0 = arith.constant 0 : i32
    %c0_i32_1 = arith.constant 0 : i32
    %c0_i32_2 = arith.constant 0 : i32
    return %c0_i32, %c0_i32_0, %c0_i32_1 : i32, i32, i32
  }
  func.func @transform_5(%arg0: i32) -> (i32, i32) {
    %c0_i32 = arith.constant 0 : i32
    %c0_i32_0 = arith.constant 0 : i32
    %c0_i32_1 = arith.constant 0 : i32
    return %c0_i32, %c0_i32_0 : i32, i32
  }
  func.func @transform_6(%arg0: i32) -> (i32, i32) {
    %c0_i32 = arith.constant 0 : i32
    %c0_i32_0 = arith.constant 0 : i32
    %c0_i32_1 = arith.constant 0 : i32
    return %c0_i32, %c0_i32_0 : i32, i32
  }
  func.func @transform_7(%arg0: i32) -> (i32, i32) {
    %c0_i32 = arith.constant 0 : i32
    %c0_i32_0 = arith.constant 0 : i32
    return %arg0, %c0_i32 : i32, i32
  }
}

module attributes {stable_mosaic.version = 11 : i64} {
  func.func @_fc_kernel(%arg0: i32, %arg1: memref<16x2048xf32, #tpu.memory_space<vmem>>, %arg2: memref<2048x128xbf16, #tpu.memory_space<vmem>>, %arg3: memref<1x128xf32, #tpu.memory_space<vmem>>, %arg4: memref<128x10xf32, #tpu.memory_space<vmem>>, %arg5: memref<1x10xf32, #tpu.memory_space<vmem>>, %arg6: memref<16x10xf32, #tpu.memory_space<vmem>>) attributes {dimension_semantics = [#tpu.dimension_semantics<parallel>], iteration_bounds = array<i64: 1>, scalar_prefetch = 0 : i64, scratch_operands = 0 : i64, tpu.core_type = #tpu.core_type<tc>, window_params = [{transform_indices = @transform_0, window_bounds = array<i64: 16, 2048>}, {pipeline_mode = #tpu.pipeline_mode<synchronous>, transform_indices = @transform_1, window_bounds = array<i64: 2048, 128>}, {pipeline_mode = #tpu.pipeline_mode<synchronous>, transform_indices = @transform_2, window_bounds = array<i64: 1, 128>}, {pipeline_mode = #tpu.pipeline_mode<synchronous>, transform_indices = @transform_3, window_bounds = array<i64: 128, 10>}, {pipeline_mode = #tpu.pipeline_mode<synchronous>, transform_indices = @transform_4, window_bounds = array<i64: 1, 10>}, {transform_indices = @transform_5, window_bounds = array<i64: 16, 10>}]} {
    %c0 = arith.constant 0 : index
    %c0_0 = arith.constant 0 : index
    %0 = vector.load %arg1[%c0, %c0_0] : memref<16x2048xf32, #tpu.memory_space<vmem>>, vector<16x2048xf32>
    %1 = arith.truncf %0 : vector<16x2048xf32> to vector<16x2048xbf16>
    %c0_1 = arith.constant 0 : index
    %c0_2 = arith.constant 0 : index
    %2 = vector.load %arg2[%c0_1, %c0_2] : memref<2048x128xbf16, #tpu.memory_space<vmem>>, vector<2048x128xbf16>
    %cst = arith.constant dense<0.000000e+00> : vector<16x128xf32>
    %3 = tpu.matmul %1, %2, %cst {dimension_numbers = #tpu.dot_dimension_numbers<[1], [0], [0], [1], [0, 0, 1, 1], [], []>} : vector<16x2048xbf16>, vector<2048x128xbf16>, vector<16x128xf32> -> vector<16x128xf32>
    %c0_3 = arith.constant 0 : index
    %c0_4 = arith.constant 0 : index
    %4 = vector.load %arg3[%c0_3, %c0_4] : memref<1x128xf32, #tpu.memory_space<vmem>>, vector<1x128xf32>
    %5 = vector.broadcast %4 : vector<1x128xf32> to vector<16x128xf32>
    %6 = arith.addf %3, %5 : vector<16x128xf32>
    %cst_5 = arith.constant 0.000000e+00 : f32
    %7 = vector.broadcast %cst_5 : f32 to vector<16x128xf32>
    %8 = arith.maximumf %6, %7 : vector<16x128xf32>
    %c0_6 = arith.constant 0 : index
    %c0_7 = arith.constant 0 : index
    %9 = vector.load %arg4[%c0_6, %c0_7] : memref<128x10xf32, #tpu.memory_space<vmem>>, vector<128x10xf32>
    %cst_8 = arith.constant dense<0.000000e+00> : vector<16x10xf32>
    %10 = tpu.matmul %8, %9, %cst_8 {dimension_numbers = #tpu.dot_dimension_numbers<[1], [0], [0], [1], [0, 0, 1, 1], [], []>} : vector<16x128xf32>, vector<128x10xf32>, vector<16x10xf32> -> vector<16x10xf32>
    %c0_9 = arith.constant 0 : index
    %c0_10 = arith.constant 0 : index
    %11 = vector.load %arg5[%c0_9, %c0_10] : memref<1x10xf32, #tpu.memory_space<vmem>>, vector<1x10xf32>
    %12 = vector.broadcast %11 : vector<1x10xf32> to vector<16x10xf32>
    %13 = arith.addf %10, %12 : vector<16x10xf32>
    %c0_11 = arith.constant 0 : index
    %c0_12 = arith.constant 0 : index
    %14 = vector.load %arg6[%c0_11, %c0_12] : memref<16x10xf32, #tpu.memory_space<vmem>>, vector<16x10xf32>
    tpu.vector_store %arg6[%c0_11, %c0_12], %13 {strides = array<i32>} : memref<16x10xf32, #tpu.memory_space<vmem>>, vector<16x10xf32>,
    return
  }
  func.func @transform_0(%arg0: i32) -> (i32, i32) {
    %c0_i32 = arith.constant 0 : i32
    %c0_i32_0 = arith.constant 0 : i32
    return %arg0, %c0_i32 : i32, i32
  }
  func.func @transform_1(%arg0: i32) -> (i32, i32) {
    %c0_i32 = arith.constant 0 : i32
    %c0_i32_0 = arith.constant 0 : i32
    %c0_i32_1 = arith.constant 0 : i32
    return %c0_i32, %c0_i32_0 : i32, i32
  }
  func.func @transform_2(%arg0: i32) -> (i32, i32) {
    %c0_i32 = arith.constant 0 : i32
    %c0_i32_0 = arith.constant 0 : i32
    %c0_i32_1 = arith.constant 0 : i32
    return %c0_i32, %c0_i32_0 : i32, i32
  }
  func.func @transform_3(%arg0: i32) -> (i32, i32) {
    %c0_i32 = arith.constant 0 : i32
    %c0_i32_0 = arith.constant 0 : i32
    %c0_i32_1 = arith.constant 0 : i32
    return %c0_i32, %c0_i32_0 : i32, i32
  }
  func.func @transform_4(%arg0: i32) -> (i32, i32) {
    %c0_i32 = arith.constant 0 : i32
    %c0_i32_0 = arith.constant 0 : i32
    %c0_i32_1 = arith.constant 0 : i32
    return %c0_i32, %c0_i32_0 : i32, i32
  }
  func.func @transform_5(%arg0: i32) -> (i32, i32) {
    %c0_i32 = arith.constant 0 : i32
    %c0_i32_0 = arith.constant 0 : i32
    return %arg0, %c0_i32 : i32, i32
  }
}

</mosaic_0001>

<llo_original>
// kernel: neural_network_forward.3
$region0: #{neural_network_forward.3}
  #allocation0 [shape = 'u32[]', space=smem, size = 0x4, offset = 0x4, fixed_abs, tag = 'smem constant byte address 0x4 - core index']
  #allocation1 [shape = 'u32[144,128]{1,0:T(1,128)}', space=vmem, size = 0x12000, scoped, tag = 'internal scratch']
  %s0 = inlined_call_operand.vmem [shape: f32[16,2048], index: 0, kind: input, shape index: {}]
  %s1 = inlined_call_operand.vmem [shape: bf16[2048,128], index: 1, kind: input, shape index: {}]
  %s2 = inlined_call_operand.vmem [shape: f32[1,128], index: 2, kind: input, shape index: {}]
  %s3 = inlined_call_operand.vmem [shape: f32[128,10], index: 3, kind: input, shape index: {}]
  %s4 = inlined_call_operand.vmem [shape: f32[1,10], index: 4, kind: input, shape index: {}]
  %s5 = inlined_call_operand.vmem [shape: f32[16,10], index: 5, kind: output, shape index: {}]
  %s6 = sld [smem:[#allocation0]]
  $region30: #{neural_network_forward.3} parent=0
    _
  %s8 = ssub.s32 1, %s6
  %s9 = scalar_select 0, %s8, %s6
  // Predicated region
  $region2: #{neural_network_forward.3} parent=0 // pred_check
    _
  $region3: #{neural_network_forward.3} parent=0 // pred_check_branch
    %11 = sbr.rel (0) target = $region5
  $region4: #{neural_network_forward.3} parent=0 // pred_region
    _
  $region5: #{neural_network_forward.3} parent=0 // pred_fallthru
    _
  // Predicated region
  $region6: #{neural_network_forward.3} parent=0 // pred_check
    _
  $region7: #{neural_network_forward.3} parent=0 // pred_check_branch
    %13 = sbr.rel (0) target = $region9
  $region8: #{neural_network_forward.3} parent=0 // pred_region
    _
  $region9: #{neural_network_forward.3} parent=0 // pred_fallthru
    _
  // Predicated region
  $region10: #{neural_network_forward.3} parent=0 // pred_check
    _
  $region11: #{neural_network_forward.3} parent=0 // pred_check_branch
    %15 = sbr.rel (0) target = $region13
  $region12: #{neural_network_forward.3} parent=0 // pred_region
    _
  $region13: #{neural_network_forward.3} parent=0 // pred_fallthru
    _
  // Predicated region
  $region14: #{neural_network_forward.3} parent=0 // pred_check
    _
  $region15: #{neural_network_forward.3} parent=0 // pred_check_branch
    %17 = sbr.rel (0) target = $region17
  $region16: #{neural_network_forward.3} parent=0 // pred_region
    _
  $region17: #{neural_network_forward.3} parent=0 // pred_fallthru
    _
  // Predicated region
  $region18: #{neural_network_forward.3} parent=0 // pred_check
    _
  $region19: #{neural_network_forward.3} parent=0 // pred_check_branch
    %19 = sbr.rel (0) target = $region21
  $region20: #{neural_network_forward.3} parent=0 // pred_region
    _
  $region21: #{neural_network_forward.3} parent=0 // pred_fallthru
    _
  %v21 = vld [vmem:[%s0] sm:$0xff]
  %v22 = vld [vmem:[%s0 + $0x8] sm:$0xff]
  %v23 = vld [vmem:[%s0 + $0x10] sm:$0xff]
  %v24 = vld [vmem:[%s0 + $0x18] sm:$0xff]
  %v25 = vld [vmem:[%s0 + $0x20] sm:$0xff]
  %v26 = vld [vmem:[%s0 + $0x28] sm:$0xff]
  %v27 = vld [vmem:[%s0 + $0x30] sm:$0xff]
  %v28 = vld [vmem:[%s0 + $0x38] sm:$0xff]
  %v29 = vld [vmem:[%s0 + $0x40] sm:$0xff]
  %v30 = vld [vmem:[%s0 + $0x48] sm:$0xff]
  %v31 = vld [vmem:[%s0 + $0x50] sm:$0xff]
  %v32 = vld [vmem:[%s0 + $0x58] sm:$0xff]
  %v33 = vld [vmem:[%s0 + $0x60] sm:$0xff]
  %v34 = vld [vmem:[%s0 + $0x68] sm:$0xff]
  %v35 = vld [vmem:[%s0 + $0x70] sm:$0xff]
  %v36 = vld [vmem:[%s0 + $0x78] sm:$0xff]
  %v37 = vld [vmem:[%s0 + $0x80] sm:$0xff]
  %v38 = vld [vmem:[%s0 + $0x88] sm:$0xff]
  %v39 = vld [vmem:[%s0 + $0x90] sm:$0xff]
  %v40 = vld [vmem:[%s0 + $0x98] sm:$0xff]
  %v41 = vld [vmem:[%s0 + $0xa0] sm:$0xff]
  %v42 = vld [vmem:[%s0 + $0xa8] sm:$0xff]
  %v43 = vld [vmem:[%s0 + $0xb0] sm:$0xff]
  %v44 = vld [vmem:[%s0 + $0xb8] sm:$0xff]
  %v45 = vld [vmem:[%s0 + $0xc0] sm:$0xff]
  %v46 = vld [vmem:[%s0 + $0xc8] sm:$0xff]
  %v47 = vld [vmem:[%s0 + $0xd0] sm:$0xff]
  %v48 = vld [vmem:[%s0 + $0xd8] sm:$0xff]
  %v49 = vld [vmem:[%s0 + $0xe0] sm:$0xff]
  %v50 = vld [vmem:[%s0 + $0xe8] sm:$0xff]
  %v51 = vld [vmem:[%s0 + $0xf0] sm:$0xff]
  %v52 = vld [vmem:[%s0 + $0xf8] sm:$0xff]
  %v53 = vpack.c.bf16 %v37, %v21
  %v54 = vpack.c.bf16 %v38, %v22
  %v55 = vpack.c.bf16 %v39, %v23
  %v56 = vpack.c.bf16 %v40, %v24
  %v57 = vpack.c.bf16 %v41, %v25
  %v58 = vpack.c.bf16 %v42, %v26
  %v59 = vpack.c.bf16 %v43, %v27
  %v60 = vpack.c.bf16 %v44, %v28
  %v61 = vpack.c.bf16 %v45, %v29
  %v62 = vpack.c.bf16 %v46, %v30
  %v63 = vpack.c.bf16 %v47, %v31
  %v64 = vpack.c.bf16 %v48, %v32
  %v65 = vpack.c.bf16 %v49, %v33
  %v66 = vpack.c.bf16 %v50, %v34
  %v67 = vpack.c.bf16 %v51, %v35
  %v68 = vpack.c.bf16 %v52, %v36
  %v69 = vld [vmem:[%s1] sm:$0xf]
  %v70 = vld [vmem:[%s1 + $0x4] sm:$0xf]
  %v71 = vld [vmem:[%s1 + $0x8] sm:$0xf]
  %v72 = vld [vmem:[%s1 + $0xc] sm:$0xf]
  %v73 = vld [vmem:[%s1 + $0x10] sm:$0xf]
  %v74 = vld [vmem:[%s1 + $0x14] sm:$0xf]
  %v75 = vld [vmem:[%s1 + $0x18] sm:$0xf]
  %v76 = vld [vmem:[%s1 + $0x1c] sm:$0xf]
  %v77 = vld [vmem:[%s1 + $0x20] sm:$0xf]
  %v78 = vld [vmem:[%s1 + $0x24] sm:$0xf]
  %v79 = vld [vmem:[%s1 + $0x28] sm:$0xf]
  %v80 = vld [vmem:[%s1 + $0x2c] sm:$0xf]
  %v81 = vld [vmem:[%s1 + $0x30] sm:$0xf]
  %v82 = vld [vmem:[%s1 + $0x34] sm:$0xf]
  %v83 = vld [vmem:[%s1 + $0x38] sm:$0xf]
  %v84 = vld [vmem:[%s1 + $0x3c] sm:$0xf]
  %v85 = vld [vmem:[%s1 + $0x40] sm:$0xf]
  %v86 = vld [vmem:[%s1 + $0x44] sm:$0xf]
  %v87 = vld [vmem:[%s1 + $0x48] sm:$0xf]
  %v88 = vld [vmem:[%s1 + $0x4c] sm:$0xf]
  %v89 = vld [vmem:[%s1 + $0x50] sm:$0xf]
  %v90 = vld [vmem:[%s1 + $0x54] sm:$0xf]
  %v91 = vld [vmem:[%s1 + $0x58] sm:$0xf]
  %v92 = vld [vmem:[%s1 + $0x5c] sm:$0xf]
  %v93 = vld [vmem:[%s1 + $0x60] sm:$0xf]
  %v94 = vld [vmem:[%s1 + $0x64] sm:$0xf]
  %v95 = vld [vmem:[%s1 + $0x68] sm:$0xf]
  %v96 = vld [vmem:[%s1 + $0x6c] sm:$0xf]
  %v97 = vld [vmem:[%s1 + $0x70] sm:$0xf]
  %v98 = vld [vmem:[%s1 + $0x74] sm:$0xf]
  %v99 = vld [vmem:[%s1 + $0x78] sm:$0xf]
  %v100 = vld [vmem:[%s1 + $0x7c] sm:$0xf]
  %v101 = vld [vmem:[%s1 + $0x80] sm:$0xf]
  %v102 = vld [vmem:[%s1 + $0x84] sm:$0xf]
  %v103 = vld [vmem:[%s1 + $0x88] sm:$0xf]
  %v104 = vld [vmem:[%s1 + $0x8c] sm:$0xf]
  %v105 = vld [vmem:[%s1 + $0x90] sm:$0xf]
  %v106 = vld [vmem:[%s1 + $0x94] sm:$0xf]
  %v107 = vld [vmem:[%s1 + $0x98] sm:$0xf]
  %v108 = vld [vmem:[%s1 + $0x9c] sm:$0xf]
  %v109 = vld [vmem:[%s1 + $0xa0] sm:$0xf]
  %v110 = vld [vmem:[%s1 + $0xa4] sm:$0xf]
  %v111 = vld [vmem:[%s1 + $0xa8] sm:$0xf]
  %v112 = vld [vmem:[%s1 + $0xac] sm:$0xf]
  %v113 = vld [vmem:[%s1 + $0xb0] sm:$0xf]
  %v114 = vld [vmem:[%s1 + $0xb4] sm:$0xf]
  %v115 = vld [vmem:[%s1 + $0xb8] sm:$0xf]
  %v116 = vld [vmem:[%s1 + $0xbc] sm:$0xf]
  %v117 = vld [vmem:[%s1 + $0xc0] sm:$0xf]
  %v118 = vld [vmem:[%s1 + $0xc4] sm:$0xf]
  %v119 = vld [vmem:[%s1 + $0xc8] sm:$0xf]
  %v120 = vld [vmem:[%s1 + $0xcc] sm:$0xf]
  %v121 = vld [vmem:[%s1 + $0xd0] sm:$0xf]
  %v122 = vld [vmem:[%s1 + $0xd4] sm:$0xf]
  %v123 = vld [vmem:[%s1 + $0xd8] sm:$0xf]
  %v124 = vld [vmem:[%s1 + $0xdc] sm:$0xf]
  %v125 = vld [vmem:[%s1 + $0xe0] sm:$0xf]
  %v126 = vld [vmem:[%s1 + $0xe4] sm:$0xf]
  %v127 = vld [vmem:[%s1 + $0xe8] sm:$0xf]
  %v128 = vld [vmem:[%s1 + $0xec] sm:$0xf]
  %v129 = vld [vmem:[%s1 + $0xf0] sm:$0xf]
  %v130 = vld [vmem:[%s1 + $0xf4] sm:$0xf]
  %v131 = vld [vmem:[%s1 + $0xf8] sm:$0xf]
  %v132 = vld [vmem:[%s1 + $0xfc] sm:$0xf]
  %v133 = vld [vmem:[%s1 + $0x100] sm:$0xf]
  %v134 = vld [vmem:[%s1 + $0x104] sm:$0xf]
  %v135 = vld [vmem:[%s1 + $0x108] sm:$0xf]
  %v136 = vld [vmem:[%s1 + $0x10c] sm:$0xf]
  %v137 = vld [vmem:[%s1 + $0x110] sm:$0xf]
  %v138 = vld [vmem:[%s1 + $0x114] sm:$0xf]
  %v139 = vld [vmem:[%s1 + $0x118] sm:$0xf]
  %v140 = vld [vmem:[%s1 + $0x11c] sm:$0xf]
  %v141 = vld [vmem:[%s1 + $0x120] sm:$0xf]
  %v142 = vld [vmem:[%s1 + $0x124] sm:$0xf]
  %v143 = vld [vmem:[%s1 + $0x128] sm:$0xf]
  %v144 = vld [vmem:[%s1 + $0x12c] sm:$0xf]
  %v145 = vld [vmem:[%s1 + $0x130] sm:$0xf]
  %v146 = vld [vmem:[%s1 + $0x134] sm:$0xf]
  %v147 = vld [vmem:[%s1 + $0x138] sm:$0xf]
  %v148 = vld [vmem:[%s1 + $0x13c] sm:$0xf]
  %v149 = vld [vmem:[%s1 + $0x140] sm:$0xf]
  %v150 = vld [vmem:[%s1 + $0x144] sm:$0xf]
  %v151 = vld [vmem:[%s1 + $0x148] sm:$0xf]
  %v152 = vld [vmem:[%s1 + $0x14c] sm:$0xf]
  %v153 = vld [vmem:[%s1 + $0x150] sm:$0xf]
  %v154 = vld [vmem:[%s1 + $0x154] sm:$0xf]
  %v155 = vld [vmem:[%s1 + $0x158] sm:$0xf]
  %v156 = vld [vmem:[%s1 + $0x15c] sm:$0xf]
  %v157 = vld [vmem:[%s1 + $0x160] sm:$0xf]
  %v158 = vld [vmem:[%s1 + $0x164] sm:$0xf]
  %v159 = vld [vmem:[%s1 + $0x168] sm:$0xf]
  %v160 = vld [vmem:[%s1 + $0x16c] sm:$0xf]
  %v161 = vld [vmem:[%s1 + $0x170] sm:$0xf]
  %v162 = vld [vmem:[%s1 + $0x174] sm:$0xf]
  %v163 = vld [vmem:[%s1 + $0x178] sm:$0xf]
  %v164 = vld [vmem:[%s1 + $0x17c] sm:$0xf]
  %v165 = vld [vmem:[%s1 + $0x180] sm:$0xf]
  %v166 = vld [vmem:[%s1 + $0x184] sm:$0xf]
  %v167 = vld [vmem:[%s1 + $0x188] sm:$0xf]
  %v168 = vld [vmem:[%s1 + $0x18c] sm:$0xf]
  %v169 = vld [vmem:[%s1 + $0x190] sm:$0xf]
  %v170 = vld [vmem:[%s1 + $0x194] sm:$0xf]
  %v171 = vld [vmem:[%s1 + $0x198] sm:$0xf]
  %v172 = vld [vmem:[%s1 + $0x19c] sm:$0xf]
  %v173 = vld [vmem:[%s1 + $0x1a0] sm:$0xf]
  %v174 = vld [vmem:[%s1 + $0x1a4] sm:$0xf]
  %v175 = vld [vmem:[%s1 + $0x1a8] sm:$0xf]
  %v176 = vld [vmem:[%s1 + $0x1ac] sm:$0xf]
  %v177 = vld [vmem:[%s1 + $0x1b0] sm:$0xf]
  %v178 = vld [vmem:[%s1 + $0x1b4] sm:$0xf]
  %v179 = vld [vmem:[%s1 + $0x1b8] sm:$0xf]
  %v180 = vld [vmem:[%s1 + $0x1bc] sm:$0xf]
  %v181 = vld [vmem:[%s1 + $0x1c0] sm:$0xf]
  %v182 = vld [vmem:[%s1 + $0x1c4] sm:$0xf]
  %v183 = vld [vmem:[%s1 + $0x1c8] sm:$0xf]
  %v184 = vld [vmem:[%s1 + $0x1cc] sm:$0xf]
  %v185 = vld [vmem:[%s1 + $0x1d0] sm:$0xf]
  %v186 = vld [vmem:[%s1 + $0x1d4] sm:$0xf]
  %v187 = vld [vmem:[%s1 + $0x1d8] sm:$0xf]
  %v188 = vld [vmem:[%s1 + $0x1dc] sm:$0xf]
  %v189 = vld [vmem:[%s1 + $0x1e0] sm:$0xf]
  %v190 = vld [vmem:[%s1 + $0x1e4] sm:$0xf]
  %v191 = vld [vmem:[%s1 + $0x1e8] sm:$0xf]
  %v192 = vld [vmem:[%s1 + $0x1ec] sm:$0xf]
  %v193 = vld [vmem:[%s1 + $0x1f0] sm:$0xf]
  %v194 = vld [vmem:[%s1 + $0x1f4] sm:$0xf]
  %v195 = vld [vmem:[%s1 + $0x1f8] sm:$0xf]
  %v196 = vld [vmem:[%s1 + $0x1fc] sm:$0xf]
  %v197 = vld [vmem:[%s1 + $0x200] sm:$0xf]
  %v198 = vld [vmem:[%s1 + $0x204] sm:$0xf]
  %v199 = vld [vmem:[%s1 + $0x208] sm:$0xf]
  %v200 = vld [vmem:[%s1 + $0x20c] sm:$0xf]
  %v201 = vld [vmem:[%s1 + $0x210] sm:$0xf]
  %v202 = vld [vmem:[%s1 + $0x214] sm:$0xf]
  %v203 = vld [vmem:[%s1 + $0x218] sm:$0xf]
  %v204 = vld [vmem:[%s1 + $0x21c] sm:$0xf]
  %v205 = vld [vmem:[%s1 + $0x220] sm:$0xf]
  %v206 = vld [vmem:[%s1 + $0x224] sm:$0xf]
  %v207 = vld [vmem:[%s1 + $0x228] sm:$0xf]
  %v208 = vld [vmem:[%s1 + $0x22c] sm:$0xf]
  %v209 = vld [vmem:[%s1 + $0x230] sm:$0xf]
  %v210 = vld [vmem:[%s1 + $0x234] sm:$0xf]
  %v211 = vld [vmem:[%s1 + $0x238] sm:$0xf]
  %v212 = vld [vmem:[%s1 + $0x23c] sm:$0xf]
  %v213 = vld [vmem:[%s1 + $0x240] sm:$0xf]
  %v214 = vld [vmem:[%s1 + $0x244] sm:$0xf]
  %v215 = vld [vmem:[%s1 + $0x248] sm:$0xf]
  %v216 = vld [vmem:[%s1 + $0x24c] sm:$0xf]
  %v217 = vld [vmem:[%s1 + $0x250] sm:$0xf]
  %v218 = vld [vmem:[%s1 + $0x254] sm:$0xf]
  %v219 = vld [vmem:[%s1 + $0x258] sm:$0xf]
  %v220 = vld [vmem:[%s1 + $0x25c] sm:$0xf]
  %v221 = vld [vmem:[%s1 + $0x260] sm:$0xf]
  %v222 = vld [vmem:[%s1 + $0x264] sm:$0xf]
  %v223 = vld [vmem:[%s1 + $0x268] sm:$0xf]
  %v224 = vld [vmem:[%s1 + $0x26c] sm:$0xf]
  %v225 = vld [vmem:[%s1 + $0x270] sm:$0xf]
  %v226 = vld [vmem:[%s1 + $0x274] sm:$0xf]
  %v227 = vld [vmem:[%s1 + $0x278] sm:$0xf]
  %v228 = vld [vmem:[%s1 + $0x27c] sm:$0xf]
  %v229 = vld [vmem:[%s1 + $0x280] sm:$0xf]
  %v230 = vld [vmem:[%s1 + $0x284] sm:$0xf]
  %v231 = vld [vmem:[%s1 + $0x288] sm:$0xf]
  %v232 = vld [vmem:[%s1 + $0x28c] sm:$0xf]
  %v233 = vld [vmem:[%s1 + $0x290] sm:$0xf]
  %v234 = vld [vmem:[%s1 + $0x294] sm:$0xf]
  %v235 = vld [vmem:[%s1 + $0x298] sm:$0xf]
  %v236 = vld [vmem:[%s1 + $0x29c] sm:$0xf]
  %v237 = vld [vmem:[%s1 + $0x2a0] sm:$0xf]
  %v238 = vld [vmem:[%s1 + $0x2a4] sm:$0xf]
  %v239 = vld [vmem:[%s1 + $0x2a8] sm:$0xf]
  %v240 = vld [vmem:[%s1 + $0x2ac] sm:$0xf]
  %v241 = vld [vmem:[%s1 + $0x2b0] sm:$0xf]
  %v242 = vld [vmem:[%s1 + $0x2b4] sm:$0xf]
  %v243 = vld [vmem:[%s1 + $0x2b8] sm:$0xf]
  %v244 = vld [vmem:[%s1 + $0x2bc] sm:$0xf]
  %v245 = vld [vmem:[%s1 + $0x2c0] sm:$0xf]
  %v246 = vld [vmem:[%s1 + $0x2c4] sm:$0xf]
  %v247 = vld [vmem:[%s1 + $0x2c8] sm:$0xf]
  %v248 = vld [vmem:[%s1 + $0x2cc] sm:$0xf]
  %v249 = vld [vmem:[%s1 + $0x2d0] sm:$0xf]
  %v250 = vld [vmem:[%s1 + $0x2d4] sm:$0xf]
  %v251 = vld [vmem:[%s1 + $0x2d8] sm:$0xf]
  %v252 = vld [vmem:[%s1 + $0x2dc] sm:$0xf]
  %v253 = vld [vmem:[%s1 + $0x2e0] sm:$0xf]
  %v254 = vld [vmem:[%s1 + $0x2e4] sm:$0xf]
  %v255 = vld [vmem:[%s1 + $0x2e8] sm:$0xf]
  %v256 = vld [vmem:[%s1 + $0x2ec] sm:$0xf]
  %v257 = vld [vmem:[%s1 + $0x2f0] sm:$0xf]
  %v258 = vld [vmem:[%s1 + $0x2f4] sm:$0xf]
  %v259 = vld [vmem:[%s1 + $0x2f8] sm:$0xf]
  %v260 = vld [vmem:[%s1 + $0x2fc] sm:$0xf]
  %v261 = vld [vmem:[%s1 + $0x300] sm:$0xf]
  %v262 = vld [vmem:[%s1 + $0x304] sm:$0xf]
  %v263 = vld [vmem:[%s1 + $0x308] sm:$0xf]
  %v264 = vld [vmem:[%s1 + $0x30c] sm:$0xf]
  %v265 = vld [vmem:[%s1 + $0x310] sm:$0xf]
  %v266 = vld [vmem:[%s1 + $0x314] sm:$0xf]
  %v267 = vld [vmem:[%s1 + $0x318] sm:$0xf]
  %v268 = vld [vmem:[%s1 + $0x31c] sm:$0xf]
  %v269 = vld [vmem:[%s1 + $0x320] sm:$0xf]
  %v270 = vld [vmem:[%s1 + $0x324] sm:$0xf]
  %v271 = vld [vmem:[%s1 + $0x328] sm:$0xf]
  %v272 = vld [vmem:[%s1 + $0x32c] sm:$0xf]
  %v273 = vld [vmem:[%s1 + $0x330] sm:$0xf]
  %v274 = vld [vmem:[%s1 + $0x334] sm:$0xf]
  %v275 = vld [vmem:[%s1 + $0x338] sm:$0xf]
  %v276 = vld [vmem:[%s1 + $0x33c] sm:$0xf]
  %v277 = vld [vmem:[%s1 + $0x340] sm:$0xf]
  %v278 = vld [vmem:[%s1 + $0x344] sm:$0xf]
  %v279 = vld [vmem:[%s1 + $0x348] sm:$0xf]
  %v280 = vld [vmem:[%s1 + $0x34c] sm:$0xf]
  %v281 = vld [vmem:[%s1 + $0x350] sm:$0xf]
  %v282 = vld [vmem:[%s1 + $0x354] sm:$0xf]
  %v283 = vld [vmem:[%s1 + $0x358] sm:$0xf]
  %v284 = vld [vmem:[%s1 + $0x35c] sm:$0xf]
  %v285 = vld [vmem:[%s1 + $0x360] sm:$0xf]
  %v286 = vld [vmem:[%s1 + $0x364] sm:$0xf]
  %v287 = vld [vmem:[%s1 + $0x368] sm:$0xf]
  %v288 = vld [vmem:[%s1 + $0x36c] sm:$0xf]
  %v289 = vld [vmem:[%s1 + $0x370] sm:$0xf]
  %v290 = vld [vmem:[%s1 + $0x374] sm:$0xf]
  %v291 = vld [vmem:[%s1 + $0x378] sm:$0xf]
  %v292 = vld [vmem:[%s1 + $0x37c] sm:$0xf]
  %v293 = vld [vmem:[%s1 + $0x380] sm:$0xf]
  %v294 = vld [vmem:[%s1 + $0x384] sm:$0xf]
  %v295 = vld [vmem:[%s1 + $0x388] sm:$0xf]
  %v296 = vld [vmem:[%s1 + $0x38c] sm:$0xf]
  %v297 = vld [vmem:[%s1 + $0x390] sm:$0xf]
  %v298 = vld [vmem:[%s1 + $0x394] sm:$0xf]
  %v299 = vld [vmem:[%s1 + $0x398] sm:$0xf]
  %v300 = vld [vmem:[%s1 + $0x39c] sm:$0xf]
  %v301 = vld [vmem:[%s1 + $0x3a0] sm:$0xf]
  %v302 = vld [vmem:[%s1 + $0x3a4] sm:$0xf]
  %v303 = vld [vmem:[%s1 + $0x3a8] sm:$0xf]
  %v304 = vld [vmem:[%s1 + $0x3ac] sm:$0xf]
  %v305 = vld [vmem:[%s1 + $0x3b0] sm:$0xf]
  %v306 = vld [vmem:[%s1 + $0x3b4] sm:$0xf]
  %v307 = vld [vmem:[%s1 + $0x3b8] sm:$0xf]
  %v308 = vld [vmem:[%s1 + $0x3bc] sm:$0xf]
  %v309 = vld [vmem:[%s1 + $0x3c0] sm:$0xf]
  %v310 = vld [vmem:[%s1 + $0x3c4] sm:$0xf]
  %v311 = vld [vmem:[%s1 + $0x3c8] sm:$0xf]
  %v312 = vld [vmem:[%s1 + $0x3cc] sm:$0xf]
  %v313 = vld [vmem:[%s1 + $0x3d0] sm:$0xf]
  %v314 = vld [vmem:[%s1 + $0x3d4] sm:$0xf]
  %v315 = vld [vmem:[%s1 + $0x3d8] sm:$0xf]
  %v316 = vld [vmem:[%s1 + $0x3dc] sm:$0xf]
  %v317 = vld [vmem:[%s1 + $0x3e0] sm:$0xf]
  %v318 = vld [vmem:[%s1 + $0x3e4] sm:$0xf]
  %v319 = vld [vmem:[%s1 + $0x3e8] sm:$0xf]
  %v320 = vld [vmem:[%s1 + $0x3ec] sm:$0xf]
  %v321 = vld [vmem:[%s1 + $0x3f0] sm:$0xf]
  %v322 = vld [vmem:[%s1 + $0x3f4] sm:$0xf]
  %v323 = vld [vmem:[%s1 + $0x3f8] sm:$0xf]
  %v324 = vld [vmem:[%s1 + $0x3fc] sm:$0xf]
  %v325 = vld [vmem:[%s2] sm:$0x1]
  %v327 = vlaneseq
  %v328 = vshrl.u32 %v327, 7
  %v329 = vsub.s32 0, %v328
  %v330 = vrot.slane %v325, %v329
  %v588 = vunpack.c.l.b16 %v69
  %v589 = vunpack.c.l.b16 %v70
  %v590 = vunpack.c.l.b16 %v71
  %v591 = vunpack.c.l.b16 %v72
  %v592 = vunpack.c.l.b16 %v73
  %v593 = vunpack.c.l.b16 %v74
  %v594 = vunpack.c.l.b16 %v75
  %v595 = vunpack.c.l.b16 %v76
  %v596 = vunpack.c.l.b16 %v77
  %v597 = vunpack.c.l.b16 %v78
  %v598 = vunpack.c.l.b16 %v79
  %v599 = vunpack.c.l.b16 %v80
  %v600 = vunpack.c.l.b16 %v81
  %v601 = vunpack.c.l.b16 %v82
  %v602 = vunpack.c.l.b16 %v83
  %v603 = vunpack.c.l.b16 %v84
  %v604 = vunpack.c.l.b16 %v85
  %v605 = vunpack.c.l.b16 %v86
  %v606 = vunpack.c.l.b16 %v87
  %v607 = vunpack.c.l.b16 %v88
  %v608 = vunpack.c.l.b16 %v89
  %v609 = vunpack.c.l.b16 %v90
  %v610 = vunpack.c.l.b16 %v91
  %v611 = vunpack.c.l.b16 %v92
  %v612 = vunpack.c.l.b16 %v93
  %v613 = vunpack.c.l.b16 %v94
  %v614 = vunpack.c.l.b16 %v95
  %v615 = vunpack.c.l.b16 %v96
  %v616 = vunpack.c.l.b16 %v97
  %v617 = vunpack.c.l.b16 %v98
  %v618 = vunpack.c.l.b16 %v99
  %v619 = vunpack.c.l.b16 %v100
  %v620 = vunpack.c.l.b16 %v101
  %v621 = vunpack.c.l.b16 %v102
  %v622 = vunpack.c.l.b16 %v103
  %v623 = vunpack.c.l.b16 %v104
  %v624 = vunpack.c.l.b16 %v105
  %v625 = vunpack.c.l.b16 %v106
  %v626 = vunpack.c.l.b16 %v107
  %v627 = vunpack.c.l.b16 %v108
  %v628 = vunpack.c.l.b16 %v109
  %v629 = vunpack.c.l.b16 %v110
  %v630 = vunpack.c.l.b16 %v111
  %v631 = vunpack.c.l.b16 %v112
  %v632 = vunpack.c.l.b16 %v113
  %v633 = vunpack.c.l.b16 %v114
  %v634 = vunpack.c.l.b16 %v115
  %v635 = vunpack.c.l.b16 %v116
  %v636 = vunpack.c.l.b16 %v117
  %v637 = vunpack.c.l.b16 %v118
  %v638 = vunpack.c.l.b16 %v119
  %v639 = vunpack.c.l.b16 %v120
  %v640 = vunpack.c.l.b16 %v121
  %v641 = vunpack.c.l.b16 %v122
  %v642 = vunpack.c.l.b16 %v123
  %v643 = vunpack.c.l.b16 %v124
  %v644 = vunpack.c.l.b16 %v125
  %v645 = vunpack.c.l.b16 %v126
  %v646 = vunpack.c.l.b16 %v127
  %v647 = vunpack.c.l.b16 %v128
  %v648 = vunpack.c.l.b16 %v129
  %v649 = vunpack.c.l.b16 %v130
  %v650 = vunpack.c.l.b16 %v131
  %v651 = vunpack.c.l.b16 %v132
  %v652 = vunpack.c.l.b16 %v133
  %v653 = vunpack.c.l.b16 %v134
  %v654 = vunpack.c.l.b16 %v135
  %v655 = vunpack.c.l.b16 %v136
  %v656 = vunpack.c.l.b16 %v137
  %v657 = vunpack.c.l.b16 %v138
  %v658 = vunpack.c.l.b16 %v139
  %v659 = vunpack.c.l.b16 %v140
  %v660 = vunpack.c.l.b16 %v141
  %v661 = vunpack.c.l.b16 %v142
  %v662 = vunpack.c.l.b16 %v143
  %v663 = vunpack.c.l.b16 %v144
  %v664 = vunpack.c.l.b16 %v145
  %v665 = vunpack.c.l.b16 %v146
  %v666 = vunpack.c.l.b16 %v147
  %v667 = vunpack.c.l.b16 %v148
  %v668 = vunpack.c.l.b16 %v149
  %v669 = vunpack.c.l.b16 %v150
  %v670 = vunpack.c.l.b16 %v151
  %v671 = vunpack.c.l.b16 %v152
  %v672 = vunpack.c.l.b16 %v153
  %v673 = vunpack.c.l.b16 %v154
  %v674 = vunpack.c.l.b16 %v155
  %v675 = vunpack.c.l.b16 %v156
  %v676 = vunpack.c.l.b16 %v157
  %v677 = vunpack.c.l.b16 %v158
  %v678 = vunpack.c.l.b16 %v159
  %v679 = vunpack.c.l.b16 %v160
  %v680 = vunpack.c.l.b16 %v161
  %v681 = vunpack.c.l.b16 %v162
  %v682 = vunpack.c.l.b16 %v163
  %v683 = vunpack.c.l.b16 %v164
  %v684 = vunpack.c.l.b16 %v165
  %v685 = vunpack.c.l.b16 %v166
  %v686 = vunpack.c.l.b16 %v167
  %v687 = vunpack.c.l.b16 %v168
  %v688 = vunpack.c.l.b16 %v169
  %v689 = vunpack.c.l.b16 %v170
  %v690 = vunpack.c.l.b16 %v171
  %v691 = vunpack.c.l.b16 %v172
  %v692 = vunpack.c.l.b16 %v173
  %v693 = vunpack.c.l.b16 %v174
  %v694 = vunpack.c.l.b16 %v175
  %v695 = vunpack.c.l.b16 %v176
  %v696 = vunpack.c.l.b16 %v177
  %v697 = vunpack.c.l.b16 %v178
  %v698 = vunpack.c.l.b16 %v179
  %v699 = vunpack.c.l.b16 %v180
  %v700 = vunpack.c.l.b16 %v181
  %v701 = vunpack.c.l.b16 %v182
  %v702 = vunpack.c.l.b16 %v183
  %v703 = vunpack.c.l.b16 %v184
  %v704 = vunpack.c.l.b16 %v185
  %v705 = vunpack.c.l.b16 %v186
  %v706 = vunpack.c.l.b16 %v187
  %v707 = vunpack.c.l.b16 %v188
  %v708 = vunpack.c.l.b16 %v189
  %v709 = vunpack.c.l.b16 %v190
  %v710 = vunpack.c.l.b16 %v191
  %v711 = vunpack.c.l.b16 %v192
  %v712 = vunpack.c.l.b16 %v193
  %v713 = vunpack.c.l.b16 %v194
  %v714 = vunpack.c.l.b16 %v195
  %v715 = vunpack.c.l.b16 %v196
  %v716 = vunpack.c.l.b16 %v197
  %v717 = vunpack.c.l.b16 %v198
  %v718 = vunpack.c.l.b16 %v199
  %v719 = vunpack.c.l.b16 %v200
  %v720 = vunpack.c.l.b16 %v201
  %v721 = vunpack.c.l.b16 %v202
  %v722 = vunpack.c.l.b16 %v203
  %v723 = vunpack.c.l.b16 %v204
  %v724 = vunpack.c.l.b16 %v205
  %v725 = vunpack.c.l.b16 %v206
  %v726 = vunpack.c.l.b16 %v207
  %v727 = vunpack.c.l.b16 %v208
  %v728 = vunpack.c.l.b16 %v209
  %v729 = vunpack.c.l.b16 %v210
  %v730 = vunpack.c.l.b16 %v211
  %v731 = vunpack.c.l.b16 %v212
  %v732 = vunpack.c.l.b16 %v213
  %v733 = vunpack.c.l.b16 %v214
  %v734 = vunpack.c.l.b16 %v215
  %v735 = vunpack.c.l.b16 %v216
  %v736 = vunpack.c.l.b16 %v217
  %v737 = vunpack.c.l.b16 %v218
  %v738 = vunpack.c.l.b16 %v219
  %v739 = vunpack.c.l.b16 %v220
  %v740 = vunpack.c.l.b16 %v221
  %v741 = vunpack.c.l.b16 %v222
  %v742 = vunpack.c.l.b16 %v223
  %v743 = vunpack.c.l.b16 %v224
  %v744 = vunpack.c.l.b16 %v225
  %v745 = vunpack.c.l.b16 %v226
  %v746 = vunpack.c.l.b16 %v227
  %v747 = vunpack.c.l.b16 %v228
  %v748 = vunpack.c.l.b16 %v229
  %v749 = vunpack.c.l.b16 %v230
  %v750 = vunpack.c.l.b16 %v231
  %v751 = vunpack.c.l.b16 %v232
  %v752 = vunpack.c.l.b16 %v233
  %v753 = vunpack.c.l.b16 %v234
  %v754 = vunpack.c.l.b16 %v235
  %v755 = vunpack.c.l.b16 %v236
  %v756 = vunpack.c.l.b16 %v237
  %v757 = vunpack.c.l.b16 %v238
  %v758 = vunpack.c.l.b16 %v239
  %v759 = vunpack.c.l.b16 %v240
  %v760 = vunpack.c.l.b16 %v241
  %v761 = vunpack.c.l.b16 %v242
  %v762 = vunpack.c.l.b16 %v243
  %v763 = vunpack.c.l.b16 %v244
  %v764 = vunpack.c.l.b16 %v245
  %v765 = vunpack.c.l.b16 %v246
  %v766 = vunpack.c.l.b16 %v247
  %v767 = vunpack.c.l.b16 %v248
  %v768 = vunpack.c.l.b16 %v249
  %v769 = vunpack.c.l.b16 %v250
  %v770 = vunpack.c.l.b16 %v251
  %v771 = vunpack.c.l.b16 %v252
  %v772 = vunpack.c.l.b16 %v253
  %v773 = vunpack.c.l.b16 %v254
  %v774 = vunpack.c.l.b16 %v255
  %v775 = vunpack.c.l.b16 %v256
  %v776 = vunpack.c.l.b16 %v257
  %v777 = vunpack.c.l.b16 %v258
  %v778 = vunpack.c.l.b16 %v259
  %v779 = vunpack.c.l.b16 %v260
  %v780 = vunpack.c.l.b16 %v261
  %v781 = vunpack.c.l.b16 %v262
  %v782 = vunpack.c.l.b16 %v263
  %v783 = vunpack.c.l.b16 %v264
  %v784 = vunpack.c.l.b16 %v265
  %v785 = vunpack.c.l.b16 %v266
  %v786 = vunpack.c.l.b16 %v267
  %v787 = vunpack.c.l.b16 %v268
  %v788 = vunpack.c.l.b16 %v269
  %v789 = vunpack.c.l.b16 %v270
  %v790 = vunpack.c.l.b16 %v271
  %v791 = vunpack.c.l.b16 %v272
  %v792 = vunpack.c.l.b16 %v273
  %v793 = vunpack.c.l.b16 %v274
  %v794 = vunpack.c.l.b16 %v275
  %v795 = vunpack.c.l.b16 %v276
  %v796 = vunpack.c.l.b16 %v277
  %v797 = vunpack.c.l.b16 %v278
  %v798 = vunpack.c.l.b16 %v279
  %v799 = vunpack.c.l.b16 %v280
  %v800 = vunpack.c.l.b16 %v281
  %v801 = vunpack.c.l.b16 %v282
  %v802 = vunpack.c.l.b16 %v283
  %v803 = vunpack.c.l.b16 %v284
  %v804 = vunpack.c.l.b16 %v285
  %v805 = vunpack.c.l.b16 %v286
  %v806 = vunpack.c.l.b16 %v287
  %v807 = vunpack.c.l.b16 %v288
  %v808 = vunpack.c.l.b16 %v289
  %v809 = vunpack.c.l.b16 %v290
  %v810 = vunpack.c.l.b16 %v291
  %v811 = vunpack.c.l.b16 %v292
  %v812 = vunpack.c.l.b16 %v293
  %v813 = vunpack.c.l.b16 %v294
  %v814 = vunpack.c.l.b16 %v295
  %v815 = vunpack.c.l.b16 %v296
  %v816 = vunpack.c.l.b16 %v297
  %v817 = vunpack.c.l.b16 %v298
  %v818 = vunpack.c.l.b16 %v299
  %v819 = vunpack.c.l.b16 %v300
  %v820 = vunpack.c.l.b16 %v301
  %v821 = vunpack.c.l.b16 %v302
  %v822 = vunpack.c.l.b16 %v303
  %v823 = vunpack.c.l.b16 %v304
  %v824 = vunpack.c.l.b16 %v305
  %v825 = vunpack.c.l.b16 %v306
  %v826 = vunpack.c.l.b16 %v307
  %v827 = vunpack.c.l.b16 %v308
  %v828 = vunpack.c.l.b16 %v309
  %v829 = vunpack.c.l.b16 %v310
  %v830 = vunpack.c.l.b16 %v311
  %v831 = vunpack.c.l.b16 %v312
  %v832 = vunpack.c.l.b16 %v313
  %v833 = vunpack.c.l.b16 %v314
  %v834 = vunpack.c.l.b16 %v315
  %v835 = vunpack.c.l.b16 %v316
  %v836 = vunpack.c.l.b16 %v317
  %v837 = vunpack.c.l.b16 %v318
  %v838 = vunpack.c.l.b16 %v319
  %v839 = vunpack.c.l.b16 %v320
  %v840 = vunpack.c.l.b16 %v321
  %v841 = vunpack.c.l.b16 %v322
  %v842 = vunpack.c.l.b16 %v323
  %v843 = vunpack.c.l.b16 %v324
  %v844 = vpack.c.b16 %v589, %v588
  %v845 = vpack.c.b16 %v591, %v590
  %v846 = vpack.c.b16 %v593, %v592
  %v847 = vpack.c.b16 %v595, %v594
  %v848 = vpack.c.b16 %v597, %v596
  %v849 = vpack.c.b16 %v599, %v598
  %v850 = vpack.c.b16 %v601, %v600
  %v851 = vpack.c.b16 %v603, %v602
  %v852 = vpack.c.b16 %v605, %v604
  %v853 = vpack.c.b16 %v607, %v606
  %v854 = vpack.c.b16 %v609, %v608
  %v855 = vpack.c.b16 %v611, %v610
  %v856 = vpack.c.b16 %v613, %v612
  %v857 = vpack.c.b16 %v615, %v614
  %v858 = vpack.c.b16 %v617, %v616
  %v859 = vpack.c.b16 %v619, %v618
  %v860 = vpack.c.b16 %v621, %v620
  %v861 = vpack.c.b16 %v623, %v622
  %v862 = vpack.c.b16 %v625, %v624
  %v863 = vpack.c.b16 %v627, %v626
  %v864 = vpack.c.b16 %v629, %v628
  %v865 = vpack.c.b16 %v631, %v630
  %v866 = vpack.c.b16 %v633, %v632
  %v867 = vpack.c.b16 %v635, %v634
  %v868 = vpack.c.b16 %v637, %v636
  %v869 = vpack.c.b16 %v639, %v638
  %v870 = vpack.c.b16 %v641, %v640
  %v871 = vpack.c.b16 %v643, %v642
  %v872 = vpack.c.b16 %v645, %v644
  %v873 = vpack.c.b16 %v647, %v646
  %v874 = vpack.c.b16 %v649, %v648
  %v875 = vpack.c.b16 %v651, %v650
  %v876 = vpack.c.b16 %v653, %v652
  %v877 = vpack.c.b16 %v655, %v654
  %v878 = vpack.c.b16 %v657, %v656
  %v879 = vpack.c.b16 %v659, %v658
  %v880 = vpack.c.b16 %v661, %v660
  %v881 = vpack.c.b16 %v663, %v662
  %v882 = vpack.c.b16 %v665, %v664
  %v883 = vpack.c.b16 %v667, %v666
  %v884 = vpack.c.b16 %v669, %v668
  %v885 = vpack.c.b16 %v671, %v670
  %v886 = vpack.c.b16 %v673, %v672
  %v887 = vpack.c.b16 %v675, %v674
  %v888 = vpack.c.b16 %v677, %v676
  %v889 = vpack.c.b16 %v679, %v678
  %v890 = vpack.c.b16 %v681, %v680
  %v891 = vpack.c.b16 %v683, %v682
  %v892 = vpack.c.b16 %v685, %v684
  %v893 = vpack.c.b16 %v687, %v686
  %v894 = vpack.c.b16 %v689, %v688
  %v895 = vpack.c.b16 %v691, %v690
  %v896 = vpack.c.b16 %v693, %v692
  %v897 = vpack.c.b16 %v695, %v694
  %v898 = vpack.c.b16 %v697, %v696
  %v899 = vpack.c.b16 %v699, %v698
  %v900 = vpack.c.b16 %v701, %v700
  %v901 = vpack.c.b16 %v703, %v702
  %v902 = vpack.c.b16 %v705, %v704
  %v903 = vpack.c.b16 %v707, %v706
  %v904 = vpack.c.b16 %v709, %v708
  %v905 = vpack.c.b16 %v711, %v710
  %v906 = vpack.c.b16 %v713, %v712
  %v907 = vpack.c.b16 %v715, %v714
  %v908 = vpack.c.b16 %v717, %v716
  %v909 = vpack.c.b16 %v719, %v718
  %v910 = vpack.c.b16 %v721, %v720
  %v911 = vpack.c.b16 %v723, %v722
  %v912 = vpack.c.b16 %v725, %v724
  %v913 = vpack.c.b16 %v727, %v726
  %v914 = vpack.c.b16 %v729, %v728
  %v915 = vpack.c.b16 %v731, %v730
  %v916 = vpack.c.b16 %v733, %v732
  %v917 = vpack.c.b16 %v735, %v734
  %v918 = vpack.c.b16 %v737, %v736
  %v919 = vpack.c.b16 %v739, %v738
  %v920 = vpack.c.b16 %v741, %v740
  %v921 = vpack.c.b16 %v743, %v742
  %v922 = vpack.c.b16 %v745, %v744
  %v923 = vpack.c.b16 %v747, %v746
  %v924 = vpack.c.b16 %v749, %v748
  %v925 = vpack.c.b16 %v751, %v750
  %v926 = vpack.c.b16 %v753, %v752
  %v927 = vpack.c.b16 %v755, %v754
  %v928 = vpack.c.b16 %v757, %v756
  %v929 = vpack.c.b16 %v759, %v758
  %v930 = vpack.c.b16 %v761, %v760
  %v931 = vpack.c.b16 %v763, %v762
  %v932 = vpack.c.b16 %v765, %v764
  %v933 = vpack.c.b16 %v767, %v766
  %v934 = vpack.c.b16 %v769, %v768
  %v935 = vpack.c.b16 %v771, %v770
  %v936 = vpack.c.b16 %v773, %v772
  %v937 = vpack.c.b16 %v775, %v774
  %v938 = vpack.c.b16 %v777, %v776
  %v939 = vpack.c.b16 %v779, %v778
  %v940 = vpack.c.b16 %v781, %v780
  %v941 = vpack.c.b16 %v783, %v782
  %v942 = vpack.c.b16 %v785, %v784
  %v943 = vpack.c.b16 %v787, %v786
  %v944 = vpack.c.b16 %v789, %v788
  %v945 = vpack.c.b16 %v791, %v790
  %v946 = vpack.c.b16 %v793, %v792
  %v947 = vpack.c.b16 %v795, %v794
  %v948 = vpack.c.b16 %v797, %v796
  %v949 = vpack.c.b16 %v799, %v798
  %v950 = vpack.c.b16 %v801, %v800
  %v951 = vpack.c.b16 %v803, %v802
  %v952 = vpack.c.b16 %v805, %v804
  %v953 = vpack.c.b16 %v807, %v806
  %v954 = vpack.c.b16 %v809, %v808
  %v955 = vpack.c.b16 %v811, %v810
  %v956 = vpack.c.b16 %v813, %v812
  %v957 = vpack.c.b16 %v815, %v814
  %v958 = vpack.c.b16 %v817, %v816
  %v959 = vpack.c.b16 %v819, %v818
  %v960 = vpack.c.b16 %v821, %v820
  %v961 = vpack.c.b16 %v823, %v822
  %v962 = vpack.c.b16 %v825, %v824
  %v963 = vpack.c.b16 %v827, %v826
  %v964 = vpack.c.b16 %v829, %v828
  %v965 = vpack.c.b16 %v831, %v830
  %v966 = vpack.c.b16 %v833, %v832
  %v967 = vpack.c.b16 %v835, %v834
  %v968 = vpack.c.b16 %v837, %v836
  %v969 = vpack.c.b16 %v839, %v838
  %v970 = vpack.c.b16 %v841, %v840
  %v971 = vpack.c.b16 %v843, %v842
  %1100 = vmatprep.subr.bf16.mxu0 0
  %1101 = vmatpush1.bf16.msra.mxu0 %v851
  %1102 = vmatprep.subr.bf16.mxu0 0
  %1103 = vmatpush1.bf16.msra.mxu0 %v850
  %1104 = vmatprep.subr.bf16.mxu0 0
  %1105 = vmatpush1.bf16.msra.mxu0 %v849
  %1106 = vmatprep.subr.bf16.mxu0 0
  %1107 = vmatpush1.bf16.msra.mxu0 %v848
  %1108 = vmatprep.subr.bf16.mxu0 0
  %1109 = vmatpush1.bf16.msra.mxu0 %v847
  %1110 = vmatprep.subr.bf16.mxu0 0
  %1111 = vmatpush1.bf16.msra.mxu0 %v846
  %1112 = vmatprep.subr.bf16.mxu0 0
  %1113 = vmatpush1.bf16.msra.mxu0 %v845
  %1114 = vmatprep.subr.bf16.mxu0 0
  %1115 = vmatpush1.bf16.msra.mxu0 %v844
  %1116 = vmatprep.subr.bf16.mxu0 0
  %1117 = vmatpush2.bf16.msra.mxu0 %v859
  %1118 = vmatprep.subr.bf16.mxu0 0
  %1119 = vmatpush2.bf16.msra.mxu0 %v858
  %1120 = vmatprep.subr.bf16.mxu0 0
  %1121 = vmatpush2.bf16.msra.mxu0 %v857
  %1122 = vmatprep.subr.bf16.mxu0 0
  %1123 = vmatpush2.bf16.msra.mxu0 %v856
  %1124 = vmatprep.subr.bf16.mxu0 0
  %1125 = vmatpush2.bf16.msra.mxu0 %v855
  %1126 = vmatprep.subr.bf16.mxu0 0
  %1127 = vmatpush2.bf16.msra.mxu0 %v854
  %1128 = vmatprep.subr.bf16.mxu0 0
  %1129 = vmatpush2.bf16.msra.mxu0 %v853
  %1130 = vmatprep.subr.bf16.mxu0 0
  %1131 = vmatpush2.bf16.msra.mxu0 %v852
  %1132 = vmatprep.mubr.bf16.mxu0 %v54
  %1133 = vmatmul.mubr.bf16.gmra.mxu0 %v53
  %v1134 = vpop.f32.mrf.mxu0
  %v1135 = vadd.f32 %v330, %v1134
  %v1136 = vpop.f32.mrf.mxu0
  %v1137 = vpop.f32.mrf.mxu0
  %v1138 = vadd.f32 %v330, %v1137
  %v1139 = vpop.f32.mrf.mxu0
  %1140 = vdwg.mxu0
  %1141 = vmatprep.subr.bf16.mxu0 0
  %1142 = vmatpush1.bf16.msra.mxu0 %v867
  %1143 = vmatprep.subr.bf16.mxu0 0
  %1144 = vmatpush1.bf16.msra.mxu0 %v866
  %1145 = vmatprep.subr.bf16.mxu0 0
  %1146 = vmatpush1.bf16.msra.mxu0 %v865
  %1147 = vmatprep.subr.bf16.mxu0 0
  %1148 = vmatpush1.bf16.msra.mxu0 %v864
  %1149 = vmatprep.subr.bf16.mxu0 0
  %1150 = vmatpush1.bf16.msra.mxu0 %v863
  %1151 = vmatprep.subr.bf16.mxu0 0
  %1152 = vmatpush1.bf16.msra.mxu0 %v862
  %1153 = vmatprep.subr.bf16.mxu0 0
  %1154 = vmatpush1.bf16.msra.mxu0 %v861
  %1155 = vmatprep.subr.bf16.mxu0 0
  %1156 = vmatpush1.bf16.msra.mxu0 %v860
  %1157 = vmatprep.subr.bf16.mxu0 0
  %1158 = vmatpush2.bf16.msra.mxu0 %v875
  %1159 = vmatprep.subr.bf16.mxu0 0
  %1160 = vmatpush2.bf16.msra.mxu0 %v874
  %1161 = vmatprep.subr.bf16.mxu0 0
  %1162 = vmatpush2.bf16.msra.mxu0 %v873
  %1163 = vmatprep.subr.bf16.mxu0 0
  %1164 = vmatpush2.bf16.msra.mxu0 %v872
  %1165 = vmatprep.subr.bf16.mxu0 0
  %1166 = vmatpush2.bf16.msra.mxu0 %v871
  %1167 = vmatprep.subr.bf16.mxu0 0
  %1168 = vmatpush2.bf16.msra.mxu0 %v870
  %1169 = vmatprep.subr.bf16.mxu0 0
  %1170 = vmatpush2.bf16.msra.mxu0 %v869
  %1171 = vmatprep.subr.bf16.mxu0 0
  %1172 = vmatpush2.bf16.msra.mxu0 %v868
  %1173 = vmatprep.mubr.bf16.mxu0 %v56
  %1174 = vmatmul.mubr.bf16.gmra.mxu0 %v55
  %v1175 = vpop.f32.mrf.mxu0
  %v1176 = vadd.f32 %v1135, %v1175
  %v1177 = vpop.f32.mrf.mxu0
  %v1178 = vpop.f32.mrf.mxu0
  %v1179 = vadd.f32 %v1138, %v1178
  %v1180 = vpop.f32.mrf.mxu0
  %1181 = vdwg.mxu0
  %1182 = vmatprep.subr.bf16.mxu0 0
  %1183 = vmatpush1.bf16.msra.mxu0 %v883
  %1184 = vmatprep.subr.bf16.mxu0 0
  %1185 = vmatpush1.bf16.msra.mxu0 %v882
  %1186 = vmatprep.subr.bf16.mxu0 0
  %1187 = vmatpush1.bf16.msra.mxu0 %v881
  %1188 = vmatprep.subr.bf16.mxu0 0
  %1189 = vmatpush1.bf16.msra.mxu0 %v880
  %1190 = vmatprep.subr.bf16.mxu0 0
  %1191 = vmatpush1.bf16.msra.mxu0 %v879
  %1192 = vmatprep.subr.bf16.mxu0 0
  %1193 = vmatpush1.bf16.msra.mxu0 %v878
  %1194 = vmatprep.subr.bf16.mxu0 0
  %1195 = vmatpush1.bf16.msra.mxu0 %v877
  %1196 = vmatprep.subr.bf16.mxu0 0
  %1197 = vmatpush1.bf16.msra.mxu0 %v876
  %1198 = vmatprep.subr.bf16.mxu0 0
  %1199 = vmatpush2.bf16.msra.mxu0 %v891
  %1200 = vmatprep.subr.bf16.mxu0 0
  %1201 = vmatpush2.bf16.msra.mxu0 %v890
  %1202 = vmatprep.subr.bf16.mxu0 0
  %1203 = vmatpush2.bf16.msra.mxu0 %v889
  %1204 = vmatprep.subr.bf16.mxu0 0
  %1205 = vmatpush2.bf16.msra.mxu0 %v888
  %1206 = vmatprep.subr.bf16.mxu0 0
  %1207 = vmatpush2.bf16.msra.mxu0 %v887
  %1208 = vmatprep.subr.bf16.mxu0 0
  %1209 = vmatpush2.bf16.msra.mxu0 %v886
  %1210 = vmatprep.subr.bf16.mxu0 0
  %1211 = vmatpush2.bf16.msra.mxu0 %v885
  %1212 = vmatprep.subr.bf16.mxu0 0
  %1213 = vmatpush2.bf16.msra.mxu0 %v884
  %1214 = vmatprep.mubr.bf16.mxu0 %v58
  %1215 = vmatmul.mubr.bf16.gmra.mxu0 %v57
  %v1216 = vpop.f32.mrf.mxu0
  %v1217 = vadd.f32 %v1176, %v1216
  %v1218 = vpop.f32.mrf.mxu0
  %v1219 = vpop.f32.mrf.mxu0
  %v1220 = vadd.f32 %v1179, %v1219
  %v1221 = vpop.f32.mrf.mxu0
  %1222 = vdwg.mxu0
  %1223 = vmatprep.subr.bf16.mxu0 0
  %1224 = vmatpush1.bf16.msra.mxu0 %v899
  %1225 = vmatprep.subr.bf16.mxu0 0
  %1226 = vmatpush1.bf16.msra.mxu0 %v898
  %1227 = vmatprep.subr.bf16.mxu0 0
  %1228 = vmatpush1.bf16.msra.mxu0 %v897
  %1229 = vmatprep.subr.bf16.mxu0 0
  %1230 = vmatpush1.bf16.msra.mxu0 %v896
  %1231 = vmatprep.subr.bf16.mxu0 0
  %1232 = vmatpush1.bf16.msra.mxu0 %v895
  %1233 = vmatprep.subr.bf16.mxu0 0
  %1234 = vmatpush1.bf16.msra.mxu0 %v894
  %1235 = vmatprep.subr.bf16.mxu0 0
  %1236 = vmatpush1.bf16.msra.mxu0 %v893
  %1237 = vmatprep.subr.bf16.mxu0 0
  %1238 = vmatpush1.bf16.msra.mxu0 %v892
  %1239 = vmatprep.subr.bf16.mxu0 0
  %1240 = vmatpush2.bf16.msra.mxu0 %v907
  %1241 = vmatprep.subr.bf16.mxu0 0
  %1242 = vmatpush2.bf16.msra.mxu0 %v906
  %1243 = vmatprep.subr.bf16.mxu0 0
  %1244 = vmatpush2.bf16.msra.mxu0 %v905
  %1245 = vmatprep.subr.bf16.mxu0 0
  %1246 = vmatpush2.bf16.msra.mxu0 %v904
  %1247 = vmatprep.subr.bf16.mxu0 0
  %1248 = vmatpush2.bf16.msra.mxu0 %v903
  %1249 = vmatprep.subr.bf16.mxu0 0
  %1250 = vmatpush2.bf16.msra.mxu0 %v902
  %1251 = vmatprep.subr.bf16.mxu0 0
  %1252 = vmatpush2.bf16.msra.mxu0 %v901
  %1253 = vmatprep.subr.bf16.mxu0 0
  %1254 = vmatpush2.bf16.msra.mxu0 %v900
  %1255 = vmatprep.mubr.bf16.mxu0 %v60
  %1256 = vmatmul.mubr.bf16.gmra.mxu0 %v59
  %v1257 = vpop.f32.mrf.mxu0
  %v1258 = vadd.f32 %v1217, %v1257
  %v1259 = vpop.f32.mrf.mxu0
  %v1260 = vpop.f32.mrf.mxu0
  %v1261 = vadd.f32 %v1220, %v1260
  %v1262 = vpop.f32.mrf.mxu0
  %1263 = vdwg.mxu0
  %1264 = vmatprep.subr.bf16.mxu0 0
  %1265 = vmatpush1.bf16.msra.mxu0 %v915
  %1266 = vmatprep.subr.bf16.mxu0 0
  %1267 = vmatpush1.bf16.msra.mxu0 %v914
  %1268 = vmatprep.subr.bf16.mxu0 0
  %1269 = vmatpush1.bf16.msra.mxu0 %v913
  %1270 = vmatprep.subr.bf16.mxu0 0
  %1271 = vmatpush1.bf16.msra.mxu0 %v912
  %1272 = vmatprep.subr.bf16.mxu0 0
  %1273 = vmatpush1.bf16.msra.mxu0 %v911
  %1274 = vmatprep.subr.bf16.mxu0 0
  %1275 = vmatpush1.bf16.msra.mxu0 %v910
  %1276 = vmatprep.subr.bf16.mxu0 0
  %1277 = vmatpush1.bf16.msra.mxu0 %v909
  %1278 = vmatprep.subr.bf16.mxu0 0
  %1279 = vmatpush1.bf16.msra.mxu0 %v908
  %1280 = vmatprep.subr.bf16.mxu0 0
  %1281 = vmatpush2.bf16.msra.mxu0 %v923
  %1282 = vmatprep.subr.bf16.mxu0 0
  %1283 = vmatpush2.bf16.msra.mxu0 %v922
  %1284 = vmatprep.subr.bf16.mxu0 0
  %1285 = vmatpush2.bf16.msra.mxu0 %v921
  %1286 = vmatprep.subr.bf16.mxu0 0
  %1287 = vmatpush2.bf16.msra.mxu0 %v920
  %1288 = vmatprep.subr.bf16.mxu0 0
  %1289 = vmatpush2.bf16.msra.mxu0 %v919
  %1290 = vmatprep.subr.bf16.mxu0 0
  %1291 = vmatpush2.bf16.msra.mxu0 %v918
  %1292 = vmatprep.subr.bf16.mxu0 0
  %1293 = vmatpush2.bf16.msra.mxu0 %v917
  %1294 = vmatprep.subr.bf16.mxu0 0
  %1295 = vmatpush2.bf16.msra.mxu0 %v916
  %1296 = vmatprep.mubr.bf16.mxu0 %v62
  %1297 = vmatmul.mubr.bf16.gmra.mxu0 %v61
  %v1298 = vpop.f32.mrf.mxu0
  %v1299 = vadd.f32 %v1258, %v1298
  %v1300 = vpop.f32.mrf.mxu0
  %v1301 = vpop.f32.mrf.mxu0
  %v1302 = vadd.f32 %v1261, %v1301
  %v1303 = vpop.f32.mrf.mxu0
  %1304 = vdwg.mxu0
  %1305 = vmatprep.subr.bf16.mxu0 0
  %1306 = vmatpush1.bf16.msra.mxu0 %v931
  %1307 = vmatprep.subr.bf16.mxu0 0
  %1308 = vmatpush1.bf16.msra.mxu0 %v930
  %1309 = vmatprep.subr.bf16.mxu0 0
  %1310 = vmatpush1.bf16.msra.mxu0 %v929
  %1311 = vmatprep.subr.bf16.mxu0 0
  %1312 = vmatpush1.bf16.msra.mxu0 %v928
  %1313 = vmatprep.subr.bf16.mxu0 0
  %1314 = vmatpush1.bf16.msra.mxu0 %v927
  %1315 = vmatprep.subr.bf16.mxu0 0
  %1316 = vmatpush1.bf16.msra.mxu0 %v926
  %1317 = vmatprep.subr.bf16.mxu0 0
  %1318 = vmatpush1.bf16.msra.mxu0 %v925
  %1319 = vmatprep.subr.bf16.mxu0 0
  %1320 = vmatpush1.bf16.msra.mxu0 %v924
  %1321 = vmatprep.subr.bf16.mxu0 0
  %1322 = vmatpush2.bf16.msra.mxu0 %v939
  %1323 = vmatprep.subr.bf16.mxu0 0
  %1324 = vmatpush2.bf16.msra.mxu0 %v938
  %1325 = vmatprep.subr.bf16.mxu0 0
  %1326 = vmatpush2.bf16.msra.mxu0 %v937
  %1327 = vmatprep.subr.bf16.mxu0 0
  %1328 = vmatpush2.bf16.msra.mxu0 %v936
  %1329 = vmatprep.subr.bf16.mxu0 0
  %1330 = vmatpush2.bf16.msra.mxu0 %v935
  %1331 = vmatprep.subr.bf16.mxu0 0
  %1332 = vmatpush2.bf16.msra.mxu0 %v934
  %1333 = vmatprep.subr.bf16.mxu0 0
  %1334 = vmatpush2.bf16.msra.mxu0 %v933
  %1335 = vmatprep.subr.bf16.mxu0 0
  %1336 = vmatpush2.bf16.msra.mxu0 %v932
  %1337 = vmatprep.mubr.bf16.mxu0 %v64
  %1338 = vmatmul.mubr.bf16.gmra.mxu0 %v63
  %v1339 = vpop.f32.mrf.mxu0
  %v1340 = vadd.f32 %v1299, %v1339
  %v1341 = vpop.f32.mrf.mxu0
  %v1342 = vpop.f32.mrf.mxu0
  %v1343 = vadd.f32 %v1302, %v1342
  %v1344 = vpop.f32.mrf.mxu0
  %1345 = vdwg.mxu0
  %1346 = vmatprep.subr.bf16.mxu0 0
  %1347 = vmatpush1.bf16.msra.mxu0 %v947
  %1348 = vmatprep.subr.bf16.mxu0 0
  %1349 = vmatpush1.bf16.msra.mxu0 %v946
  %1350 = vmatprep.subr.bf16.mxu0 0
  %1351 = vmatpush1.bf16.msra.mxu0 %v945
  %1352 = vmatprep.subr.bf16.mxu0 0
  %1353 = vmatpush1.bf16.msra.mxu0 %v944
  %1354 = vmatprep.subr.bf16.mxu0 0
  %1355 = vmatpush1.bf16.msra.mxu0 %v943
  %1356 = vmatprep.subr.bf16.mxu0 0
  %1357 = vmatpush1.bf16.msra.mxu0 %v942
  %1358 = vmatprep.subr.bf16.mxu0 0
  %1359 = vmatpush1.bf16.msra.mxu0 %v941
  %1360 = vmatprep.subr.bf16.mxu0 0
  %1361 = vmatpush1.bf16.msra.mxu0 %v940
  %1362 = vmatprep.subr.bf16.mxu0 0
  %1363 = vmatpush2.bf16.msra.mxu0 %v955
  %1364 = vmatprep.subr.bf16.mxu0 0
  %1365 = vmatpush2.bf16.msra.mxu0 %v954
  %1366 = vmatprep.subr.bf16.mxu0 0
  %1367 = vmatpush2.bf16.msra.mxu0 %v953
  %1368 = vmatprep.subr.bf16.mxu0 0
  %1369 = vmatpush2.bf16.msra.mxu0 %v952
  %1370 = vmatprep.subr.bf16.mxu0 0
  %1371 = vmatpush2.bf16.msra.mxu0 %v951
  %1372 = vmatprep.subr.bf16.mxu0 0
  %1373 = vmatpush2.bf16.msra.mxu0 %v950
  %1374 = vmatprep.subr.bf16.mxu0 0
  %1375 = vmatpush2.bf16.msra.mxu0 %v949
  %1376 = vmatprep.subr.bf16.mxu0 0
  %1377 = vmatpush2.bf16.msra.mxu0 %v948
  %1378 = vmatprep.mubr.bf16.mxu0 %v66
  %1379 = vmatmul.mubr.bf16.gmra.mxu0 %v65
  %v1380 = vpop.f32.mrf.mxu0
  %v1381 = vadd.f32 %v1340, %v1380
  %v1382 = vpop.f32.mrf.mxu0
  %v1383 = vpop.f32.mrf.mxu0
  %v1384 = vadd.f32 %v1343, %v1383
  %v1385 = vpop.f32.mrf.mxu0
  %1386 = vdwg.mxu0
  %1387 = vmatprep.subr.bf16.mxu0 0
  %1388 = vmatpush1.bf16.msra.mxu0 %v963
  %1389 = vmatprep.subr.bf16.mxu0 0
  %1390 = vmatpush1.bf16.msra.mxu0 %v962
  %1391 = vmatprep.subr.bf16.mxu0 0
  %1392 = vmatpush1.bf16.msra.mxu0 %v961
  %1393 = vmatprep.subr.bf16.mxu0 0
  %1394 = vmatpush1.bf16.msra.mxu0 %v960
  %1395 = vmatprep.subr.bf16.mxu0 0
  %1396 = vmatpush1.bf16.msra.mxu0 %v959
  %1397 = vmatprep.subr.bf16.mxu0 0
  %1398 = vmatpush1.bf16.msra.mxu0 %v958
  %1399 = vmatprep.subr.bf16.mxu0 0
  %1400 = vmatpush1.bf16.msra.mxu0 %v957
  %1401 = vmatprep.subr.bf16.mxu0 0
  %1402 = vmatpush1.bf16.msra.mxu0 %v956
  %1403 = vmatprep.subr.bf16.mxu0 0
  %1404 = vmatpush2.bf16.msra.mxu0 %v971
  %1405 = vmatprep.subr.bf16.mxu0 0
  %1406 = vmatpush2.bf16.msra.mxu0 %v970
  %1407 = vmatprep.subr.bf16.mxu0 0
  %1408 = vmatpush2.bf16.msra.mxu0 %v969
  %1409 = vmatprep.subr.bf16.mxu0 0
  %1410 = vmatpush2.bf16.msra.mxu0 %v968
  %1411 = vmatprep.subr.bf16.mxu0 0
  %1412 = vmatpush2.bf16.msra.mxu0 %v967
  %1413 = vmatprep.subr.bf16.mxu0 0
  %1414 = vmatpush2.bf16.msra.mxu0 %v966
  %1415 = vmatprep.subr.bf16.mxu0 0
  %1416 = vmatpush2.bf16.msra.mxu0 %v965
  %1417 = vmatprep.subr.bf16.mxu0 0
  %1418 = vmatpush2.bf16.msra.mxu0 %v964
  %1419 = vmatprep.mubr.bf16.mxu0 %v68
  %1420 = vmatmul.mubr.bf16.gmra.mxu0 %v67
  %v1421 = vpop.f32.mrf.mxu0
  %v1422 = vadd.f32 %v1381, %v1421
  %v1423 = vpop.f32.mrf.mxu0
  %v1424 = vpop.f32.mrf.mxu0
  %v1425 = vadd.f32 %v1384, %v1424
  %v1426 = vpop.f32.mrf.mxu0
  %1427 = vdwg.mxu0
  %v1428 = vmax.f32 %v1422, 0.0
  %v1429 = vmax.f32 %v1425, 0.0
  %v1430 = vld [vmem:[%s3] sm:$0xff]
  %v1431 = vld [vmem:[%s3 + $0x8] sm:$0xff]
  %v1432 = vld [vmem:[%s3 + $0x10] sm:$0xff]
  %v1433 = vld [vmem:[%s3 + $0x18] sm:$0xff]
  %v1434 = vld [vmem:[%s3 + $0x20] sm:$0xff]
  %v1435 = vld [vmem:[%s3 + $0x28] sm:$0xff]
  %v1436 = vld [vmem:[%s3 + $0x30] sm:$0xff]
  %v1437 = vld [vmem:[%s3 + $0x38] sm:$0xff]
  %v1438 = vld [vmem:[%s3 + $0x40] sm:$0xff]
  %v1439 = vld [vmem:[%s3 + $0x48] sm:$0xff]
  %v1440 = vld [vmem:[%s3 + $0x50] sm:$0xff]
  %v1441 = vld [vmem:[%s3 + $0x58] sm:$0xff]
  %v1442 = vld [vmem:[%s3 + $0x60] sm:$0xff]
  %v1443 = vld [vmem:[%s3 + $0x68] sm:$0xff]
  %v1444 = vld [vmem:[%s3 + $0x70] sm:$0xff]
  %v1445 = vld [vmem:[%s3 + $0x78] sm:$0xff]
  %v1446 = vld [vmem:[%s4] sm:$0x1]
  %v1448 = vlaneseq
  %v1449 = vshrl.u32 %v1448, 7
  %v1450 = vsub.s32 0, %v1449
  %v1451 = vrot.slane %v1446, %v1450
  %1453 = vmatprep.subr.mxu0 0.0
  %1454 = vmatpush1.msra.mxu0 %v1445
  %1455 = vmatprep.subr.mxu0 0.0
  %1456 = vmatpush1.msra.mxu0 %v1444
  %1457 = vmatprep.subr.mxu0 0.0
  %1458 = vmatpush1.msra.mxu0 %v1443
  %1459 = vmatprep.subr.mxu0 0.0
  %1460 = vmatpush1.msra.mxu0 %v1442
  %1461 = vmatprep.subr.mxu0 0.0
  %1462 = vmatpush1.msra.mxu0 %v1441
  %1463 = vmatprep.subr.mxu0 0.0
  %1464 = vmatpush1.msra.mxu0 %v1440
  %1465 = vmatprep.subr.mxu0 0.0
  %1466 = vmatpush1.msra.mxu0 %v1439
  %1467 = vmatprep.subr.mxu0 0.0
  %1468 = vmatpush1.msra.mxu0 %v1438
  %1469 = vmatprep.subr.mxu0 0.0
  %1470 = vmatpush1.msra.mxu0 %v1437
  %1471 = vmatprep.subr.mxu0 0.0
  %1472 = vmatpush1.msra.mxu0 %v1436
  %1473 = vmatprep.subr.mxu0 0.0
  %1474 = vmatpush1.msra.mxu0 %v1435
  %1475 = vmatprep.subr.mxu0 0.0
  %1476 = vmatpush1.msra.mxu0 %v1434
  %1477 = vmatprep.subr.mxu0 0.0
  %1478 = vmatpush1.msra.mxu0 %v1433
  %1479 = vmatprep.subr.mxu0 0.0
  %1480 = vmatpush1.msra.mxu0 %v1432
  %1481 = vmatprep.subr.mxu0 0.0
  %1482 = vmatpush1.msra.mxu0 %v1431
  %1483 = vmatprep.subr.mxu0 0.0
  %1484 = vmatpush1.msra.mxu0 %v1430
  %1485 = vmatprep.subr.mxu0 0.0
  %1486 = vmatpush2.msra.mxu0 0.0
  %1487 = vmatprep.subr.mxu0 0.0
  %1488 = vmatpush2.msra.mxu0 0.0
  %1489 = vmatprep.subr.mxu0 0.0
  %1490 = vmatpush2.msra.mxu0 0.0
  %1491 = vmatprep.subr.mxu0 0.0
  %1492 = vmatpush2.msra.mxu0 0.0
  %1493 = vmatprep.subr.mxu0 0.0
  %1494 = vmatpush2.msra.mxu0 0.0
  %1495 = vmatprep.subr.mxu0 0.0
  %1496 = vmatpush2.msra.mxu0 0.0
  %1497 = vmatprep.subr.mxu0 0.0
  %1498 = vmatpush2.msra.mxu0 0.0
  %1499 = vmatprep.subr.mxu0 0.0
  %1500 = vmatpush2.msra.mxu0 0.0
  %1501 = vmatprep.subr.mxu0 0.0
  %1502 = vmatpush2.msra.mxu0 0.0
  %1503 = vmatprep.subr.mxu0 0.0
  %1504 = vmatpush2.msra.mxu0 0.0
  %1505 = vmatprep.subr.mxu0 0.0
  %1506 = vmatpush2.msra.mxu0 0.0
  %1507 = vmatprep.subr.mxu0 0.0
  %1508 = vmatpush2.msra.mxu0 0.0
  %1509 = vmatprep.subr.mxu0 0.0
  %1510 = vmatpush2.msra.mxu0 0.0
  %1511 = vmatprep.subr.mxu0 0.0
  %1512 = vmatpush2.msra.mxu0 0.0
  %1513 = vmatprep.subr.mxu0 0.0
  %1514 = vmatpush2.msra.mxu0 0.0
  %1515 = vmatprep.subr.mxu0 0.0
  %1516 = vmatpush2.msra.mxu0 0.0
  %1517 = vmatprep.mubr.f32.mxu0 0.0
  %1518 = vmatmul.mubr.f32.gmra.mxu0 %v1428
  %v1519 = vpop.f32.mrf.mxu0
  %v1520 = vadd.f32 %v1451, %v1519
  %v1521 = vpop.f32.mrf.mxu0
  %1522 = vmatprep.mubr.f32.mxu0 0.0
  %1523 = vmatmul.mubr.f32.gmra.mxu0 %v1429
  %v1524 = vpop.f32.mrf.mxu0
  %v1525 = vadd.f32 %v1451, %v1524
  %v1526 = vpop.f32.mrf.mxu0
  %1527 = vdwg.mxu0
  %vm1528 = vcmask 80896
  %1529 = vst.msk [vmem:[%s5] sm:$0xff] %vm1528, %v1520
  %1530 = vst.msk [vmem:[%s5 + $0x8] sm:$0xff] %vm1528, %v1525
  // Predicated region
  $region22: #{neural_network_forward.3} parent=0 // pred_check
    _
  $region23: #{neural_network_forward.3} parent=0 // pred_check_branch
    %1532 = sbr.rel (0) target = $region25
  $region24: #{neural_network_forward.3} parent=0 // pred_region
    _
  $region25: #{neural_network_forward.3} parent=0 // pred_fallthru
    _
  // Predicated region
  $region26: #{neural_network_forward.3} parent=0 // pred_check
    _
  $region27: #{neural_network_forward.3} parent=0 // pred_check_branch
    %1534 = sbr.rel (0) target = $region29
  $region28: #{neural_network_forward.3} parent=0 // pred_region
    _
  $region29: #{neural_network_forward.3} parent=0 // pred_fallthru
    _

// kernel: neural_network_forward.2
$region0: #{neural_network_forward.2}
  #allocation0 [shape = 'u32[]', space=smem, size = 0x4, offset = 0x4, fixed_abs, tag = 'smem constant byte address 0x4 - core index']
  #allocation1 [shape = 'u32[144,128]{1,0:T(1,128)}', space=vmem, size = 0x12000, scoped, tag = 'internal scratch']
  %s0 = inlined_call_operand.vmem [shape: f32[1456,72], index: 0, kind: input, shape index: {}]
  %s1 = inlined_call_operand.vmem [shape: f32[72,256], index: 1, kind: input, shape index: {}]
  %s2 = inlined_call_operand.vmem [shape: f32[1,256], index: 2, kind: input, shape index: {}]
  %s3 = inlined_call_operand.vmem [shape: bf16[171,699], index: 3, kind: input, shape index: {}]
  %s4 = inlined_call_operand.vmem [shape: bf16[9,256,512], index: 4, kind: input, shape index: {}]
  %s5 = inlined_call_operand.vmem [shape: f32[1,512], index: 5, kind: input, shape index: {}]
  %s6 = inlined_call_operand.vmem [shape: f32[32,129], index: 6, kind: input, shape index: {}]
  %s7 = inlined_call_operand.vmem [shape: f32[64,512], index: 7, kind: output, shape index: {}]
  %s8 = sld [smem:[#allocation0]]
  $region61: #{neural_network_forward.2} parent=0
    _
  %s10 = ssub.s32 1, %s8
  %s11 = scalar_select 0, %s10, %s8
  loop: start=0, step=1, limit=4
  $region2: #{neural_network_forward.2} parent=0 // loop_pre_header
    _
  $region3: #{neural_network_forward.2} parent=0 // loop_header
    %s13 = sphi 0, %s17
    %p14 = scmp.ge.s32.totalorder %s13, 4
    %s23 = sphi 0, %s25
    %s26 = sphi 0, %s23
    %s27 = sphi 0, %s26
    %s43 = sphi 0, %s27
    %s47 = sphi 0, %s47
    %s49 = sphi 0, %s47
    %s50 = sphi 0, %s49
    %s64 = sphi 0, %s50
    %s68 = sphi 0, %s68
    %s70 = sphi 0, %s68
    %s71 = sphi 0, %s70
    %s85 = sphi 0, %s71
    %s89 = sphi 0, %s89
    %s91 = sphi 0, %s89
    %s92 = sphi 0, %s91
    %s106 = sphi 0, %s92
    %s110 = sphi 0, %s110
    %s112 = sphi 0, %s110
    %s113 = sphi 0, %s112
    %s127 = sphi 0, %s113
    %s131 = sphi 0, %s131
    %s133 = sphi 0, %s131
    %s134 = sphi 0, %s133
    %s148 = sphi 0, %s134
    %s152 = sphi 0, %s152
    %s154 = sphi 0, %s152
    %s155 = sphi 0, %s154
    %s169 = sphi 0, %s155
    %s175 = sphi 0, %s177
    %s178 = sphi 0, %s175
    %s179 = sphi 0, %s178
    %s195 = sphi 0, %s179
  $region4: #{neural_network_forward.2} parent=0 // loop_header_branch
    %16 = sbr.rel (%p14) target = $region8
  $region5: #{neural_network_forward.2} parent=0 // loop_body
    %s18 = ssub.s32 %s13, 1
    %s19 = ssub.s32 %s13, 2
    %s20 = sadd.s32 %s13, 1
    %s21 = ssub.s32 %s13, %s20
    %p22 = scmp.eq.s32.totalorder %s21, 0
    %s24 = sadd.s32 %s23, 1
    %s25 = scalar_select %p22, %s23, %s24
    %p28 = pneg %p22
    %p29 = scmp.eq.s32.totalorder %s13, 1
    %p30 = por %p28, %p29
    %p31 = scmp.ne.s32.totalorder %s23, %s26
    %p32 = scmp.eq.s32.totalorder %s13, 0
    %p33 = por %p31, %p32
    %p34 = scmp.ne.s32.totalorder %s23, %s26
    %p35 = scmp.eq.s32.totalorder %s18, 1
    %p36 = por %p34, %p35
    %p37 = scmp.ne.s32.totalorder %s26, %s27
    %p38 = scmp.eq.s32.totalorder %s18, 0
    %p39 = por %p37, %p38
    %p40 = scmp.ne.s32.totalorder %s26, %s27
    %p41 = scmp.eq.s32.totalorder %s19, 1
    %p42 = por %p40, %p41
    %p44 = scmp.ne.s32.totalorder %s27, %s43
    %p45 = scmp.eq.s32.totalorder %s19, 0
    %p46 = por %p44, %p45
    %s48 = sadd.s32 %s47, 1
    %p51 = scmp.eq.s32.totalorder %s13, 1
    %p52 = scmp.ne.s32.totalorder %s47, %s49
    %p53 = scmp.eq.s32.totalorder %s13, 0
    %p54 = por %p52, %p53
    %p55 = scmp.ne.s32.totalorder %s47, %s49
    %p56 = scmp.eq.s32.totalorder %s18, 1
    %p57 = por %p55, %p56
    %p58 = scmp.ne.s32.totalorder %s49, %s50
    %p59 = scmp.eq.s32.totalorder %s18, 0
    %p60 = por %p58, %p59
    %p61 = scmp.ne.s32.totalorder %s49, %s50
    %p62 = scmp.eq.s32.totalorder %s19, 1
    %p63 = por %p61, %p62
    %p65 = scmp.ne.s32.totalorder %s50, %s64
    %p66 = scmp.eq.s32.totalorder %s19, 0
    %p67 = por %p65, %p66
    %s69 = sadd.s32 %s68, 1
    %p72 = scmp.eq.s32.totalorder %s13, 1
    %p73 = scmp.ne.s32.totalorder %s68, %s70
    %p74 = scmp.eq.s32.totalorder %s13, 0
    %p75 = por %p73, %p74
    %p76 = scmp.ne.s32.totalorder %s68, %s70
    %p77 = scmp.eq.s32.totalorder %s18, 1
    %p78 = por %p76, %p77
    %p79 = scmp.ne.s32.totalorder %s70, %s71
    %p80 = scmp.eq.s32.totalorder %s18, 0
    %p81 = por %p79, %p80
    %p82 = scmp.ne.s32.totalorder %s70, %s71
    %p83 = scmp.eq.s32.totalorder %s19, 1
    %p84 = por %p82, %p83
    %p86 = scmp.ne.s32.totalorder %s71, %s85
    %p87 = scmp.eq.s32.totalorder %s19, 0
    %p88 = por %p86, %p87
    %s90 = sadd.s32 %s89, 1
    %p93 = scmp.eq.s32.totalorder %s13, 1
    %p94 = scmp.ne.s32.totalorder %s89, %s91
    %p95 = scmp.eq.s32.totalorder %s13, 0
    %p96 = por %p94, %p95
    %p97 = scmp.ne.s32.totalorder %s89, %s91
    %p98 = scmp.eq.s32.totalorder %s18, 1
    %p99 = por %p97, %p98
    %p100 = scmp.ne.s32.totalorder %s91, %s92
    %p101 = scmp.eq.s32.totalorder %s18, 0
    %p102 = por %p100, %p101
    %p103 = scmp.ne.s32.totalorder %s91, %s92
    %p104 = scmp.eq.s32.totalorder %s19, 1
    %p105 = por %p103, %p104
    %p107 = scmp.ne.s32.totalorder %s92, %s106
    %p108 = scmp.eq.s32.totalorder %s19, 0
    %p109 = por %p107, %p108
    %s111 = sadd.s32 %s110, 1
    %p114 = scmp.eq.s32.totalorder %s13, 1
    %p115 = scmp.ne.s32.totalorder %s110, %s112
    %p116 = scmp.eq.s32.totalorder %s13, 0
    %p117 = por %p115, %p116
    %p118 = scmp.ne.s32.totalorder %s110, %s112
    %p119 = scmp.eq.s32.totalorder %s18, 1
    %p120 = por %p118, %p119
    %p121 = scmp.ne.s32.totalorder %s112, %s113
    %p122 = scmp.eq.s32.totalorder %s18, 0
    %p123 = por %p121, %p122
    %p124 = scmp.ne.s32.totalorder %s112, %s113
    %p125 = scmp.eq.s32.totalorder %s19, 1
    %p126 = por %p124, %p125
    %p128 = scmp.ne.s32.totalorder %s113, %s127
    %p129 = scmp.eq.s32.totalorder %s19, 0
    %p130 = por %p128, %p129
    %s132 = sadd.s32 %s131, 1
    %p135 = scmp.eq.s32.totalorder %s13, 1
    %p136 = scmp.ne.s32.totalorder %s131, %s133
    %p137 = scmp.eq.s32.totalorder %s13, 0
    %p138 = por %p136, %p137
    %p139 = scmp.ne.s32.totalorder %s131, %s133
    %p140 = scmp.eq.s32.totalorder %s18, 1
    %p141 = por %p139, %p140
    %p142 = scmp.ne.s32.totalorder %s133, %s134
    %p143 = scmp.eq.s32.totalorder %s18, 0
    %p144 = por %p142, %p143
    %p145 = scmp.ne.s32.totalorder %s133, %s134
    %p146 = scmp.eq.s32.totalorder %s19, 1
    %p147 = por %p145, %p146
    %p149 = scmp.ne.s32.totalorder %s134, %s148
    %p150 = scmp.eq.s32.totalorder %s19, 0
    %p151 = por %p149, %p150
    %s153 = sadd.s32 %s152, 1
    %p156 = scmp.eq.s32.totalorder %s13, 1
    %p157 = scmp.ne.s32.totalorder %s152, %s154
    %p158 = scmp.eq.s32.totalorder %s13, 0
    %p159 = por %p157, %p158
    %p160 = scmp.ne.s32.totalorder %s152, %s154
    %p161 = scmp.eq.s32.totalorder %s18, 1
    %p162 = por %p160, %p161
    %p163 = scmp.ne.s32.totalorder %s154, %s155
    %p164 = scmp.eq.s32.totalorder %s18, 0
    %p165 = por %p163, %p164
    %p166 = scmp.ne.s32.totalorder %s154, %s155
    %p167 = scmp.eq.s32.totalorder %s19, 1
    %p168 = por %p166, %p167
    %p170 = scmp.ne.s32.totalorder %s155, %s169
    %p171 = scmp.eq.s32.totalorder %s19, 0
    %p172 = por %p170, %p171
    %s173 = ssub.s32 %s13, %s20
    %p174 = scmp.eq.s32.totalorder %s173, 0
    %s176 = sadd.s32 %s175, 1
    %s177 = scalar_select %p174, %s175, %s176
    %p180 = pneg %p174
    %p181 = scmp.eq.s32.totalorder %s13, 1
    %p182 = por %p180, %p181
    %p183 = scmp.ne.s32.totalorder %s175, %s178
    %p184 = scmp.eq.s32.totalorder %s13, 0
    %p185 = por %p183, %p184
    %p186 = scmp.ne.s32.totalorder %s175, %s178
    %p187 = scmp.eq.s32.totalorder %s18, 1
    %p188 = por %p186, %p187
    %p189 = scmp.ne.s32.totalorder %s178, %s179
    %p190 = scmp.eq.s32.totalorder %s18, 0
    %p191 = por %p189, %p190
    %p192 = scmp.ne.s32.totalorder %s178, %s179
    %p193 = scmp.eq.s32.totalorder %s19, 1
    %p194 = por %p192, %p193
    %p196 = scmp.ne.s32.totalorder %s179, %s195
    %p197 = scmp.eq.s32.totalorder %s19, 0
    %p198 = por %p196, %p197
    %p199 = scmp.le.s32.totalorder 1, %s13
    %p200 = scmp.lt.s32.totalorder %s13, 3
    %p201 = pnand %p199, %p200
    %p202 = pneg %p201
    // Predicated region
    $region9: #{neural_network_forward.2} parent=5 // pred_check
      _
    $region10: #{neural_network_forward.2} parent=5 // pred_check_branch
      %204 = sbr.rel (%p201) target = $region12
    $region11: #{neural_network_forward.2} parent=5 // pred_region
      %s205 = ssub.s32 %s13, 1
      // Predicated region
      $region13: #{neural_network_forward.2} parent=11 // pred_check
        %p206 = pneg %p60
      $region14: #{neural_network_forward.2} parent=11 // pred_check_branch
        %208 = sbr.rel (%p206) target = $region16
      $region15: #{neural_network_forward.2} parent=11 // pred_region
        _
      $region16: #{neural_network_forward.2} parent=11 // pred_fallthru
        _
      // Predicated region
      $region17: #{neural_network_forward.2} parent=11 // pred_check
        %p209 = pneg %p81
      $region18: #{neural_network_forward.2} parent=11 // pred_check_branch
        %211 = sbr.rel (%p209) target = $region20
      $region19: #{neural_network_forward.2} parent=11 // pred_region
        _
      $region20: #{neural_network_forward.2} parent=11 // pred_fallthru
        _
      // Predicated region
      $region21: #{neural_network_forward.2} parent=11 // pred_check
        %p212 = pneg %p102
      $region22: #{neural_network_forward.2} parent=11 // pred_check_branch
        %214 = sbr.rel (%p212) target = $region24
      $region23: #{neural_network_forward.2} parent=11 // pred_region
        _
      $region24: #{neural_network_forward.2} parent=11 // pred_fallthru
        _
      // Predicated region
      $region25: #{neural_network_forward.2} parent=11 // pred_check
        %p215 = pneg %p123
      $region26: #{neural_network_forward.2} parent=11 // pred_check_branch
        %217 = sbr.rel (%p215) target = $region28
      $region27: #{neural_network_forward.2} parent=11 // pred_region
        _
      $region28: #{neural_network_forward.2} parent=11 // pred_fallthru
        _
      // Predicated region
      $region29: #{neural_network_forward.2} parent=11 // pred_check
        %p218 = pneg %p144
      $region30: #{neural_network_forward.2} parent=11 // pred_check_branch
        %220 = sbr.rel (%p218) target = $region32
      $region31: #{neural_network_forward.2} parent=11 // pred_region
        _
      $region32: #{neural_network_forward.2} parent=11 // pred_fallthru
        _
      // Predicated region
      $region33: #{neural_network_forward.2} parent=11 // pred_check
        %p221 = pneg %p165
      $region34: #{neural_network_forward.2} parent=11 // pred_check_branch
        %223 = sbr.rel (%p221) target = $region36
      $region35: #{neural_network_forward.2} parent=11 // pred_region
        _
      $region36: #{neural_network_forward.2} parent=11 // pred_fallthru
        _
    $region12: #{neural_network_forward.2} parent=5 // pred_fallthru
      _
    %p224 = scmp.lt.s32.totalorder %s13, 2
    // Predicated region
    $region37: #{neural_network_forward.2} parent=5 // pred_check
      %p225 = pneg %p224
    $region38: #{neural_network_forward.2} parent=5 // pred_check_branch
      %227 = sbr.rel (%p225) target = $region40
    $region39: #{neural_network_forward.2} parent=5 // pred_region
      // Predicated region
      $region41: #{neural_network_forward.2} parent=39 // pred_check
        %p228 = pneg %p33
      $region42: #{neural_network_forward.2} parent=39 // pred_check_branch
        %230 = sbr.rel (%p228) target = $region44
      $region43: #{neural_network_forward.2} parent=39 // pred_region
        %s231 = smul.u32 91, %s13
        %p232 = scmp.lt.s32.totalorder %s231, 181
        %s233 = scalar_select %p232, %s231, 181
        %s234 = smul.addr %s233, 8
        %s235 = scalar_lea.vmem %s0, %s234
        %s236 = smul.u32 91, %s13
      $region44: #{neural_network_forward.2} parent=39 // pred_fallthru
        _
    $region40: #{neural_network_forward.2} parent=5 // pred_fallthru
      _
    %p237 = scmp.le.s32.totalorder 1, %s13
    %p238 = scmp.lt.s32.totalorder %s13, 3
    %p239 = pnand %p237, %p238
    %p240 = pneg %p239
    // Predicated region
    $region45: #{neural_network_forward.2} parent=5 // pred_check
      _
    $region46: #{neural_network_forward.2} parent=5 // pred_check_branch
      %242 = sbr.rel (%p239) target = $region48
    $region47: #{neural_network_forward.2} parent=5 // pred_region
      %s243 = ssub.s32 %s13, 1
      %s244 = smul.u32 91, %s18
      %p245 = scmp.lt.s32.totalorder %s244, 181
      %s246 = scalar_select %p245, %s244, 181
      %s247 = smul.addr %s246, 8
      %s248 = scalar_lea.vmem %s0, %s247
      %p249 = pneg %p39
      %p250 = pneg %p36
      %p251 = pneg %p60
      %p252 = pneg %p57
      %p253 = pneg %p81
      %p254 = pneg %p78
      %p255 = pneg %p102
      %p256 = pneg %p99
      %p257 = pneg %p123
      %p258 = pneg %p120
      %p259 = pneg %p144
      %p260 = pneg %p141
      %p261 = pneg %p165
      %p262 = pneg %p162
      %p263 = pneg %p191
      %p264 = pneg %p188
      %s265 = smul.u32 4, %s18
      %p266 = scmp.lt.s32.totalorder %s265, 7
      %s267 = scalar_select %p266, %s265, 7
      %s268 = smul.addr %s267, 4
      %s269 = smul.addr %s268, 8
      %s270 = scalar_lea.vmem %s7, %s269
      %s271 = smul.u32 91, %s18
      %p272 = scmp.lt.s32.totalorder %s271, 181
      %s273 = scalar_select %p272, %s271, 181
      %s274 = smul.addr %s273, 8
      %s275 = scalar_lea.vmem %s0, %s274
      %s276 = smul.u32 91, %s18
      %s277 = smul.u32 4, %s18
      %p278 = scmp.lt.s32.totalorder %s277, 7
      %s279 = scalar_select %p278, %s277, 7
      %s280 = smul.addr %s279, 4
      %s281 = smul.addr %s280, 8
      %s282 = scalar_lea.vmem %s7, %s281
      %s283 = smul.u32 4, %s18
      %v285 = vld [vmem:[%s275] sm:$0xff]
      %v286 = vld [vmem:[%s275 + $0x8] sm:$0xff]
      %v287 = vld [vmem:[%s275 + $0x10] sm:$0xff]
      %v288 = vld [vmem:[%s275 + $0x18] sm:$0xff]
      %v289 = vld [vmem:[%s275 + $0x20] sm:$0xff]
      %v290 = vld [vmem:[%s275 + $0x28] sm:$0xff]
      %v291 = vld [vmem:[%s275 + $0x30] sm:$0xff]
      %v292 = vld [vmem:[%s275 + $0x38] sm:$0xff]
      %v293 = vld [vmem:[%s275 + $0x40] sm:$0xff]
      %v294 = vld [vmem:[%s275 + $0x48] sm:$0xff]
      %v295 = vld [vmem:[%s275 + $0x50] sm:$0xff]
      %v296 = vld [vmem:[%s275 + $0x58] sm:$0xff]
      %v297 = vld [vmem:[%s275 + $0x60] sm:$0xff]
      %v298 = vld [vmem:[%s275 + $0x68] sm:$0xff]
      %v299 = vld [vmem:[%s275 + $0x70] sm:$0xff]
      %v300 = vld [vmem:[%s275 + $0x78] sm:$0xff]
      %v301 = vld [vmem:[%s275 + $0x80] sm:$0xff]
      %v302 = vld [vmem:[%s275 + $0x88] sm:$0xff]
      %v303 = vld [vmem:[%s275 + $0x90] sm:$0xff]
      %v304 = vld [vmem:[%s275 + $0x98] sm:$0xff]
      %v305 = vld [vmem:[%s275 + $0xa0] sm:$0xff]
      %v306 = vld [vmem:[%s275 + $0xa8] sm:$0xff]
      %v307 = vld [vmem:[%s275 + $0xb0] sm:$0xff]
      %v308 = vld [vmem:[%s275 + $0xb8] sm:$0xff]
      %v309 = vld [vmem:[%s275 + $0xc0] sm:$0xff]
      %v310 = vld [vmem:[%s275 + $0xc8] sm:$0xff]
      %v311 = vld [vmem:[%s275 + $0xd0] sm:$0xff]
      %v312 = vld [vmem:[%s275 + $0xd8] sm:$0xff]
      %v313 = vld [vmem:[%s275 + $0xe0] sm:$0xff]
      %v314 = vld [vmem:[%s275 + $0xe8] sm:$0xff]
      %v315 = vld [vmem:[%s275 + $0xf0] sm:$0xff]
      %v316 = vld [vmem:[%s275 + $0xf8] sm:$0xff]
      %v317 = vld [vmem:[%s275 + $0x100] sm:$0xff]
      %v318 = vld [vmem:[%s275 + $0x108] sm:$0xff]
      %v319 = vld [vmem:[%s275 + $0x110] sm:$0xff]
      %v320 = vld [vmem:[%s275 + $0x118] sm:$0xff]
      %v321 = vld [vmem:[%s275 + $0x120] sm:$0xff]
      %v322 = vld [vmem:[%s275 + $0x128] sm:$0xff]
      %v323 = vld [vmem:[%s275 + $0x130] sm:$0xff]
      %v324 = vld [vmem:[%s275 + $0x138] sm:$0xff]
      %v325 = vld [vmem:[%s275 + $0x140] sm:$0xff]
      %v326 = vld [vmem:[%s275 + $0x148] sm:$0xff]
      %v327 = vld [vmem:[%s275 + $0x150] sm:$0xff]
      %v328 = vld [vmem:[%s275 + $0x158] sm:$0xff]
      %v329 = vld [vmem:[%s275 + $0x160] sm:$0xff]
      %v330 = vld [vmem:[%s275 + $0x168] sm:$0xff]
      %v331 = vld [vmem:[%s275 + $0x170] sm:$0xff]
      %v332 = vld [vmem:[%s275 + $0x178] sm:$0xff]
      %v333 = vld [vmem:[%s275 + $0x180] sm:$0xff]
      %v334 = vld [vmem:[%s275 + $0x188] sm:$0xff]
      %v335 = vld [vmem:[%s275 + $0x190] sm:$0xff]
      %v336 = vld [vmem:[%s275 + $0x198] sm:$0xff]
      %v337 = vld [vmem:[%s275 + $0x1a0] sm:$0xff]
      %v338 = vld [vmem:[%s275 + $0x1a8] sm:$0xff]
      %v339 = vld [vmem:[%s275 + $0x1b0] sm:$0xff]
      %v340 = vld [vmem:[%s275 + $0x1b8] sm:$0xff]
      %v341 = vld [vmem:[%s275 + $0x1c0] sm:$0xff]
      %v342 = vld [vmem:[%s275 + $0x1c8] sm:$0xff]
      %v343 = vld [vmem:[%s275 + $0x1d0] sm:$0xff]
      %v344 = vld [vmem:[%s275 + $0x1d8] sm:$0xff]
      %v345 = vld [vmem:[%s275 + $0x1e0] sm:$0xff]
      %v346 = vld [vmem:[%s275 + $0x1e8] sm:$0xff]
      %v347 = vld [vmem:[%s275 + $0x1f0] sm:$0xff]
      %v348 = vld [vmem:[%s275 + $0x1f8] sm:$0xff]
      %v349 = vld [vmem:[%s275 + $0x200] sm:$0xff]
      %v350 = vld [vmem:[%s275 + $0x208] sm:$0xff]
      %v351 = vld [vmem:[%s275 + $0x210] sm:$0xff]
      %v352 = vld [vmem:[%s275 + $0x218] sm:$0xff]
      %v353 = vld [vmem:[%s275 + $0x220] sm:$0xff]
      %v354 = vld [vmem:[%s275 + $0x228] sm:$0xff]
      %v355 = vld [vmem:[%s275 + $0x230] sm:$0xff]
      %v356 = vld [vmem:[%s275 + $0x238] sm:$0xff]
      %v357 = vld [vmem:[%s275 + $0x240] sm:$0xff]
      %v358 = vld [vmem:[%s275 + $0x248] sm:$0xff]
      %v359 = vld [vmem:[%s275 + $0x250] sm:$0xff]
      %v360 = vld [vmem:[%s275 + $0x258] sm:$0xff]
      %v361 = vld [vmem:[%s275 + $0x260] sm:$0xff]
      %v362 = vld [vmem:[%s275 + $0x268] sm:$0xff]
      %v363 = vld [vmem:[%s275 + $0x270] sm:$0xff]
      %v364 = vld [vmem:[%s275 + $0x278] sm:$0xff]
      %v365 = vld [vmem:[%s275 + $0x280] sm:$0xff]
      %v366 = vld [vmem:[%s275 + $0x288] sm:$0xff]
      %v367 = vld [vmem:[%s275 + $0x290] sm:$0xff]
      %v368 = vld [vmem:[%s275 + $0x298] sm:$0xff]
      %v369 = vld [vmem:[%s275 + $0x2a0] sm:$0xff]
      %v370 = vld [vmem:[%s275 + $0x2a8] sm:$0xff]
      %v371 = vld [vmem:[%s275 + $0x2b0] sm:$0xff]
      %v372 = vld [vmem:[%s275 + $0x2b8] sm:$0xff]
      %v373 = vld [vmem:[%s275 + $0x2c0] sm:$0xff]
      %v374 = vld [vmem:[%s275 + $0x2c8] sm:$0xff]
      %v375 = vld [vmem:[%s275 + $0x2d0] sm:$0xff]
      %v376 = vld [vmem:[%s1] sm:$0xff]
      %v377 = vld [vmem:[%s1 + $0x8] sm:$0xff]
      %v378 = vld [vmem:[%s1 + $0x10] sm:$0xff]
      %v379 = vld [vmem:[%s1 + $0x18] sm:$0xff]
      %v380 = vld [vmem:[%s1 + $0x20] sm:$0xff]
      %v381 = vld [vmem:[%s1 + $0x28] sm:$0xff]
      %v382 = vld [vmem:[%s1 + $0x30] sm:$0xff]
      %v383 = vld [vmem:[%s1 + $0x38] sm:$0xff]
      %v384 = vld [vmem:[%s1 + $0x40] sm:$0xff]
      %v385 = vld [vmem:[%s1 + $0x48] sm:$0xff]
      %v386 = vld [vmem:[%s1 + $0x50] sm:$0xff]
      %v387 = vld [vmem:[%s1 + $0x58] sm:$0xff]
      %v388 = vld [vmem:[%s1 + $0x60] sm:$0xff]
      %v389 = vld [vmem:[%s1 + $0x68] sm:$0xff]
      %v390 = vld [vmem:[%s1 + $0x70] sm:$0xff]
      %v391 = vld [vmem:[%s1 + $0x78] sm:$0xff]
      %v392 = vld [vmem:[%s1 + $0x80] sm:$0xff]
      %v393 = vld [vmem:[%s1 + $0x88] sm:$0xff]
      %v394 = vld [vmem:[%s2] sm:$0x3]
      %v396 = vlaneseq
      %v397 = vshrl.u32 %v396, 7
      %v398 = vsub.s32 0, %v397
      %v399 = vrot.slane %v394, %v398
      %v400 = vlaneseq
      %v401 = vshrl.u32 %v400, 7
      %v402 = vsub.s32 1, %v401
      %v403 = vrot.slane %v394, %v402
      %vm406 = vcmask 588800
      %v408 = vsel %vm406, %v285, 0
      %v411 = vsel %vm406, %v286, 0
      %v414 = vsel %vm406, %v287, 0
      %v417 = vsel %vm406, %v288, 0
      %v420 = vsel %vm406, %v289, 0
      %v423 = vsel %vm406, %v290, 0
      %v426 = vsel %vm406, %v291, 0
      %v429 = vsel %vm406, %v292, 0
      %v432 = vsel %vm406, %v293, 0
      %v435 = vsel %vm406, %v294, 0
      %v438 = vsel %vm406, %v295, 0
      %v441 = vsel %vm406, %v296, 0
      %v444 = vsel %vm406, %v297, 0
      %v447 = vsel %vm406, %v298, 0
      %v450 = vsel %vm406, %v299, 0
      %v453 = vsel %vm406, %v300, 0
      %v456 = vsel %vm406, %v301, 0
      %v459 = vsel %vm406, %v302, 0
      %v462 = vsel %vm406, %v303, 0
      %v465 = vsel %vm406, %v304, 0
      %v468 = vsel %vm406, %v305, 0
      %v471 = vsel %vm406, %v306, 0
      %v474 = vsel %vm406, %v307, 0
      %v477 = vsel %vm406, %v308, 0
      %v480 = vsel %vm406, %v309, 0
      %v483 = vsel %vm406, %v310, 0
      %v486 = vsel %vm406, %v311, 0
      %v489 = vsel %vm406, %v312, 0
      %v492 = vsel %vm406, %v313, 0
      %v495 = vsel %vm406, %v314, 0
      %v498 = vsel %vm406, %v315, 0
      %v501 = vsel %vm406, %v316, 0
      %v504 = vsel %vm406, %v317, 0
      %v507 = vsel %vm406, %v318, 0
      %v510 = vsel %vm406, %v319, 0
      %v513 = vsel %vm406, %v320, 0
      %v516 = vsel %vm406, %v321, 0
      %v519 = vsel %vm406, %v322, 0
      %v522 = vsel %vm406, %v323, 0
      %v525 = vsel %vm406, %v324, 0
      %v528 = vsel %vm406, %v325, 0
      %v531 = vsel %vm406, %v326, 0
      %v534 = vsel %vm406, %v327, 0
      %v537 = vsel %vm406, %v328, 0
      %v540 = vsel %vm406, %v329, 0
      %v543 = vsel %vm406, %v330, 0
      %v546 = vsel %vm406, %v331, 0
      %v549 = vsel %vm406, %v332, 0
      %v552 = vsel %vm406, %v333, 0
      %v555 = vsel %vm406, %v334, 0
      %v558 = vsel %vm406, %v335, 0
      %v561 = vsel %vm406, %v336, 0
      %v564 = vsel %vm406, %v337, 0
      %v567 = vsel %vm406, %v338, 0
      %v570 = vsel %vm406, %v339, 0
      %v573 = vsel %vm406, %v340, 0
      %v576 = vsel %vm406, %v341, 0
      %v579 = vsel %vm406, %v342, 0
      %v582 = vsel %vm406, %v343, 0
      %v585 = vsel %vm406, %v344, 0
      %v588 = vsel %vm406, %v345, 0
      %v591 = vsel %vm406, %v346, 0
      %v594 = vsel %vm406, %v347, 0
      %v597 = vsel %vm406, %v348, 0
      %v600 = vsel %vm406, %v349, 0
      %v603 = vsel %vm406, %v350, 0
      %v606 = vsel %vm406, %v351, 0
      %v609 = vsel %vm406, %v352, 0
      %v612 = vsel %vm406, %v353, 0
      %v615 = vsel %vm406, %v354, 0
      %v618 = vsel %vm406, %v355, 0
      %v621 = vsel %vm406, %v356, 0
      %v624 = vsel %vm406, %v357, 0
      %v627 = vsel %vm406, %v358, 0
      %v630 = vsel %vm406, %v359, 0
      %v633 = vsel %vm406, %v360, 0
      %v636 = vsel %vm406, %v361, 0
      %v639 = vsel %vm406, %v362, 0
      %v642 = vsel %vm406, %v363, 0
      %v645 = vsel %vm406, %v364, 0
      %v648 = vsel %vm406, %v365, 0
      %v651 = vsel %vm406, %v366, 0
      %v654 = vsel %vm406, %v367, 0
      %v657 = vsel %vm406, %v368, 0
      %v660 = vsel %vm406, %v369, 0
      %v663 = vsel %vm406, %v370, 0
      %v666 = vsel %vm406, %v371, 0
      %v669 = vsel %vm406, %v372, 0
      %v672 = vsel %vm406, %v373, 0
      %v675 = vsel %vm406, %v374, 0
      %v678 = vsel %vm406, %v375, 0
      %680 = vmatprep.subr.mxu0 0.0
      %681 = vmatpush1.msra.mxu0 0.0
      %682 = vmatprep.subr.mxu0 0.0
      %683 = vmatpush1.msra.mxu0 0.0
      %684 = vmatprep.subr.mxu0 0.0
      %685 = vmatpush1.msra.mxu0 0.0
      %686 = vmatprep.subr.mxu0 0.0
      %687 = vmatpush1.msra.mxu0 0.0
      %688 = vmatprep.subr.mxu0 0.0
      %689 = vmatpush1.msra.mxu0 0.0
      %690 = vmatprep.subr.mxu0 0.0
      %691 = vmatpush1.msra.mxu0 0.0
      %692 = vmatprep.subr.mxu0 0.0
      %693 = vmatpush1.msra.mxu0 0.0
      %694 = vmatprep.subr.mxu0 %v393
      %695 = vmatpush1.msra.mxu0 %v392
      %696 = vmatprep.subr.mxu0 %v391
      %697 = vmatpush1.msra.mxu0 %v390
      %698 = vmatprep.subr.mxu0 %v389
      %699 = vmatpush1.msra.mxu0 %v388
      %700 = vmatprep.subr.mxu0 %v387
      %701 = vmatpush1.msra.mxu0 %v386
      %702 = vmatprep.subr.mxu0 %v385
      %703 = vmatpush1.msra.mxu0 %v384
      %704 = vmatprep.subr.mxu0 %v383
      %705 = vmatpush1.msra.mxu0 %v382
      %706 = vmatprep.subr.mxu0 %v381
      %707 = vmatpush1.msra.mxu0 %v380
      %708 = vmatprep.subr.mxu0 %v379
      %709 = vmatpush1.msra.mxu0 %v378
      %710 = vmatprep.subr.mxu0 %v377
      %711 = vmatpush1.msra.mxu0 %v376
      %712 = vmatprep.subr.mxu0 0.0
      %713 = vmatpush2.msra.mxu0 0.0
      %714 = vmatprep.subr.mxu0 0.0
      %715 = vmatpush2.msra.mxu0 0.0
      %716 = vmatprep.subr.mxu0 0.0
      %717 = vmatpush2.msra.mxu0 0.0
      %718 = vmatprep.subr.mxu0 0.0
      %719 = vmatpush2.msra.mxu0 0.0
      %720 = vmatprep.subr.mxu0 0.0
      %721 = vmatpush2.msra.mxu0 0.0
      %722 = vmatprep.subr.mxu0 0.0
      %723 = vmatpush2.msra.mxu0 0.0
      %724 = vmatprep.subr.mxu0 0.0
      %725 = vmatpush2.msra.mxu0 0.0
      %726 = vmatprep.subr.mxu0 0.0
      %727 = vmatpush2.msra.mxu0 0.0
      %728 = vmatprep.subr.mxu0 0.0
      %729 = vmatpush2.msra.mxu0 0.0
      %730 = vmatprep.subr.mxu0 0.0
      %731 = vmatpush2.msra.mxu0 0.0
      %732 = vmatprep.subr.mxu0 0.0
      %733 = vmatpush2.msra.mxu0 0.0
      %734 = vmatprep.subr.mxu0 0.0
      %735 = vmatpush2.msra.mxu0 0.0
      %736 = vmatprep.subr.mxu0 0.0
      %737 = vmatpush2.msra.mxu0 0.0
      %738 = vmatprep.subr.mxu0 0.0
      %739 = vmatpush2.msra.mxu0 0.0
      %740 = vmatprep.subr.mxu0 0.0
      %741 = vmatpush2.msra.mxu0 0.0
      %742 = vmatprep.subr.mxu0 0.0
      %743 = vmatpush2.msra.mxu0 0.0
      %744 = vmatprep.mubr.f32.mxu0 0.0
      %745 = vmatmul.mubr.f32.gmra.mxu0 %v408
      %v746 = vpop.f32.mrf.mxu0
      %v747 = vadd.f32 %v399, %v746
      %v748 = vpop.f32.mrf.mxu0
      %v749 = vadd.f32 %v403, %v748
      %750 = vmatprep.mubr.f32.mxu0 0.0
      %751 = vmatmul.mubr.f32.gmra.mxu0 %v411
      %v752 = vpop.f32.mrf.mxu0
      %v753 = vadd.f32 %v399, %v752
      %v754 = vpop.f32.mrf.mxu0
      %v755 = vadd.f32 %v403, %v754
      %756 = vmatprep.mubr.f32.mxu0 0.0
      %757 = vmatmul.mubr.f32.gmra.mxu0 %v414
      %v758 = vpop.f32.mrf.mxu0
      %v759 = vadd.f32 %v399, %v758
      %v760 = vpop.f32.mrf.mxu0
      %v761 = vadd.f32 %v403, %v760
      %762 = vmatprep.mubr.f32.mxu0 0.0
      %763 = vmatmul.mubr.f32.gmra.mxu0 %v417
      %v764 = vpop.f32.mrf.mxu0
      %v765 = vadd.f32 %v399, %v764
      %v766 = vpop.f32.mrf.mxu0
      %v767 = vadd.f32 %v403, %v766
      %768 = vmatprep.mubr.f32.mxu0 0.0
      %769 = vmatmul.mubr.f32.gmra.mxu0 %v420
      %v770 = vpop.f32.mrf.mxu0
      %v771 = vadd.f32 %v399, %v770
      %v772 = vpop.f32.mrf.mxu0
      %v773 = vadd.f32 %v403, %v772
      %774 = vmatprep.mubr.f32.mxu0 0.0
      %775 = vmatmul.mubr.f32.gmra.mxu0 %v423
      %v776 = vpop.f32.mrf.mxu0
      %v777 = vadd.f32 %v399, %v776
      %v778 = vpop.f32.mrf.mxu0
      %v779 = vadd.f32 %v403, %v778
      %780 = vmatprep.mubr.f32.mxu0 0.0
      %781 = vmatmul.mubr.f32.gmra.mxu0 %v426
      %v782 = vpop.f32.mrf.mxu0
      %v783 = vadd.f32 %v399, %v782
      %v784 = vpop.f32.mrf.mxu0
      %v785 = vadd.f32 %v403, %v784
      %786 = vmatprep.mubr.f32.mxu0 0.0
      %787 = vmatmul.mubr.f32.gmra.mxu0 %v429
      %v788 = vpop.f32.mrf.mxu0
      %v789 = vadd.f32 %v399, %v788
      %v790 = vpop.f32.mrf.mxu0
      %v791 = vadd.f32 %v403, %v790
      %792 = vmatprep.mubr.f32.mxu0 0.0
      %793 = vmatmul.mubr.f32.gmra.mxu0 %v432
      %v794 = vpop.f32.mrf.mxu0
      %v795 = vadd.f32 %v399, %v794
      %v796 = vpop.f32.mrf.mxu0
      %v797 = vadd.f32 %v403, %v796
      %798 = vmatprep.mubr.f32.mxu0 0.0
      %799 = vmatmul.mubr.f32.gmra.mxu0 %v435
      %v800 = vpop.f32.mrf.mxu0
      %v801 = vadd.f32 %v399, %v800
      %v802 = vpop.f32.mrf.mxu0
      %v803 = vadd.f32 %v403, %v802
      %804 = vmatprep.mubr.f32.mxu0 0.0
      %805 = vmatmul.mubr.f32.gmra.mxu0 %v438
      %v806 = vpop.f32.mrf.mxu0
      %v807 = vadd.f32 %v399, %v806
      %v808 = vpop.f32.mrf.mxu0
      %v809 = vadd.f32 %v403, %v808
      %810 = vmatprep.mubr.f32.mxu0 0.0
      %811 = vmatmul.mubr.f32.gmra.mxu0 %v441
      %v812 = vpop.f32.mrf.mxu0
      %v813 = vadd.f32 %v399, %v812
      %v814 = vpop.f32.mrf.mxu0
      %v815 = vadd.f32 %v403, %v814
      %816 = vmatprep.mubr.f32.mxu0 0.0
      %817 = vmatmul.mubr.f32.gmra.mxu0 %v444
      %v818 = vpop.f32.mrf.mxu0
      %v819 = vadd.f32 %v399, %v818
      %v820 = vpop.f32.mrf.mxu0
      %v821 = vadd.f32 %v403, %v820
      %822 = vmatprep.mubr.f32.mxu0 0.0
      %823 = vmatmul.mubr.f32.gmra.mxu0 %v447
      %v824 = vpop.f32.mrf.mxu0
      %v825 = vadd.f32 %v399, %v824
      %v826 = vpop.f32.mrf.mxu0
      %v827 = vadd.f32 %v403, %v826
      %828 = vmatprep.mubr.f32.mxu0 0.0
      %829 = vmatmul.mubr.f32.gmra.mxu0 %v450
      %v830 = vpop.f32.mrf.mxu0
      %v831 = vadd.f32 %v399, %v830
      %v832 = vpop.f32.mrf.mxu0
      %v833 = vadd.f32 %v403, %v832
      %834 = vmatprep.mubr.f32.mxu0 0.0
      %835 = vmatmul.mubr.f32.gmra.mxu0 %v453
      %v836 = vpop.f32.mrf.mxu0
      %v837 = vadd.f32 %v399, %v836
      %v838 = vpop.f32.mrf.mxu0
      %v839 = vadd.f32 %v403, %v838
      %840 = vmatprep.mubr.f32.mxu0 0.0
      %841 = vmatmul.mubr.f32.gmra.mxu0 %v456
      %v842 = vpop.f32.mrf.mxu0
      %v843 = vadd.f32 %v399, %v842
      %v844 = vpop.f32.mrf.mxu0
      %v845 = vadd.f32 %v403, %v844
      %846 = vmatprep.mubr.f32.mxu0 0.0
      %847 = vmatmul.mubr.f32.gmra.mxu0 %v459
      %v848 = vpop.f32.mrf.mxu0
      %v849 = vadd.f32 %v399, %v848
      %v850 = vpop.f32.mrf.mxu0
      %v851 = vadd.f32 %v403, %v850
      %852 = vmatprep.mubr.f32.mxu0 0.0
      %853 = vmatmul.mubr.f32.gmra.mxu0 %v462
      %v854 = vpop.f32.mrf.mxu0
      %v855 = vadd.f32 %v399, %v854
      %v856 = vpop.f32.mrf.mxu0
      %v857 = vadd.f32 %v403, %v856
      %858 = vmatprep.mubr.f32.mxu0 0.0
      %859 = vmatmul.mubr.f32.gmra.mxu0 %v465
      %v860 = vpop.f32.mrf.mxu0
      %v861 = vadd.f32 %v399, %v860
      %v862 = vpop.f32.mrf.mxu0
      %v863 = vadd.f32 %v403, %v862
      %864 = vmatprep.mubr.f32.mxu0 0.0
      %865 = vmatmul.mubr.f32.gmra.mxu0 %v468
      %v866 = vpop.f32.mrf.mxu0
      %v867 = vadd.f32 %v399, %v866
      %v868 = vpop.f32.mrf.mxu0
      %v869 = vadd.f32 %v403, %v868
      %870 = vmatprep.mubr.f32.mxu0 0.0
      %871 = vmatmul.mubr.f32.gmra.mxu0 %v471
      %v872 = vpop.f32.mrf.mxu0
      %v873 = vadd.f32 %v399, %v872
      %v874 = vpop.f32.mrf.mxu0
      %v875 = vadd.f32 %v403, %v874
      %876 = vmatprep.mubr.f32.mxu0 0.0
      %877 = vmatmul.mubr.f32.gmra.mxu0 %v474
      %v878 = vpop.f32.mrf.mxu0
      %v879 = vadd.f32 %v399, %v878
      %v880 = vpop.f32.mrf.mxu0
      %v881 = vadd.f32 %v403, %v880
      %882 = vmatprep.mubr.f32.mxu0 0.0
      %883 = vmatmul.mubr.f32.gmra.mxu0 %v477
      %v884 = vpop.f32.mrf.mxu0
      %v885 = vadd.f32 %v399, %v884
      %v886 = vpop.f32.mrf.mxu0
      %v887 = vadd.f32 %v403, %v886
      %888 = vmatprep.mubr.f32.mxu0 0.0
      %889 = vmatmul.mubr.f32.gmra.mxu0 %v480
      %v890 = vpop.f32.mrf.mxu0
      %v891 = vadd.f32 %v399, %v890
      %v892 = vpop.f32.mrf.mxu0
      %v893 = vadd.f32 %v403, %v892
      %894 = vmatprep.mubr.f32.mxu0 0.0
      %895 = vmatmul.mubr.f32.gmra.mxu0 %v483
      %v896 = vpop.f32.mrf.mxu0
      %v897 = vadd.f32 %v399, %v896
      %v898 = vpop.f32.mrf.mxu0
      %v899 = vadd.f32 %v403, %v898
      %900 = vmatprep.mubr.f32.mxu0 0.0
      %901 = vmatmul.mubr.f32.gmra.mxu0 %v486
      %v902 = vpop.f32.mrf.mxu0
      %v903 = vadd.f32 %v399, %v902
      %v904 = vpop.f32.mrf.mxu0
      %v905 = vadd.f32 %v403, %v904
      %906 = vmatprep.mubr.f32.mxu0 0.0
      %907 = vmatmul.mubr.f32.gmra.mxu0 %v489
      %v908 = vpop.f32.mrf.mxu0
      %v909 = vadd.f32 %v399, %v908
      %v910 = vpop.f32.mrf.mxu0
      %v911 = vadd.f32 %v403, %v910
      %912 = vmatprep.mubr.f32.mxu0 0.0
      %913 = vmatmul.mubr.f32.gmra.mxu0 %v492
      %v914 = vpop.f32.mrf.mxu0
      %v915 = vadd.f32 %v399, %v914
      %v916 = vpop.f32.mrf.mxu0
      %v917 = vadd.f32 %v403, %v916
      %918 = vmatprep.mubr.f32.mxu0 0.0
      %919 = vmatmul.mubr.f32.gmra.mxu0 %v495
      %v920 = vpop.f32.mrf.mxu0
      %v921 = vadd.f32 %v399, %v920
      %v922 = vpop.f32.mrf.mxu0
      %v923 = vadd.f32 %v403, %v922
      %924 = vmatprep.mubr.f32.mxu0 0.0
      %925 = vmatmul.mubr.f32.gmra.mxu0 %v498
      %v926 = vpop.f32.mrf.mxu0
      %v927 = vadd.f32 %v399, %v926
      %v928 = vpop.f32.mrf.mxu0
      %v929 = vadd.f32 %v403, %v928
      %930 = vmatprep.mubr.f32.mxu0 0.0
      %931 = vmatmul.mubr.f32.gmra.mxu0 %v501
      %v932 = vpop.f32.mrf.mxu0
      %v933 = vadd.f32 %v399, %v932
      %v934 = vpop.f32.mrf.mxu0
      %v935 = vadd.f32 %v403, %v934
      %936 = vmatprep.mubr.f32.mxu0 0.0
      %937 = vmatmul.mubr.f32.gmra.mxu0 %v504
      %v938 = vpop.f32.mrf.mxu0
      %v939 = vadd.f32 %v399, %v938
      %v940 = vpop.f32.mrf.mxu0
      %v941 = vadd.f32 %v403, %v940
      %942 = vmatprep.mubr.f32.mxu0 0.0
      %943 = vmatmul.mubr.f32.gmra.mxu0 %v507
      %v944 = vpop.f32.mrf.mxu0
      %v945 = vadd.f32 %v399, %v944
      %v946 = vpop.f32.mrf.mxu0
      %v947 = vadd.f32 %v403, %v946
      %948 = vmatprep.mubr.f32.mxu0 0.0
      %949 = vmatmul.mubr.f32.gmra.mxu0 %v510
      %v950 = vpop.f32.mrf.mxu0
      %v951 = vadd.f32 %v399, %v950
      %v952 = vpop.f32.mrf.mxu0
      %v953 = vadd.f32 %v403, %v952
      %954 = vmatprep.mubr.f32.mxu0 0.0
      %955 = vmatmul.mubr.f32.gmra.mxu0 %v513
      %v956 = vpop.f32.mrf.mxu0
      %v957 = vadd.f32 %v399, %v956
      %v958 = vpop.f32.mrf.mxu0
      %v959 = vadd.f32 %v403, %v958
      %960 = vmatprep.mubr.f32.mxu0 0.0
      %961 = vmatmul.mubr.f32.gmra.mxu0 %v516
      %v962 = vpop.f32.mrf.mxu0
      %v963 = vadd.f32 %v399, %v962
      %v964 = vpop.f32.mrf.mxu0
      %v965 = vadd.f32 %v403, %v964
      %966 = vmatprep.mubr.f32.mxu0 0.0
      %967 = vmatmul.mubr.f32.gmra.mxu0 %v519
      %v968 = vpop.f32.mrf.mxu0
      %v969 = vadd.f32 %v399, %v968
      %v970 = vpop.f32.mrf.mxu0
      %v971 = vadd.f32 %v403, %v970
      %972 = vmatprep.mubr.f32.mxu0 0.0
      %973 = vmatmul.mubr.f32.gmra.mxu0 %v522
      %v974 = vpop.f32.mrf.mxu0
      %v975 = vadd.f32 %v399, %v974
      %v976 = vpop.f32.mrf.mxu0
      %v977 = vadd.f32 %v403, %v976
      %978 = vmatprep.mubr.f32.mxu0 0.0
      %979 = vmatmul.mubr.f32.gmra.mxu0 %v525
      %v980 = vpop.f32.mrf.mxu0
      %v981 = vadd.f32 %v399, %v980
      %v982 = vpop.f32.mrf.mxu0
      %v983 = vadd.f32 %v403, %v982
      %984 = vmatprep.mubr.f32.mxu0 0.0
      %985 = vmatmul.mubr.f32.gmra.mxu0 %v528
      %v986 = vpop.f32.mrf.mxu0
      %v987 = vadd.f32 %v399, %v986
      %v988 = vpop.f32.mrf.mxu0
      %v989 = vadd.f32 %v403, %v988
      %990 = vmatprep.mubr.f32.mxu0 0.0
      %991 = vmatmul.mubr.f32.gmra.mxu0 %v531
      %v992 = vpop.f32.mrf.mxu0
      %v993 = vadd.f32 %v399, %v992
      %v994 = vpop.f32.mrf.mxu0
      %v995 = vadd.f32 %v403, %v994
      %996 = vmatprep.mubr.f32.mxu0 0.0
      %997 = vmatmul.mubr.f32.gmra.mxu0 %v534
      %v998 = vpop.f32.mrf.mxu0
      %v999 = vadd.f32 %v399, %v998
      %v1000 = vpop.f32.mrf.mxu0
      %v1001 = vadd.f32 %v403, %v1000
      %1002 = vmatprep.mubr.f32.mxu0 0.0
      %1003 = vmatmul.mubr.f32.gmra.mxu0 %v537
      %v1004 = vpop.f32.mrf.mxu0
      %v1005 = vadd.f32 %v399, %v1004
      %v1006 = vpop.f32.mrf.mxu0
      %v1007 = vadd.f32 %v403, %v1006
      %1008 = vmatprep.mubr.f32.mxu0 0.0
      %1009 = vmatmul.mubr.f32.gmra.mxu0 %v540
      %v1010 = vpop.f32.mrf.mxu0
      %v1011 = vadd.f32 %v399, %v1010
      %v1012 = vpop.f32.mrf.mxu0
      %v1013 = vadd.f32 %v403, %v1012
      %1014 = vmatprep.mubr.f32.mxu0 0.0
      %1015 = vmatmul.mubr.f32.gmra.mxu0 %v543
      %v1016 = vpop.f32.mrf.mxu0
      %v1017 = vadd.f32 %v399, %v1016
      %v1018 = vpop.f32.mrf.mxu0
      %v1019 = vadd.f32 %v403, %v1018
      %1020 = vmatprep.mubr.f32.mxu0 0.0
      %1021 = vmatmul.mubr.f32.gmra.mxu0 %v546
      %v1022 = vpop.f32.mrf.mxu0
      %v1023 = vadd.f32 %v399, %v1022
      %v1024 = vpop.f32.mrf.mxu0
      %v1025 = vadd.f32 %v403, %v1024
      %1026 = vmatprep.mubr.f32.mxu0 0.0
      %1027 = vmatmul.mubr.f32.gmra.mxu0 %v549
      %v1028 = vpop.f32.mrf.mxu0
      %v1029 = vadd.f32 %v399, %v1028
      %v1030 = vpop.f32.mrf.mxu0
      %v1031 = vadd.f32 %v403, %v1030
      %1032 = vmatprep.mubr.f32.mxu0 0.0
      %1033 = vmatmul.mubr.f32.gmra.mxu0 %v552
      %v1034 = vpop.f32.mrf.mxu0
      %v1035 = vadd.f32 %v399, %v1034
      %v1036 = vpop.f32.mrf.mxu0
      %v1037 = vadd.f32 %v403, %v1036
      %1038 = vmatprep.mubr.f32.mxu0 0.0
      %1039 = vmatmul.mubr.f32.gmra.mxu0 %v555
      %v1040 = vpop.f32.mrf.mxu0
      %v1041 = vadd.f32 %v399, %v1040
      %v1042 = vpop.f32.mrf.mxu0
      %v1043 = vadd.f32 %v403, %v1042
      %1044 = vmatprep.mubr.f32.mxu0 0.0
      %1045 = vmatmul.mubr.f32.gmra.mxu0 %v558
      %v1046 = vpop.f32.mrf.mxu0
      %v1047 = vadd.f32 %v399, %v1046
      %v1048 = vpop.f32.mrf.mxu0
      %v1049 = vadd.f32 %v403, %v1048
      %1050 = vmatprep.mubr.f32.mxu0 0.0
      %1051 = vmatmul.mubr.f32.gmra.mxu0 %v561
      %v1052 = vpop.f32.mrf.mxu0
      %v1053 = vadd.f32 %v399, %v1052
      %v1054 = vpop.f32.mrf.mxu0
      %v1055 = vadd.f32 %v403, %v1054
      %1056 = vmatprep.mubr.f32.mxu0 0.0
      %1057 = vmatmul.mubr.f32.gmra.mxu0 %v564
      %v1058 = vpop.f32.mrf.mxu0
      %v1059 = vadd.f32 %v399, %v1058
      %v1060 = vpop.f32.mrf.mxu0
      %v1061 = vadd.f32 %v403, %v1060
      %1062 = vmatprep.mubr.f32.mxu0 0.0
      %1063 = vmatmul.mubr.f32.gmra.mxu0 %v567
      %v1064 = vpop.f32.mrf.mxu0
      %v1065 = vadd.f32 %v399, %v1064
      %v1066 = vpop.f32.mrf.mxu0
      %v1067 = vadd.f32 %v403, %v1066
      %1068 = vmatprep.mubr.f32.mxu0 0.0
      %1069 = vmatmul.mubr.f32.gmra.mxu0 %v570
      %v1070 = vpop.f32.mrf.mxu0
      %v1071 = vadd.f32 %v399, %v1070
      %v1072 = vpop.f32.mrf.mxu0
      %v1073 = vadd.f32 %v403, %v1072
      %1074 = vmatprep.mubr.f32.mxu0 0.0
      %1075 = vmatmul.mubr.f32.gmra.mxu0 %v573
      %v1076 = vpop.f32.mrf.mxu0
      %v1077 = vadd.f32 %v399, %v1076
      %v1078 = vpop.f32.mrf.mxu0
      %v1079 = vadd.f32 %v403, %v1078
      %1080 = vmatprep.mubr.f32.mxu0 0.0
      %1081 = vmatmul.mubr.f32.gmra.mxu0 %v576
      %v1082 = vpop.f32.mrf.mxu0
      %v1083 = vadd.f32 %v399, %v1082
      %v1084 = vpop.f32.mrf.mxu0
      %v1085 = vadd.f32 %v403, %v1084
      %1086 = vmatprep.mubr.f32.mxu0 0.0
      %1087 = vmatmul.mubr.f32.gmra.mxu0 %v579
      %v1088 = vpop.f32.mrf.mxu0
      %v1089 = vadd.f32 %v399, %v1088
      %v1090 = vpop.f32.mrf.mxu0
      %v1091 = vadd.f32 %v403, %v1090
      %1092 = vmatprep.mubr.f32.mxu0 0.0
      %1093 = vmatmul.mubr.f32.gmra.mxu0 %v582
      %v1094 = vpop.f32.mrf.mxu0
      %v1095 = vadd.f32 %v399, %v1094
      %v1096 = vpop.f32.mrf.mxu0
      %v1097 = vadd.f32 %v403, %v1096
      %1098 = vmatprep.mubr.f32.mxu0 0.0
      %1099 = vmatmul.mubr.f32.gmra.mxu0 %v585
      %v1100 = vpop.f32.mrf.mxu0
      %v1101 = vadd.f32 %v399, %v1100
      %v1102 = vpop.f32.mrf.mxu0
      %v1103 = vadd.f32 %v403, %v1102
      %1104 = vmatprep.mubr.f32.mxu0 0.0
      %1105 = vmatmul.mubr.f32.gmra.mxu0 %v588
      %v1106 = vpop.f32.mrf.mxu0
      %v1107 = vadd.f32 %v399, %v1106
      %v1108 = vpop.f32.mrf.mxu0
      %v1109 = vadd.f32 %v403, %v1108
      %1110 = vmatprep.mubr.f32.mxu0 0.0
      %1111 = vmatmul.mubr.f32.gmra.mxu0 %v591
      %v1112 = vpop.f32.mrf.mxu0
      %v1113 = vadd.f32 %v399, %v1112
      %v1114 = vpop.f32.mrf.mxu0
      %v1115 = vadd.f32 %v403, %v1114
      %1116 = vmatprep.mubr.f32.mxu0 0.0
      %1117 = vmatmul.mubr.f32.gmra.mxu0 %v594
      %v1118 = vpop.f32.mrf.mxu0
      %v1119 = vadd.f32 %v399, %v1118
      %v1120 = vpop.f32.mrf.mxu0
      %v1121 = vadd.f32 %v403, %v1120
      %1122 = vmatprep.mubr.f32.mxu0 0.0
      %1123 = vmatmul.mubr.f32.gmra.mxu0 %v597
      %v1124 = vpop.f32.mrf.mxu0
      %v1125 = vadd.f32 %v399, %v1124
      %v1126 = vpop.f32.mrf.mxu0
      %v1127 = vadd.f32 %v403, %v1126
      %1128 = vmatprep.mubr.f32.mxu0 0.0
      %1129 = vmatmul.mubr.f32.gmra.mxu0 %v600
      %v1130 = vpop.f32.mrf.mxu0
      %v1131 = vadd.f32 %v399, %v1130
      %v1132 = vpop.f32.mrf.mxu0
      %v1133 = vadd.f32 %v403, %v1132
      %1134 = vmatprep.mubr.f32.mxu0 0.0
      %1135 = vmatmul.mubr.f32.gmra.mxu0 %v603
      %v1136 = vpop.f32.mrf.mxu0
      %v1137 = vadd.f32 %v399, %v1136
      %v1138 = vpop.f32.mrf.mxu0
      %v1139 = vadd.f32 %v403, %v1138
      %1140 = vmatprep.mubr.f32.mxu0 0.0
      %1141 = vmatmul.mubr.f32.gmra.mxu0 %v606
      %v1142 = vpop.f32.mrf.mxu0
      %v1143 = vadd.f32 %v399, %v1142
      %v1144 = vpop.f32.mrf.mxu0
      %v1145 = vadd.f32 %v403, %v1144
      %1146 = vmatprep.mubr.f32.mxu0 0.0
      %1147 = vmatmul.mubr.f32.gmra.mxu0 %v609
      %v1148 = vpop.f32.mrf.mxu0
      %v1149 = vadd.f32 %v399, %v1148
      %v1150 = vpop.f32.mrf.mxu0
      %v1151 = vadd.f32 %v403, %v1150
      %1152 = vmatprep.mubr.f32.mxu0 0.0
      %1153 = vmatmul.mubr.f32.gmra.mxu0 %v612
      %v1154 = vpop.f32.mrf.mxu0
      %v1155 = vadd.f32 %v399, %v1154
      %v1156 = vpop.f32.mrf.mxu0
      %v1157 = vadd.f32 %v403, %v1156
      %1158 = vmatprep.mubr.f32.mxu0 0.0
      %1159 = vmatmul.mubr.f32.gmra.mxu0 %v615
      %v1160 = vpop.f32.mrf.mxu0
      %v1161 = vadd.f32 %v399, %v1160
      %v1162 = vpop.f32.mrf.mxu0
      %v1163 = vadd.f32 %v403, %v1162
      %1164 = vmatprep.mubr.f32.mxu0 0.0
      %1165 = vmatmul.mubr.f32.gmra.mxu0 %v618
      %v1166 = vpop.f32.mrf.mxu0
      %v1167 = vadd.f32 %v399, %v1166
      %v1168 = vpop.f32.mrf.mxu0
      %v1169 = vadd.f32 %v403, %v1168
      %1170 = vmatprep.mubr.f32.mxu0 0.0
      %1171 = vmatmul.mubr.f32.gmra.mxu0 %v621
      %v1172 = vpop.f32.mrf.mxu0
      %v1173 = vadd.f32 %v399, %v1172
      %v1174 = vpop.f32.mrf.mxu0
      %v1175 = vadd.f32 %v403, %v1174
      %1176 = vmatprep.mubr.f32.mxu0 0.0
      %1177 = vmatmul.mubr.f32.gmra.mxu0 %v624
      %v1178 = vpop.f32.mrf.mxu0
      %v1179 = vadd.f32 %v399, %v1178
      %v1180 = vpop.f32.mrf.mxu0
      %v1181 = vadd.f32 %v403, %v1180
      %1182 = vmatprep.mubr.f32.mxu0 0.0
      %1183 = vmatmul.mubr.f32.gmra.mxu0 %v627
      %v1184 = vpop.f32.mrf.mxu0
      %v1185 = vadd.f32 %v399, %v1184
      %v1186 = vpop.f32.mrf.mxu0
      %v1187 = vadd.f32 %v403, %v1186
      %1188 = vmatprep.mubr.f32.mxu0 0.0
      %1189 = vmatmul.mubr.f32.gmra.mxu0 %v630
      %v1190 = vpop.f32.mrf.mxu0
      %v1191 = vadd.f32 %v399, %v1190
      %v1192 = vpop.f32.mrf.mxu0
      %v1193 = vadd.f32 %v403, %v1192
      %1194 = vmatprep.mubr.f32.mxu0 0.0
      %1195 = vmatmul.mubr.f32.gmra.mxu0 %v633
      %v1196 = vpop.f32.mrf.mxu0
      %v1197 = vadd.f32 %v399, %v1196
      %v1198 = vpop.f32.mrf.mxu0
      %v1199 = vadd.f32 %v403, %v1198
      %1200 = vmatprep.mubr.f32.mxu0 0.0
      %1201 = vmatmul.mubr.f32.gmra.mxu0 %v636
      %v1202 = vpop.f32.mrf.mxu0
      %v1203 = vadd.f32 %v399, %v1202
      %v1204 = vpop.f32.mrf.mxu0
      %v1205 = vadd.f32 %v403, %v1204
      %1206 = vmatprep.mubr.f32.mxu0 0.0
      %1207 = vmatmul.mubr.f32.gmra.mxu0 %v639
      %v1208 = vpop.f32.mrf.mxu0
      %v1209 = vadd.f32 %v399, %v1208
      %v1210 = vpop.f32.mrf.mxu0
      %v1211 = vadd.f32 %v403, %v1210
      %1212 = vmatprep.mubr.f32.mxu0 0.0
      %1213 = vmatmul.mubr.f32.gmra.mxu0 %v642
      %v1214 = vpop.f32.mrf.mxu0
      %v1215 = vadd.f32 %v399, %v1214
      %v1216 = vpop.f32.mrf.mxu0
      %v1217 = vadd.f32 %v403, %v1216
      %1218 = vmatprep.mubr.f32.mxu0 0.0
      %1219 = vmatmul.mubr.f32.gmra.mxu0 %v645
      %v1220 = vpop.f32.mrf.mxu0
      %v1221 = vadd.f32 %v399, %v1220
      %v1222 = vpop.f32.mrf.mxu0
      %v1223 = vadd.f32 %v403, %v1222
      %1224 = vmatprep.mubr.f32.mxu0 0.0
      %1225 = vmatmul.mubr.f32.gmra.mxu0 %v648
      %v1226 = vpop.f32.mrf.mxu0
      %v1227 = vadd.f32 %v399, %v1226
      %v1228 = vpop.f32.mrf.mxu0
      %v1229 = vadd.f32 %v403, %v1228
      %1230 = vmatprep.mubr.f32.mxu0 0.0
      %1231 = vmatmul.mubr.f32.gmra.mxu0 %v651
      %v1232 = vpop.f32.mrf.mxu0
      %v1233 = vadd.f32 %v399, %v1232
      %v1234 = vpop.f32.mrf.mxu0
      %v1235 = vadd.f32 %v403, %v1234
      %1236 = vmatprep.mubr.f32.mxu0 0.0
      %1237 = vmatmul.mubr.f32.gmra.mxu0 %v654
      %v1238 = vpop.f32.mrf.mxu0
      %v1239 = vadd.f32 %v399, %v1238
      %v1240 = vpop.f32.mrf.mxu0
      %v1241 = vadd.f32 %v403, %v1240
      %1242 = vmatprep.mubr.f32.mxu0 0.0
      %1243 = vmatmul.mubr.f32.gmra.mxu0 %v657
      %v1244 = vpop.f32.mrf.mxu0
      %v1245 = vadd.f32 %v399, %v1244
      %v1246 = vpop.f32.mrf.mxu0
      %v1247 = vadd.f32 %v403, %v1246
      %1248 = vmatprep.mubr.f32.mxu0 0.0
      %1249 = vmatmul.mubr.f32.gmra.mxu0 %v660
      %v1250 = vpop.f32.mrf.mxu0
      %v1251 = vadd.f32 %v399, %v1250
      %v1252 = vpop.f32.mrf.mxu0
      %v1253 = vadd.f32 %v403, %v1252
      %1254 = vmatprep.mubr.f32.mxu0 0.0
      %1255 = vmatmul.mubr.f32.gmra.mxu0 %v663
      %v1256 = vpop.f32.mrf.mxu0
      %v1257 = vadd.f32 %v399, %v1256
      %v1258 = vpop.f32.mrf.mxu0
      %v1259 = vadd.f32 %v403, %v1258
      %1260 = vmatprep.mubr.f32.mxu0 0.0
      %1261 = vmatmul.mubr.f32.gmra.mxu0 %v666
      %v1262 = vpop.f32.mrf.mxu0
      %v1263 = vadd.f32 %v399, %v1262
      %v1264 = vpop.f32.mrf.mxu0
      %v1265 = vadd.f32 %v403, %v1264
      %1266 = vmatprep.mubr.f32.mxu0 0.0
      %1267 = vmatmul.mubr.f32.gmra.mxu0 %v669
      %v1268 = vpop.f32.mrf.mxu0
      %v1269 = vadd.f32 %v399, %v1268
      %v1270 = vpop.f32.mrf.mxu0
      %v1271 = vadd.f32 %v403, %v1270
      %1272 = vmatprep.mubr.f32.mxu0 0.0
      %1273 = vmatmul.mubr.f32.gmra.mxu0 %v672
      %v1274 = vpop.f32.mrf.mxu0
      %v1275 = vadd.f32 %v399, %v1274
      %v1276 = vpop.f32.mrf.mxu0
      %v1277 = vadd.f32 %v403, %v1276
      %1278 = vmatprep.mubr.f32.mxu0 0.0
      %1279 = vmatmul.mubr.f32.gmra.mxu0 %v675
      %v1280 = vpop.f32.mrf.mxu0
      %v1281 = vadd.f32 %v399, %v1280
      %v1282 = vpop.f32.mrf.mxu0
      %v1283 = vadd.f32 %v403, %v1282
      %1284 = vmatprep.mubr.f32.mxu0 0.0
      %1285 = vmatmul.mubr.f32.gmra.mxu0 %v678
      %v1286 = vpop.f32.mrf.mxu0
      %v1287 = vadd.f32 %v399, %v1286
      %v1288 = vpop.f32.mrf.mxu0
      %v1289 = vadd.f32 %v403, %v1288
      %1290 = vdwg.mxu0
      %v1291 = vmax.f32 %v747, 0.0
      %v1292 = vmax.f32 %v749, 0.0
      %v1293 = vmax.f32 %v753, 0.0
      %v1294 = vmax.f32 %v755, 0.0
      %v1295 = vmax.f32 %v759, 0.0
      %v1296 = vmax.f32 %v761, 0.0
      %v1297 = vmax.f32 %v765, 0.0
      %v1298 = vmax.f32 %v767, 0.0
      %v1299 = vmax.f32 %v771, 0.0
      %v1300 = vmax.f32 %v773, 0.0
      %v1301 = vmax.f32 %v777, 0.0
      %v1302 = vmax.f32 %v779, 0.0
      %v1303 = vmax.f32 %v783, 0.0
      %v1304 = vmax.f32 %v785, 0.0
      %v1305 = vmax.f32 %v789, 0.0
      %v1306 = vmax.f32 %v791, 0.0
      %v1307 = vmax.f32 %v795, 0.0
      %v1308 = vmax.f32 %v797, 0.0
      %v1309 = vmax.f32 %v801, 0.0
      %v1310 = vmax.f32 %v803, 0.0
      %v1311 = vmax.f32 %v807, 0.0
      %v1312 = vmax.f32 %v809, 0.0
      %v1313 = vmax.f32 %v813, 0.0
      %v1314 = vmax.f32 %v815, 0.0
      %v1315 = vmax.f32 %v819, 0.0
      %v1316 = vmax.f32 %v821, 0.0
      %v1317 = vmax.f32 %v825, 0.0
      %v1318 = vmax.f32 %v827, 0.0
      %v1319 = vmax.f32 %v831, 0.0
      %v1320 = vmax.f32 %v833, 0.0
      %v1321 = vmax.f32 %v837, 0.0
      %v1322 = vmax.f32 %v839, 0.0
      %v1323 = vmax.f32 %v843, 0.0
      %v1324 = vmax.f32 %v845, 0.0
      %v1325 = vmax.f32 %v849, 0.0
      %v1326 = vmax.f32 %v851, 0.0
      %v1327 = vmax.f32 %v855, 0.0
      %v1328 = vmax.f32 %v857, 0.0
      %v1329 = vmax.f32 %v861, 0.0
      %v1330 = vmax.f32 %v863, 0.0
      %v1331 = vmax.f32 %v867, 0.0
      %v1332 = vmax.f32 %v869, 0.0
      %v1333 = vmax.f32 %v873, 0.0
      %v1334 = vmax.f32 %v875, 0.0
      %v1335 = vmax.f32 %v879, 0.0
      %v1336 = vmax.f32 %v881, 0.0
      %v1337 = vmax.f32 %v885, 0.0
      %v1338 = vmax.f32 %v887, 0.0
      %v1339 = vmax.f32 %v891, 0.0
      %v1340 = vmax.f32 %v893, 0.0
      %v1341 = vmax.f32 %v897, 0.0
      %v1342 = vmax.f32 %v899, 0.0
      %v1343 = vmax.f32 %v903, 0.0
      %v1344 = vmax.f32 %v905, 0.0
      %v1345 = vmax.f32 %v909, 0.0
      %v1346 = vmax.f32 %v911, 0.0
      %v1347 = vmax.f32 %v915, 0.0
      %v1348 = vmax.f32 %v917, 0.0
      %v1349 = vmax.f32 %v921, 0.0
      %v1350 = vmax.f32 %v923, 0.0
      %v1351 = vmax.f32 %v927, 0.0
      %v1352 = vmax.f32 %v929, 0.0
      %v1353 = vmax.f32 %v933, 0.0
      %v1354 = vmax.f32 %v935, 0.0
      %v1355 = vmax.f32 %v939, 0.0
      %v1356 = vmax.f32 %v941, 0.0
      %v1357 = vmax.f32 %v945, 0.0
      %v1358 = vmax.f32 %v947, 0.0
      %v1359 = vmax.f32 %v951, 0.0
      %v1360 = vmax.f32 %v953, 0.0
      %v1361 = vmax.f32 %v957, 0.0
      %v1362 = vmax.f32 %v959, 0.0
      %v1363 = vmax.f32 %v963, 0.0
      %v1364 = vmax.f32 %v965, 0.0
      %v1365 = vmax.f32 %v969, 0.0
      %v1366 = vmax.f32 %v971, 0.0
      %v1367 = vmax.f32 %v975, 0.0
      %v1368 = vmax.f32 %v977, 0.0
      %v1369 = vmax.f32 %v981, 0.0
      %v1370 = vmax.f32 %v983, 0.0
      %v1371 = vmax.f32 %v987, 0.0
      %v1372 = vmax.f32 %v989, 0.0
      %v1373 = vmax.f32 %v993, 0.0
      %v1374 = vmax.f32 %v995, 0.0
      %v1375 = vmax.f32 %v999, 0.0
      %v1376 = vmax.f32 %v1001, 0.0
      %v1377 = vmax.f32 %v1005, 0.0
      %v1378 = vmax.f32 %v1007, 0.0
      %v1379 = vmax.f32 %v1011, 0.0
      %v1380 = vmax.f32 %v1013, 0.0
      %v1381 = vmax.f32 %v1017, 0.0
      %v1382 = vmax.f32 %v1019, 0.0
      %v1383 = vmax.f32 %v1023, 0.0
      %v1384 = vmax.f32 %v1025, 0.0
      %v1385 = vmax.f32 %v1029, 0.0
      %v1386 = vmax.f32 %v1031, 0.0
      %v1387 = vmax.f32 %v1035, 0.0
      %v1388 = vmax.f32 %v1037, 0.0
      %v1389 = vmax.f32 %v1041, 0.0
      %v1390 = vmax.f32 %v1043, 0.0
      %v1391 = vmax.f32 %v1047, 0.0
      %v1392 = vmax.f32 %v1049, 0.0
      %v1393 = vmax.f32 %v1053, 0.0
      %v1394 = vmax.f32 %v1055, 0.0
      %v1395 = vmax.f32 %v1059, 0.0
      %v1396 = vmax.f32 %v1061, 0.0
      %v1397 = vmax.f32 %v1065, 0.0
      %v1398 = vmax.f32 %v1067, 0.0
      %v1399 = vmax.f32 %v1071, 0.0
      %v1400 = vmax.f32 %v1073, 0.0
      %v1401 = vmax.f32 %v1077, 0.0
      %v1402 = vmax.f32 %v1079, 0.0
      %v1403 = vmax.f32 %v1083, 0.0
      %v1404 = vmax.f32 %v1085, 0.0
      %v1405 = vmax.f32 %v1089, 0.0
      %v1406 = vmax.f32 %v1091, 0.0
      %v1407 = vmax.f32 %v1095, 0.0
      %v1408 = vmax.f32 %v1097, 0.0
      %v1409 = vmax.f32 %v1101, 0.0
      %v1410 = vmax.f32 %v1103, 0.0
      %v1411 = vmax.f32 %v1107, 0.0
      %v1412 = vmax.f32 %v1109, 0.0
      %v1413 = vmax.f32 %v1113, 0.0
      %v1414 = vmax.f32 %v1115, 0.0
      %v1415 = vmax.f32 %v1119, 0.0
      %v1416 = vmax.f32 %v1121, 0.0
      %v1417 = vmax.f32 %v1125, 0.0
      %v1418 = vmax.f32 %v1127, 0.0
      %v1419 = vmax.f32 %v1131, 0.0
      %v1420 = vmax.f32 %v1133, 0.0
      %v1421 = vmax.f32 %v1137, 0.0
      %v1422 = vmax.f32 %v1139, 0.0
      %v1423 = vmax.f32 %v1143, 0.0
      %v1424 = vmax.f32 %v1145, 0.0
      %v1425 = vmax.f32 %v1149, 0.0
      %v1426 = vmax.f32 %v1151, 0.0
      %v1427 = vmax.f32 %v1155, 0.0
      %v1428 = vmax.f32 %v1157, 0.0
      %v1429 = vmax.f32 %v1161, 0.0
      %v1430 = vmax.f32 %v1163, 0.0
      %v1431 = vmax.f32 %v1167, 0.0
      %v1432 = vmax.f32 %v1169, 0.0
      %v1433 = vmax.f32 %v1173, 0.0
      %v1434 = vmax.f32 %v1175, 0.0
      %v1435 = vmax.f32 %v1179, 0.0
      %v1436 = vmax.f32 %v1181, 0.0
      %v1437 = vmax.f32 %v1185, 0.0
      %v1438 = vmax.f32 %v1187, 0.0
      %v1439 = vmax.f32 %v1191, 0.0
      %v1440 = vmax.f32 %v1193, 0.0
      %v1441 = vmax.f32 %v1197, 0.0
      %v1442 = vmax.f32 %v1199, 0.0
      %v1443 = vmax.f32 %v1203, 0.0
      %v1444 = vmax.f32 %v1205, 0.0
      %v1445 = vmax.f32 %v1209, 0.0
      %v1446 = vmax.f32 %v1211, 0.0
      %v1447 = vmax.f32 %v1215, 0.0
      %v1448 = vmax.f32 %v1217, 0.0
      %v1449 = vmax.f32 %v1221, 0.0
      %v1450 = vmax.f32 %v1223, 0.0
      %v1451 = vmax.f32 %v1227, 0.0
      %v1452 = vmax.f32 %v1229, 0.0
      %v1453 = vmax.f32 %v1233, 0.0
      %v1454 = vmax.f32 %v1235, 0.0
      %v1455 = vmax.f32 %v1239, 0.0
      %v1456 = vmax.f32 %v1241, 0.0
      %v1457 = vmax.f32 %v1245, 0.0
      %v1458 = vmax.f32 %v1247, 0.0
      %v1459 = vmax.f32 %v1251, 0.0
      %v1460 = vmax.f32 %v1253, 0.0
      %v1461 = vmax.f32 %v1257, 0.0
      %v1462 = vmax.f32 %v1259, 0.0
      %v1463 = vmax.f32 %v1263, 0.0
      %v1464 = vmax.f32 %v1265, 0.0
      %v1465 = vmax.f32 %v1269, 0.0
      %v1466 = vmax.f32 %v1271, 0.0
      %v1467 = vmax.f32 %v1275, 0.0
      %v1468 = vmax.f32 %v1277, 0.0
      %v1469 = vmax.f32 %v1281, 0.0
      %v1470 = vmax.f32 %v1283, 0.0
      %v1471 = vmax.f32 %v1287, 0.0
      %v1472 = vmax.f32 %v1289, 0.0
      %vm1655 = vcmask 1046528
      %v1656 = vrot.slane %v1291, 1
      %v1657 = vrot.slane %v1293, 1
      %v1658 = vsel %vm1655, %v1656, %v1657
      %v1659 = vrot.slane %v1292, 1
      %v1660 = vrot.slane %v1294, 1
      %v1661 = vsel %vm1655, %v1659, %v1660
      %v1662 = vrot.slane %v1295, 1
      %v1663 = vsel %vm1655, %v1657, %v1662
      %v1664 = vrot.slane %v1296, 1
      %v1665 = vsel %vm1655, %v1660, %v1664
      %v1666 = vrot.slane %v1297, 1
      %v1667 = vsel %vm1655, %v1662, %v1666
      %v1668 = vrot.slane %v1298, 1
      %v1669 = vsel %vm1655, %v1664, %v1668
      %v1670 = vrot.slane %v1299, 1
      %v1671 = vsel %vm1655, %v1666, %v1670
      %v1672 = vrot.slane %v1300, 1
      %v1673 = vsel %vm1655, %v1668, %v1672
      %v1674 = vrot.slane %v1301, 1
      %v1675 = vsel %vm1655, %v1670, %v1674
      %v1676 = vrot.slane %v1302, 1
      %v1677 = vsel %vm1655, %v1672, %v1676
      %v1678 = vrot.slane %v1303, 1
      %v1679 = vsel %vm1655, %v1674, %v1678
      %v1680 = vrot.slane %v1304, 1
      %v1681 = vsel %vm1655, %v1676, %v1680
      %v1682 = vrot.slane %v1305, 1
      %v1683 = vsel %vm1655, %v1678, %v1682
      %v1684 = vrot.slane %v1306, 1
      %v1685 = vsel %vm1655, %v1680, %v1684
      %v1686 = vrot.slane %v1307, 1
      %v1687 = vsel %vm1655, %v1682, %v1686
      %v1688 = vrot.slane %v1308, 1
      %v1689 = vsel %vm1655, %v1684, %v1688
      %v1690 = vrot.slane %v1309, 1
      %v1691 = vsel %vm1655, %v1686, %v1690
      %v1692 = vrot.slane %v1310, 1
      %v1693 = vsel %vm1655, %v1688, %v1692
      %v1694 = vrot.slane %v1311, 1
      %v1695 = vsel %vm1655, %v1690, %v1694
      %v1696 = vrot.slane %v1312, 1
      %v1697 = vsel %vm1655, %v1692, %v1696
      %v1698 = vrot.slane %v1313, 1
      %v1699 = vsel %vm1655, %v1694, %v1698
      %v1700 = vrot.slane %v1314, 1
      %v1701 = vsel %vm1655, %v1696, %v1700
      %v1702 = vrot.slane %v1315, 1
      %v1703 = vsel %vm1655, %v1698, %v1702
      %v1704 = vrot.slane %v1316, 1
      %v1705 = vsel %vm1655, %v1700, %v1704
      %v1706 = vrot.slane %v1317, 1
      %v1707 = vsel %vm1655, %v1702, %v1706
      %v1708 = vrot.slane %v1318, 1
      %v1709 = vsel %vm1655, %v1704, %v1708
      %v1710 = vrot.slane %v1319, 1
      %v1711 = vsel %vm1655, %v1706, %v1710
      %v1712 = vrot.slane %v1320, 1
      %v1713 = vsel %vm1655, %v1708, %v1712
      %v1714 = vrot.slane %v1321, 1
      %v1715 = vsel %vm1655, %v1710, %v1714
      %v1716 = vrot.slane %v1322, 1
      %v1717 = vsel %vm1655, %v1712, %v1716
      %v1718 = vrot.slane %v1323, 1
      %v1719 = vsel %vm1655, %v1714, %v1718
      %v1720 = vrot.slane %v1324, 1
      %v1721 = vsel %vm1655, %v1716, %v1720
      %v1722 = vrot.slane %v1325, 1
      %v1723 = vsel %vm1655, %v1718, %v1722
      %v1724 = vrot.slane %v1326, 1
      %v1725 = vsel %vm1655, %v1720, %v1724
      %v1726 = vrot.slane %v1327, 1
      %v1727 = vsel %vm1655, %v1722, %v1726
      %v1728 = vrot.slane %v1328, 1
      %v1729 = vsel %vm1655, %v1724, %v1728
      %v1730 = vrot.slane %v1329, 1
      %v1731 = vsel %vm1655, %v1726, %v1730
      %v1732 = vrot.slane %v1330, 1
      %v1733 = vsel %vm1655, %v1728, %v1732
      %v1734 = vrot.slane %v1331, 1
      %v1735 = vsel %vm1655, %v1730, %v1734
      %v1736 = vrot.slane %v1332, 1
      %v1737 = vsel %vm1655, %v1732, %v1736
      %v1738 = vrot.slane %v1333, 1
      %v1739 = vsel %vm1655, %v1734, %v1738
      %v1740 = vrot.slane %v1334, 1
      %v1741 = vsel %vm1655, %v1736, %v1740
      %v1742 = vrot.slane %v1335, 1
      %v1743 = vsel %vm1655, %v1738, %v1742
      %v1744 = vrot.slane %v1336, 1
      %v1745 = vsel %vm1655, %v1740, %v1744
      %v1746 = vrot.slane %v1337, 1
      %v1747 = vsel %vm1655, %v1742, %v1746
      %v1748 = vrot.slane %v1338, 1
      %v1749 = vsel %vm1655, %v1744, %v1748
      %v1750 = vrot.slane %v1339, 1
      %v1751 = vsel %vm1655, %v1746, %v1750
      %v1752 = vrot.slane %v1340, 1
      %v1753 = vsel %vm1655, %v1748, %v1752
      %v1754 = vrot.slane %v1341, 1
      %v1755 = vsel %vm1655, %v1750, %v1754
      %v1756 = vrot.slane %v1342, 1
      %v1757 = vsel %vm1655, %v1752, %v1756
      %v1758 = vrot.slane %v1343, 1
      %v1759 = vsel %vm1655, %v1754, %v1758
      %v1760 = vrot.slane %v1344, 1
      %v1761 = vsel %vm1655, %v1756, %v1760
      %v1762 = vrot.slane %v1345, 1
      %v1763 = vsel %vm1655, %v1758, %v1762
      %v1764 = vrot.slane %v1346, 1
      %v1765 = vsel %vm1655, %v1760, %v1764
      %v1766 = vrot.slane %v1347, 1
      %v1767 = vsel %vm1655, %v1762, %v1766
      %v1768 = vrot.slane %v1348, 1
      %v1769 = vsel %vm1655, %v1764, %v1768
      %v1770 = vrot.slane %v1349, 1
      %v1771 = vsel %vm1655, %v1766, %v1770
      %v1772 = vrot.slane %v1350, 1
      %v1773 = vsel %vm1655, %v1768, %v1772
      %v1774 = vrot.slane %v1351, 1
      %v1775 = vsel %vm1655, %v1770, %v1774
      %v1776 = vrot.slane %v1352, 1
      %v1777 = vsel %vm1655, %v1772, %v1776
      %v1778 = vrot.slane %v1353, 1
      %v1779 = vsel %vm1655, %v1774, %v1778
      %v1780 = vrot.slane %v1354, 1
      %v1781 = vsel %vm1655, %v1776, %v1780
      %v1782 = vrot.slane %v1355, 1
      %v1783 = vsel %vm1655, %v1778, %v1782
      %v1784 = vrot.slane %v1356, 1
      %v1785 = vsel %vm1655, %v1780, %v1784
      %v1786 = vrot.slane %v1357, 1
      %v1787 = vsel %vm1655, %v1782, %v1786
      %v1788 = vrot.slane %v1358, 1
      %v1789 = vsel %vm1655, %v1784, %v1788
      %v1790 = vrot.slane %v1359, 1
      %v1791 = vsel %vm1655, %v1786, %v1790
      %v1792 = vrot.slane %v1360, 1
      %v1793 = vsel %vm1655, %v1788, %v1792
      %v1794 = vrot.slane %v1361, 1
      %v1795 = vsel %vm1655, %v1790, %v1794
      %v1796 = vrot.slane %v1362, 1
      %v1797 = vsel %vm1655, %v1792, %v1796
      %v1798 = vrot.slane %v1363, 1
      %v1799 = vsel %vm1655, %v1794, %v1798
      %v1800 = vrot.slane %v1364, 1
      %v1801 = vsel %vm1655, %v1796, %v1800
      %v1802 = vrot.slane %v1365, 1
      %v1803 = vsel %vm1655, %v1798, %v1802
      %v1804 = vrot.slane %v1366, 1
      %v1805 = vsel %vm1655, %v1800, %v1804
      %v1806 = vrot.slane %v1367, 1
      %v1807 = vsel %vm1655, %v1802, %v1806
      %v1808 = vrot.slane %v1368, 1
      %v1809 = vsel %vm1655, %v1804, %v1808
      %v1810 = vrot.slane %v1369, 1
      %v1811 = vsel %vm1655, %v1806, %v1810
      %v1812 = vrot.slane %v1370, 1
      %v1813 = vsel %vm1655, %v1808, %v1812
      %v1814 = vrot.slane %v1371, 1
      %v1815 = vsel %vm1655, %v1810, %v1814
      %v1816 = vrot.slane %v1372, 1
      %v1817 = vsel %vm1655, %v1812, %v1816
      %v1818 = vrot.slane %v1373, 1
      %v1819 = vsel %vm1655, %v1814, %v1818
      %v1820 = vrot.slane %v1374, 1
      %v1821 = vsel %vm1655, %v1816, %v1820
      %v1822 = vrot.slane %v1375, 1
      %v1823 = vsel %vm1655, %v1818, %v1822
      %v1824 = vrot.slane %v1376, 1
      %v1825 = vsel %vm1655, %v1820, %v1824
      %v1826 = vrot.slane %v1377, 1
      %v1827 = vsel %vm1655, %v1822, %v1826
      %v1828 = vrot.slane %v1378, 1
      %v1829 = vsel %vm1655, %v1824, %v1828
      %v1830 = vrot.slane %v1379, 1
      %v1831 = vsel %vm1655, %v1826, %v1830
      %v1832 = vrot.slane %v1380, 1
      %v1833 = vsel %vm1655, %v1828, %v1832
      %v1834 = vrot.slane %v1381, 1
      %v1835 = vsel %vm1655, %v1830, %v1834
      %v1836 = vrot.slane %v1382, 1
      %v1837 = vsel %vm1655, %v1832, %v1836
      %v1838 = vrot.slane %v1383, 1
      %v1839 = vsel %vm1655, %v1834, %v1838
      %v1840 = vrot.slane %v1384, 1
      %v1841 = vsel %vm1655, %v1836, %v1840
      %v1842 = vrot.slane %v1385, 1
      %v1843 = vsel %vm1655, %v1838, %v1842
      %v1844 = vrot.slane %v1386, 1
      %v1845 = vsel %vm1655, %v1840, %v1844
      %v1846 = vrot.slane %v1387, 1
      %v1847 = vsel %vm1655, %v1842, %v1846
      %v1848 = vrot.slane %v1388, 1
      %v1849 = vsel %vm1655, %v1844, %v1848
      %v1850 = vrot.slane %v1389, 1
      %v1851 = vsel %vm1655, %v1846, %v1850
      %v1852 = vrot.slane %v1390, 1
      %v1853 = vsel %vm1655, %v1848, %v1852
      %v1854 = vrot.slane %v1391, 1
      %v1855 = vsel %vm1655, %v1850, %v1854
      %v1856 = vrot.slane %v1392, 1
      %v1857 = vsel %vm1655, %v1852, %v1856
      %v1858 = vrot.slane %v1393, 1
      %v1859 = vsel %vm1655, %v1854, %v1858
      %v1860 = vrot.slane %v1394, 1
      %v1861 = vsel %vm1655, %v1856, %v1860
      %v1862 = vrot.slane %v1395, 1
      %v1863 = vsel %vm1655, %v1858, %v1862
      %v1864 = vrot.slane %v1396, 1
      %v1865 = vsel %vm1655, %v1860, %v1864
      %v1866 = vrot.slane %v1397, 1
      %v1867 = vsel %vm1655, %v1862, %v1866
      %v1868 = vrot.slane %v1398, 1
      %v1869 = vsel %vm1655, %v1864, %v1868
      %v1870 = vrot.slane %v1399, 1
      %v1871 = vsel %vm1655, %v1866, %v1870
      %v1872 = vrot.slane %v1400, 1
      %v1873 = vsel %vm1655, %v1868, %v1872
      %v1874 = vrot.slane %v1401, 1
      %v1875 = vsel %vm1655, %v1870, %v1874
      %v1876 = vrot.slane %v1402, 1
      %v1877 = vsel %vm1655, %v1872, %v1876
      %v1878 = vrot.slane %v1403, 1
      %v1879 = vsel %vm1655, %v1874, %v1878
      %v1880 = vrot.slane %v1404, 1
      %v1881 = vsel %vm1655, %v1876, %v1880
      %v1882 = vrot.slane %v1405, 1
      %v1883 = vsel %vm1655, %v1878, %v1882
      %v1884 = vrot.slane %v1406, 1
      %v1885 = vsel %vm1655, %v1880, %v1884
      %v1886 = vrot.slane %v1407, 1
      %v1887 = vsel %vm1655, %v1882, %v1886
      %v1888 = vrot.slane %v1408, 1
      %v1889 = vsel %vm1655, %v1884, %v1888
      %v1890 = vrot.slane %v1409, 1
      %v1891 = vsel %vm1655, %v1886, %v1890
      %v1892 = vrot.slane %v1410, 1
      %v1893 = vsel %vm1655, %v1888, %v1892
      %v1894 = vrot.slane %v1411, 1
      %v1895 = vsel %vm1655, %v1890, %v1894
      %v1896 = vrot.slane %v1412, 1
      %v1897 = vsel %vm1655, %v1892, %v1896
      %v1898 = vrot.slane %v1413, 1
      %v1899 = vsel %vm1655, %v1894, %v1898
      %v1900 = vrot.slane %v1414, 1
      %v1901 = vsel %vm1655, %v1896, %v1900
      %v1902 = vrot.slane %v1415, 1
      %v1903 = vsel %vm1655, %v1898, %v1902
      %v1904 = vrot.slane %v1416, 1
      %v1905 = vsel %vm1655, %v1900, %v1904
      %v1906 = vrot.slane %v1417, 1
      %v1907 = vsel %vm1655, %v1902, %v1906
      %v1908 = vrot.slane %v1418, 1
      %v1909 = vsel %vm1655, %v1904, %v1908
      %v1910 = vrot.slane %v1419, 1
      %v1911 = vsel %vm1655, %v1906, %v1910
      %v1912 = vrot.slane %v1420, 1
      %v1913 = vsel %vm1655, %v1908, %v1912
      %v1914 = vrot.slane %v1421, 1
      %v1915 = vsel %vm1655, %v1910, %v1914
      %v1916 = vrot.slane %v1422, 1
      %v1917 = vsel %vm1655, %v1912, %v1916
      %v1918 = vrot.slane %v1423, 1
      %v1919 = vsel %vm1655, %v1914, %v1918
      %v1920 = vrot.slane %v1424, 1
      %v1921 = vsel %vm1655, %v1916, %v1920
      %v1922 = vrot.slane %v1425, 1
      %v1923 = vsel %vm1655, %v1918, %v1922
      %v1924 = vrot.slane %v1426, 1
      %v1925 = vsel %vm1655, %v1920, %v1924
      %v1926 = vrot.slane %v1427, 1
      %v1927 = vsel %vm1655, %v1922, %v1926
      %v1928 = vrot.slane %v1428, 1
      %v1929 = vsel %vm1655, %v1924, %v1928
      %v1930 = vrot.slane %v1429, 1
      %v1931 = vsel %vm1655, %v1926, %v1930
      %v1932 = vrot.slane %v1430, 1
      %v1933 = vsel %vm1655, %v1928, %v1932
      %v1934 = vrot.slane %v1431, 1
      %v1935 = vsel %vm1655, %v1930, %v1934
      %v1936 = vrot.slane %v1432, 1
      %v1937 = vsel %vm1655, %v1932, %v1936
      %v1938 = vrot.slane %v1433, 1
      %v1939 = vsel %vm1655, %v1934, %v1938
      %v1940 = vrot.slane %v1434, 1
      %v1941 = vsel %vm1655, %v1936, %v1940
      %v1942 = vrot.slane %v1435, 1
      %v1943 = vsel %vm1655, %v1938, %v1942
      %v1944 = vrot.slane %v1436, 1
      %v1945 = vsel %vm1655, %v1940, %v1944
      %v1946 = vrot.slane %v1437, 1
      %v1947 = vsel %vm1655, %v1942, %v1946
      %v1948 = vrot.slane %v1438, 1
      %v1949 = vsel %vm1655, %v1944, %v1948
      %v1950 = vrot.slane %v1439, 1
      %v1951 = vsel %vm1655, %v1946, %v1950
      %v1952 = vrot.slane %v1440, 1
      %v1953 = vsel %vm1655, %v1948, %v1952
      %v1954 = vrot.slane %v1441, 1
      %v1955 = vsel %vm1655, %v1950, %v1954
      %v1956 = vrot.slane %v1442, 1
      %v1957 = vsel %vm1655, %v1952, %v1956
      %v1958 = vrot.slane %v1443, 1
      %v1959 = vsel %vm1655, %v1954, %v1958
      %v1960 = vrot.slane %v1444, 1
      %v1961 = vsel %vm1655, %v1956, %v1960
      %v1962 = vrot.slane %v1445, 1
      %v1963 = vsel %vm1655, %v1958, %v1962
      %v1964 = vrot.slane %v1446, 1
      %v1965 = vsel %vm1655, %v1960, %v1964
      %v1966 = vrot.slane %v1447, 1
      %v1967 = vsel %vm1655, %v1962, %v1966
      %v1968 = vrot.slane %v1448, 1
      %v1969 = vsel %vm1655, %v1964, %v1968
      %v1970 = vrot.slane %v1449, 1
      %v1971 = vsel %vm1655, %v1966, %v1970
      %v1972 = vrot.slane %v1450, 1
      %v1973 = vsel %vm1655, %v1968, %v1972
      %v1974 = vrot.slane %v1451, 1
      %v1975 = vsel %vm1655, %v1970, %v1974
      %v1976 = vrot.slane %v1452, 1
      %v1977 = vsel %vm1655, %v1972, %v1976
      %v1978 = vrot.slane %v1453, 1
      %v1979 = vsel %vm1655, %v1974, %v1978
      %v1980 = vrot.slane %v1454, 1
      %v1981 = vsel %vm1655, %v1976, %v1980
      %v1982 = vrot.slane %v1455, 1
      %v1983 = vsel %vm1655, %v1978, %v1982
      %v1984 = vrot.slane %v1456, 1
      %v1985 = vsel %vm1655, %v1980, %v1984
      %v1986 = vrot.slane %v1457, 1
      %v1987 = vsel %vm1655, %v1982, %v1986
      %v1988 = vrot.slane %v1458, 1
      %v1989 = vsel %vm1655, %v1984, %v1988
      %v1990 = vrot.slane %v1459, 1
      %v1991 = vsel %vm1655, %v1986, %v1990
      %v1992 = vrot.slane %v1460, 1
      %v1993 = vsel %vm1655, %v1988, %v1992
      %v1994 = vrot.slane %v1461, 1
      %v1995 = vsel %vm1655, %v1990, %v1994
      %v1996 = vrot.slane %v1462, 1
      %v1997 = vsel %vm1655, %v1992, %v1996
      %v1998 = vrot.slane %v1463, 1
      %v1999 = vsel %vm1655, %v1994, %v1998
      %v2000 = vrot.slane %v1464, 1
      %v2001 = vsel %vm1655, %v1996, %v2000
      %v2002 = vrot.slane %v1465, 1
      %v2003 = vsel %vm1655, %v1998, %v2002
      %v2004 = vrot.slane %v1466, 1
      %v2005 = vsel %vm1655, %v2000, %v2004
      %v2006 = vrot.slane %v1467, 1
      %v2007 = vsel %vm1655, %v2002, %v2006
      %v2008 = vrot.slane %v1468, 1
      %v2009 = vsel %vm1655, %v2004, %v2008
      %v2010 = vrot.slane %v1469, 1
      %v2011 = vsel %vm1655, %v2006, %v2010
      %v2012 = vrot.slane %v1470, 1
      %v2013 = vsel %vm1655, %v2008, %v2012
      %v2014 = vrot.slane %v1471, 1
      %v2015 = vsel %vm1655, %v2010, %v2014
      %v2016 = vrot.slane %v1472, 1
      %v2017 = vsel %vm1655, %v2012, %v2016
      %v2200 = vmax.f32 %v1291, %v1658
      %v2201 = vmax.f32 %v1292, %v1661
      %v2202 = vmax.f32 %v1293, %v1663
      %v2203 = vmax.f32 %v1294, %v1665
      %v2204 = vmax.f32 %v1295, %v1667
      %v2205 = vmax.f32 %v1296, %v1669
      %v2206 = vmax.f32 %v1297, %v1671
      %v2207 = vmax.f32 %v1298, %v1673
      %v2208 = vmax.f32 %v1299, %v1675
      %v2209 = vmax.f32 %v1300, %v1677
      %v2210 = vmax.f32 %v1301, %v1679
      %v2211 = vmax.f32 %v1302, %v1681
      %v2212 = vmax.f32 %v1303, %v1683
      %v2213 = vmax.f32 %v1304, %v1685
      %v2214 = vmax.f32 %v1305, %v1687
      %v2215 = vmax.f32 %v1306, %v1689
      %v2216 = vmax.f32 %v1307, %v1691
      %v2217 = vmax.f32 %v1308, %v1693
      %v2218 = vmax.f32 %v1309, %v1695
      %v2219 = vmax.f32 %v1310, %v1697
      %v2220 = vmax.f32 %v1311, %v1699
      %v2221 = vmax.f32 %v1312, %v1701
      %v2222 = vmax.f32 %v1313, %v1703
      %v2223 = vmax.f32 %v1314, %v1705
      %v2224 = vmax.f32 %v1315, %v1707
      %v2225 = vmax.f32 %v1316, %v1709
      %v2226 = vmax.f32 %v1317, %v1711
      %v2227 = vmax.f32 %v1318, %v1713
      %v2228 = vmax.f32 %v1319, %v1715
      %v2229 = vmax.f32 %v1320, %v1717
      %v2230 = vmax.f32 %v1321, %v1719
      %v2231 = vmax.f32 %v1322, %v1721
      %v2232 = vmax.f32 %v1323, %v1723
      %v2233 = vmax.f32 %v1324, %v1725
      %v2234 = vmax.f32 %v1325, %v1727
      %v2235 = vmax.f32 %v1326, %v1729
      %v2236 = vmax.f32 %v1327, %v1731
      %v2237 = vmax.f32 %v1328, %v1733
      %v2238 = vmax.f32 %v1329, %v1735
      %v2239 = vmax.f32 %v1330, %v1737
      %v2240 = vmax.f32 %v1331, %v1739
      %v2241 = vmax.f32 %v1332, %v1741
      %v2242 = vmax.f32 %v1333, %v1743
      %v2243 = vmax.f32 %v1334, %v1745
      %v2244 = vmax.f32 %v1335, %v1747
      %v2245 = vmax.f32 %v1336, %v1749
      %v2246 = vmax.f32 %v1337, %v1751
      %v2247 = vmax.f32 %v1338, %v1753
      %v2248 = vmax.f32 %v1339, %v1755
      %v2249 = vmax.f32 %v1340, %v1757
      %v2250 = vmax.f32 %v1341, %v1759
      %v2251 = vmax.f32 %v1342, %v1761
      %v2252 = vmax.f32 %v1343, %v1763
      %v2253 = vmax.f32 %v1344, %v1765
      %v2254 = vmax.f32 %v1345, %v1767
      %v2255 = vmax.f32 %v1346, %v1769
      %v2256 = vmax.f32 %v1347, %v1771
      %v2257 = vmax.f32 %v1348, %v1773
      %v2258 = vmax.f32 %v1349, %v1775
      %v2259 = vmax.f32 %v1350, %v1777
      %v2260 = vmax.f32 %v1351, %v1779
      %v2261 = vmax.f32 %v1352, %v1781
      %v2262 = vmax.f32 %v1353, %v1783
      %v2263 = vmax.f32 %v1354, %v1785
      %v2264 = vmax.f32 %v1355, %v1787
      %v2265 = vmax.f32 %v1356, %v1789
      %v2266 = vmax.f32 %v1357, %v1791
      %v2267 = vmax.f32 %v1358, %v1793
      %v2268 = vmax.f32 %v1359, %v1795
      %v2269 = vmax.f32 %v1360, %v1797
      %v2270 = vmax.f32 %v1361, %v1799
      %v2271 = vmax.f32 %v1362, %v1801
      %v2272 = vmax.f32 %v1363, %v1803
      %v2273 = vmax.f32 %v1364, %v1805
      %v2274 = vmax.f32 %v1365, %v1807
      %v2275 = vmax.f32 %v1366, %v1809
      %v2276 = vmax.f32 %v1367, %v1811
      %v2277 = vmax.f32 %v1368, %v1813
      %v2278 = vmax.f32 %v1369, %v1815
      %v2279 = vmax.f32 %v1370, %v1817
      %v2280 = vmax.f32 %v1371, %v1819
      %v2281 = vmax.f32 %v1372, %v1821
      %v2282 = vmax.f32 %v1373, %v1823
      %v2283 = vmax.f32 %v1374, %v1825
      %v2284 = vmax.f32 %v1375, %v1827
      %v2285 = vmax.f32 %v1376, %v1829
      %v2286 = vmax.f32 %v1377, %v1831
      %v2287 = vmax.f32 %v1378, %v1833
      %v2288 = vmax.f32 %v1379, %v1835
      %v2289 = vmax.f32 %v1380, %v1837
      %v2290 = vmax.f32 %v1381, %v1839
      %v2291 = vmax.f32 %v1382, %v1841
      %v2292 = vmax.f32 %v1383, %v1843
      %v2293 = vmax.f32 %v1384, %v1845
      %v2294 = vmax.f32 %v1385, %v1847
      %v2295 = vmax.f32 %v1386, %v1849
      %v2296 = vmax.f32 %v1387, %v1851
      %v2297 = vmax.f32 %v1388, %v1853
      %v2298 = vmax.f32 %v1389, %v1855
      %v2299 = vmax.f32 %v1390, %v1857
      %v2300 = vmax.f32 %v1391, %v1859
      %v2301 = vmax.f32 %v1392, %v1861
      %v2302 = vmax.f32 %v1393, %v1863
      %v2303 = vmax.f32 %v1394, %v1865
      %v2304 = vmax.f32 %v1395, %v1867
      %v2305 = vmax.f32 %v1396, %v1869
      %v2306 = vmax.f32 %v1397, %v1871
      %v2307 = vmax.f32 %v1398, %v1873
      %v2308 = vmax.f32 %v1399, %v1875
      %v2309 = vmax.f32 %v1400, %v1877
      %v2310 = vmax.f32 %v1401, %v1879
      %v2311 = vmax.f32 %v1402, %v1881
      %v2312 = vmax.f32 %v1403, %v1883
      %v2313 = vmax.f32 %v1404, %v1885
      %v2314 = vmax.f32 %v1405, %v1887
      %v2315 = vmax.f32 %v1406, %v1889
      %v2316 = vmax.f32 %v1407, %v1891
      %v2317 = vmax.f32 %v1408, %v1893
      %v2318 = vmax.f32 %v1409, %v1895
      %v2319 = vmax.f32 %v1410, %v1897
      %v2320 = vmax.f32 %v1411, %v1899
      %v2321 = vmax.f32 %v1412, %v1901
      %v2322 = vmax.f32 %v1413, %v1903
      %v2323 = vmax.f32 %v1414, %v1905
      %v2324 = vmax.f32 %v1415, %v1907
      %v2325 = vmax.f32 %v1416, %v1909
      %v2326 = vmax.f32 %v1417, %v1911
      %v2327 = vmax.f32 %v1418, %v1913
      %v2328 = vmax.f32 %v1419, %v1915
      %v2329 = vmax.f32 %v1420, %v1917
      %v2330 = vmax.f32 %v1421, %v1919
      %v2331 = vmax.f32 %v1422, %v1921
      %v2332 = vmax.f32 %v1423, %v1923
      %v2333 = vmax.f32 %v1424, %v1925
      %v2334 = vmax.f32 %v1425, %v1927
      %v2335 = vmax.f32 %v1426, %v1929
      %v2336 = vmax.f32 %v1427, %v1931
      %v2337 = vmax.f32 %v1428, %v1933
      %v2338 = vmax.f32 %v1429, %v1935
      %v2339 = vmax.f32 %v1430, %v1937
      %v2340 = vmax.f32 %v1431, %v1939
      %v2341 = vmax.f32 %v1432, %v1941
      %v2342 = vmax.f32 %v1433, %v1943
      %v2343 = vmax.f32 %v1434, %v1945
      %v2344 = vmax.f32 %v1435, %v1947
      %v2345 = vmax.f32 %v1436, %v1949
      %v2346 = vmax.f32 %v1437, %v1951
      %v2347 = vmax.f32 %v1438, %v1953
      %v2348 = vmax.f32 %v1439, %v1955
      %v2349 = vmax.f32 %v1440, %v1957
      %v2350 = vmax.f32 %v1441, %v1959
      %v2351 = vmax.f32 %v1442, %v1961
      %v2352 = vmax.f32 %v1443, %v1963
      %v2353 = vmax.f32 %v1444, %v1965
      %v2354 = vmax.f32 %v1445, %v1967
      %v2355 = vmax.f32 %v1446, %v1969
      %v2356 = vmax.f32 %v1447, %v1971
      %v2357 = vmax.f32 %v1448, %v1973
      %v2358 = vmax.f32 %v1449, %v1975
      %v2359 = vmax.f32 %v1450, %v1977
      %v2360 = vmax.f32 %v1451, %v1979
      %v2361 = vmax.f32 %v1452, %v1981
      %v2362 = vmax.f32 %v1453, %v1983
      %v2363 = vmax.f32 %v1454, %v1985
      %v2364 = vmax.f32 %v1455, %v1987
      %v2365 = vmax.f32 %v1456, %v1989
      %v2366 = vmax.f32 %v1457, %v1991
      %v2367 = vmax.f32 %v1458, %v1993
      %v2368 = vmax.f32 %v1459, %v1995
      %v2369 = vmax.f32 %v1460, %v1997
      %v2370 = vmax.f32 %v1461, %v1999
      %v2371 = vmax.f32 %v1462, %v2001
      %v2372 = vmax.f32 %v1463, %v2003
      %v2373 = vmax.f32 %v1464, %v2005
      %v2374 = vmax.f32 %v1465, %v2007
      %v2375 = vmax.f32 %v1466, %v2009
      %v2376 = vmax.f32 %v1467, %v2011
      %v2377 = vmax.f32 %v1468, %v2013
      %v2378 = vmax.f32 %v1469, %v2015
      %v2379 = vmax.f32 %v1470, %v2017
      %v2380 = vmax.f32 %v1471, %v2014
      %v2381 = vmax.f32 %v1472, %v2016
      %vm2558 = vcmask 1043456
      %v2559 = vrot.slane %v2206, 4
      %v2560 = vrot.slane %v2208, 4
      %v2561 = vsel %vm2558, %v2559, %v2560
      %v2562 = vrot.slane %v2207, 4
      %v2563 = vrot.slane %v2209, 4
      %v2564 = vsel %vm2558, %v2562, %v2563
      %v2565 = vrot.slane %v2210, 4
      %v2566 = vsel %vm2558, %v2560, %v2565
      %v2567 = vrot.slane %v2211, 4
      %v2568 = vsel %vm2558, %v2563, %v2567
      %v2569 = vrot.slane %v2212, 4
      %v2570 = vsel %vm2558, %v2565, %v2569
      %v2571 = vrot.slane %v2213, 4
      %v2572 = vsel %vm2558, %v2567, %v2571
      %v2573 = vrot.slane %v2214, 4
      %v2574 = vsel %vm2558, %v2569, %v2573
      %v2575 = vrot.slane %v2215, 4
      %v2576 = vsel %vm2558, %v2571, %v2575
      %v2577 = vrot.slane %v2216, 4
      %v2578 = vsel %vm2558, %v2573, %v2577
      %v2579 = vrot.slane %v2217, 4
      %v2580 = vsel %vm2558, %v2575, %v2579
      %v2581 = vrot.slane %v2218, 4
      %v2582 = vsel %vm2558, %v2577, %v2581
      %v2583 = vrot.slane %v2219, 4
      %v2584 = vsel %vm2558, %v2579, %v2583
      %v2585 = vrot.slane %v2220, 4
      %v2586 = vsel %vm2558, %v2581, %v2585
      %v2587 = vrot.slane %v2221, 4
      %v2588 = vsel %vm2558, %v2583, %v2587
      %v2589 = vrot.slane %v2222, 4
      %v2590 = vsel %vm2558, %v2585, %v2589
      %v2591 = vrot.slane %v2223, 4
      %v2592 = vsel %vm2558, %v2587, %v2591
      %v2593 = vrot.slane %v2224, 4
      %v2594 = vsel %vm2558, %v2589, %v2593
      %v2595 = vrot.slane %v2225, 4
      %v2596 = vsel %vm2558, %v2591, %v2595
      %v2597 = vrot.slane %v2226, 4
      %v2598 = vsel %vm2558, %v2593, %v2597
      %v2599 = vrot.slane %v2227, 4
      %v2600 = vsel %vm2558, %v2595, %v2599
      %v2601 = vrot.slane %v2228, 4
      %v2602 = vsel %vm2558, %v2597, %v2601
      %v2603 = vrot.slane %v2229, 4
      %v2604 = vsel %vm2558, %v2599, %v2603
      %v2605 = vrot.slane %v2230, 4
      %v2606 = vsel %vm2558, %v2601, %v2605
      %v2607 = vrot.slane %v2231, 4
      %v2608 = vsel %vm2558, %v2603, %v2607
      %v2609 = vrot.slane %v2232, 4
      %v2610 = vsel %vm2558, %v2605, %v2609
      %v2611 = vrot.slane %v2233, 4
      %v2612 = vsel %vm2558, %v2607, %v2611
      %v2613 = vrot.slane %v2234, 4
      %v2614 = vsel %vm2558, %v2609, %v2613
      %v2615 = vrot.slane %v2235, 4
      %v2616 = vsel %vm2558, %v2611, %v2615
      %v2617 = vrot.slane %v2236, 4
      %v2618 = vsel %vm2558, %v2613, %v2617
      %v2619 = vrot.slane %v2237, 4
      %v2620 = vsel %vm2558, %v2615, %v2619
      %v2621 = vrot.slane %v2238, 4
      %v2622 = vsel %vm2558, %v2617, %v2621
      %v2623 = vrot.slane %v2239, 4
      %v2624 = vsel %vm2558, %v2619, %v2623
      %v2625 = vrot.slane %v2240, 4
      %v2626 = vsel %vm2558, %v2621, %v2625
      %v2627 = vrot.slane %v2241, 4
      %v2628 = vsel %vm2558, %v2623, %v2627
      %v2629 = vrot.slane %v2242, 4
      %v2630 = vsel %vm2558, %v2625, %v2629
      %v2631 = vrot.slane %v2243, 4
      %v2632 = vsel %vm2558, %v2627, %v2631
      %v2633 = vrot.slane %v2244, 4
      %v2634 = vsel %vm2558, %v2629, %v2633
      %v2635 = vrot.slane %v2245, 4
      %v2636 = vsel %vm2558, %v2631, %v2635
      %v2637 = vrot.slane %v2246, 4
      %v2638 = vsel %vm2558, %v2633, %v2637
      %v2639 = vrot.slane %v2247, 4
      %v2640 = vsel %vm2558, %v2635, %v2639
      %v2641 = vrot.slane %v2248, 4
      %v2642 = vsel %vm2558, %v2637, %v2641
      %v2643 = vrot.slane %v2249, 4
      %v2644 = vsel %vm2558, %v2639, %v2643
      %v2645 = vrot.slane %v2250, 4
      %v2646 = vsel %vm2558, %v2641, %v2645
      %v2647 = vrot.slane %v2251, 4
      %v2648 = vsel %vm2558, %v2643, %v2647
      %v2649 = vrot.slane %v2252, 4
      %v2650 = vsel %vm2558, %v2645, %v2649
      %v2651 = vrot.slane %v2253, 4
      %v2652 = vsel %vm2558, %v2647, %v2651
      %v2653 = vrot.slane %v2254, 4
      %v2654 = vsel %vm2558, %v2649, %v2653
      %v2655 = vrot.slane %v2255, 4
      %v2656 = vsel %vm2558, %v2651, %v2655
      %v2657 = vrot.slane %v2256, 4
      %v2658 = vsel %vm2558, %v2653, %v2657
      %v2659 = vrot.slane %v2257, 4
      %v2660 = vsel %vm2558, %v2655, %v2659
      %v2661 = vrot.slane %v2258, 4
      %v2662 = vsel %vm2558, %v2657, %v2661
      %v2663 = vrot.slane %v2259, 4
      %v2664 = vsel %vm2558, %v2659, %v2663
      %v2665 = vrot.slane %v2260, 4
      %v2666 = vsel %vm2558, %v2661, %v2665
      %v2667 = vrot.slane %v2261, 4
      %v2668 = vsel %vm2558, %v2663, %v2667
      %v2669 = vrot.slane %v2262, 4
      %v2670 = vsel %vm2558, %v2665, %v2669
      %v2671 = vrot.slane %v2263, 4
      %v2672 = vsel %vm2558, %v2667, %v2671
      %v2673 = vrot.slane %v2264, 4
      %v2674 = vsel %vm2558, %v2669, %v2673
      %v2675 = vrot.slane %v2265, 4
      %v2676 = vsel %vm2558, %v2671, %v2675
      %v2677 = vrot.slane %v2266, 4
      %v2678 = vsel %vm2558, %v2673, %v2677
      %v2679 = vrot.slane %v2267, 4
      %v2680 = vsel %vm2558, %v2675, %v2679
      %v2681 = vrot.slane %v2268, 4
      %v2682 = vsel %vm2558, %v2677, %v2681
      %v2683 = vrot.slane %v2269, 4
      %v2684 = vsel %vm2558, %v2679, %v2683
      %v2685 = vrot.slane %v2270, 4
      %v2686 = vsel %vm2558, %v2681, %v2685
      %v2687 = vrot.slane %v2271, 4
      %v2688 = vsel %vm2558, %v2683, %v2687
      %v2689 = vrot.slane %v2272, 4
      %v2690 = vsel %vm2558, %v2685, %v2689
      %v2691 = vrot.slane %v2273, 4
      %v2692 = vsel %vm2558, %v2687, %v2691
      %v2693 = vrot.slane %v2274, 4
      %v2694 = vsel %vm2558, %v2689, %v2693
      %v2695 = vrot.slane %v2275, 4
      %v2696 = vsel %vm2558, %v2691, %v2695
      %v2697 = vrot.slane %v2276, 4
      %v2698 = vsel %vm2558, %v2693, %v2697
      %v2699 = vrot.slane %v2277, 4
      %v2700 = vsel %vm2558, %v2695, %v2699
      %v2701 = vrot.slane %v2278, 4
      %v2702 = vsel %vm2558, %v2697, %v2701
      %v2703 = vrot.slane %v2279, 4
      %v2704 = vsel %vm2558, %v2699, %v2703
      %v2705 = vrot.slane %v2280, 4
      %v2706 = vsel %vm2558, %v2701, %v2705
      %v2707 = vrot.slane %v2281, 4
      %v2708 = vsel %vm2558, %v2703, %v2707
      %v2709 = vrot.slane %v2282, 4
      %v2710 = vsel %vm2558, %v2705, %v2709
      %v2711 = vrot.slane %v2283, 4
      %v2712 = vsel %vm2558, %v2707, %v2711
      %v2713 = vrot.slane %v2284, 4
      %v2714 = vsel %vm2558, %v2709, %v2713
      %v2715 = vrot.slane %v2285, 4
      %v2716 = vsel %vm2558, %v2711, %v2715
      %v2717 = vrot.slane %v2286, 4
      %v2718 = vsel %vm2558, %v2713, %v2717
      %v2719 = vrot.slane %v2287, 4
      %v2720 = vsel %vm2558, %v2715, %v2719
      %v2721 = vrot.slane %v2288, 4
      %v2722 = vsel %vm2558, %v2717, %v2721
      %v2723 = vrot.slane %v2289, 4
      %v2724 = vsel %vm2558, %v2719, %v2723
      %v2725 = vrot.slane %v2290, 4
      %v2726 = vsel %vm2558, %v2721, %v2725
      %v2727 = vrot.slane %v2291, 4
      %v2728 = vsel %vm2558, %v2723, %v2727
      %v2729 = vrot.slane %v2292, 4
      %v2730 = vsel %vm2558, %v2725, %v2729
      %v2731 = vrot.slane %v2293, 4
      %v2732 = vsel %vm2558, %v2727, %v2731
      %v2733 = vrot.slane %v2294, 4
      %v2734 = vsel %vm2558, %v2729, %v2733
      %v2735 = vrot.slane %v2295, 4
      %v2736 = vsel %vm2558, %v2731, %v2735
      %v2737 = vrot.slane %v2296, 4
      %v2738 = vsel %vm2558, %v2733, %v2737
      %v2739 = vrot.slane %v2297, 4
      %v2740 = vsel %vm2558, %v2735, %v2739
      %v2741 = vrot.slane %v2298, 4
      %v2742 = vsel %vm2558, %v2737, %v2741
      %v2743 = vrot.slane %v2299, 4
      %v2744 = vsel %vm2558, %v2739, %v2743
      %v2745 = vrot.slane %v2300, 4
      %v2746 = vsel %vm2558, %v2741, %v2745
      %v2747 = vrot.slane %v2301, 4
      %v2748 = vsel %vm2558, %v2743, %v2747
      %v2749 = vrot.slane %v2302, 4
      %v2750 = vsel %vm2558, %v2745, %v2749
      %v2751 = vrot.slane %v2303, 4
      %v2752 = vsel %vm2558, %v2747, %v2751
      %v2753 = vrot.slane %v2304, 4
      %v2754 = vsel %vm2558, %v2749, %v2753
      %v2755 = vrot.slane %v2305, 4
      %v2756 = vsel %vm2558, %v2751, %v2755
      %v2757 = vrot.slane %v2306, 4
      %v2758 = vsel %vm2558, %v2753, %v2757
      %v2759 = vrot.slane %v2307, 4
      %v2760 = vsel %vm2558, %v2755, %v2759
      %v2761 = vrot.slane %v2308, 4
      %v2762 = vsel %vm2558, %v2757, %v2761
      %v2763 = vrot.slane %v2309, 4
      %v2764 = vsel %vm2558, %v2759, %v2763
      %v2765 = vrot.slane %v2310, 4
      %v2766 = vsel %vm2558, %v2761, %v2765
      %v2767 = vrot.slane %v2311, 4
      %v2768 = vsel %vm2558, %v2763, %v2767
      %v2769 = vrot.slane %v2312, 4
      %v2770 = vsel %vm2558, %v2765, %v2769
      %v2771 = vrot.slane %v2313, 4
      %v2772 = vsel %vm2558, %v2767, %v2771
      %v2773 = vrot.slane %v2314, 4
      %v2774 = vsel %vm2558, %v2769, %v2773
      %v2775 = vrot.slane %v2315, 4
      %v2776 = vsel %vm2558, %v2771, %v2775
      %v2777 = vrot.slane %v2316, 4
      %v2778 = vsel %vm2558, %v2773, %v2777
      %v2779 = vrot.slane %v2317, 4
      %v2780 = vsel %vm2558, %v2775, %v2779
      %v2781 = vrot.slane %v2318, 4
      %v2782 = vsel %vm2558, %v2777, %v2781
      %v2783 = vrot.slane %v2319, 4
      %v2784 = vsel %vm2558, %v2779, %v2783
      %v2785 = vrot.slane %v2320, 4
      %v2786 = vsel %vm2558, %v2781, %v2785
      %v2787 = vrot.slane %v2321, 4
      %v2788 = vsel %vm2558, %v2783, %v2787
      %v2789 = vrot.slane %v2322, 4
      %v2790 = vsel %vm2558, %v2785, %v2789
      %v2791 = vrot.slane %v2323, 4
      %v2792 = vsel %vm2558, %v2787, %v2791
      %v2793 = vrot.slane %v2324, 4
      %v2794 = vsel %vm2558, %v2789, %v2793
      %v2795 = vrot.slane %v2325, 4
      %v2796 = vsel %vm2558, %v2791, %v2795
      %v2797 = vrot.slane %v2326, 4
      %v2798 = vsel %vm2558, %v2793, %v2797
      %v2799 = vrot.slane %v2327, 4
      %v2800 = vsel %vm2558, %v2795, %v2799
      %v2801 = vrot.slane %v2328, 4
      %v2802 = vsel %vm2558, %v2797, %v2801
      %v2803 = vrot.slane %v2329, 4
      %v2804 = vsel %vm2558, %v2799, %v2803
      %v2805 = vrot.slane %v2330, 4
      %v2806 = vsel %vm2558, %v2801, %v2805
      %v2807 = vrot.slane %v2331, 4
      %v2808 = vsel %vm2558, %v2803, %v2807
      %v2809 = vrot.slane %v2332, 4
      %v2810 = vsel %vm2558, %v2805, %v2809
      %v2811 = vrot.slane %v2333, 4
      %v2812 = vsel %vm2558, %v2807, %v2811
      %v2813 = vrot.slane %v2334, 4
      %v2814 = vsel %vm2558, %v2809, %v2813
      %v2815 = vrot.slane %v2335, 4
      %v2816 = vsel %vm2558, %v2811, %v2815
      %v2817 = vrot.slane %v2336, 4
      %v2818 = vsel %vm2558, %v2813, %v2817
      %v2819 = vrot.slane %v2337, 4
      %v2820 = vsel %vm2558, %v2815, %v2819
      %v2821 = vrot.slane %v2338, 4
      %v2822 = vsel %vm2558, %v2817, %v2821
      %v2823 = vrot.slane %v2339, 4
      %v2824 = vsel %vm2558, %v2819, %v2823
      %v2825 = vrot.slane %v2340, 4
      %v2826 = vsel %vm2558, %v2821, %v2825
      %v2827 = vrot.slane %v2341, 4
      %v2828 = vsel %vm2558, %v2823, %v2827
      %v2829 = vrot.slane %v2342, 4
      %v2830 = vsel %vm2558, %v2825, %v2829
      %v2831 = vrot.slane %v2343, 4
      %v2832 = vsel %vm2558, %v2827, %v2831
      %v2833 = vrot.slane %v2344, 4
      %v2834 = vsel %vm2558, %v2829, %v2833
      %v2835 = vrot.slane %v2345, 4
      %v2836 = vsel %vm2558, %v2831, %v2835
      %v2837 = vrot.slane %v2346, 4
      %v2838 = vsel %vm2558, %v2833, %v2837
      %v2839 = vrot.slane %v2347, 4
      %v2840 = vsel %vm2558, %v2835, %v2839
      %v2841 = vrot.slane %v2348, 4
      %v2842 = vsel %vm2558, %v2837, %v2841
      %v2843 = vrot.slane %v2349, 4
      %v2844 = vsel %vm2558, %v2839, %v2843
      %v2845 = vrot.slane %v2350, 4
      %v2846 = vsel %vm2558, %v2841, %v2845
      %v2847 = vrot.slane %v2351, 4
      %v2848 = vsel %vm2558, %v2843, %v2847
      %v2849 = vrot.slane %v2352, 4
      %v2850 = vsel %vm2558, %v2845, %v2849
      %v2851 = vrot.slane %v2353, 4
      %v2852 = vsel %vm2558, %v2847, %v2851
      %v2853 = vrot.slane %v2354, 4
      %v2854 = vsel %vm2558, %v2849, %v2853
      %v2855 = vrot.slane %v2355, 4
      %v2856 = vsel %vm2558, %v2851, %v2855
      %v2857 = vrot.slane %v2356, 4
      %v2858 = vsel %vm2558, %v2853, %v2857
      %v2859 = vrot.slane %v2357, 4
      %v2860 = vsel %vm2558, %v2855, %v2859
      %v2861 = vrot.slane %v2358, 4
      %v2862 = vsel %vm2558, %v2857, %v2861
      %v2863 = vrot.slane %v2359, 4
      %v2864 = vsel %vm2558, %v2859, %v2863
      %v2865 = vrot.slane %v2360, 4
      %v2866 = vsel %vm2558, %v2861, %v2865
      %v2867 = vrot.slane %v2361, 4
      %v2868 = vsel %vm2558, %v2863, %v2867
      %v2869 = vrot.slane %v2362, 4
      %v2870 = vsel %vm2558, %v2865, %v2869
      %v2871 = vrot.slane %v2363, 4
      %v2872 = vsel %vm2558, %v2867, %v2871
      %v2873 = vrot.slane %v2364, 4
      %v2874 = vsel %vm2558, %v2869, %v2873
      %v2875 = vrot.slane %v2365, 4
      %v2876 = vsel %vm2558, %v2871, %v2875
      %v2877 = vrot.slane %v2366, 4
      %v2878 = vsel %vm2558, %v2873, %v2877
      %v2879 = vrot.slane %v2367, 4
      %v2880 = vsel %vm2558, %v2875, %v2879
      %v2881 = vrot.slane %v2368, 4
      %v2882 = vsel %vm2558, %v2877, %v2881
      %v2883 = vrot.slane %v2369, 4
      %v2884 = vsel %vm2558, %v2879, %v2883
      %v2885 = vrot.slane %v2370, 4
      %v2886 = vsel %vm2558, %v2881, %v2885
      %v2887 = vrot.slane %v2371, 4
      %v2888 = vsel %vm2558, %v2883, %v2887
      %v2889 = vrot.slane %v2372, 4
      %v2890 = vsel %vm2558, %v2885, %v2889
      %v2891 = vrot.slane %v2373, 4
      %v2892 = vsel %vm2558, %v2887, %v2891
      %v2893 = vrot.slane %v2374, 4
      %v2894 = vsel %vm2558, %v2889, %v2893
      %v2895 = vrot.slane %v2375, 4
      %v2896 = vsel %vm2558, %v2891, %v2895
      %v2897 = vrot.slane %v2376, 4
      %v2898 = vsel %vm2558, %v2893, %v2897
      %v2899 = vrot.slane %v2377, 4
      %v2900 = vsel %vm2558, %v2895, %v2899
      %v2901 = vrot.slane %v2378, 4
      %v2902 = vsel %vm2558, %v2897, %v2901
      %v2903 = vrot.slane %v2379, 4
      %v2904 = vsel %vm2558, %v2899, %v2903
      %v2905 = vrot.slane %v2380, 4
      %v2906 = vsel %vm2558, %v2901, %v2905
      %v2907 = vrot.slane %v2381, 4
      %v2908 = vsel %vm2558, %v2903, %v2907
      %v3085 = vmax.f32 %v2200, %v2561
      %v3086 = vmax.f32 %v2201, %v2564
      %v3087 = vmax.f32 %v2202, %v2566
      %v3088 = vmax.f32 %v2203, %v2568
      %v3089 = vmax.f32 %v2204, %v2570
      %v3090 = vmax.f32 %v2205, %v2572
      %v3091 = vmax.f32 %v2206, %v2574
      %v3092 = vmax.f32 %v2207, %v2576
      %v3093 = vmax.f32 %v2208, %v2578
      %v3094 = vmax.f32 %v2209, %v2580
      %v3095 = vmax.f32 %v2210, %v2582
      %v3096 = vmax.f32 %v2211, %v2584
      %v3097 = vmax.f32 %v2212, %v2586
      %v3098 = vmax.f32 %v2213, %v2588
      %v3099 = vmax.f32 %v2214, %v2590
      %v3100 = vmax.f32 %v2215, %v2592
      %v3101 = vmax.f32 %v2216, %v2594
      %v3102 = vmax.f32 %v2217, %v2596
      %v3103 = vmax.f32 %v2218, %v2598
      %v3104 = vmax.f32 %v2219, %v2600
      %v3105 = vmax.f32 %v2220, %v2602
      %v3106 = vmax.f32 %v2221, %v2604
      %v3107 = vmax.f32 %v2222, %v2606
      %v3108 = vmax.f32 %v2223, %v2608
      %v3109 = vmax.f32 %v2224, %v2610
      %v3110 = vmax.f32 %v2225, %v2612
      %v3111 = vmax.f32 %v2226, %v2614
      %v3112 = vmax.f32 %v2227, %v2616
      %v3113 = vmax.f32 %v2228, %v2618
      %v3114 = vmax.f32 %v2229, %v2620
      %v3115 = vmax.f32 %v2230, %v2622
      %v3116 = vmax.f32 %v2231, %v2624
      %v3117 = vmax.f32 %v2232, %v2626
      %v3118 = vmax.f32 %v2233, %v2628
      %v3119 = vmax.f32 %v2234, %v2630
      %v3120 = vmax.f32 %v2235, %v2632
      %v3121 = vmax.f32 %v2236, %v2634
      %v3122 = vmax.f32 %v2237, %v2636
      %v3123 = vmax.f32 %v2238, %v2638
      %v3124 = vmax.f32 %v2239, %v2640
      %v3125 = vmax.f32 %v2240, %v2642
      %v3126 = vmax.f32 %v2241, %v2644
      %v3127 = vmax.f32 %v2242, %v2646
      %v3128 = vmax.f32 %v2243, %v2648
      %v3129 = vmax.f32 %v2244, %v2650
      %v3130 = vmax.f32 %v2245, %v2652
      %v3131 = vmax.f32 %v2246, %v2654
      %v3132 = vmax.f32 %v2247, %v2656
      %v3133 = vmax.f32 %v2248, %v2658
      %v3134 = vmax.f32 %v2249, %v2660
      %v3135 = vmax.f32 %v2250, %v2662
      %v3136 = vmax.f32 %v2251, %v2664
      %v3137 = vmax.f32 %v2252, %v2666
      %v3138 = vmax.f32 %v2253, %v2668
      %v3139 = vmax.f32 %v2254, %v2670
      %v3140 = vmax.f32 %v2255, %v2672
      %v3141 = vmax.f32 %v2256, %v2674
      %v3142 = vmax.f32 %v2257, %v2676
      %v3143 = vmax.f32 %v2258, %v2678
      %v3144 = vmax.f32 %v2259, %v2680
      %v3145 = vmax.f32 %v2260, %v2682
      %v3146 = vmax.f32 %v2261, %v2684
      %v3147 = vmax.f32 %v2262, %v2686
      %v3148 = vmax.f32 %v2263, %v2688
      %v3149 = vmax.f32 %v2264, %v2690
      %v3150 = vmax.f32 %v2265, %v2692
      %v3151 = vmax.f32 %v2266, %v2694
      %v3152 = vmax.f32 %v2267, %v2696
      %v3153 = vmax.f32 %v2268, %v2698
      %v3154 = vmax.f32 %v2269, %v2700
      %v3155 = vmax.f32 %v2270, %v2702
      %v3156 = vmax.f32 %v2271, %v2704
      %v3157 = vmax.f32 %v2272, %v2706
      %v3158 = vmax.f32 %v2273, %v2708
      %v3159 = vmax.f32 %v2274, %v2710
      %v3160 = vmax.f32 %v2275, %v2712
      %v3161 = vmax.f32 %v2276, %v2714
      %v3162 = vmax.f32 %v2277, %v2716
      %v3163 = vmax.f32 %v2278, %v2718
      %v3164 = vmax.f32 %v2279, %v2720
      %v3165 = vmax.f32 %v2280, %v2722
      %v3166 = vmax.f32 %v2281, %v2724
      %v3167 = vmax.f32 %v2282, %v2726
      %v3168 = vmax.f32 %v2283, %v2728
      %v3169 = vmax.f32 %v2284, %v2730
      %v3170 = vmax.f32 %v2285, %v2732
      %v3171 = vmax.f32 %v2286, %v2734
      %v3172 = vmax.f32 %v2287, %v2736
      %v3173 = vmax.f32 %v2288, %v2738
      %v3174 = vmax.f32 %v2289, %v2740
      %v3175 = vmax.f32 %v2290, %v2742
      %v3176 = vmax.f32 %v2291, %v2744
      %v3177 = vmax.f32 %v2292, %v2746
      %v3178 = vmax.f32 %v2293, %v2748
      %v3179 = vmax.f32 %v2294, %v2750
      %v3180 = vmax.f32 %v2295, %v2752
      %v3181 = vmax.f32 %v2296, %v2754
      %v3182 = vmax.f32 %v2297, %v2756
      %v3183 = vmax.f32 %v2298, %v2758
      %v3184 = vmax.f32 %v2299, %v2760
      %v3185 = vmax.f32 %v2300, %v2762
      %v3186 = vmax.f32 %v2301, %v2764
      %v3187 = vmax.f32 %v2302, %v2766
      %v3188 = vmax.f32 %v2303, %v2768
      %v3189 = vmax.f32 %v2304, %v2770
      %v3190 = vmax.f32 %v2305, %v2772
      %v3191 = vmax.f32 %v2306, %v2774
      %v3192 = vmax.f32 %v2307, %v2776
      %v3193 = vmax.f32 %v2308, %v2778
      %v3194 = vmax.f32 %v2309, %v2780
      %v3195 = vmax.f32 %v2310, %v2782
      %v3196 = vmax.f32 %v2311, %v2784
      %v3197 = vmax.f32 %v2312, %v2786
      %v3198 = vmax.f32 %v2313, %v2788
      %v3199 = vmax.f32 %v2314, %v2790
      %v3200 = vmax.f32 %v2315, %v2792
      %v3201 = vmax.f32 %v2316, %v2794
      %v3202 = vmax.f32 %v2317, %v2796
      %v3203 = vmax.f32 %v2318, %v2798
      %v3204 = vmax.f32 %v2319, %v2800
      %v3205 = vmax.f32 %v2320, %v2802
      %v3206 = vmax.f32 %v2321, %v2804
      %v3207 = vmax.f32 %v2322, %v2806
      %v3208 = vmax.f32 %v2323, %v2808
      %v3209 = vmax.f32 %v2324, %v2810
      %v3210 = vmax.f32 %v2325, %v2812
      %v3211 = vmax.f32 %v2326, %v2814
      %v3212 = vmax.f32 %v2327, %v2816
      %v3213 = vmax.f32 %v2328, %v2818
      %v3214 = vmax.f32 %v2329, %v2820
      %v3215 = vmax.f32 %v2330, %v2822
      %v3216 = vmax.f32 %v2331, %v2824
      %v3217 = vmax.f32 %v2332, %v2826
      %v3218 = vmax.f32 %v2333, %v2828
      %v3219 = vmax.f32 %v2334, %v2830
      %v3220 = vmax.f32 %v2335, %v2832
      %v3221 = vmax.f32 %v2336, %v2834
      %v3222 = vmax.f32 %v2337, %v2836
      %v3223 = vmax.f32 %v2338, %v2838
      %v3224 = vmax.f32 %v2339, %v2840
      %v3225 = vmax.f32 %v2340, %v2842
      %v3226 = vmax.f32 %v2341, %v2844
      %v3227 = vmax.f32 %v2342, %v2846
      %v3228 = vmax.f32 %v2343, %v2848
      %v3229 = vmax.f32 %v2344, %v2850
      %v3230 = vmax.f32 %v2345, %v2852
      %v3231 = vmax.f32 %v2346, %v2854
      %v3232 = vmax.f32 %v2347, %v2856
      %v3233 = vmax.f32 %v2348, %v2858
      %v3234 = vmax.f32 %v2349, %v2860
      %v3235 = vmax.f32 %v2350, %v2862
      %v3236 = vmax.f32 %v2351, %v2864
      %v3237 = vmax.f32 %v2352, %v2866
      %v3238 = vmax.f32 %v2353, %v2868
      %v3239 = vmax.f32 %v2354, %v2870
      %v3240 = vmax.f32 %v2355, %v2872
      %v3241 = vmax.f32 %v2356, %v2874
      %v3242 = vmax.f32 %v2357, %v2876
      %v3243 = vmax.f32 %v2358, %v2878
      %v3244 = vmax.f32 %v2359, %v2880
      %v3245 = vmax.f32 %v2360, %v2882
      %v3246 = vmax.f32 %v2361, %v2884
      %v3247 = vmax.f32 %v2362, %v2886
      %v3248 = vmax.f32 %v2363, %v2888
      %v3249 = vmax.f32 %v2364, %v2890
      %v3250 = vmax.f32 %v2365, %v2892
      %v3251 = vmax.f32 %v2366, %v2894
      %v3252 = vmax.f32 %v2367, %v2896
      %v3253 = vmax.f32 %v2368, %v2898
      %v3254 = vmax.f32 %v2369, %v2900
      %v3255 = vmax.f32 %v2370, %v2902
      %v3256 = vmax.f32 %v2371, %v2904
      %v3257 = vmax.f32 %v2372, %v2906
      %v3258 = vmax.f32 %v2373, %v2908
      %v3259 = vmax.f32 %v2374, %v2905
      %v3260 = vmax.f32 %v2375, %v2907
      %v3261 = vld [vmem:[%s3] sm:$0xff]
      %v3262 = vld [vmem:[%s3 + $0x8] sm:$0xff]
      %v3263 = vld [vmem:[%s3 + $0x10] sm:$0xff]
      %v3264 = vld [vmem:[%s3 + $0x18] sm:$0xff]
      %v3265 = vld [vmem:[%s3 + $0x20] sm:$0xff]
      %v3266 = vld [vmem:[%s3 + $0x28] sm:$0xff]
      %v3267 = vld [vmem:[%s3 + $0x30] sm:$0xff]
      %v3268 = vld [vmem:[%s3 + $0x38] sm:$0xff]
      %v3269 = vld [vmem:[%s3 + $0x40] sm:$0xff]
      %v3270 = vld [vmem:[%s3 + $0x48] sm:$0xff]
      %v3271 = vld [vmem:[%s3 + $0x50] sm:$0xff]
      %v3272 = vld [vmem:[%s3 + $0x58] sm:$0xff]
      %v3273 = vld [vmem:[%s3 + $0x60] sm:$0xff]
      %v3274 = vld [vmem:[%s3 + $0x68] sm:$0xff]
      %v3275 = vld [vmem:[%s3 + $0x70] sm:$0xff]
      %v3276 = vld [vmem:[%s3 + $0x78] sm:$0xff]
      %v3277 = vld [vmem:[%s3 + $0x80] sm:$0xff]
      %v3278 = vld [vmem:[%s3 + $0x88] sm:$0xff]
      %v3279 = vld [vmem:[%s3 + $0x90] sm:$0xff]
      %v3280 = vld [vmem:[%s3 + $0x98] sm:$0xff]
      %v3281 = vld [vmem:[%s3 + $0xa0] sm:$0xff]
      %v3282 = vld [vmem:[%s3 + $0xa8] sm:$0xff]
      %v3283 = vld [vmem:[%s3 + $0xb0] sm:$0xff]
      %v3284 = vld [vmem:[%s3 + $0xb8] sm:$0xff]
      %v3285 = vld [vmem:[%s3 + $0xc0] sm:$0xff]
      %v3286 = vld [vmem:[%s3 + $0xc8] sm:$0xff]
      %v3287 = vld [vmem:[%s3 + $0xd0] sm:$0xff]
      %v3288 = vld [vmem:[%s3 + $0xd8] sm:$0xff]
      %v3289 = vld [vmem:[%s3 + $0xe0] sm:$0xff]
      %v3290 = vld [vmem:[%s3 + $0xe8] sm:$0xff]
      %v3291 = vld [vmem:[%s3 + $0xf0] sm:$0xff]
      %v3292 = vld [vmem:[%s3 + $0xf8] sm:$0xff]
      %v3293 = vld [vmem:[%s3 + $0x100] sm:$0xff]
      %v3294 = vld [vmem:[%s3 + $0x108] sm:$0xff]
      %v3295 = vld [vmem:[%s3 + $0x110] sm:$0xff]
      %v3296 = vld [vmem:[%s3 + $0x118] sm:$0xff]
      %v3297 = vld [vmem:[%s3 + $0x120] sm:$0xff]
      %v3298 = vld [vmem:[%s3 + $0x128] sm:$0xff]
      %v3299 = vld [vmem:[%s3 + $0x130] sm:$0xff]
      %v3300 = vld [vmem:[%s3 + $0x138] sm:$0xff]
      %v3301 = vld [vmem:[%s3 + $0x140] sm:$0xff]
      %v3302 = vld [vmem:[%s3 + $0x148] sm:$0xff]
      %v3303 = vld [vmem:[%s3 + $0x150] sm:$0xff]
      %v3304 = vld [vmem:[%s3 + $0x158] sm:$0xff]
      %v3305 = vld [vmem:[%s3 + $0x160] sm:$0xff]
      %v3306 = vld [vmem:[%s3 + $0x168] sm:$0xff]
      %v3307 = vld [vmem:[%s3 + $0x170] sm:$0xff]
      %v3308 = vld [vmem:[%s3 + $0x178] sm:$0xff]
      %v3309 = vld [vmem:[%s3 + $0x180] sm:$0xff]
      %v3310 = vld [vmem:[%s3 + $0x188] sm:$0xff]
      %v3311 = vld [vmem:[%s3 + $0x190] sm:$0xff]
      %v3312 = vld [vmem:[%s3 + $0x198] sm:$0xff]
      %v3313 = vld [vmem:[%s3 + $0x1a0] sm:$0xff]
      %v3314 = vld [vmem:[%s3 + $0x1a8] sm:$0xff]
      %v3315 = vld [vmem:[%s3 + $0x1b0] sm:$0xff]
      %v3316 = vld [vmem:[%s3 + $0x1b8] sm:$0xff]
      %v3317 = vld [vmem:[%s3 + $0x1c0] sm:$0xff]
      %v3318 = vld [vmem:[%s3 + $0x1c8] sm:$0xff]
      %v3319 = vld [vmem:[%s3 + $0x1d0] sm:$0xff]
      %v3320 = vld [vmem:[%s3 + $0x1d8] sm:$0xff]
      %v3321 = vld [vmem:[%s3 + $0x1e0] sm:$0xff]
      %v3322 = vld [vmem:[%s3 + $0x1e8] sm:$0xff]
      %v3323 = vld [vmem:[%s3 + $0x1f0] sm:$0xff]
      %v3324 = vld [vmem:[%s3 + $0x1f8] sm:$0x33]
      %v3325 = vld [vmem:[%s3 + $0x200] sm:$0x33]
      %v3326 = vld [vmem:[%s3 + $0x208] sm:$0x33]
      %v3327 = vpack.c.bf16 %v3087, %v3085
      %v3328 = vpack.c.bf16 %v3088, %v3086
      %v3329 = vpack.c.bf16 %v3091, %v3089
      %v3330 = vpack.c.bf16 %v3092, %v3090
      %v3331 = vpack.c.bf16 %v3095, %v3093
      %v3332 = vpack.c.bf16 %v3096, %v3094
      %v3333 = vpack.c.bf16 %v3099, %v3097
      %v3334 = vpack.c.bf16 %v3100, %v3098
      %v3335 = vpack.c.bf16 %v3103, %v3101
      %v3336 = vpack.c.bf16 %v3104, %v3102
      %v3337 = vpack.c.bf16 %v3107, %v3105
      %v3338 = vpack.c.bf16 %v3108, %v3106
      %v3339 = vpack.c.bf16 %v3111, %v3109
      %v3340 = vpack.c.bf16 %v3112, %v3110
      %v3341 = vpack.c.bf16 %v3115, %v3113
      %v3342 = vpack.c.bf16 %v3116, %v3114
      %v3343 = vpack.c.bf16 %v3119, %v3117
      %v3344 = vpack.c.bf16 %v3120, %v3118
      %v3345 = vpack.c.bf16 %v3123, %v3121
      %v3346 = vpack.c.bf16 %v3124, %v3122
      %v3347 = vpack.c.bf16 %v3127, %v3125
      %v3348 = vpack.c.bf16 %v3128, %v3126
      %v3349 = vpack.c.bf16 %v3131, %v3129
      %v3350 = vpack.c.bf16 %v3132, %v3130
      %v3351 = vpack.c.bf16 %v3135, %v3133
      %v3352 = vpack.c.bf16 %v3136, %v3134
      %v3353 = vpack.c.bf16 %v3139, %v3137
      %v3354 = vpack.c.bf16 %v3140, %v3138
      %v3355 = vpack.c.bf16 %v3143, %v3141
      %v3356 = vpack.c.bf16 %v3144, %v3142
      %v3357 = vpack.c.bf16 %v3147, %v3145
      %v3358 = vpack.c.bf16 %v3148, %v3146
      %v3359 = vpack.c.bf16 %v3151, %v3149
      %v3360 = vpack.c.bf16 %v3152, %v3150
      %v3361 = vpack.c.bf16 %v3155, %v3153
      %v3362 = vpack.c.bf16 %v3156, %v3154
      %v3363 = vpack.c.bf16 %v3159, %v3157
      %v3364 = vpack.c.bf16 %v3160, %v3158
      %v3365 = vpack.c.bf16 %v3163, %v3161
      %v3366 = vpack.c.bf16 %v3164, %v3162
      %v3367 = vpack.c.bf16 %v3167, %v3165
      %v3368 = vpack.c.bf16 %v3168, %v3166
      %v3369 = vpack.c.bf16 %v3171, %v3169
      %v3370 = vpack.c.bf16 %v3172, %v3170
      %v3371 = vpack.c.bf16 %v3175, %v3173
      %v3372 = vpack.c.bf16 %v3176, %v3174
      %v3373 = vpack.c.bf16 %v3179, %v3177
      %v3374 = vpack.c.bf16 %v3180, %v3178
      %v3375 = vpack.c.bf16 %v3183, %v3181
      %v3376 = vpack.c.bf16 %v3184, %v3182
      %v3377 = vpack.c.bf16 %v3187, %v3185
      %v3378 = vpack.c.bf16 %v3188, %v3186
      %v3379 = vpack.c.bf16 %v3191, %v3189
      %v3380 = vpack.c.bf16 %v3192, %v3190
      %v3381 = vpack.c.bf16 %v3195, %v3193
      %v3382 = vpack.c.bf16 %v3196, %v3194
      %v3383 = vpack.c.bf16 %v3199, %v3197
      %v3384 = vpack.c.bf16 %v3200, %v3198
      %v3385 = vpack.c.bf16 %v3203, %v3201
      %v3386 = vpack.c.bf16 %v3204, %v3202
      %v3387 = vpack.c.bf16 %v3207, %v3205
      %v3388 = vpack.c.bf16 %v3208, %v3206
      %v3389 = vpack.c.bf16 %v3211, %v3209
      %v3390 = vpack.c.bf16 %v3212, %v3210
      %v3391 = vpack.c.bf16 %v3215, %v3213
      %v3392 = vpack.c.bf16 %v3216, %v3214
      %v3393 = vpack.c.bf16 %v3219, %v3217
      %v3394 = vpack.c.bf16 %v3220, %v3218
      %v3395 = vpack.c.bf16 %v3223, %v3221
      %v3396 = vpack.c.bf16 %v3224, %v3222
      %v3397 = vpack.c.bf16 %v3227, %v3225
      %v3398 = vpack.c.bf16 %v3228, %v3226
      %v3399 = vpack.c.bf16 %v3231, %v3229
      %v3400 = vpack.c.bf16 %v3232, %v3230
      %v3401 = vpack.c.bf16 %v3235, %v3233
      %v3402 = vpack.c.bf16 %v3236, %v3234
      %v3403 = vpack.c.bf16 %v3239, %v3237
      %v3404 = vpack.c.bf16 %v3240, %v3238
      %v3405 = vpack.c.bf16 %v3243, %v3241
      %v3406 = vpack.c.bf16 %v3244, %v3242
      %v3407 = vpack.c.bf16 %v3247, %v3245
      %v3408 = vpack.c.bf16 %v3248, %v3246
      %v3409 = vpack.c.bf16 %v3251, %v3249
      %v3410 = vpack.c.bf16 %v3252, %v3250
      %v3411 = vpack.c.bf16 %v3255, %v3253
      %v3412 = vpack.c.bf16 %v3256, %v3254
      %v3413 = vpack.c.bf16 %v3259, %v3257
      %v3414 = vpack.c.bf16 %v3260, %v3258
      %v3481 = vunpack.c.l.b16 %v3261
      %v3482 = vunpack.c.h.b16 %v3261
      %v3483 = vunpack.c.l.b16 %v3262
      %v3484 = vunpack.c.h.b16 %v3262
      %v3485 = vunpack.c.l.b16 %v3263
      %v3486 = vunpack.c.h.b16 %v3263
      %v3487 = vunpack.c.l.b16 %v3264
      %v3488 = vunpack.c.h.b16 %v3264
      %v3489 = vunpack.c.l.b16 %v3265
      %v3490 = vunpack.c.h.b16 %v3265
      %v3491 = vunpack.c.l.b16 %v3266
      %v3492 = vunpack.c.h.b16 %v3266
      %v3493 = vunpack.c.l.b16 %v3267
      %v3494 = vunpack.c.h.b16 %v3267
      %v3495 = vunpack.c.l.b16 %v3268
      %v3496 = vunpack.c.h.b16 %v3268
      %v3497 = vunpack.c.l.b16 %v3269
      %v3498 = vunpack.c.h.b16 %v3269
      %v3499 = vunpack.c.l.b16 %v3270
      %v3500 = vunpack.c.h.b16 %v3270
      %v3501 = vunpack.c.l.b16 %v3271
      %v3502 = vunpack.c.h.b16 %v3271
      %v3503 = vunpack.c.l.b16 %v3272
      %v3504 = vunpack.c.h.b16 %v3272
      %v3505 = vunpack.c.l.b16 %v3273
      %v3506 = vunpack.c.h.b16 %v3273
      %v3507 = vunpack.c.l.b16 %v3274
      %v3508 = vunpack.c.h.b16 %v3274
      %v3509 = vunpack.c.l.b16 %v3275
      %v3510 = vunpack.c.h.b16 %v3275
      %v3511 = vunpack.c.l.b16 %v3276
      %v3512 = vunpack.c.h.b16 %v3276
      %v3513 = vunpack.c.l.b16 %v3277
      %v3514 = vunpack.c.h.b16 %v3277
      %v3515 = vunpack.c.l.b16 %v3278
      %v3516 = vunpack.c.h.b16 %v3278
      %v3517 = vunpack.c.l.b16 %v3279
      %v3518 = vunpack.c.h.b16 %v3279
      %v3519 = vunpack.c.l.b16 %v3280
      %v3520 = vunpack.c.h.b16 %v3280
      %v3521 = vunpack.c.l.b16 %v3281
      %v3522 = vunpack.c.h.b16 %v3281
      %v3523 = vunpack.c.l.b16 %v3282
      %v3524 = vunpack.c.h.b16 %v3282
      %v3525 = vunpack.c.l.b16 %v3283
      %v3526 = vunpack.c.h.b16 %v3283
      %v3527 = vunpack.c.l.b16 %v3284
      %v3528 = vunpack.c.h.b16 %v3284
      %v3529 = vunpack.c.l.b16 %v3285
      %v3530 = vunpack.c.h.b16 %v3285
      %v3531 = vunpack.c.l.b16 %v3286
      %v3532 = vunpack.c.h.b16 %v3286
      %v3533 = vunpack.c.l.b16 %v3287
      %v3534 = vunpack.c.h.b16 %v3287
      %v3535 = vunpack.c.l.b16 %v3288
      %v3536 = vunpack.c.h.b16 %v3288
      %v3537 = vunpack.c.l.b16 %v3289
      %v3538 = vunpack.c.h.b16 %v3289
      %v3539 = vunpack.c.l.b16 %v3290
      %v3540 = vunpack.c.h.b16 %v3290
      %v3541 = vunpack.c.l.b16 %v3291
      %v3542 = vunpack.c.h.b16 %v3291
      %v3543 = vunpack.c.l.b16 %v3292
      %v3544 = vunpack.c.h.b16 %v3292
      %v3545 = vunpack.c.l.b16 %v3293
      %v3546 = vunpack.c.h.b16 %v3293
      %v3547 = vunpack.c.l.b16 %v3294
      %v3548 = vunpack.c.h.b16 %v3294
      %v3549 = vunpack.c.l.b16 %v3295
      %v3550 = vunpack.c.h.b16 %v3295
      %v3551 = vunpack.c.l.b16 %v3296
      %v3552 = vunpack.c.h.b16 %v3296
      %v3553 = vunpack.c.l.b16 %v3297
      %v3554 = vunpack.c.h.b16 %v3297
      %v3555 = vunpack.c.l.b16 %v3298
      %v3556 = vunpack.c.h.b16 %v3298
      %v3557 = vunpack.c.l.b16 %v3299
      %v3558 = vunpack.c.h.b16 %v3299
      %v3559 = vunpack.c.l.b16 %v3300
      %v3560 = vunpack.c.h.b16 %v3300
      %v3561 = vunpack.c.l.b16 %v3301
      %v3562 = vunpack.c.h.b16 %v3301
      %v3563 = vunpack.c.l.b16 %v3302
      %v3564 = vunpack.c.h.b16 %v3302
      %v3565 = vunpack.c.l.b16 %v3303
      %v3566 = vunpack.c.h.b16 %v3303
      %v3567 = vunpack.c.l.b16 %v3304
      %v3568 = vunpack.c.h.b16 %v3304
      %v3569 = vunpack.c.l.b16 %v3305
      %v3570 = vunpack.c.h.b16 %v3305
      %v3571 = vunpack.c.l.b16 %v3306
      %v3572 = vunpack.c.h.b16 %v3306
      %v3573 = vunpack.c.l.b16 %v3307
      %v3574 = vunpack.c.h.b16 %v3307
      %v3575 = vunpack.c.l.b16 %v3308
      %v3576 = vunpack.c.h.b16 %v3308
      %v3577 = vunpack.c.l.b16 %v3309
      %v3578 = vunpack.c.h.b16 %v3309
      %v3579 = vunpack.c.l.b16 %v3310
      %v3580 = vunpack.c.h.b16 %v3310
      %v3581 = vunpack.c.l.b16 %v3311
      %v3582 = vunpack.c.h.b16 %v3311
      %v3583 = vunpack.c.l.b16 %v3312
      %v3584 = vunpack.c.h.b16 %v3312
      %v3585 = vunpack.c.l.b16 %v3313
      %v3586 = vunpack.c.h.b16 %v3313
      %v3587 = vunpack.c.l.b16 %v3314
      %v3588 = vunpack.c.h.b16 %v3314
      %v3589 = vunpack.c.l.b16 %v3315
      %v3590 = vunpack.c.h.b16 %v3315
      %v3591 = vunpack.c.l.b16 %v3316
      %v3592 = vunpack.c.h.b16 %v3316
      %v3593 = vunpack.c.l.b16 %v3317
      %v3594 = vunpack.c.h.b16 %v3317
      %v3595 = vunpack.c.l.b16 %v3318
      %v3596 = vunpack.c.h.b16 %v3318
      %v3597 = vunpack.c.l.b16 %v3319
      %v3598 = vunpack.c.h.b16 %v3319
      %v3599 = vunpack.c.l.b16 %v3320
      %v3600 = vunpack.c.h.b16 %v3320
      %v3601 = vunpack.c.l.b16 %v3321
      %v3602 = vunpack.c.h.b16 %v3321
      %v3603 = vunpack.c.l.b16 %v3322
      %v3604 = vunpack.c.h.b16 %v3322
      %v3605 = vunpack.c.l.b16 %v3323
      %v3606 = vunpack.c.h.b16 %v3323
      %v3607 = vunpack.c.l.b16 %v3324
      %v3608 = vunpack.c.h.b16 %v3324
      %v3609 = vunpack.c.l.b16 %v3325
      %v3610 = vunpack.c.h.b16 %v3325
      %v3611 = vunpack.c.l.b16 %v3326
      %v3612 = vunpack.c.h.b16 %v3326
      %v3613 = vpack.c.b16 %v3487, %v3481
      %v3614 = vpack.c.b16 %v3488, %v3482
      %v3615 = vpack.c.b16 %v3489, %v3483
      %v3616 = vpack.c.b16 %v3490, %v3484
      %v3617 = vpack.c.b16 %v3491, %v3485
      %v3618 = vpack.c.b16 %v3492, %v3486
      %v3619 = vpack.c.b16 %v3499, %v3493
      %v3620 = vpack.c.b16 %v3500, %v3494
      %v3621 = vpack.c.b16 %v3501, %v3495
      %v3622 = vpack.c.b16 %v3502, %v3496
      %v3623 = vpack.c.b16 %v3503, %v3497
      %v3624 = vpack.c.b16 %v3504, %v3498
      %v3625 = vpack.c.b16 %v3511, %v3505
      %v3626 = vpack.c.b16 %v3512, %v3506
      %v3627 = vpack.c.b16 %v3513, %v3507
      %v3628 = vpack.c.b16 %v3514, %v3508
      %v3629 = vpack.c.b16 %v3515, %v3509
      %v3630 = vpack.c.b16 %v3516, %v3510
      %v3631 = vpack.c.b16 %v3523, %v3517
      %v3632 = vpack.c.b16 %v3524, %v3518
      %v3633 = vpack.c.b16 %v3525, %v3519
      %v3634 = vpack.c.b16 %v3526, %v3520
      %v3635 = vpack.c.b16 %v3527, %v3521
      %v3636 = vpack.c.b16 %v3528, %v3522
      %v3637 = vpack.c.b16 %v3535, %v3529
      %v3638 = vpack.c.b16 %v3536, %v3530
      %v3639 = vpack.c.b16 %v3537, %v3531
      %v3640 = vpack.c.b16 %v3538, %v3532
      %v3641 = vpack.c.b16 %v3539, %v3533
      %v3642 = vpack.c.b16 %v3540, %v3534
      %v3643 = vpack.c.b16 %v3547, %v3541
      %v3644 = vpack.c.b16 %v3548, %v3542
      %v3645 = vpack.c.b16 %v3549, %v3543
      %v3646 = vpack.c.b16 %v3550, %v3544
      %v3647 = vpack.c.b16 %v3551, %v3545
      %v3648 = vpack.c.b16 %v3552, %v3546
      %v3649 = vpack.c.b16 %v3559, %v3553
      %v3650 = vpack.c.b16 %v3560, %v3554
      %v3651 = vpack.c.b16 %v3561, %v3555
      %v3652 = vpack.c.b16 %v3562, %v3556
      %v3653 = vpack.c.b16 %v3563, %v3557
      %v3654 = vpack.c.b16 %v3564, %v3558
      %v3655 = vpack.c.b16 %v3571, %v3565
      %v3656 = vpack.c.b16 %v3572, %v3566
      %v3657 = vpack.c.b16 %v3573, %v3567
      %v3658 = vpack.c.b16 %v3574, %v3568
      %v3659 = vpack.c.b16 %v3575, %v3569
      %v3660 = vpack.c.b16 %v3576, %v3570
      %v3661 = vpack.c.b16 %v3583, %v3577
      %v3662 = vpack.c.b16 %v3584, %v3578
      %v3663 = vpack.c.b16 %v3585, %v3579
      %v3664 = vpack.c.b16 %v3586, %v3580
      %v3665 = vpack.c.b16 %v3587, %v3581
      %v3666 = vpack.c.b16 %v3588, %v3582
      %v3667 = vpack.c.b16 %v3595, %v3589
      %v3668 = vpack.c.b16 %v3596, %v3590
      %v3669 = vpack.c.b16 %v3597, %v3591
      %v3670 = vpack.c.b16 %v3598, %v3592
      %v3671 = vpack.c.b16 %v3599, %v3593
      %v3672 = vpack.c.b16 %v3600, %v3594
      %v3673 = vpack.c.b16 %v3607, %v3601
      %v3674 = vpack.c.b16 %v3608, %v3602
      %v3675 = vpack.c.b16 %v3609, %v3603
      %v3676 = vpack.c.b16 %v3610, %v3604
      %v3677 = vpack.c.b16 %v3611, %v3605
      %v3678 = vpack.c.b16 %v3612, %v3606
      %vm3734 = vcmask 482304
      %v3736 = vsel %vm3734, %v3618, 0
      %v3739 = vsel %vm3734, %v3624, 0
      %v3742 = vsel %vm3734, %v3630, 0
      %v3745 = vsel %vm3734, %v3636, 0
      %v3748 = vsel %vm3734, %v3642, 0
      %v3751 = vsel %vm3734, %v3648, 0
      %v3754 = vsel %vm3734, %v3654, 0
      %v3757 = vsel %vm3734, %v3660, 0
      %v3760 = vsel %vm3734, %v3666, 0
      %v3763 = vsel %vm3734, %v3672, 0
      %v3766 = vsel %vm3734, %v3678, 0
      %vm3768 = vcmask 1044480
      %vm3769 = vcmask 1045504
      %v3770 = vsel %vm3768, 4294967295, 65535
      %v3771 = vsel %vm3769, %v3770, 0
      %v3773 = vand.u32 %v3413, %v3771
      %v3776 = vand.u32 %v3414, %v3771
      %3778 = vmatprep.subr.bf16.mxu0 %v3342
      %3779 = vmatpush1.bf16.msra.mxu0 %v3341
      %3780 = vmatprep.subr.bf16.mxu0 %v3340
      %3781 = vmatpush1.bf16.msra.mxu0 %v3339
      %3782 = vmatprep.subr.bf16.mxu0 %v3338
      %3783 = vmatpush1.bf16.msra.mxu0 %v3337
      %3784 = vmatprep.subr.bf16.mxu0 %v3336
      %3785 = vmatpush1.bf16.msra.mxu0 %v3335
      %3786 = vmatprep.subr.bf16.mxu0 %v3334
      %3787 = vmatpush1.bf16.msra.mxu0 %v3333
      %3788 = vmatprep.subr.bf16.mxu0 %v3332
      %3789 = vmatpush1.bf16.msra.mxu0 %v3331
      %3790 = vmatprep.subr.bf16.mxu0 %v3330
      %3791 = vmatpush1.bf16.msra.mxu0 %v3329
      %3792 = vmatprep.subr.bf16.mxu0 %v3328
      %3793 = vmatpush1.bf16.msra.mxu0 %v3327
      %3794 = vmatprep.subr.bf16.mxu0 %v3358
      %3795 = vmatpush2.bf16.msra.mxu0 %v3357
      %3796 = vmatprep.subr.bf16.mxu0 %v3356
      %3797 = vmatpush2.bf16.msra.mxu0 %v3355
      %3798 = vmatprep.subr.bf16.mxu0 %v3354
      %3799 = vmatpush2.bf16.msra.mxu0 %v3353
      %3800 = vmatprep.subr.bf16.mxu0 %v3352
      %3801 = vmatpush2.bf16.msra.mxu0 %v3351
      %3802 = vmatprep.subr.bf16.mxu0 %v3350
      %3803 = vmatpush2.bf16.msra.mxu0 %v3349
      %3804 = vmatprep.subr.bf16.mxu0 %v3348
      %3805 = vmatpush2.bf16.msra.mxu0 %v3347
      %3806 = vmatprep.subr.bf16.mxu0 %v3346
      %3807 = vmatpush2.bf16.msra.mxu0 %v3345
      %3808 = vmatprep.subr.bf16.mxu0 %v3344
      %3809 = vmatpush2.bf16.msra.mxu0 %v3343
      %3810 = vmatprep.mubr.bf16.mxu0 %v3614
      %3811 = vmatmul.mubr.bf16.gmra.mxu0 %v3613
      %v3812 = vpop.f32.mrf.mxu0
      %v3813 = vadd.f32 0.0, %v3812
      %v3814 = vpop.f32.mrf.mxu0
      %v3815 = vadd.f32 0.0, %v3814
      %v3816 = vpop.f32.mrf.mxu0
      %v3817 = vadd.f32 0.0, %v3816
      %v3818 = vpop.f32.mrf.mxu0
      %v3819 = vadd.f32 0.0, %v3818
      %3820 = vmatprep.mubr.bf16.mxu0 %v3620
      %3821 = vmatmul.mubr.bf16.gmra.mxu0 %v3619
      %v3822 = vpop.f32.mrf.mxu0
      %v3823 = vadd.f32 0.0, %v3822
      %v3824 = vpop.f32.mrf.mxu0
      %v3825 = vadd.f32 0.0, %v3824
      %v3826 = vpop.f32.mrf.mxu0
      %v3827 = vadd.f32 0.0, %v3826
      %v3828 = vpop.f32.mrf.mxu0
      %v3829 = vadd.f32 0.0, %v3828
      %3830 = vmatprep.mubr.bf16.mxu0 %v3626
      %3831 = vmatmul.mubr.bf16.gmra.mxu0 %v3625
      %v3832 = vpop.f32.mrf.mxu0
      %v3833 = vadd.f32 0.0, %v3832
      %v3834 = vpop.f32.mrf.mxu0
      %v3835 = vadd.f32 0.0, %v3834
      %v3836 = vpop.f32.mrf.mxu0
      %v3837 = vadd.f32 0.0, %v3836
      %v3838 = vpop.f32.mrf.mxu0
      %v3839 = vadd.f32 0.0, %v3838
      %3840 = vmatprep.mubr.bf16.mxu0 %v3632
      %3841 = vmatmul.mubr.bf16.gmra.mxu0 %v3631
      %v3842 = vpop.f32.mrf.mxu0
      %v3843 = vadd.f32 0.0, %v3842
      %v3844 = vpop.f32.mrf.mxu0
      %v3845 = vadd.f32 0.0, %v3844
      %v3846 = vpop.f32.mrf.mxu0
      %v3847 = vadd.f32 0.0, %v3846
      %v3848 = vpop.f32.mrf.mxu0
      %v3849 = vadd.f32 0.0, %v3848
      %3850 = vmatprep.mubr.bf16.mxu0 %v3638
      %3851 = vmatmul.mubr.bf16.gmra.mxu0 %v3637
      %v3852 = vpop.f32.mrf.mxu0
      %v3853 = vadd.f32 0.0, %v3852
      %v3854 = vpop.f32.mrf.mxu0
      %v3855 = vadd.f32 0.0, %v3854
      %v3856 = vpop.f32.mrf.mxu0
      %v3857 = vadd.f32 0.0, %v3856
      %v3858 = vpop.f32.mrf.mxu0
      %v3859 = vadd.f32 0.0, %v3858
      %3860 = vmatprep.mubr.bf16.mxu0 %v3644
      %3861 = vmatmul.mubr.bf16.gmra.mxu0 %v3643
      %v3862 = vpop.f32.mrf.mxu0
      %v3863 = vadd.f32 0.0, %v3862
      %v3864 = vpop.f32.mrf.mxu0
      %v3865 = vadd.f32 0.0, %v3864
      %v3866 = vpop.f32.mrf.mxu0
      %v3867 = vadd.f32 0.0, %v3866
      %v3868 = vpop.f32.mrf.mxu0
      %v3869 = vadd.f32 0.0, %v3868
      %3870 = vmatprep.mubr.bf16.mxu0 %v3650
      %3871 = vmatmul.mubr.bf16.gmra.mxu0 %v3649
      %v3872 = vpop.f32.mrf.mxu0
      %v3873 = vadd.f32 0.0, %v3872
      %v3874 = vpop.f32.mrf.mxu0
      %v3875 = vadd.f32 0.0, %v3874
      %v3876 = vpop.f32.mrf.mxu0
      %v3877 = vadd.f32 0.0, %v3876
      %v3878 = vpop.f32.mrf.mxu0
      %v3879 = vadd.f32 0.0, %v3878
      %3880 = vmatprep.mubr.bf16.mxu0 %v3656
      %3881 = vmatmul.mubr.bf16.gmra.mxu0 %v3655
      %v3882 = vpop.f32.mrf.mxu0
      %v3883 = vadd.f32 0.0, %v3882
      %v3884 = vpop.f32.mrf.mxu0
      %v3885 = vadd.f32 0.0, %v3884
      %v3886 = vpop.f32.mrf.mxu0
      %v3887 = vadd.f32 0.0, %v3886
      %v3888 = vpop.f32.mrf.mxu0
      %v3889 = vadd.f32 0.0, %v3888
      %3890 = vmatprep.mubr.bf16.mxu0 %v3662
      %3891 = vmatmul.mubr.bf16.gmra.mxu0 %v3661
      %v3892 = vpop.f32.mrf.mxu0
      %v3893 = vadd.f32 0.0, %v3892
      %v3894 = vpop.f32.mrf.mxu0
      %v3895 = vadd.f32 0.0, %v3894
      %v3896 = vpop.f32.mrf.mxu0
      %v3897 = vadd.f32 0.0, %v3896
      %v3898 = vpop.f32.mrf.mxu0
      %v3899 = vadd.f32 0.0, %v3898
      %3900 = vmatprep.mubr.bf16.mxu0 %v3668
      %3901 = vmatmul.mubr.bf16.gmra.mxu0 %v3667
      %v3902 = vpop.f32.mrf.mxu0
      %v3903 = vadd.f32 0.0, %v3902
      %v3904 = vpop.f32.mrf.mxu0
      %v3905 = vadd.f32 0.0, %v3904
      %v3906 = vpop.f32.mrf.mxu0
      %v3907 = vadd.f32 0.0, %v3906
      %v3908 = vpop.f32.mrf.mxu0
      %v3909 = vadd.f32 0.0, %v3908
      %3910 = vmatprep.mubr.bf16.mxu0 %v3674
      %3911 = vmatmul.mubr.bf16.gmra.mxu0 %v3673
      %v3912 = vpop.f32.mrf.mxu0
      %v3913 = vadd.f32 0.0, %v3912
      %v3914 = vpop.f32.mrf.mxu0
      %v3915 = vadd.f32 0.0, %v3914
      %v3916 = vpop.f32.mrf.mxu0
      %v3917 = vadd.f32 0.0, %v3916
      %v3918 = vpop.f32.mrf.mxu0
      %v3919 = vadd.f32 0.0, %v3918
      %3920 = vdwg.mxu0
      %3921 = vmatprep.subr.bf16.mxu0 %v3374
      %3922 = vmatpush1.bf16.msra.mxu0 %v3373
      %3923 = vmatprep.subr.bf16.mxu0 %v3372
      %3924 = vmatpush1.bf16.msra.mxu0 %v3371
      %3925 = vmatprep.subr.bf16.mxu0 %v3370
      %3926 = vmatpush1.bf16.msra.mxu0 %v3369
      %3927 = vmatprep.subr.bf16.mxu0 %v3368
      %3928 = vmatpush1.bf16.msra.mxu0 %v3367
      %3929 = vmatprep.subr.bf16.mxu0 %v3366
      %3930 = vmatpush1.bf16.msra.mxu0 %v3365
      %3931 = vmatprep.subr.bf16.mxu0 %v3364
      %3932 = vmatpush1.bf16.msra.mxu0 %v3363
      %3933 = vmatprep.subr.bf16.mxu0 %v3362
      %3934 = vmatpush1.bf16.msra.mxu0 %v3361
      %3935 = vmatprep.subr.bf16.mxu0 %v3360
      %3936 = vmatpush1.bf16.msra.mxu0 %v3359
      %3937 = vmatprep.subr.bf16.mxu0 %v3390
      %3938 = vmatpush2.bf16.msra.mxu0 %v3389
      %3939 = vmatprep.subr.bf16.mxu0 %v3388
      %3940 = vmatpush2.bf16.msra.mxu0 %v3387
      %3941 = vmatprep.subr.bf16.mxu0 %v3386
      %3942 = vmatpush2.bf16.msra.mxu0 %v3385
      %3943 = vmatprep.subr.bf16.mxu0 %v3384
      %3944 = vmatpush2.bf16.msra.mxu0 %v3383
      %3945 = vmatprep.subr.bf16.mxu0 %v3382
      %3946 = vmatpush2.bf16.msra.mxu0 %v3381
      %3947 = vmatprep.subr.bf16.mxu0 %v3380
      %3948 = vmatpush2.bf16.msra.mxu0 %v3379
      %3949 = vmatprep.subr.bf16.mxu0 %v3378
      %3950 = vmatpush2.bf16.msra.mxu0 %v3377
      %3951 = vmatprep.subr.bf16.mxu0 %v3376
      %3952 = vmatpush2.bf16.msra.mxu0 %v3375
      %3953 = vmatprep.mubr.bf16.mxu0 %v3616
      %3954 = vmatmul.mubr.bf16.gmra.mxu0 %v3615
      %v3955 = vpop.f32.mrf.mxu0
      %v3956 = vadd.f32 %v3813, %v3955
      %v3957 = vpop.f32.mrf.mxu0
      %v3958 = vadd.f32 %v3815, %v3957
      %v3959 = vpop.f32.mrf.mxu0
      %v3960 = vadd.f32 %v3817, %v3959
      %v3961 = vpop.f32.mrf.mxu0
      %v3962 = vadd.f32 %v3819, %v3961
      %3963 = vmatprep.mubr.bf16.mxu0 %v3622
      %3964 = vmatmul.mubr.bf16.gmra.mxu0 %v3621
      %v3965 = vpop.f32.mrf.mxu0
      %v3966 = vadd.f32 %v3823, %v3965
      %v3967 = vpop.f32.mrf.mxu0
      %v3968 = vadd.f32 %v3825, %v3967
      %v3969 = vpop.f32.mrf.mxu0
      %v3970 = vadd.f32 %v3827, %v3969
      %v3971 = vpop.f32.mrf.mxu0
      %v3972 = vadd.f32 %v3829, %v3971
      %3973 = vmatprep.mubr.bf16.mxu0 %v3628
      %3974 = vmatmul.mubr.bf16.gmra.mxu0 %v3627
      %v3975 = vpop.f32.mrf.mxu0
      %v3976 = vadd.f32 %v3833, %v3975
      %v3977 = vpop.f32.mrf.mxu0
      %v3978 = vadd.f32 %v3835, %v3977
      %v3979 = vpop.f32.mrf.mxu0
      %v3980 = vadd.f32 %v3837, %v3979
      %v3981 = vpop.f32.mrf.mxu0
      %v3982 = vadd.f32 %v3839, %v3981
      %3983 = vmatprep.mubr.bf16.mxu0 %v3634
      %3984 = vmatmul.mubr.bf16.gmra.mxu0 %v3633
      %v3985 = vpop.f32.mrf.mxu0
      %v3986 = vadd.f32 %v3843, %v3985
      %v3987 = vpop.f32.mrf.mxu0
      %v3988 = vadd.f32 %v3845, %v3987
      %v3989 = vpop.f32.mrf.mxu0
      %v3990 = vadd.f32 %v3847, %v3989
      %v3991 = vpop.f32.mrf.mxu0
      %v3992 = vadd.f32 %v3849, %v3991
      %3993 = vmatprep.mubr.bf16.mxu0 %v3640
      %3994 = vmatmul.mubr.bf16.gmra.mxu0 %v3639
      %v3995 = vpop.f32.mrf.mxu0
      %v3996 = vadd.f32 %v3853, %v3995
      %v3997 = vpop.f32.mrf.mxu0
      %v3998 = vadd.f32 %v3855, %v3997
      %v3999 = vpop.f32.mrf.mxu0
      %v4000 = vadd.f32 %v3857, %v3999
      %v4001 = vpop.f32.mrf.mxu0
      %v4002 = vadd.f32 %v3859, %v4001
      %4003 = vmatprep.mubr.bf16.mxu0 %v3646
      %4004 = vmatmul.mubr.bf16.gmra.mxu0 %v3645
      %v4005 = vpop.f32.mrf.mxu0
      %v4006 = vadd.f32 %v3863, %v4005
      %v4007 = vpop.f32.mrf.mxu0
      %v4008 = vadd.f32 %v3865, %v4007
      %v4009 = vpop.f32.mrf.mxu0
      %v4010 = vadd.f32 %v3867, %v4009
      %v4011 = vpop.f32.mrf.mxu0
      %v4012 = vadd.f32 %v3869, %v4011
      %4013 = vmatprep.mubr.bf16.mxu0 %v3652
      %4014 = vmatmul.mubr.bf16.gmra.mxu0 %v3651
      %v4015 = vpop.f32.mrf.mxu0
      %v4016 = vadd.f32 %v3873, %v4015
      %v4017 = vpop.f32.mrf.mxu0
      %v4018 = vadd.f32 %v3875, %v4017
      %v4019 = vpop.f32.mrf.mxu0
      %v4020 = vadd.f32 %v3877, %v4019
      %v4021 = vpop.f32.mrf.mxu0
      %v4022 = vadd.f32 %v3879, %v4021
      %4023 = vmatprep.mubr.bf16.mxu0 %v3658
      %4024 = vmatmul.mubr.bf16.gmra.mxu0 %v3657
      %v4025 = vpop.f32.mrf.mxu0
      %v4026 = vadd.f32 %v3883, %v4025
      %v4027 = vpop.f32.mrf.mxu0
      %v4028 = vadd.f32 %v3885, %v4027
      %v4029 = vpop.f32.mrf.mxu0
      %v4030 = vadd.f32 %v3887, %v4029
      %v4031 = vpop.f32.mrf.mxu0
      %v4032 = vadd.f32 %v3889, %v4031
      %4033 = vmatprep.mubr.bf16.mxu0 %v3664
      %4034 = vmatmul.mubr.bf16.gmra.mxu0 %v3663
      %v4035 = vpop.f32.mrf.mxu0
      %v4036 = vadd.f32 %v3893, %v4035
      %v4037 = vpop.f32.mrf.mxu0
      %v4038 = vadd.f32 %v3895, %v4037
      %v4039 = vpop.f32.mrf.mxu0
      %v4040 = vadd.f32 %v3897, %v4039
      %v4041 = vpop.f32.mrf.mxu0
      %v4042 = vadd.f32 %v3899, %v4041
      %4043 = vmatprep.mubr.bf16.mxu0 %v3670
      %4044 = vmatmul.mubr.bf16.gmra.mxu0 %v3669
      %v4045 = vpop.f32.mrf.mxu0
      %v4046 = vadd.f32 %v3903, %v4045
      %v4047 = vpop.f32.mrf.mxu0
      %v4048 = vadd.f32 %v3905, %v4047
      %v4049 = vpop.f32.mrf.mxu0
      %v4050 = vadd.f32 %v3907, %v4049
      %v4051 = vpop.f32.mrf.mxu0
      %v4052 = vadd.f32 %v3909, %v4051
      %4053 = vmatprep.mubr.bf16.mxu0 %v3676
      %4054 = vmatmul.mubr.bf16.gmra.mxu0 %v3675
      %v4055 = vpop.f32.mrf.mxu0
      %v4056 = vadd.f32 %v3913, %v4055
      %v4057 = vpop.f32.mrf.mxu0
      %v4058 = vadd.f32 %v3915, %v4057
      %v4059 = vpop.f32.mrf.mxu0
      %v4060 = vadd.f32 %v3917, %v4059
      %v4061 = vpop.f32.mrf.mxu0
      %v4062 = vadd.f32 %v3919, %v4061
      %4063 = vdwg.mxu0
      %4064 = vmatprep.subr.bf16.mxu0 %v3406
      %4065 = vmatpush1.bf16.msra.mxu0 %v3405
      %4066 = vmatprep.subr.bf16.mxu0 %v3404
      %4067 = vmatpush1.bf16.msra.mxu0 %v3403
      %4068 = vmatprep.subr.bf16.mxu0 %v3402
      %4069 = vmatpush1.bf16.msra.mxu0 %v3401
      %4070 = vmatprep.subr.bf16.mxu0 %v3400
      %4071 = vmatpush1.bf16.msra.mxu0 %v3399
      %4072 = vmatprep.subr.bf16.mxu0 %v3398
      %4073 = vmatpush1.bf16.msra.mxu0 %v3397
      %4074 = vmatprep.subr.bf16.mxu0 %v3396
      %4075 = vmatpush1.bf16.msra.mxu0 %v3395
      %4076 = vmatprep.subr.bf16.mxu0 %v3394
      %4077 = vmatpush1.bf16.msra.mxu0 %v3393
      %4078 = vmatprep.subr.bf16.mxu0 %v3392
      %4079 = vmatpush1.bf16.msra.mxu0 %v3391
      %4080 = vmatprep.subr.bf16.mxu0 0
      %4081 = vmatpush2.bf16.msra.mxu0 0
      %4082 = vmatprep.subr.bf16.mxu0 0
      %4083 = vmatpush2.bf16.msra.mxu0 0
      %4084 = vmatprep.subr.bf16.mxu0 0
      %4085 = vmatpush2.bf16.msra.mxu0 0
      %4086 = vmatprep.subr.bf16.mxu0 0
      %4087 = vmatpush2.bf16.msra.mxu0 0
      %4088 = vmatprep.subr.bf16.mxu0 %v3776
      %4089 = vmatpush2.bf16.msra.mxu0 %v3773
      %4090 = vmatprep.subr.bf16.mxu0 %v3412
      %4091 = vmatpush2.bf16.msra.mxu0 %v3411
      %4092 = vmatprep.subr.bf16.mxu0 %v3410
      %4093 = vmatpush2.bf16.msra.mxu0 %v3409
      %4094 = vmatprep.subr.bf16.mxu0 %v3408
      %4095 = vmatpush2.bf16.msra.mxu0 %v3407
      %4096 = vmatprep.mubr.bf16.mxu0 %v3736
      %4097 = vmatmul.mubr.bf16.gmra.mxu0 %v3617
      %v4098 = vpop.f32.mrf.mxu0
      %v4099 = vadd.f32 %v3956, %v4098
      %v4100 = vpop.f32.mrf.mxu0
      %v4101 = vadd.f32 %v3958, %v4100
      %v4102 = vpop.f32.mrf.mxu0
      %v4103 = vadd.f32 %v3960, %v4102
      %v4104 = vpop.f32.mrf.mxu0
      %v4105 = vadd.f32 %v3962, %v4104
      %4106 = vmatprep.mubr.bf16.mxu0 %v3739
      %4107 = vmatmul.mubr.bf16.gmra.mxu0 %v3623
      %v4108 = vpop.f32.mrf.mxu0
      %v4109 = vadd.f32 %v3966, %v4108
      %v4110 = vpop.f32.mrf.mxu0
      %v4111 = vadd.f32 %v3968, %v4110
      %v4112 = vpop.f32.mrf.mxu0
      %v4113 = vadd.f32 %v3970, %v4112
      %v4114 = vpop.f32.mrf.mxu0
      %v4115 = vadd.f32 %v3972, %v4114
      %4116 = vmatprep.mubr.bf16.mxu0 %v3742
      %4117 = vmatmul.mubr.bf16.gmra.mxu0 %v3629
      %v4118 = vpop.f32.mrf.mxu0
      %v4119 = vadd.f32 %v3976, %v4118
      %v4120 = vpop.f32.mrf.mxu0
      %v4121 = vadd.f32 %v3978, %v4120
      %v4122 = vpop.f32.mrf.mxu0
      %v4123 = vadd.f32 %v3980, %v4122
      %v4124 = vpop.f32.mrf.mxu0
      %v4125 = vadd.f32 %v3982, %v4124
      %4126 = vmatprep.mubr.bf16.mxu0 %v3745
      %4127 = vmatmul.mubr.bf16.gmra.mxu0 %v3635
      %v4128 = vpop.f32.mrf.mxu0
      %v4129 = vadd.f32 %v3986, %v4128
      %v4130 = vpop.f32.mrf.mxu0
      %v4131 = vadd.f32 %v3988, %v4130
      %v4132 = vpop.f32.mrf.mxu0
      %v4133 = vadd.f32 %v3990, %v4132
      %v4134 = vpop.f32.mrf.mxu0
      %v4135 = vadd.f32 %v3992, %v4134
      %4136 = vmatprep.mubr.bf16.mxu0 %v3748
      %4137 = vmatmul.mubr.bf16.gmra.mxu0 %v3641
      %v4138 = vpop.f32.mrf.mxu0
      %v4139 = vadd.f32 %v3996, %v4138
      %v4140 = vpop.f32.mrf.mxu0
      %v4141 = vadd.f32 %v3998, %v4140
      %v4142 = vpop.f32.mrf.mxu0
      %v4143 = vadd.f32 %v4000, %v4142
      %v4144 = vpop.f32.mrf.mxu0
      %v4145 = vadd.f32 %v4002, %v4144
      %4146 = vmatprep.mubr.bf16.mxu0 %v3751
      %4147 = vmatmul.mubr.bf16.gmra.mxu0 %v3647
      %v4148 = vpop.f32.mrf.mxu0
      %v4149 = vadd.f32 %v4006, %v4148
      %v4150 = vpop.f32.mrf.mxu0
      %v4151 = vadd.f32 %v4008, %v4150
      %v4152 = vpop.f32.mrf.mxu0
      %v4153 = vadd.f32 %v4010, %v4152
      %v4154 = vpop.f32.mrf.mxu0
      %v4155 = vadd.f32 %v4012, %v4154
      %4156 = vmatprep.mubr.bf16.mxu0 %v3754
      %4157 = vmatmul.mubr.bf16.gmra.mxu0 %v3653
      %v4158 = vpop.f32.mrf.mxu0
      %v4159 = vadd.f32 %v4016, %v4158
      %v4160 = vpop.f32.mrf.mxu0
      %v4161 = vadd.f32 %v4018, %v4160
      %v4162 = vpop.f32.mrf.mxu0
      %v4163 = vadd.f32 %v4020, %v4162
      %v4164 = vpop.f32.mrf.mxu0
      %v4165 = vadd.f32 %v4022, %v4164
      %4166 = vmatprep.mubr.bf16.mxu0 %v3757
      %4167 = vmatmul.mubr.bf16.gmra.mxu0 %v3659
      %v4168 = vpop.f32.mrf.mxu0
      %v4169 = vadd.f32 %v4026, %v4168
      %v4170 = vpop.f32.mrf.mxu0
      %v4171 = vadd.f32 %v4028, %v4170
      %v4172 = vpop.f32.mrf.mxu0
      %v4173 = vadd.f32 %v4030, %v4172
      %v4174 = vpop.f32.mrf.mxu0
      %v4175 = vadd.f32 %v4032, %v4174
      %4176 = vmatprep.mubr.bf16.mxu0 %v3760
      %4177 = vmatmul.mubr.bf16.gmra.mxu0 %v3665
      %v4178 = vpop.f32.mrf.mxu0
      %v4179 = vadd.f32 %v4036, %v4178
      %v4180 = vpop.f32.mrf.mxu0
      %v4181 = vadd.f32 %v4038, %v4180
      %v4182 = vpop.f32.mrf.mxu0
      %v4183 = vadd.f32 %v4040, %v4182
      %v4184 = vpop.f32.mrf.mxu0
      %v4185 = vadd.f32 %v4042, %v4184
      %4186 = vmatprep.mubr.bf16.mxu0 %v3763
      %4187 = vmatmul.mubr.bf16.gmra.mxu0 %v3671
      %v4188 = vpop.f32.mrf.mxu0
      %v4189 = vadd.f32 %v4046, %v4188
      %v4190 = vpop.f32.mrf.mxu0
      %v4191 = vadd.f32 %v4048, %v4190
      %v4192 = vpop.f32.mrf.mxu0
      %v4193 = vadd.f32 %v4050, %v4192
      %v4194 = vpop.f32.mrf.mxu0
      %v4195 = vadd.f32 %v4052, %v4194
      %4196 = vmatprep.mubr.bf16.mxu0 %v3766
      %4197 = vmatmul.mubr.bf16.gmra.mxu0 %v3677
      %v4198 = vpop.f32.mrf.mxu0
      %v4199 = vadd.f32 %v4056, %v4198
      %v4200 = vpop.f32.mrf.mxu0
      %v4201 = vadd.f32 %v4058, %v4200
      %v4202 = vpop.f32.mrf.mxu0
      %v4203 = vadd.f32 %v4060, %v4202
      %v4204 = vpop.f32.mrf.mxu0
      %v4205 = vadd.f32 %v4062, %v4204
      %4206 = vdwg.mxu0
      %v4207 = vpack.c.bf16 %v4103, %v4099
      %v4208 = vpack.c.bf16 %v4105, %v4101
      %v4209 = vpack.c.bf16 %v4113, %v4109
      %v4210 = vpack.c.bf16 %v4115, %v4111
      %v4211 = vpack.c.bf16 %v4123, %v4119
      %v4212 = vpack.c.bf16 %v4125, %v4121
      %v4213 = vpack.c.bf16 %v4133, %v4129
      %v4214 = vpack.c.bf16 %v4135, %v4131
      %v4215 = vpack.c.bf16 %v4143, %v4139
      %v4216 = vpack.c.bf16 %v4145, %v4141
      %v4217 = vpack.c.bf16 %v4153, %v4149
      %v4218 = vpack.c.bf16 %v4155, %v4151
      %v4219 = vpack.c.bf16 %v4163, %v4159
      %v4220 = vpack.c.bf16 %v4165, %v4161
      %v4221 = vpack.c.bf16 %v4173, %v4169
      %v4222 = vpack.c.bf16 %v4175, %v4171
      %v4223 = vpack.c.bf16 %v4183, %v4179
      %v4224 = vpack.c.bf16 %v4185, %v4181
      %v4225 = vpack.c.bf16 %v4193, %v4189
      %v4226 = vpack.c.bf16 %v4195, %v4191
      %v4227 = vpack.c.bf16 %v4203, %v4199
      %v4228 = vpack.c.bf16 %v4205, %v4201
      %v4229 = vld [vmem:[%s4] sm:$0xff]
      %v4230 = vld [vmem:[%s4 + $0x8] sm:$0xff]
      %v4231 = vld [vmem:[%s4 + $0x10] sm:$0xff]
      %v4232 = vld [vmem:[%s4 + $0x18] sm:$0xff]
      %v4233 = vld [vmem:[%s4 + $0x20] sm:$0xff]
      %v4234 = vld [vmem:[%s4 + $0x28] sm:$0xff]
      %v4235 = vld [vmem:[%s4 + $0x30] sm:$0xff]
      %v4236 = vld [vmem:[%s4 + $0x38] sm:$0xff]
      %v4237 = vld [vmem:[%s4 + $0x40] sm:$0xff]
      %v4238 = vld [vmem:[%s4 + $0x48] sm:$0xff]
      %v4239 = vld [vmem:[%s4 + $0x50] sm:$0xff]
      %v4240 = vld [vmem:[%s4 + $0x58] sm:$0xff]
      %v4241 = vld [vmem:[%s4 + $0x60] sm:$0xff]
      %v4242 = vld [vmem:[%s4 + $0x68] sm:$0xff]
      %v4243 = vld [vmem:[%s4 + $0x70] sm:$0xff]
      %v4244 = vld [vmem:[%s4 + $0x78] sm:$0xff]
      %v4245 = vld [vmem:[%s4 + $0x80] sm:$0xff]
      %v4246 = vld [vmem:[%s4 + $0x88] sm:$0xff]
      %v4247 = vld [vmem:[%s4 + $0x90] sm:$0xff]
      %v4248 = vld [vmem:[%s4 + $0x98] sm:$0xff]
      %v4249 = vld [vmem:[%s4 + $0xa0] sm:$0xff]
      %v4250 = vld [vmem:[%s4 + $0xa8] sm:$0xff]
      %v4251 = vld [vmem:[%s4 + $0xb0] sm:$0xff]
      %v4252 = vld [vmem:[%s4 + $0xb8] sm:$0xff]
      %v4253 = vld [vmem:[%s4 + $0xc0] sm:$0xff]
      %v4254 = vld [vmem:[%s4 + $0xc8] sm:$0xff]
      %v4255 = vld [vmem:[%s4 + $0xd0] sm:$0xff]
      %v4256 = vld [vmem:[%s4 + $0xd8] sm:$0xff]
      %v4257 = vld [vmem:[%s4 + $0xe0] sm:$0xff]
      %v4258 = vld [vmem:[%s4 + $0xe8] sm:$0xff]
      %v4259 = vld [vmem:[%s4 + $0xf0] sm:$0xff]
      %v4260 = vld [vmem:[%s4 + $0xf8] sm:$0xff]
      %v4261 = vld [vmem:[%s4 + $0x100] sm:$0xff]
      %v4262 = vld [vmem:[%s4 + $0x108] sm:$0xff]
      %v4263 = vld [vmem:[%s4 + $0x110] sm:$0xff]
      %v4264 = vld [vmem:[%s4 + $0x118] sm:$0xff]
      %v4265 = vld [vmem:[%s4 + $0x120] sm:$0xff]
      %v4266 = vld [vmem:[%s4 + $0x128] sm:$0xff]
      %v4267 = vld [vmem:[%s4 + $0x130] sm:$0xff]
      %v4268 = vld [vmem:[%s4 + $0x138] sm:$0xff]
      %v4269 = vld [vmem:[%s4 + $0x140] sm:$0xff]
      %v4270 = vld [vmem:[%s4 + $0x148] sm:$0xff]
      %v4271 = vld [vmem:[%s4 + $0x150] sm:$0xff]
      %v4272 = vld [vmem:[%s4 + $0x158] sm:$0xff]
      %v4273 = vld [vmem:[%s4 + $0x160] sm:$0xff]
      %v4274 = vld [vmem:[%s4 + $0x168] sm:$0xff]
      %v4275 = vld [vmem:[%s4 + $0x170] sm:$0xff]
      %v4276 = vld [vmem:[%s4 + $0x178] sm:$0xff]
      %v4277 = vld [vmem:[%s4 + $0x180] sm:$0xff]
      %v4278 = vld [vmem:[%s4 + $0x188] sm:$0xff]
      %v4279 = vld [vmem:[%s4 + $0x190] sm:$0xff]
      %v4280 = vld [vmem:[%s4 + $0x198] sm:$0xff]
      %v4281 = vld [vmem:[%s4 + $0x1a0] sm:$0xff]
      %v4282 = vld [vmem:[%s4 + $0x1a8] sm:$0xff]
      %v4283 = vld [vmem:[%s4 + $0x1b0] sm:$0xff]
      %v4284 = vld [vmem:[%s4 + $0x1b8] sm:$0xff]
      %v4285 = vld [vmem:[%s4 + $0x1c0] sm:$0xff]
      %v4286 = vld [vmem:[%s4 + $0x1c8] sm:$0xff]
      %v4287 = vld [vmem:[%s4 + $0x1d0] sm:$0xff]
      %v4288 = vld [vmem:[%s4 + $0x1d8] sm:$0xff]
      %v4289 = vld [vmem:[%s4 + $0x1e0] sm:$0xff]
      %v4290 = vld [vmem:[%s4 + $0x1e8] sm:$0xff]
      %v4291 = vld [vmem:[%s4 + $0x1f0] sm:$0xff]
      %v4292 = vld [vmem:[%s4 + $0x1f8] sm:$0xff]
      %s4293 = scalar_lea.vmem %s4, 512
      %v4294 = vld [vmem:[%s4293] sm:$0xff]
      %v4295 = vld [vmem:[%s4293 + $0x8] sm:$0xff]
      %v4296 = vld [vmem:[%s4293 + $0x10] sm:$0xff]
      %v4297 = vld [vmem:[%s4293 + $0x18] sm:$0xff]
      %v4298 = vld [vmem:[%s4293 + $0x20] sm:$0xff]
      %v4299 = vld [vmem:[%s4293 + $0x28] sm:$0xff]
      %v4300 = vld [vmem:[%s4293 + $0x30] sm:$0xff]
      %v4301 = vld [vmem:[%s4293 + $0x38] sm:$0xff]
      %v4302 = vld [vmem:[%s4293 + $0x40] sm:$0xff]
      %v4303 = vld [vmem:[%s4293 + $0x48] sm:$0xff]
      %v4304 = vld [vmem:[%s4293 + $0x50] sm:$0xff]
      %v4305 = vld [vmem:[%s4293 + $0x58] sm:$0xff]
      %v4306 = vld [vmem:[%s4293 + $0x60] sm:$0xff]
      %v4307 = vld [vmem:[%s4293 + $0x68] sm:$0xff]
      %v4308 = vld [vmem:[%s4293 + $0x70] sm:$0xff]
      %v4309 = vld [vmem:[%s4293 + $0x78] sm:$0xff]
      %v4310 = vld [vmem:[%s4293 + $0x80] sm:$0xff]
      %v4311 = vld [vmem:[%s4293 + $0x88] sm:$0xff]
      %v4312 = vld [vmem:[%s4293 + $0x90] sm:$0xff]
      %v4313 = vld [vmem:[%s4293 + $0x98] sm:$0xff]
      %v4314 = vld [vmem:[%s4293 + $0xa0] sm:$0xff]
      %v4315 = vld [vmem:[%s4293 + $0xa8] sm:$0xff]
      %v4316 = vld [vmem:[%s4293 + $0xb0] sm:$0xff]
      %v4317 = vld [vmem:[%s4293 + $0xb8] sm:$0xff]
      %v4318 = vld [vmem:[%s4293 + $0xc0] sm:$0xff]
      %v4319 = vld [vmem:[%s4293 + $0xc8] sm:$0xff]
      %v4320 = vld [vmem:[%s4293 + $0xd0] sm:$0xff]
      %v4321 = vld [vmem:[%s4293 + $0xd8] sm:$0xff]
      %v4322 = vld [vmem:[%s4293 + $0xe0] sm:$0xff]
      %v4323 = vld [vmem:[%s4293 + $0xe8] sm:$0xff]
      %v4324 = vld [vmem:[%s4293 + $0xf0] sm:$0xff]
      %v4325 = vld [vmem:[%s4293 + $0xf8] sm:$0xff]
      %v4326 = vld [vmem:[%s4293 + $0x100] sm:$0xff]
      %v4327 = vld [vmem:[%s4293 + $0x108] sm:$0xff]
      %v4328 = vld [vmem:[%s4293 + $0x110] sm:$0xff]
      %v4329 = vld [vmem:[%s4293 + $0x118] sm:$0xff]
      %v4330 = vld [vmem:[%s4293 + $0x120] sm:$0xff]
      %v4331 = vld [vmem:[%s4293 + $0x128] sm:$0xff]
      %v4332 = vld [vmem:[%s4293 + $0x130] sm:$0xff]
      %v4333 = vld [vmem:[%s4293 + $0x138] sm:$0xff]
      %v4334 = vld [vmem:[%s4293 + $0x140] sm:$0xff]
      %v4335 = vld [vmem:[%s4293 + $0x148] sm:$0xff]
      %v4336 = vld [vmem:[%s4293 + $0x150] sm:$0xff]
      %v4337 = vld [vmem:[%s4293 + $0x158] sm:$0xff]
      %v4338 = vld [vmem:[%s4293 + $0x160] sm:$0xff]
      %v4339 = vld [vmem:[%s4293 + $0x168] sm:$0xff]
      %v4340 = vld [vmem:[%s4293 + $0x170] sm:$0xff]
      %v4341 = vld [vmem:[%s4293 + $0x178] sm:$0xff]
      %v4342 = vld [vmem:[%s4293 + $0x180] sm:$0xff]
      %v4343 = vld [vmem:[%s4293 + $0x188] sm:$0xff]
      %v4344 = vld [vmem:[%s4293 + $0x190] sm:$0xff]
      %v4345 = vld [vmem:[%s4293 + $0x198] sm:$0xff]
      %v4346 = vld [vmem:[%s4293 + $0x1a0] sm:$0xff]
      %v4347 = vld [vmem:[%s4293 + $0x1a8] sm:$0xff]
      %v4348 = vld [vmem:[%s4293 + $0x1b0] sm:$0xff]
      %v4349 = vld [vmem:[%s4293 + $0x1b8] sm:$0xff]
      %v4350 = vld [vmem:[%s4293 + $0x1c0] sm:$0xff]
      %v4351 = vld [vmem:[%s4293 + $0x1c8] sm:$0xff]
      %v4352 = vld [vmem:[%s4293 + $0x1d0] sm:$0xff]
      %v4353 = vld [vmem:[%s4293 + $0x1d8] sm:$0xff]
      %v4354 = vld [vmem:[%s4293 + $0x1e0] sm:$0xff]
      %v4355 = vld [vmem:[%s4293 + $0x1e8] sm:$0xff]
      %v4356 = vld [vmem:[%s4293 + $0x1f0] sm:$0xff]
      %v4357 = vld [vmem:[%s4293 + $0x1f8] sm:$0xff]
      %vm4358 = vsmask.f32 7424
      %v4360 = vshrl.u32 %v4207, 16
      %v4362 = vshll.u32 %v4207, 16
      %v4364 = vrot.slane %v4362, 1
      %v4365 = vor.u32 %v4360, %v4364
      %v4367 = vshll.u32 %v4209, 16
      %v4369 = vrot.slane %v4367, 1
      %v4370 = vsel %vm4358, %v4365, %v4369
      %v4372 = vshrl.u32 %v4208, 16
      %v4374 = vshll.u32 %v4208, 16
      %v4376 = vrot.slane %v4374, 1
      %v4377 = vor.u32 %v4372, %v4376
      %v4379 = vshll.u32 %v4210, 16
      %v4381 = vrot.slane %v4379, 1
      %v4382 = vsel %vm4358, %v4377, %v4381
      %v4383 = vshrl.u32 %v4209, 16
      %v4385 = vor.u32 %v4383, %v4369
      %v4387 = vshll.u32 %v4211, 16
      %v4389 = vrot.slane %v4387, 1
      %v4390 = vsel %vm4358, %v4385, %v4389
      %v4391 = vshrl.u32 %v4210, 16
      %v4393 = vor.u32 %v4391, %v4381
      %v4395 = vshll.u32 %v4212, 16
      %v4397 = vrot.slane %v4395, 1
      %v4398 = vsel %vm4358, %v4393, %v4397
      %v4399 = vshrl.u32 %v4211, 16
      %v4401 = vor.u32 %v4399, %v4389
      %v4403 = vshll.u32 %v4213, 16
      %v4405 = vrot.slane %v4403, 1
      %v4406 = vsel %vm4358, %v4401, %v4405
      %v4407 = vshrl.u32 %v4212, 16
      %v4409 = vor.u32 %v4407, %v4397
      %v4411 = vshll.u32 %v4214, 16
      %v4413 = vrot.slane %v4411, 1
      %v4414 = vsel %vm4358, %v4409, %v4413
      %v4415 = vshrl.u32 %v4213, 16
      %v4417 = vor.u32 %v4415, %v4405
      %v4419 = vshll.u32 %v4215, 16
      %v4421 = vrot.slane %v4419, 1
      %v4422 = vsel %vm4358, %v4417, %v4421
      %v4423 = vshrl.u32 %v4214, 16
      %v4425 = vor.u32 %v4423, %v4413
      %v4427 = vshll.u32 %v4216, 16
      %v4429 = vrot.slane %v4427, 1
      %v4430 = vsel %vm4358, %v4425, %v4429
      %v4431 = vshrl.u32 %v4215, 16
      %v4433 = vor.u32 %v4431, %v4421
      %v4435 = vshll.u32 %v4217, 16
      %v4437 = vrot.slane %v4435, 1
      %v4438 = vsel %vm4358, %v4433, %v4437
      %v4439 = vshrl.u32 %v4216, 16
      %v4441 = vor.u32 %v4439, %v4429
      %v4443 = vshll.u32 %v4218, 16
      %v4445 = vrot.slane %v4443, 1
      %v4446 = vsel %vm4358, %v4441, %v4445
      %v4447 = vshrl.u32 %v4217, 16
      %v4449 = vor.u32 %v4447, %v4437
      %v4451 = vshll.u32 %v4219, 16
      %v4453 = vrot.slane %v4451, 1
      %v4454 = vsel %vm4358, %v4449, %v4453
      %v4455 = vshrl.u32 %v4218, 16
      %v4457 = vor.u32 %v4455, %v4445
      %v4459 = vshll.u32 %v4220, 16
      %v4461 = vrot.slane %v4459, 1
      %v4462 = vsel %vm4358, %v4457, %v4461
      %v4463 = vshrl.u32 %v4219, 16
      %v4465 = vor.u32 %v4463, %v4453
      %v4467 = vshll.u32 %v4221, 16
      %v4469 = vrot.slane %v4467, 1
      %v4470 = vsel %vm4358, %v4465, %v4469
      %v4471 = vshrl.u32 %v4220, 16
      %v4473 = vor.u32 %v4471, %v4461
      %v4475 = vshll.u32 %v4222, 16
      %v4477 = vrot.slane %v4475, 1
      %v4478 = vsel %vm4358, %v4473, %v4477
      %v4479 = vshrl.u32 %v4221, 16
      %v4481 = vor.u32 %v4479, %v4469
      %v4483 = vshll.u32 %v4223, 16
      %v4485 = vrot.slane %v4483, 1
      %v4486 = vsel %vm4358, %v4481, %v4485
      %v4487 = vshrl.u32 %v4222, 16
      %v4489 = vor.u32 %v4487, %v4477
      %v4491 = vshll.u32 %v4224, 16
      %v4493 = vrot.slane %v4491, 1
      %v4494 = vsel %vm4358, %v4489, %v4493
      %v4495 = vshrl.u32 %v4223, 16
      %v4497 = vor.u32 %v4495, %v4485
      %v4498 = vshrl.u32 %v4224, 16
      %v4500 = vor.u32 %v4498, %v4493
      %v4583 = vunpack.c.l.b16 %v4294
      %v4584 = vunpack.c.h.b16 %v4294
      %v4585 = vunpack.c.l.b16 %v4295
      %v4586 = vunpack.c.h.b16 %v4295
      %v4587 = vunpack.c.l.b16 %v4296
      %v4588 = vunpack.c.h.b16 %v4296
      %v4589 = vunpack.c.l.b16 %v4297
      %v4590 = vunpack.c.h.b16 %v4297
      %v4591 = vunpack.c.l.b16 %v4298
      %v4592 = vunpack.c.h.b16 %v4298
      %v4593 = vunpack.c.l.b16 %v4299
      %v4594 = vunpack.c.h.b16 %v4299
      %v4595 = vunpack.c.l.b16 %v4300
      %v4596 = vunpack.c.h.b16 %v4300
      %v4597 = vunpack.c.l.b16 %v4301
      %v4598 = vunpack.c.h.b16 %v4301
      %v4599 = vunpack.c.l.b16 %v4302
      %v4600 = vunpack.c.h.b16 %v4302
      %v4601 = vunpack.c.l.b16 %v4303
      %v4602 = vunpack.c.h.b16 %v4303
      %v4603 = vunpack.c.l.b16 %v4304
      %v4604 = vunpack.c.h.b16 %v4304
      %v4605 = vunpack.c.l.b16 %v4305
      %v4606 = vunpack.c.h.b16 %v4305
      %v4607 = vunpack.c.l.b16 %v4306
      %v4608 = vunpack.c.h.b16 %v4306
      %v4609 = vunpack.c.l.b16 %v4307
      %v4610 = vunpack.c.h.b16 %v4307
      %v4611 = vunpack.c.l.b16 %v4308
      %v4612 = vunpack.c.h.b16 %v4308
      %v4613 = vunpack.c.l.b16 %v4309
      %v4614 = vunpack.c.h.b16 %v4309
      %v4615 = vunpack.c.l.b16 %v4310
      %v4616 = vunpack.c.h.b16 %v4310
      %v4617 = vunpack.c.l.b16 %v4311
      %v4618 = vunpack.c.h.b16 %v4311
      %v4619 = vunpack.c.l.b16 %v4312
      %v4620 = vunpack.c.h.b16 %v4312
      %v4621 = vunpack.c.l.b16 %v4313
      %v4622 = vunpack.c.h.b16 %v4313
      %v4623 = vunpack.c.l.b16 %v4314
      %v4624 = vunpack.c.h.b16 %v4314
      %v4625 = vunpack.c.l.b16 %v4315
      %v4626 = vunpack.c.h.b16 %v4315
      %v4627 = vunpack.c.l.b16 %v4316
      %v4628 = vunpack.c.h.b16 %v4316
      %v4629 = vunpack.c.l.b16 %v4317
      %v4630 = vunpack.c.h.b16 %v4317
      %v4631 = vunpack.c.l.b16 %v4318
      %v4632 = vunpack.c.h.b16 %v4318
      %v4633 = vunpack.c.l.b16 %v4319
      %v4634 = vunpack.c.h.b16 %v4319
      %v4635 = vunpack.c.l.b16 %v4320
      %v4636 = vunpack.c.h.b16 %v4320
      %v4637 = vunpack.c.l.b16 %v4321
      %v4638 = vunpack.c.h.b16 %v4321
      %v4639 = vunpack.c.l.b16 %v4322
      %v4640 = vunpack.c.h.b16 %v4322
      %v4641 = vunpack.c.l.b16 %v4323
      %v4642 = vunpack.c.h.b16 %v4323
      %v4643 = vunpack.c.l.b16 %v4324
      %v4644 = vunpack.c.h.b16 %v4324
      %v4645 = vunpack.c.l.b16 %v4325
      %v4646 = vunpack.c.h.b16 %v4325
      %v4647 = vunpack.c.l.b16 %v4326
      %v4648 = vunpack.c.h.b16 %v4326
      %v4649 = vunpack.c.l.b16 %v4327
      %v4650 = vunpack.c.h.b16 %v4327
      %v4651 = vunpack.c.l.b16 %v4328
      %v4652 = vunpack.c.h.b16 %v4328
      %v4653 = vunpack.c.l.b16 %v4329
      %v4654 = vunpack.c.h.b16 %v4329
      %v4655 = vunpack.c.l.b16 %v4330
      %v4656 = vunpack.c.h.b16 %v4330
      %v4657 = vunpack.c.l.b16 %v4331
      %v4658 = vunpack.c.h.b16 %v4331
      %v4659 = vunpack.c.l.b16 %v4332
      %v4660 = vunpack.c.h.b16 %v4332
      %v4661 = vunpack.c.l.b16 %v4333
      %v4662 = vunpack.c.h.b16 %v4333
      %v4663 = vunpack.c.l.b16 %v4334
      %v4664 = vunpack.c.h.b16 %v4334
      %v4665 = vunpack.c.l.b16 %v4335
      %v4666 = vunpack.c.h.b16 %v4335
      %v4667 = vunpack.c.l.b16 %v4336
      %v4668 = vunpack.c.h.b16 %v4336
      %v4669 = vunpack.c.l.b16 %v4337
      %v4670 = vunpack.c.h.b16 %v4337
      %v4671 = vunpack.c.l.b16 %v4338
      %v4672 = vunpack.c.h.b16 %v4338
      %v4673 = vunpack.c.l.b16 %v4339
      %v4674 = vunpack.c.h.b16 %v4339
      %v4675 = vunpack.c.l.b16 %v4340
      %v4676 = vunpack.c.h.b16 %v4340
      %v4677 = vunpack.c.l.b16 %v4341
      %v4678 = vunpack.c.h.b16 %v4341
      %v4679 = vunpack.c.l.b16 %v4342
      %v4680 = vunpack.c.h.b16 %v4342
      %v4681 = vunpack.c.l.b16 %v4343
      %v4682 = vunpack.c.h.b16 %v4343
      %v4683 = vunpack.c.l.b16 %v4344
      %v4684 = vunpack.c.h.b16 %v4344
      %v4685 = vunpack.c.l.b16 %v4345
      %v4686 = vunpack.c.h.b16 %v4345
      %v4687 = vunpack.c.l.b16 %v4346
      %v4688 = vunpack.c.h.b16 %v4346
      %v4689 = vunpack.c.l.b16 %v4347
      %v4690 = vunpack.c.h.b16 %v4347
      %v4691 = vunpack.c.l.b16 %v4348
      %v4692 = vunpack.c.h.b16 %v4348
      %v4693 = vunpack.c.l.b16 %v4349
      %v4694 = vunpack.c.h.b16 %v4349
      %v4695 = vunpack.c.l.b16 %v4350
      %v4696 = vunpack.c.h.b16 %v4350
      %v4697 = vunpack.c.l.b16 %v4351
      %v4698 = vunpack.c.h.b16 %v4351
      %v4699 = vunpack.c.l.b16 %v4352
      %v4700 = vunpack.c.h.b16 %v4352
      %v4701 = vunpack.c.l.b16 %v4353
      %v4702 = vunpack.c.h.b16 %v4353
      %v4703 = vunpack.c.l.b16 %v4354
      %v4704 = vunpack.c.h.b16 %v4354
      %v4705 = vunpack.c.l.b16 %v4355
      %v4706 = vunpack.c.h.b16 %v4355
      %v4707 = vunpack.c.l.b16 %v4356
      %v4708 = vunpack.c.h.b16 %v4356
      %v4709 = vunpack.c.l.b16 %v4357
      %v4710 = vunpack.c.h.b16 %v4357
      %v4711 = vpack.c.b16 %v4587, %v4583
      %v4712 = vpack.c.b16 %v4588, %v4584
      %v4713 = vpack.c.b16 %v4589, %v4585
      %v4714 = vpack.c.b16 %v4590, %v4586
      %v4715 = vpack.c.b16 %v4595, %v4591
      %v4716 = vpack.c.b16 %v4596, %v4592
      %v4717 = vpack.c.b16 %v4597, %v4593
      %v4718 = vpack.c.b16 %v4598, %v4594
      %v4719 = vpack.c.b16 %v4603, %v4599
      %v4720 = vpack.c.b16 %v4604, %v4600
      %v4721 = vpack.c.b16 %v4605, %v4601
      %v4722 = vpack.c.b16 %v4606, %v4602
      %v4723 = vpack.c.b16 %v4611, %v4607
      %v4724 = vpack.c.b16 %v4612, %v4608
      %v4725 = vpack.c.b16 %v4613, %v4609
      %v4726 = vpack.c.b16 %v4614, %v4610
      %v4727 = vpack.c.b16 %v4619, %v4615
      %v4728 = vpack.c.b16 %v4620, %v4616
      %v4729 = vpack.c.b16 %v4621, %v4617
      %v4730 = vpack.c.b16 %v4622, %v4618
      %v4731 = vpack.c.b16 %v4627, %v4623
      %v4732 = vpack.c.b16 %v4628, %v4624
      %v4733 = vpack.c.b16 %v4629, %v4625
      %v4734 = vpack.c.b16 %v4630, %v4626
      %v4735 = vpack.c.b16 %v4635, %v4631
      %v4736 = vpack.c.b16 %v4636, %v4632
      %v4737 = vpack.c.b16 %v4637, %v4633
      %v4738 = vpack.c.b16 %v4638, %v4634
      %v4739 = vpack.c.b16 %v4643, %v4639
      %v4740 = vpack.c.b16 %v4644, %v4640
      %v4741 = vpack.c.b16 %v4645, %v4641
      %v4742 = vpack.c.b16 %v4646, %v4642
      %v4743 = vpack.c.b16 %v4651, %v4647
      %v4744 = vpack.c.b16 %v4652, %v4648
      %v4745 = vpack.c.b16 %v4653, %v4649
      %v4746 = vpack.c.b16 %v4654, %v4650
      %v4747 = vpack.c.b16 %v4659, %v4655
      %v4748 = vpack.c.b16 %v4660, %v4656
      %v4749 = vpack.c.b16 %v4661, %v4657
      %v4750 = vpack.c.b16 %v4662, %v4658
      %v4751 = vpack.c.b16 %v4667, %v4663
      %v4752 = vpack.c.b16 %v4668, %v4664
      %v4753 = vpack.c.b16 %v4669, %v4665
      %v4754 = vpack.c.b16 %v4670, %v4666
      %v4755 = vpack.c.b16 %v4675, %v4671
      %v4756 = vpack.c.b16 %v4676, %v4672
      %v4757 = vpack.c.b16 %v4677, %v4673
      %v4758 = vpack.c.b16 %v4678, %v4674
      %v4759 = vpack.c.b16 %v4683, %v4679
      %v4760 = vpack.c.b16 %v4684, %v4680
      %v4761 = vpack.c.b16 %v4685, %v4681
      %v4762 = vpack.c.b16 %v4686, %v4682
      %v4763 = vpack.c.b16 %v4691, %v4687
      %v4764 = vpack.c.b16 %v4692, %v4688
      %v4765 = vpack.c.b16 %v4693, %v4689
      %v4766 = vpack.c.b16 %v4694, %v4690
      %v4767 = vpack.c.b16 %v4699, %v4695
      %v4768 = vpack.c.b16 %v4700, %v4696
      %v4769 = vpack.c.b16 %v4701, %v4697
      %v4770 = vpack.c.b16 %v4702, %v4698
      %v4771 = vpack.c.b16 %v4707, %v4703
      %v4772 = vpack.c.b16 %v4708, %v4704
      %v4773 = vpack.c.b16 %v4709, %v4705
      %v4774 = vpack.c.b16 %v4710, %v4706
      %4839 = vmatprep.subr.bf16.mxu0 %v4740
      %4840 = vmatpush1.bf16.msra.mxu0 %v4739
      %4841 = vmatprep.subr.bf16.mxu0 %v4736
      %4842 = vmatpush1.bf16.msra.mxu0 %v4735
      %4843 = vmatprep.subr.bf16.mxu0 %v4732
      %4844 = vmatpush1.bf16.msra.mxu0 %v4731
      %4845 = vmatprep.subr.bf16.mxu0 %v4728
      %4846 = vmatpush1.bf16.msra.mxu0 %v4727
      %4847 = vmatprep.subr.bf16.mxu0 %v4724
      %4848 = vmatpush1.bf16.msra.mxu0 %v4723
      %4849 = vmatprep.subr.bf16.mxu0 %v4720
      %4850 = vmatpush1.bf16.msra.mxu0 %v4719
      %4851 = vmatprep.subr.bf16.mxu0 %v4716
      %4852 = vmatpush1.bf16.msra.mxu0 %v4715
      %4853 = vmatprep.subr.bf16.mxu0 %v4712
      %4854 = vmatpush1.bf16.msra.mxu0 %v4711
      %4855 = vmatprep.subr.bf16.mxu0 %v4772
      %4856 = vmatpush2.bf16.msra.mxu0 %v4771
      %4857 = vmatprep.subr.bf16.mxu0 %v4768
      %4858 = vmatpush2.bf16.msra.mxu0 %v4767
      %4859 = vmatprep.subr.bf16.mxu0 %v4764
      %4860 = vmatpush2.bf16.msra.mxu0 %v4763
      %4861 = vmatprep.subr.bf16.mxu0 %v4760
      %4862 = vmatpush2.bf16.msra.mxu0 %v4759
      %4863 = vmatprep.subr.bf16.mxu0 %v4756
      %4864 = vmatpush2.bf16.msra.mxu0 %v4755
      %4865 = vmatprep.subr.bf16.mxu0 %v4752
      %4866 = vmatpush2.bf16.msra.mxu0 %v4751
      %4867 = vmatprep.subr.bf16.mxu0 %v4748
      %4868 = vmatpush2.bf16.msra.mxu0 %v4747
      %4869 = vmatprep.subr.bf16.mxu0 %v4744
      %4870 = vmatpush2.bf16.msra.mxu0 %v4743
      %4871 = vmatprep.mubr.bf16.mxu0 %v4382
      %4872 = vmatmul.mubr.bf16.gmra.mxu0 %v4370
      %v4873 = vpop.f32.mrf.mxu0
      %v4874 = vadd.f32 0.0, %v4873
      %v4875 = vpop.f32.mrf.mxu0
      %v4876 = vadd.f32 0.0, %v4875
      %v4877 = vpop.f32.mrf.mxu0
      %v4878 = vadd.f32 0.0, %v4877
      %v4879 = vpop.f32.mrf.mxu0
      %v4880 = vadd.f32 0.0, %v4879
      %4881 = vmatprep.mubr.bf16.mxu0 %v4398
      %4882 = vmatmul.mubr.bf16.gmra.mxu0 %v4390
      %v4883 = vpop.f32.mrf.mxu0
      %v4884 = vadd.f32 0.0, %v4883
      %v4885 = vpop.f32.mrf.mxu0
      %v4886 = vadd.f32 0.0, %v4885
      %v4887 = vpop.f32.mrf.mxu0
      %v4888 = vadd.f32 0.0, %v4887
      %v4889 = vpop.f32.mrf.mxu0
      %v4890 = vadd.f32 0.0, %v4889
      %4891 = vmatprep.mubr.bf16.mxu0 %v4414
      %4892 = vmatmul.mubr.bf16.gmra.mxu0 %v4406
      %v4893 = vpop.f32.mrf.mxu0
      %v4894 = vadd.f32 0.0, %v4893
      %v4895 = vpop.f32.mrf.mxu0
      %v4896 = vadd.f32 0.0, %v4895
      %v4897 = vpop.f32.mrf.mxu0
      %v4898 = vadd.f32 0.0, %v4897
      %v4899 = vpop.f32.mrf.mxu0
      %v4900 = vadd.f32 0.0, %v4899
      %4901 = vmatprep.mubr.bf16.mxu0 %v4430
      %4902 = vmatmul.mubr.bf16.gmra.mxu0 %v4422
      %v4903 = vpop.f32.mrf.mxu0
      %v4904 = vadd.f32 0.0, %v4903
      %v4905 = vpop.f32.mrf.mxu0
      %v4906 = vadd.f32 0.0, %v4905
      %v4907 = vpop.f32.mrf.mxu0
      %v4908 = vadd.f32 0.0, %v4907
      %v4909 = vpop.f32.mrf.mxu0
      %v4910 = vadd.f32 0.0, %v4909
      %4911 = vmatprep.mubr.bf16.mxu0 %v4446
      %4912 = vmatmul.mubr.bf16.gmra.mxu0 %v4438
      %v4913 = vpop.f32.mrf.mxu0
      %v4914 = vadd.f32 0.0, %v4913
      %v4915 = vpop.f32.mrf.mxu0
      %v4916 = vadd.f32 0.0, %v4915
      %v4917 = vpop.f32.mrf.mxu0
      %v4918 = vadd.f32 0.0, %v4917
      %v4919 = vpop.f32.mrf.mxu0
      %v4920 = vadd.f32 0.0, %v4919
      %4921 = vmatprep.mubr.bf16.mxu0 %v4462
      %4922 = vmatmul.mubr.bf16.gmra.mxu0 %v4454
      %v4923 = vpop.f32.mrf.mxu0
      %v4924 = vadd.f32 0.0, %v4923
      %v4925 = vpop.f32.mrf.mxu0
      %v4926 = vadd.f32 0.0, %v4925
      %v4927 = vpop.f32.mrf.mxu0
      %v4928 = vadd.f32 0.0, %v4927
      %v4929 = vpop.f32.mrf.mxu0
      %v4930 = vadd.f32 0.0, %v4929
      %4931 = vmatprep.mubr.bf16.mxu0 %v4478
      %4932 = vmatmul.mubr.bf16.gmra.mxu0 %v4470
      %v4933 = vpop.f32.mrf.mxu0
      %v4934 = vadd.f32 0.0, %v4933
      %v4935 = vpop.f32.mrf.mxu0
      %v4936 = vadd.f32 0.0, %v4935
      %v4937 = vpop.f32.mrf.mxu0
      %v4938 = vadd.f32 0.0, %v4937
      %v4939 = vpop.f32.mrf.mxu0
      %v4940 = vadd.f32 0.0, %v4939
      %4941 = vmatprep.mubr.bf16.mxu0 %v4494
      %4942 = vmatmul.mubr.bf16.gmra.mxu0 %v4486
      %v4943 = vpop.f32.mrf.mxu0
      %v4944 = vadd.f32 0.0, %v4943
      %v4945 = vpop.f32.mrf.mxu0
      %v4946 = vadd.f32 0.0, %v4945
      %v4947 = vpop.f32.mrf.mxu0
      %v4948 = vadd.f32 0.0, %v4947
      %v4949 = vpop.f32.mrf.mxu0
      %v4950 = vadd.f32 0.0, %v4949
      %4951 = vmatprep.mubr.bf16.mxu0 %v4500
      %4952 = vmatmul.mubr.bf16.gmra.mxu0 %v4497
      %v4953 = vpop.f32.mrf.mxu0
      %v4954 = vadd.f32 0.0, %v4953
      %v4955 = vpop.f32.mrf.mxu0
      %v4956 = vadd.f32 0.0, %v4955
      %v4957 = vpop.f32.mrf.mxu0
      %v4958 = vadd.f32 0.0, %v4957
      %v4959 = vpop.f32.mrf.mxu0
      %v4960 = vadd.f32 0.0, %v4959
      %4961 = vdwg.mxu0
      %4962 = vmatprep.subr.bf16.mxu0 %v4742
      %4963 = vmatpush1.bf16.msra.mxu0 %v4741
      %4964 = vmatprep.subr.bf16.mxu0 %v4738
      %4965 = vmatpush1.bf16.msra.mxu0 %v4737
      %4966 = vmatprep.subr.bf16.mxu0 %v4734
      %4967 = vmatpush1.bf16.msra.mxu0 %v4733
      %4968 = vmatprep.subr.bf16.mxu0 %v4730
      %4969 = vmatpush1.bf16.msra.mxu0 %v4729
      %4970 = vmatprep.subr.bf16.mxu0 %v4726
      %4971 = vmatpush1.bf16.msra.mxu0 %v4725
      %4972 = vmatprep.subr.bf16.mxu0 %v4722
      %4973 = vmatpush1.bf16.msra.mxu0 %v4721
      %4974 = vmatprep.subr.bf16.mxu0 %v4718
      %4975 = vmatpush1.bf16.msra.mxu0 %v4717
      %4976 = vmatprep.subr.bf16.mxu0 %v4714
      %4977 = vmatpush1.bf16.msra.mxu0 %v4713
      %4978 = vmatprep.subr.bf16.mxu0 %v4774
      %4979 = vmatpush2.bf16.msra.mxu0 %v4773
      %4980 = vmatprep.subr.bf16.mxu0 %v4770
      %4981 = vmatpush2.bf16.msra.mxu0 %v4769
      %4982 = vmatprep.subr.bf16.mxu0 %v4766
      %4983 = vmatpush2.bf16.msra.mxu0 %v4765
      %4984 = vmatprep.subr.bf16.mxu0 %v4762
      %4985 = vmatpush2.bf16.msra.mxu0 %v4761
      %4986 = vmatprep.subr.bf16.mxu0 %v4758
      %4987 = vmatpush2.bf16.msra.mxu0 %v4757
      %4988 = vmatprep.subr.bf16.mxu0 %v4754
      %4989 = vmatpush2.bf16.msra.mxu0 %v4753
      %4990 = vmatprep.subr.bf16.mxu0 %v4750
      %4991 = vmatpush2.bf16.msra.mxu0 %v4749
      %4992 = vmatprep.subr.bf16.mxu0 %v4746
      %4993 = vmatpush2.bf16.msra.mxu0 %v4745
      %4994 = vmatprep.mubr.bf16.mxu0 %v4382
      %4995 = vmatmul.mubr.bf16.gmra.mxu0 %v4370
      %v4996 = vpop.f32.mrf.mxu0
      %v4997 = vadd.f32 0.0, %v4996
      %v4998 = vpop.f32.mrf.mxu0
      %v4999 = vadd.f32 0.0, %v4998
      %v5000 = vpop.f32.mrf.mxu0
      %v5001 = vadd.f32 0.0, %v5000
      %v5002 = vpop.f32.mrf.mxu0
      %v5003 = vadd.f32 0.0, %v5002
      %5004 = vmatprep.mubr.bf16.mxu0 %v4398
      %5005 = vmatmul.mubr.bf16.gmra.mxu0 %v4390
      %v5006 = vpop.f32.mrf.mxu0
      %v5007 = vadd.f32 0.0, %v5006
      %v5008 = vpop.f32.mrf.mxu0
      %v5009 = vadd.f32 0.0, %v5008
      %v5010 = vpop.f32.mrf.mxu0
      %v5011 = vadd.f32 0.0, %v5010
      %v5012 = vpop.f32.mrf.mxu0
      %v5013 = vadd.f32 0.0, %v5012
      %5014 = vmatprep.mubr.bf16.mxu0 %v4414
      %5015 = vmatmul.mubr.bf16.gmra.mxu0 %v4406
      %v5016 = vpop.f32.mrf.mxu0
      %v5017 = vadd.f32 0.0, %v5016
      %v5018 = vpop.f32.mrf.mxu0
      %v5019 = vadd.f32 0.0, %v5018
      %v5020 = vpop.f32.mrf.mxu0
      %v5021 = vadd.f32 0.0, %v5020
      %v5022 = vpop.f32.mrf.mxu0
      %v5023 = vadd.f32 0.0, %v5022
      %5024 = vmatprep.mubr.bf16.mxu0 %v4430
      %5025 = vmatmul.mubr.bf16.gmra.mxu0 %v4422
      %v5026 = vpop.f32.mrf.mxu0
      %v5027 = vadd.f32 0.0, %v5026
      %v5028 = vpop.f32.mrf.mxu0
      %v5029 = vadd.f32 0.0, %v5028
      %v5030 = vpop.f32.mrf.mxu0
      %v5031 = vadd.f32 0.0, %v5030
      %v5032 = vpop.f32.mrf.mxu0
      %v5033 = vadd.f32 0.0, %v5032
      %5034 = vmatprep.mubr.bf16.mxu0 %v4446
      %5035 = vmatmul.mubr.bf16.gmra.mxu0 %v4438
      %v5036 = vpop.f32.mrf.mxu0
      %v5037 = vadd.f32 0.0, %v5036
      %v5038 = vpop.f32.mrf.mxu0
      %v5039 = vadd.f32 0.0, %v5038
      %v5040 = vpop.f32.mrf.mxu0
      %v5041 = vadd.f32 0.0, %v5040
      %v5042 = vpop.f32.mrf.mxu0
      %v5043 = vadd.f32 0.0, %v5042
      %5044 = vmatprep.mubr.bf16.mxu0 %v4462
      %5045 = vmatmul.mubr.bf16.gmra.mxu0 %v4454
      %v5046 = vpop.f32.mrf.mxu0
      %v5047 = vadd.f32 0.0, %v5046
      %v5048 = vpop.f32.mrf.mxu0
      %v5049 = vadd.f32 0.0, %v5048
      %v5050 = vpop.f32.mrf.mxu0
      %v5051 = vadd.f32 0.0, %v5050
      %v5052 = vpop.f32.mrf.mxu0
      %v5053 = vadd.f32 0.0, %v5052
      %5054 = vmatprep.mubr.bf16.mxu0 %v4478
      %5055 = vmatmul.mubr.bf16.gmra.mxu0 %v4470
      %v5056 = vpop.f32.mrf.mxu0
      %v5057 = vadd.f32 0.0, %v5056
      %v5058 = vpop.f32.mrf.mxu0
      %v5059 = vadd.f32 0.0, %v5058
      %v5060 = vpop.f32.mrf.mxu0
      %v5061 = vadd.f32 0.0, %v5060
      %v5062 = vpop.f32.mrf.mxu0
      %v5063 = vadd.f32 0.0, %v5062
      %5064 = vmatprep.mubr.bf16.mxu0 %v4494
      %5065 = vmatmul.mubr.bf16.gmra.mxu0 %v4486
      %v5066 = vpop.f32.mrf.mxu0
      %v5067 = vadd.f32 0.0, %v5066
      %v5068 = vpop.f32.mrf.mxu0
      %v5069 = vadd.f32 0.0, %v5068
      %v5070 = vpop.f32.mrf.mxu0
      %v5071 = vadd.f32 0.0, %v5070
      %v5072 = vpop.f32.mrf.mxu0
      %v5073 = vadd.f32 0.0, %v5072
      %5074 = vmatprep.mubr.bf16.mxu0 %v4500
      %5075 = vmatmul.mubr.bf16.gmra.mxu0 %v4497
      %v5076 = vpop.f32.mrf.mxu0
      %v5077 = vadd.f32 0.0, %v5076
      %v5078 = vpop.f32.mrf.mxu0
      %v5079 = vadd.f32 0.0, %v5078
      %v5080 = vpop.f32.mrf.mxu0
      %v5081 = vadd.f32 0.0, %v5080
      %v5082 = vpop.f32.mrf.mxu0
      %v5083 = vadd.f32 0.0, %v5082
      %5084 = vdwg.mxu0
      %v5149 = vunpack.c.l.b16 %v4229
      %v5150 = vunpack.c.h.b16 %v4229
      %v5151 = vunpack.c.l.b16 %v4230
      %v5152 = vunpack.c.h.b16 %v4230
      %v5153 = vunpack.c.l.b16 %v4231
      %v5154 = vunpack.c.h.b16 %v4231
      %v5155 = vunpack.c.l.b16 %v4232
      %v5156 = vunpack.c.h.b16 %v4232
      %v5157 = vunpack.c.l.b16 %v4233
      %v5158 = vunpack.c.h.b16 %v4233
      %v5159 = vunpack.c.l.b16 %v4234
      %v5160 = vunpack.c.h.b16 %v4234
      %v5161 = vunpack.c.l.b16 %v4235
      %v5162 = vunpack.c.h.b16 %v4235
      %v5163 = vunpack.c.l.b16 %v4236
      %v5164 = vunpack.c.h.b16 %v4236
      %v5165 = vunpack.c.l.b16 %v4237
      %v5166 = vunpack.c.h.b16 %v4237
      %v5167 = vunpack.c.l.b16 %v4238
      %v5168 = vunpack.c.h.b16 %v4238
      %v5169 = vunpack.c.l.b16 %v4239
      %v5170 = vunpack.c.h.b16 %v4239
      %v5171 = vunpack.c.l.b16 %v4240
      %v5172 = vunpack.c.h.b16 %v4240
      %v5173 = vunpack.c.l.b16 %v4241
      %v5174 = vunpack.c.h.b16 %v4241
      %v5175 = vunpack.c.l.b16 %v4242
      %v5176 = vunpack.c.h.b16 %v4242
      %v5177 = vunpack.c.l.b16 %v4243
      %v5178 = vunpack.c.h.b16 %v4243
      %v5179 = vunpack.c.l.b16 %v4244
      %v5180 = vunpack.c.h.b16 %v4244
      %v5181 = vunpack.c.l.b16 %v4245
      %v5182 = vunpack.c.h.b16 %v4245
      %v5183 = vunpack.c.l.b16 %v4246
      %v5184 = vunpack.c.h.b16 %v4246
      %v5185 = vunpack.c.l.b16 %v4247
      %v5186 = vunpack.c.h.b16 %v4247
      %v5187 = vunpack.c.l.b16 %v4248
      %v5188 = vunpack.c.h.b16 %v4248
      %v5189 = vunpack.c.l.b16 %v4249
      %v5190 = vunpack.c.h.b16 %v4249
      %v5191 = vunpack.c.l.b16 %v4250
      %v5192 = vunpack.c.h.b16 %v4250
      %v5193 = vunpack.c.l.b16 %v4251
      %v5194 = vunpack.c.h.b16 %v4251
      %v5195 = vunpack.c.l.b16 %v4252
      %v5196 = vunpack.c.h.b16 %v4252
      %v5197 = vunpack.c.l.b16 %v4253
      %v5198 = vunpack.c.h.b16 %v4253
      %v5199 = vunpack.c.l.b16 %v4254
      %v5200 = vunpack.c.h.b16 %v4254
      %v5201 = vunpack.c.l.b16 %v4255
      %v5202 = vunpack.c.h.b16 %v4255
      %v5203 = vunpack.c.l.b16 %v4256
      %v5204 = vunpack.c.h.b16 %v4256
      %v5205 = vunpack.c.l.b16 %v4257
      %v5206 = vunpack.c.h.b16 %v4257
      %v5207 = vunpack.c.l.b16 %v4258
      %v5208 = vunpack.c.h.b16 %v4258
      %v5209 = vunpack.c.l.b16 %v4259
      %v5210 = vunpack.c.h.b16 %v4259
      %v5211 = vunpack.c.l.b16 %v4260
      %v5212 = vunpack.c.h.b16 %v4260
      %v5213 = vunpack.c.l.b16 %v4261
      %v5214 = vunpack.c.h.b16 %v4261
      %v5215 = vunpack.c.l.b16 %v4262
      %v5216 = vunpack.c.h.b16 %v4262
      %v5217 = vunpack.c.l.b16 %v4263
      %v5218 = vunpack.c.h.b16 %v4263
      %v5219 = vunpack.c.l.b16 %v4264
      %v5220 = vunpack.c.h.b16 %v4264
      %v5221 = vunpack.c.l.b16 %v4265
      %v5222 = vunpack.c.h.b16 %v4265
      %v5223 = vunpack.c.l.b16 %v4266
      %v5224 = vunpack.c.h.b16 %v4266
      %v5225 = vunpack.c.l.b16 %v4267
      %v5226 = vunpack.c.h.b16 %v4267
      %v5227 = vunpack.c.l.b16 %v4268
      %v5228 = vunpack.c.h.b16 %v4268
      %v5229 = vunpack.c.l.b16 %v4269
      %v5230 = vunpack.c.h.b16 %v4269
      %v5231 = vunpack.c.l.b16 %v4270
      %v5232 = vunpack.c.h.b16 %v4270
      %v5233 = vunpack.c.l.b16 %v4271
      %v5234 = vunpack.c.h.b16 %v4271
      %v5235 = vunpack.c.l.b16 %v4272
      %v5236 = vunpack.c.h.b16 %v4272
      %v5237 = vunpack.c.l.b16 %v4273
      %v5238 = vunpack.c.h.b16 %v4273
      %v5239 = vunpack.c.l.b16 %v4274
      %v5240 = vunpack.c.h.b16 %v4274
      %v5241 = vunpack.c.l.b16 %v4275
      %v5242 = vunpack.c.h.b16 %v4275
      %v5243 = vunpack.c.l.b16 %v4276
      %v5244 = vunpack.c.h.b16 %v4276
      %v5245 = vunpack.c.l.b16 %v4277
      %v5246 = vunpack.c.h.b16 %v4277
      %v5247 = vunpack.c.l.b16 %v4278
      %v5248 = vunpack.c.h.b16 %v4278
      %v5249 = vunpack.c.l.b16 %v4279
      %v5250 = vunpack.c.h.b16 %v4279
      %v5251 = vunpack.c.l.b16 %v4280
      %v5252 = vunpack.c.h.b16 %v4280
      %v5253 = vunpack.c.l.b16 %v4281
      %v5254 = vunpack.c.h.b16 %v4281
      %v5255 = vunpack.c.l.b16 %v4282
      %v5256 = vunpack.c.h.b16 %v4282
      %v5257 = vunpack.c.l.b16 %v4283
      %v5258 = vunpack.c.h.b16 %v4283
      %v5259 = vunpack.c.l.b16 %v4284
      %v5260 = vunpack.c.h.b16 %v4284
      %v5261 = vunpack.c.l.b16 %v4285
      %v5262 = vunpack.c.h.b16 %v4285
      %v5263 = vunpack.c.l.b16 %v4286
      %v5264 = vunpack.c.h.b16 %v4286
      %v5265 = vunpack.c.l.b16 %v4287
      %v5266 = vunpack.c.h.b16 %v4287
      %v5267 = vunpack.c.l.b16 %v4288
      %v5268 = vunpack.c.h.b16 %v4288
      %v5269 = vunpack.c.l.b16 %v4289
      %v5270 = vunpack.c.h.b16 %v4289
      %v5271 = vunpack.c.l.b16 %v4290
      %v5272 = vunpack.c.h.b16 %v4290
      %v5273 = vunpack.c.l.b16 %v4291
      %v5274 = vunpack.c.h.b16 %v4291
      %v5275 = vunpack.c.l.b16 %v4292
      %v5276 = vunpack.c.h.b16 %v4292
      %v5277 = vpack.c.b16 %v5153, %v5149
      %v5278 = vpack.c.b16 %v5154, %v5150
      %v5279 = vpack.c.b16 %v5155, %v5151
      %v5280 = vpack.c.b16 %v5156, %v5152
      %v5281 = vpack.c.b16 %v5161, %v5157
      %v5282 = vpack.c.b16 %v5162, %v5158
      %v5283 = vpack.c.b16 %v5163, %v5159
      %v5284 = vpack.c.b16 %v5164, %v5160
      %v5285 = vpack.c.b16 %v5169, %v5165
      %v5286 = vpack.c.b16 %v5170, %v5166
      %v5287 = vpack.c.b16 %v5171, %v5167
      %v5288 = vpack.c.b16 %v5172, %v5168
      %v5289 = vpack.c.b16 %v5177, %v5173
      %v5290 = vpack.c.b16 %v5178, %v5174
      %v5291 = vpack.c.b16 %v5179, %v5175
      %v5292 = vpack.c.b16 %v5180, %v5176
      %v5293 = vpack.c.b16 %v5185, %v5181
      %v5294 = vpack.c.b16 %v5186, %v5182
      %v5295 = vpack.c.b16 %v5187, %v5183
      %v5296 = vpack.c.b16 %v5188, %v5184
      %v5297 = vpack.c.b16 %v5193, %v5189
      %v5298 = vpack.c.b16 %v5194, %v5190
      %v5299 = vpack.c.b16 %v5195, %v5191
      %v5300 = vpack.c.b16 %v5196, %v5192
      %v5301 = vpack.c.b16 %v5201, %v5197
      %v5302 = vpack.c.b16 %v5202, %v5198
      %v5303 = vpack.c.b16 %v5203, %v5199
      %v5304 = vpack.c.b16 %v5204, %v5200
      %v5305 = vpack.c.b16 %v5209, %v5205
      %v5306 = vpack.c.b16 %v5210, %v5206
      %v5307 = vpack.c.b16 %v5211, %v5207
      %v5308 = vpack.c.b16 %v5212, %v5208
      %v5309 = vpack.c.b16 %v5217, %v5213
      %v5310 = vpack.c.b16 %v5218, %v5214
      %v5311 = vpack.c.b16 %v5219, %v5215
      %v5312 = vpack.c.b16 %v5220, %v5216
      %v5313 = vpack.c.b16 %v5225, %v5221
      %v5314 = vpack.c.b16 %v5226, %v5222
      %v5315 = vpack.c.b16 %v5227, %v5223
      %v5316 = vpack.c.b16 %v5228, %v5224
      %v5317 = vpack.c.b16 %v5233, %v5229
      %v5318 = vpack.c.b16 %v5234, %v5230
      %v5319 = vpack.c.b16 %v5235, %v5231
      %v5320 = vpack.c.b16 %v5236, %v5232
      %v5321 = vpack.c.b16 %v5241, %v5237
      %v5322 = vpack.c.b16 %v5242, %v5238
      %v5323 = vpack.c.b16 %v5243, %v5239
      %v5324 = vpack.c.b16 %v5244, %v5240
      %v5325 = vpack.c.b16 %v5249, %v5245
      %v5326 = vpack.c.b16 %v5250, %v5246
      %v5327 = vpack.c.b16 %v5251, %v5247
      %v5328 = vpack.c.b16 %v5252, %v5248
      %v5329 = vpack.c.b16 %v5257, %v5253
      %v5330 = vpack.c.b16 %v5258, %v5254
      %v5331 = vpack.c.b16 %v5259, %v5255
      %v5332 = vpack.c.b16 %v5260, %v5256
      %v5333 = vpack.c.b16 %v5265, %v5261
      %v5334 = vpack.c.b16 %v5266, %v5262
      %v5335 = vpack.c.b16 %v5267, %v5263
      %v5336 = vpack.c.b16 %v5268, %v5264
      %v5337 = vpack.c.b16 %v5273, %v5269
      %v5338 = vpack.c.b16 %v5274, %v5270
      %v5339 = vpack.c.b16 %v5275, %v5271
      %v5340 = vpack.c.b16 %v5276, %v5272
      %5405 = vmatprep.subr.bf16.mxu0 %v5306
      %5406 = vmatpush1.bf16.msra.mxu0 %v5305
      %5407 = vmatprep.subr.bf16.mxu0 %v5302
      %5408 = vmatpush1.bf16.msra.mxu0 %v5301
      %5409 = vmatprep.subr.bf16.mxu0 %v5298
      %5410 = vmatpush1.bf16.msra.mxu0 %v5297
      %5411 = vmatprep.subr.bf16.mxu0 %v5294
      %5412 = vmatpush1.bf16.msra.mxu0 %v5293
      %5413 = vmatprep.subr.bf16.mxu0 %v5290
      %5414 = vmatpush1.bf16.msra.mxu0 %v5289
      %5415 = vmatprep.subr.bf16.mxu0 %v5286
      %5416 = vmatpush1.bf16.msra.mxu0 %v5285
      %5417 = vmatprep.subr.bf16.mxu0 %v5282
      %5418 = vmatpush1.bf16.msra.mxu0 %v5281
      %5419 = vmatprep.subr.bf16.mxu0 %v5278
      %5420 = vmatpush1.bf16.msra.mxu0 %v5277
      %5421 = vmatprep.subr.bf16.mxu0 %v5338
      %5422 = vmatpush2.bf16.msra.mxu0 %v5337
      %5423 = vmatprep.subr.bf16.mxu0 %v5334
      %5424 = vmatpush2.bf16.msra.mxu0 %v5333
      %5425 = vmatprep.subr.bf16.mxu0 %v5330
      %5426 = vmatpush2.bf16.msra.mxu0 %v5329
      %5427 = vmatprep.subr.bf16.mxu0 %v5326
      %5428 = vmatpush2.bf16.msra.mxu0 %v5325
      %5429 = vmatprep.subr.bf16.mxu0 %v5322
      %5430 = vmatpush2.bf16.msra.mxu0 %v5321
      %5431 = vmatprep.subr.bf16.mxu0 %v5318
      %5432 = vmatpush2.bf16.msra.mxu0 %v5317
      %5433 = vmatprep.subr.bf16.mxu0 %v5314
      %5434 = vmatpush2.bf16.msra.mxu0 %v5313
      %5435 = vmatprep.subr.bf16.mxu0 %v5310
      %5436 = vmatpush2.bf16.msra.mxu0 %v5309
      %5437 = vmatprep.mubr.bf16.mxu0 %v4208
      %5438 = vmatmul.mubr.bf16.gmra.mxu0 %v4207
      %v5439 = vpop.f32.mrf.mxu0
      %v5440 = vadd.f32 %v4874, %v5439
      %v5441 = vpop.f32.mrf.mxu0
      %v5442 = vadd.f32 %v4876, %v5441
      %v5443 = vpop.f32.mrf.mxu0
      %v5444 = vadd.f32 %v4878, %v5443
      %v5445 = vpop.f32.mrf.mxu0
      %v5446 = vadd.f32 %v4880, %v5445
      %5447 = vmatprep.mubr.bf16.mxu0 %v4210
      %5448 = vmatmul.mubr.bf16.gmra.mxu0 %v4209
      %v5449 = vpop.f32.mrf.mxu0
      %v5450 = vadd.f32 %v4884, %v5449
      %v5451 = vpop.f32.mrf.mxu0
      %v5452 = vadd.f32 %v4886, %v5451
      %v5453 = vpop.f32.mrf.mxu0
      %v5454 = vadd.f32 %v4888, %v5453
      %v5455 = vpop.f32.mrf.mxu0
      %v5456 = vadd.f32 %v4890, %v5455
      %5457 = vmatprep.mubr.bf16.mxu0 %v4212
      %5458 = vmatmul.mubr.bf16.gmra.mxu0 %v4211
      %v5459 = vpop.f32.mrf.mxu0
      %v5460 = vadd.f32 %v4894, %v5459
      %v5461 = vpop.f32.mrf.mxu0
      %v5462 = vadd.f32 %v4896, %v5461
      %v5463 = vpop.f32.mrf.mxu0
      %v5464 = vadd.f32 %v4898, %v5463
      %v5465 = vpop.f32.mrf.mxu0
      %v5466 = vadd.f32 %v4900, %v5465
      %5467 = vmatprep.mubr.bf16.mxu0 %v4214
      %5468 = vmatmul.mubr.bf16.gmra.mxu0 %v4213
      %v5469 = vpop.f32.mrf.mxu0
      %v5470 = vadd.f32 %v4904, %v5469
      %v5471 = vpop.f32.mrf.mxu0
      %v5472 = vadd.f32 %v4906, %v5471
      %v5473 = vpop.f32.mrf.mxu0
      %v5474 = vadd.f32 %v4908, %v5473
      %v5475 = vpop.f32.mrf.mxu0
      %v5476 = vadd.f32 %v4910, %v5475
      %5477 = vmatprep.mubr.bf16.mxu0 %v4216
      %5478 = vmatmul.mubr.bf16.gmra.mxu0 %v4215
      %v5479 = vpop.f32.mrf.mxu0
      %v5480 = vadd.f32 %v4914, %v5479
      %v5481 = vpop.f32.mrf.mxu0
      %v5482 = vadd.f32 %v4916, %v5481
      %v5483 = vpop.f32.mrf.mxu0
      %v5484 = vadd.f32 %v4918, %v5483
      %v5485 = vpop.f32.mrf.mxu0
      %v5486 = vadd.f32 %v4920, %v5485
      %5487 = vmatprep.mubr.bf16.mxu0 %v4218
      %5488 = vmatmul.mubr.bf16.gmra.mxu0 %v4217
      %v5489 = vpop.f32.mrf.mxu0
      %v5490 = vadd.f32 %v4924, %v5489
      %v5491 = vpop.f32.mrf.mxu0
      %v5492 = vadd.f32 %v4926, %v5491
      %v5493 = vpop.f32.mrf.mxu0
      %v5494 = vadd.f32 %v4928, %v5493
      %v5495 = vpop.f32.mrf.mxu0
      %v5496 = vadd.f32 %v4930, %v5495
      %5497 = vmatprep.mubr.bf16.mxu0 %v4220
      %5498 = vmatmul.mubr.bf16.gmra.mxu0 %v4219
      %v5499 = vpop.f32.mrf.mxu0
      %v5500 = vadd.f32 %v4934, %v5499
      %v5501 = vpop.f32.mrf.mxu0
      %v5502 = vadd.f32 %v4936, %v5501
      %v5503 = vpop.f32.mrf.mxu0
      %v5504 = vadd.f32 %v4938, %v5503
      %v5505 = vpop.f32.mrf.mxu0
      %v5506 = vadd.f32 %v4940, %v5505
      %5507 = vmatprep.mubr.bf16.mxu0 %v4222
      %5508 = vmatmul.mubr.bf16.gmra.mxu0 %v4221
      %v5509 = vpop.f32.mrf.mxu0
      %v5510 = vadd.f32 %v4944, %v5509
      %v5511 = vpop.f32.mrf.mxu0
      %v5512 = vadd.f32 %v4946, %v5511
      %v5513 = vpop.f32.mrf.mxu0
      %v5514 = vadd.f32 %v4948, %v5513
      %v5515 = vpop.f32.mrf.mxu0
      %v5516 = vadd.f32 %v4950, %v5515
      %5517 = vmatprep.mubr.bf16.mxu0 %v4224
      %5518 = vmatmul.mubr.bf16.gmra.mxu0 %v4223
      %v5519 = vpop.f32.mrf.mxu0
      %v5520 = vadd.f32 %v4954, %v5519
      %v5521 = vpop.f32.mrf.mxu0
      %v5522 = vadd.f32 %v4956, %v5521
      %v5523 = vpop.f32.mrf.mxu0
      %v5524 = vadd.f32 %v4958, %v5523
      %v5525 = vpop.f32.mrf.mxu0
      %v5526 = vadd.f32 %v4960, %v5525
      %5527 = vdwg.mxu0
      %5528 = vmatprep.subr.bf16.mxu0 %v5308
      %5529 = vmatpush1.bf16.msra.mxu0 %v5307
      %5530 = vmatprep.subr.bf16.mxu0 %v5304
      %5531 = vmatpush1.bf16.msra.mxu0 %v5303
      %5532 = vmatprep.subr.bf16.mxu0 %v5300
      %5533 = vmatpush1.bf16.msra.mxu0 %v5299
      %5534 = vmatprep.subr.bf16.mxu0 %v5296
      %5535 = vmatpush1.bf16.msra.mxu0 %v5295
      %5536 = vmatprep.subr.bf16.mxu0 %v5292
      %5537 = vmatpush1.bf16.msra.mxu0 %v5291
      %5538 = vmatprep.subr.bf16.mxu0 %v5288
      %5539 = vmatpush1.bf16.msra.mxu0 %v5287
      %5540 = vmatprep.subr.bf16.mxu0 %v5284
      %5541 = vmatpush1.bf16.msra.mxu0 %v5283
      %5542 = vmatprep.subr.bf16.mxu0 %v5280
      %5543 = vmatpush1.bf16.msra.mxu0 %v5279
      %5544 = vmatprep.subr.bf16.mxu0 %v5340
      %5545 = vmatpush2.bf16.msra.mxu0 %v5339
      %5546 = vmatprep.subr.bf16.mxu0 %v5336
      %5547 = vmatpush2.bf16.msra.mxu0 %v5335
      %5548 = vmatprep.subr.bf16.mxu0 %v5332
      %5549 = vmatpush2.bf16.msra.mxu0 %v5331
      %5550 = vmatprep.subr.bf16.mxu0 %v5328
      %5551 = vmatpush2.bf16.msra.mxu0 %v5327
      %5552 = vmatprep.subr.bf16.mxu0 %v5324
      %5553 = vmatpush2.bf16.msra.mxu0 %v5323
      %5554 = vmatprep.subr.bf16.mxu0 %v5320
      %5555 = vmatpush2.bf16.msra.mxu0 %v5319
      %5556 = vmatprep.subr.bf16.mxu0 %v5316
      %5557 = vmatpush2.bf16.msra.mxu0 %v5315
      %5558 = vmatprep.subr.bf16.mxu0 %v5312
      %5559 = vmatpush2.bf16.msra.mxu0 %v5311
      %5560 = vmatprep.mubr.bf16.mxu0 %v4208
      %5561 = vmatmul.mubr.bf16.gmra.mxu0 %v4207
      %v5562 = vpop.f32.mrf.mxu0
      %v5563 = vadd.f32 %v4997, %v5562
      %v5564 = vpop.f32.mrf.mxu0
      %v5565 = vadd.f32 %v4999, %v5564
      %v5566 = vpop.f32.mrf.mxu0
      %v5567 = vadd.f32 %v5001, %v5566
      %v5568 = vpop.f32.mrf.mxu0
      %v5569 = vadd.f32 %v5003, %v5568
      %5570 = vmatprep.mubr.bf16.mxu0 %v4210
      %5571 = vmatmul.mubr.bf16.gmra.mxu0 %v4209
      %v5572 = vpop.f32.mrf.mxu0
      %v5573 = vadd.f32 %v5007, %v5572
      %v5574 = vpop.f32.mrf.mxu0
      %v5575 = vadd.f32 %v5009, %v5574
      %v5576 = vpop.f32.mrf.mxu0
      %v5577 = vadd.f32 %v5011, %v5576
      %v5578 = vpop.f32.mrf.mxu0
      %v5579 = vadd.f32 %v5013, %v5578
      %5580 = vmatprep.mubr.bf16.mxu0 %v4212
      %5581 = vmatmul.mubr.bf16.gmra.mxu0 %v4211
      %v5582 = vpop.f32.mrf.mxu0
      %v5583 = vadd.f32 %v5017, %v5582
      %v5584 = vpop.f32.mrf.mxu0
      %v5585 = vadd.f32 %v5019, %v5584
      %v5586 = vpop.f32.mrf.mxu0
      %v5587 = vadd.f32 %v5021, %v5586
      %v5588 = vpop.f32.mrf.mxu0
      %v5589 = vadd.f32 %v5023, %v5588
      %5590 = vmatprep.mubr.bf16.mxu0 %v4214
      %5591 = vmatmul.mubr.bf16.gmra.mxu0 %v4213
      %v5592 = vpop.f32.mrf.mxu0
      %v5593 = vadd.f32 %v5027, %v5592
      %v5594 = vpop.f32.mrf.mxu0
      %v5595 = vadd.f32 %v5029, %v5594
      %v5596 = vpop.f32.mrf.mxu0
      %v5597 = vadd.f32 %v5031, %v5596
      %v5598 = vpop.f32.mrf.mxu0
      %v5599 = vadd.f32 %v5033, %v5598
      %5600 = vmatprep.mubr.bf16.mxu0 %v4216
      %5601 = vmatmul.mubr.bf16.gmra.mxu0 %v4215
      %v5602 = vpop.f32.mrf.mxu0
      %v5603 = vadd.f32 %v5037, %v5602
      %v5604 = vpop.f32.mrf.mxu0
      %v5605 = vadd.f32 %v5039, %v5604
      %v5606 = vpop.f32.mrf.mxu0
      %v5607 = vadd.f32 %v5041, %v5606
      %v5608 = vpop.f32.mrf.mxu0
      %v5609 = vadd.f32 %v5043, %v5608
      %5610 = vmatprep.mubr.bf16.mxu0 %v4218
      %5611 = vmatmul.mubr.bf16.gmra.mxu0 %v4217
      %v5612 = vpop.f32.mrf.mxu0
      %v5613 = vadd.f32 %v5047, %v5612
      %v5614 = vpop.f32.mrf.mxu0
      %v5615 = vadd.f32 %v5049, %v5614
      %v5616 = vpop.f32.mrf.mxu0
      %v5617 = vadd.f32 %v5051, %v5616
      %v5618 = vpop.f32.mrf.mxu0
      %v5619 = vadd.f32 %v5053, %v5618
      %5620 = vmatprep.mubr.bf16.mxu0 %v4220
      %5621 = vmatmul.mubr.bf16.gmra.mxu0 %v4219
      %v5622 = vpop.f32.mrf.mxu0
      %v5623 = vadd.f32 %v5057, %v5622
      %v5624 = vpop.f32.mrf.mxu0
      %v5625 = vadd.f32 %v5059, %v5624
      %v5626 = vpop.f32.mrf.mxu0
      %v5627 = vadd.f32 %v5061, %v5626
      %v5628 = vpop.f32.mrf.mxu0
      %v5629 = vadd.f32 %v5063, %v5628
      %5630 = vmatprep.mubr.bf16.mxu0 %v4222
      %5631 = vmatmul.mubr.bf16.gmra.mxu0 %v4221
      %v5632 = vpop.f32.mrf.mxu0
      %v5633 = vadd.f32 %v5067, %v5632
      %v5634 = vpop.f32.mrf.mxu0
      %v5635 = vadd.f32 %v5069, %v5634
      %v5636 = vpop.f32.mrf.mxu0
      %v5637 = vadd.f32 %v5071, %v5636
      %v5638 = vpop.f32.mrf.mxu0
      %v5639 = vadd.f32 %v5073, %v5638
      %5640 = vmatprep.mubr.bf16.mxu0 %v4224
      %5641 = vmatmul.mubr.bf16.gmra.mxu0 %v4223
      %v5642 = vpop.f32.mrf.mxu0
      %v5643 = vadd.f32 %v5077, %v5642
      %v5644 = vpop.f32.mrf.mxu0
      %v5645 = vadd.f32 %v5079, %v5644
      %v5646 = vpop.f32.mrf.mxu0
      %v5647 = vadd.f32 %v5081, %v5646
      %v5648 = vpop.f32.mrf.mxu0
      %v5649 = vadd.f32 %v5083, %v5648
      %5650 = vdwg.mxu0
      %s5651 = scalar_lea.vmem %s4, 1024
      %v5652 = vld [vmem:[%s5651] sm:$0xff]
      %v5653 = vld [vmem:[%s5651 + $0x8] sm:$0xff]
      %v5654 = vld [vmem:[%s5651 + $0x10] sm:$0xff]
      %v5655 = vld [vmem:[%s5651 + $0x18] sm:$0xff]
      %v5656 = vld [vmem:[%s5651 + $0x20] sm:$0xff]
      %v5657 = vld [vmem:[%s5651 + $0x28] sm:$0xff]
      %v5658 = vld [vmem:[%s5651 + $0x30] sm:$0xff]
      %v5659 = vld [vmem:[%s5651 + $0x38] sm:$0xff]
      %v5660 = vld [vmem:[%s5651 + $0x40] sm:$0xff]
      %v5661 = vld [vmem:[%s5651 + $0x48] sm:$0xff]
      %v5662 = vld [vmem:[%s5651 + $0x50] sm:$0xff]
      %v5663 = vld [vmem:[%s5651 + $0x58] sm:$0xff]
      %v5664 = vld [vmem:[%s5651 + $0x60] sm:$0xff]
      %v5665 = vld [vmem:[%s5651 + $0x68] sm:$0xff]
      %v5666 = vld [vmem:[%s5651 + $0x70] sm:$0xff]
      %v5667 = vld [vmem:[%s5651 + $0x78] sm:$0xff]
      %v5668 = vld [vmem:[%s5651 + $0x80] sm:$0xff]
      %v5669 = vld [vmem:[%s5651 + $0x88] sm:$0xff]
      %v5670 = vld [vmem:[%s5651 + $0x90] sm:$0xff]
      %v5671 = vld [vmem:[%s5651 + $0x98] sm:$0xff]
      %v5672 = vld [vmem:[%s5651 + $0xa0] sm:$0xff]
      %v5673 = vld [vmem:[%s5651 + $0xa8] sm:$0xff]
      %v5674 = vld [vmem:[%s5651 + $0xb0] sm:$0xff]
      %v5675 = vld [vmem:[%s5651 + $0xb8] sm:$0xff]
      %v5676 = vld [vmem:[%s5651 + $0xc0] sm:$0xff]
      %v5677 = vld [vmem:[%s5651 + $0xc8] sm:$0xff]
      %v5678 = vld [vmem:[%s5651 + $0xd0] sm:$0xff]
      %v5679 = vld [vmem:[%s5651 + $0xd8] sm:$0xff]
      %v5680 = vld [vmem:[%s5651 + $0xe0] sm:$0xff]
      %v5681 = vld [vmem:[%s5651 + $0xe8] sm:$0xff]
      %v5682 = vld [vmem:[%s5651 + $0xf0] sm:$0xff]
      %v5683 = vld [vmem:[%s5651 + $0xf8] sm:$0xff]
      %v5684 = vld [vmem:[%s5651 + $0x100] sm:$0xff]
      %v5685 = vld [vmem:[%s5651 + $0x108] sm:$0xff]
      %v5686 = vld [vmem:[%s5651 + $0x110] sm:$0xff]
      %v5687 = vld [vmem:[%s5651 + $0x118] sm:$0xff]
      %v5688 = vld [vmem:[%s5651 + $0x120] sm:$0xff]
      %v5689 = vld [vmem:[%s5651 + $0x128] sm:$0xff]
      %v5690 = vld [vmem:[%s5651 + $0x130] sm:$0xff]
      %v5691 = vld [vmem:[%s5651 + $0x138] sm:$0xff]
      %v5692 = vld [vmem:[%s5651 + $0x140] sm:$0xff]
      %v5693 = vld [vmem:[%s5651 + $0x148] sm:$0xff]
      %v5694 = vld [vmem:[%s5651 + $0x150] sm:$0xff]
      %v5695 = vld [vmem:[%s5651 + $0x158] sm:$0xff]
      %v5696 = vld [vmem:[%s5651 + $0x160] sm:$0xff]
      %v5697 = vld [vmem:[%s5651 + $0x168] sm:$0xff]
      %v5698 = vld [vmem:[%s5651 + $0x170] sm:$0xff]
      %v5699 = vld [vmem:[%s5651 + $0x178] sm:$0xff]
      %v5700 = vld [vmem:[%s5651 + $0x180] sm:$0xff]
      %v5701 = vld [vmem:[%s5651 + $0x188] sm:$0xff]
      %v5702 = vld [vmem:[%s5651 + $0x190] sm:$0xff]
      %v5703 = vld [vmem:[%s5651 + $0x198] sm:$0xff]
      %v5704 = vld [vmem:[%s5651 + $0x1a0] sm:$0xff]
      %v5705 = vld [vmem:[%s5651 + $0x1a8] sm:$0xff]
      %v5706 = vld [vmem:[%s5651 + $0x1b0] sm:$0xff]
      %v5707 = vld [vmem:[%s5651 + $0x1b8] sm:$0xff]
      %v5708 = vld [vmem:[%s5651 + $0x1c0] sm:$0xff]
      %v5709 = vld [vmem:[%s5651 + $0x1c8] sm:$0xff]
      %v5710 = vld [vmem:[%s5651 + $0x1d0] sm:$0xff]
      %v5711 = vld [vmem:[%s5651 + $0x1d8] sm:$0xff]
      %v5712 = vld [vmem:[%s5651 + $0x1e0] sm:$0xff]
      %v5713 = vld [vmem:[%s5651 + $0x1e8] sm:$0xff]
      %v5714 = vld [vmem:[%s5651 + $0x1f0] sm:$0xff]
      %v5715 = vld [vmem:[%s5651 + $0x1f8] sm:$0xff]
      %vm5736 = vcmask 1046528
      %v5737 = vrot.slane %v4207, 1
      %v5738 = vrot.slane %v4209, 1
      %v5739 = vsel %vm5736, %v5737, %v5738
      %v5740 = vrot.slane %v4208, 1
      %v5741 = vrot.slane %v4210, 1
      %v5742 = vsel %vm5736, %v5740, %v5741
      %v5743 = vrot.slane %v4211, 1
      %v5744 = vsel %vm5736, %v5738, %v5743
      %v5745 = vrot.slane %v4212, 1
      %v5746 = vsel %vm5736, %v5741, %v5745
      %v5747 = vrot.slane %v4213, 1
      %v5748 = vsel %vm5736, %v5743, %v5747
      %v5749 = vrot.slane %v4214, 1
      %v5750 = vsel %vm5736, %v5745, %v5749
      %v5751 = vrot.slane %v4215, 1
      %v5752 = vsel %vm5736, %v5747, %v5751
      %v5753 = vrot.slane %v4216, 1
      %v5754 = vsel %vm5736, %v5749, %v5753
      %v5755 = vrot.slane %v4217, 1
      %v5756 = vsel %vm5736, %v5751, %v5755
      %v5757 = vrot.slane %v4218, 1
      %v5758 = vsel %vm5736, %v5753, %v5757
      %v5759 = vrot.slane %v4219, 1
      %v5760 = vsel %vm5736, %v5755, %v5759
      %v5761 = vrot.slane %v4220, 1
      %v5762 = vsel %vm5736, %v5757, %v5761
      %v5763 = vrot.slane %v4221, 1
      %v5764 = vsel %vm5736, %v5759, %v5763
      %v5765 = vrot.slane %v4222, 1
      %v5766 = vsel %vm5736, %v5761, %v5765
      %v5767 = vrot.slane %v4223, 1
      %v5768 = vsel %vm5736, %v5763, %v5767
      %v5769 = vrot.slane %v4224, 1
      %v5770 = vsel %vm5736, %v5765, %v5769
      %v5771 = vrot.slane %v4225, 1
      %v5772 = vsel %vm5736, %v5767, %v5771
      %v5773 = vrot.slane %v4226, 1
      %v5774 = vsel %vm5736, %v5769, %v5773
      %v5857 = vunpack.c.l.b16 %v5652
      %v5858 = vunpack.c.h.b16 %v5652
      %v5859 = vunpack.c.l.b16 %v5653
      %v5860 = vunpack.c.h.b16 %v5653
      %v5861 = vunpack.c.l.b16 %v5654
      %v5862 = vunpack.c.h.b16 %v5654
      %v5863 = vunpack.c.l.b16 %v5655
      %v5864 = vunpack.c.h.b16 %v5655
      %v5865 = vunpack.c.l.b16 %v5656
      %v5866 = vunpack.c.h.b16 %v5656
      %v5867 = vunpack.c.l.b16 %v5657
      %v5868 = vunpack.c.h.b16 %v5657
      %v5869 = vunpack.c.l.b16 %v5658
      %v5870 = vunpack.c.h.b16 %v5658
      %v5871 = vunpack.c.l.b16 %v5659
      %v5872 = vunpack.c.h.b16 %v5659
      %v5873 = vunpack.c.l.b16 %v5660
      %v5874 = vunpack.c.h.b16 %v5660
      %v5875 = vunpack.c.l.b16 %v5661
      %v5876 = vunpack.c.h.b16 %v5661
      %v5877 = vunpack.c.l.b16 %v5662
      %v5878 = vunpack.c.h.b16 %v5662
      %v5879 = vunpack.c.l.b16 %v5663
      %v5880 = vunpack.c.h.b16 %v5663
      %v5881 = vunpack.c.l.b16 %v5664
      %v5882 = vunpack.c.h.b16 %v5664
      %v5883 = vunpack.c.l.b16 %v5665
      %v5884 = vunpack.c.h.b16 %v5665
      %v5885 = vunpack.c.l.b16 %v5666
      %v5886 = vunpack.c.h.b16 %v5666
      %v5887 = vunpack.c.l.b16 %v5667
      %v5888 = vunpack.c.h.b16 %v5667
      %v5889 = vunpack.c.l.b16 %v5668
      %v5890 = vunpack.c.h.b16 %v5668
      %v5891 = vunpack.c.l.b16 %v5669
      %v5892 = vunpack.c.h.b16 %v5669
      %v5893 = vunpack.c.l.b16 %v5670
      %v5894 = vunpack.c.h.b16 %v5670
      %v5895 = vunpack.c.l.b16 %v5671
      %v5896 = vunpack.c.h.b16 %v5671
      %v5897 = vunpack.c.l.b16 %v5672
      %v5898 = vunpack.c.h.b16 %v5672
      %v5899 = vunpack.c.l.b16 %v5673
      %v5900 = vunpack.c.h.b16 %v5673
      %v5901 = vunpack.c.l.b16 %v5674
      %v5902 = vunpack.c.h.b16 %v5674
      %v5903 = vunpack.c.l.b16 %v5675
      %v5904 = vunpack.c.h.b16 %v5675
      %v5905 = vunpack.c.l.b16 %v5676
      %v5906 = vunpack.c.h.b16 %v5676
      %v5907 = vunpack.c.l.b16 %v5677
      %v5908 = vunpack.c.h.b16 %v5677
      %v5909 = vunpack.c.l.b16 %v5678
      %v5910 = vunpack.c.h.b16 %v5678
      %v5911 = vunpack.c.l.b16 %v5679
      %v5912 = vunpack.c.h.b16 %v5679
      %v5913 = vunpack.c.l.b16 %v5680
      %v5914 = vunpack.c.h.b16 %v5680
      %v5915 = vunpack.c.l.b16 %v5681
      %v5916 = vunpack.c.h.b16 %v5681
      %v5917 = vunpack.c.l.b16 %v5682
      %v5918 = vunpack.c.h.b16 %v5682
      %v5919 = vunpack.c.l.b16 %v5683
      %v5920 = vunpack.c.h.b16 %v5683
      %v5921 = vunpack.c.l.b16 %v5684
      %v5922 = vunpack.c.h.b16 %v5684
      %v5923 = vunpack.c.l.b16 %v5685
      %v5924 = vunpack.c.h.b16 %v5685
      %v5925 = vunpack.c.l.b16 %v5686
      %v5926 = vunpack.c.h.b16 %v5686
      %v5927 = vunpack.c.l.b16 %v5687
      %v5928 = vunpack.c.h.b16 %v5687
      %v5929 = vunpack.c.l.b16 %v5688
      %v5930 = vunpack.c.h.b16 %v5688
      %v5931 = vunpack.c.l.b16 %v5689
      %v5932 = vunpack.c.h.b16 %v5689
      %v5933 = vunpack.c.l.b16 %v5690
      %v5934 = vunpack.c.h.b16 %v5690
      %v5935 = vunpack.c.l.b16 %v5691
      %v5936 = vunpack.c.h.b16 %v5691
      %v5937 = vunpack.c.l.b16 %v5692
      %v5938 = vunpack.c.h.b16 %v5692
      %v5939 = vunpack.c.l.b16 %v5693
      %v5940 = vunpack.c.h.b16 %v5693
      %v5941 = vunpack.c.l.b16 %v5694
      %v5942 = vunpack.c.h.b16 %v5694
      %v5943 = vunpack.c.l.b16 %v5695
      %v5944 = vunpack.c.h.b16 %v5695
      %v5945 = vunpack.c.l.b16 %v5696
      %v5946 = vunpack.c.h.b16 %v5696
      %v5947 = vunpack.c.l.b16 %v5697
      %v5948 = vunpack.c.h.b16 %v5697
      %v5949 = vunpack.c.l.b16 %v5698
      %v5950 = vunpack.c.h.b16 %v5698
      %v5951 = vunpack.c.l.b16 %v5699
      %v5952 = vunpack.c.h.b16 %v5699
      %v5953 = vunpack.c.l.b16 %v5700
      %v5954 = vunpack.c.h.b16 %v5700
      %v5955 = vunpack.c.l.b16 %v5701
      %v5956 = vunpack.c.h.b16 %v5701
      %v5957 = vunpack.c.l.b16 %v5702
      %v5958 = vunpack.c.h.b16 %v5702
      %v5959 = vunpack.c.l.b16 %v5703
      %v5960 = vunpack.c.h.b16 %v5703
      %v5961 = vunpack.c.l.b16 %v5704
      %v5962 = vunpack.c.h.b16 %v5704
      %v5963 = vunpack.c.l.b16 %v5705
      %v5964 = vunpack.c.h.b16 %v5705
      %v5965 = vunpack.c.l.b16 %v5706
      %v5966 = vunpack.c.h.b16 %v5706
      %v5967 = vunpack.c.l.b16 %v5707
      %v5968 = vunpack.c.h.b16 %v5707
      %v5969 = vunpack.c.l.b16 %v5708
      %v5970 = vunpack.c.h.b16 %v5708
      %v5971 = vunpack.c.l.b16 %v5709
      %v5972 = vunpack.c.h.b16 %v5709
      %v5973 = vunpack.c.l.b16 %v5710
      %v5974 = vunpack.c.h.b16 %v5710
      %v5975 = vunpack.c.l.b16 %v5711
      %v5976 = vunpack.c.h.b16 %v5711
      %v5977 = vunpack.c.l.b16 %v5712
      %v5978 = vunpack.c.h.b16 %v5712
      %v5979 = vunpack.c.l.b16 %v5713
      %v5980 = vunpack.c.h.b16 %v5713
      %v5981 = vunpack.c.l.b16 %v5714
      %v5982 = vunpack.c.h.b16 %v5714
      %v5983 = vunpack.c.l.b16 %v5715
      %v5984 = vunpack.c.h.b16 %v5715
      %v5985 = vpack.c.b16 %v5861, %v5857
      %v5986 = vpack.c.b16 %v5862, %v5858
      %v5987 = vpack.c.b16 %v5863, %v5859
      %v5988 = vpack.c.b16 %v5864, %v5860
      %v5989 = vpack.c.b16 %v5869, %v5865
      %v5990 = vpack.c.b16 %v5870, %v5866
      %v5991 = vpack.c.b16 %v5871, %v5867
      %v5992 = vpack.c.b16 %v5872, %v5868
      %v5993 = vpack.c.b16 %v5877, %v5873
      %v5994 = vpack.c.b16 %v5878, %v5874
      %v5995 = vpack.c.b16 %v5879, %v5875
      %v5996 = vpack.c.b16 %v5880, %v5876
      %v5997 = vpack.c.b16 %v5885, %v5881
      %v5998 = vpack.c.b16 %v5886, %v5882
      %v5999 = vpack.c.b16 %v5887, %v5883
      %v6000 = vpack.c.b16 %v5888, %v5884
      %v6001 = vpack.c.b16 %v5893, %v5889
      %v6002 = vpack.c.b16 %v5894, %v5890
      %v6003 = vpack.c.b16 %v5895, %v5891
      %v6004 = vpack.c.b16 %v5896, %v5892
      %v6005 = vpack.c.b16 %v5901, %v5897
      %v6006 = vpack.c.b16 %v5902, %v5898
      %v6007 = vpack.c.b16 %v5903, %v5899
      %v6008 = vpack.c.b16 %v5904, %v5900
      %v6009 = vpack.c.b16 %v5909, %v5905
      %v6010 = vpack.c.b16 %v5910, %v5906
      %v6011 = vpack.c.b16 %v5911, %v5907
      %v6012 = vpack.c.b16 %v5912, %v5908
      %v6013 = vpack.c.b16 %v5917, %v5913
      %v6014 = vpack.c.b16 %v5918, %v5914
      %v6015 = vpack.c.b16 %v5919, %v5915
      %v6016 = vpack.c.b16 %v5920, %v5916
      %v6017 = vpack.c.b16 %v5925, %v5921
      %v6018 = vpack.c.b16 %v5926, %v5922
      %v6019 = vpack.c.b16 %v5927, %v5923
      %v6020 = vpack.c.b16 %v5928, %v5924
      %v6021 = vpack.c.b16 %v5933, %v5929
      %v6022 = vpack.c.b16 %v5934, %v5930
      %v6023 = vpack.c.b16 %v5935, %v5931
      %v6024 = vpack.c.b16 %v5936, %v5932
      %v6025 = vpack.c.b16 %v5941, %v5937
      %v6026 = vpack.c.b16 %v5942, %v5938
      %v6027 = vpack.c.b16 %v5943, %v5939
      %v6028 = vpack.c.b16 %v5944, %v5940
      %v6029 = vpack.c.b16 %v5949, %v5945
      %v6030 = vpack.c.b16 %v5950, %v5946
      %v6031 = vpack.c.b16 %v5951, %v5947
      %v6032 = vpack.c.b16 %v5952, %v5948
      %v6033 = vpack.c.b16 %v5957, %v5953
      %v6034 = vpack.c.b16 %v5958, %v5954
      %v6035 = vpack.c.b16 %v5959, %v5955
      %v6036 = vpack.c.b16 %v5960, %v5956
      %v6037 = vpack.c.b16 %v5965, %v5961
      %v6038 = vpack.c.b16 %v5966, %v5962
      %v6039 = vpack.c.b16 %v5967, %v5963
      %v6040 = vpack.c.b16 %v5968, %v5964
      %v6041 = vpack.c.b16 %v5973, %v5969
      %v6042 = vpack.c.b16 %v5974, %v5970
      %v6043 = vpack.c.b16 %v5975, %v5971
      %v6044 = vpack.c.b16 %v5976, %v5972
      %v6045 = vpack.c.b16 %v5981, %v5977
      %v6046 = vpack.c.b16 %v5982, %v5978
      %v6047 = vpack.c.b16 %v5983, %v5979
      %v6048 = vpack.c.b16 %v5984, %v5980
      %6113 = vmatprep.subr.bf16.mxu0 %v6014
      %6114 = vmatpush1.bf16.msra.mxu0 %v6013
      %6115 = vmatprep.subr.bf16.mxu0 %v6010
      %6116 = vmatpush1.bf16.msra.mxu0 %v6009
      %6117 = vmatprep.subr.bf16.mxu0 %v6006
      %6118 = vmatpush1.bf16.msra.mxu0 %v6005
      %6119 = vmatprep.subr.bf16.mxu0 %v6002
      %6120 = vmatpush1.bf16.msra.mxu0 %v6001
      %6121 = vmatprep.subr.bf16.mxu0 %v5998
      %6122 = vmatpush1.bf16.msra.mxu0 %v5997
      %6123 = vmatprep.subr.bf16.mxu0 %v5994
      %6124 = vmatpush1.bf16.msra.mxu0 %v5993
      %6125 = vmatprep.subr.bf16.mxu0 %v5990
      %6126 = vmatpush1.bf16.msra.mxu0 %v5989
      %6127 = vmatprep.subr.bf16.mxu0 %v5986
      %6128 = vmatpush1.bf16.msra.mxu0 %v5985
      %6129 = vmatprep.subr.bf16.mxu0 %v6046
      %6130 = vmatpush2.bf16.msra.mxu0 %v6045
      %6131 = vmatprep.subr.bf16.mxu0 %v6042
      %6132 = vmatpush2.bf16.msra.mxu0 %v6041
      %6133 = vmatprep.subr.bf16.mxu0 %v6038
      %6134 = vmatpush2.bf16.msra.mxu0 %v6037
      %6135 = vmatprep.subr.bf16.mxu0 %v6034
      %6136 = vmatpush2.bf16.msra.mxu0 %v6033
      %6137 = vmatprep.subr.bf16.mxu0 %v6030
      %6138 = vmatpush2.bf16.msra.mxu0 %v6029
      %6139 = vmatprep.subr.bf16.mxu0 %v6026
      %6140 = vmatpush2.bf16.msra.mxu0 %v6025
      %6141 = vmatprep.subr.bf16.mxu0 %v6022
      %6142 = vmatpush2.bf16.msra.mxu0 %v6021
      %6143 = vmatprep.subr.bf16.mxu0 %v6018
      %6144 = vmatpush2.bf16.msra.mxu0 %v6017
      %6145 = vmatprep.mubr.bf16.mxu0 %v5742
      %6146 = vmatmul.mubr.bf16.gmra.mxu0 %v5739
      %v6147 = vpop.f32.mrf.mxu0
      %v6148 = vadd.f32 0.0, %v6147
      %v6149 = vpop.f32.mrf.mxu0
      %v6150 = vadd.f32 0.0, %v6149
      %v6151 = vpop.f32.mrf.mxu0
      %v6152 = vadd.f32 0.0, %v6151
      %v6153 = vpop.f32.mrf.mxu0
      %v6154 = vadd.f32 0.0, %v6153
      %6155 = vmatprep.mubr.bf16.mxu0 %v5746
      %6156 = vmatmul.mubr.bf16.gmra.mxu0 %v5744
      %v6157 = vpop.f32.mrf.mxu0
      %v6158 = vadd.f32 0.0, %v6157
      %v6159 = vpop.f32.mrf.mxu0
      %v6160 = vadd.f32 0.0, %v6159
      %v6161 = vpop.f32.mrf.mxu0
      %v6162 = vadd.f32 0.0, %v6161
      %v6163 = vpop.f32.mrf.mxu0
      %v6164 = vadd.f32 0.0, %v6163
      %6165 = vmatprep.mubr.bf16.mxu0 %v5750
      %6166 = vmatmul.mubr.bf16.gmra.mxu0 %v5748
      %v6167 = vpop.f32.mrf.mxu0
      %v6168 = vadd.f32 0.0, %v6167
      %v6169 = vpop.f32.mrf.mxu0
      %v6170 = vadd.f32 0.0, %v6169
      %v6171 = vpop.f32.mrf.mxu0
      %v6172 = vadd.f32 0.0, %v6171
      %v6173 = vpop.f32.mrf.mxu0
      %v6174 = vadd.f32 0.0, %v6173
      %6175 = vmatprep.mubr.bf16.mxu0 %v5754
      %6176 = vmatmul.mubr.bf16.gmra.mxu0 %v5752
      %v6177 = vpop.f32.mrf.mxu0
      %v6178 = vadd.f32 0.0, %v6177
      %v6179 = vpop.f32.mrf.mxu0
      %v6180 = vadd.f32 0.0, %v6179
      %v6181 = vpop.f32.mrf.mxu0
      %v6182 = vadd.f32 0.0, %v6181
      %v6183 = vpop.f32.mrf.mxu0
      %v6184 = vadd.f32 0.0, %v6183
      %6185 = vmatprep.mubr.bf16.mxu0 %v5758
      %6186 = vmatmul.mubr.bf16.gmra.mxu0 %v5756
      %v6187 = vpop.f32.mrf.mxu0
      %v6188 = vadd.f32 0.0, %v6187
      %v6189 = vpop.f32.mrf.mxu0
      %v6190 = vadd.f32 0.0, %v6189
      %v6191 = vpop.f32.mrf.mxu0
      %v6192 = vadd.f32 0.0, %v6191
      %v6193 = vpop.f32.mrf.mxu0
      %v6194 = vadd.f32 0.0, %v6193
      %6195 = vmatprep.mubr.bf16.mxu0 %v5762
      %6196 = vmatmul.mubr.bf16.gmra.mxu0 %v5760
      %v6197 = vpop.f32.mrf.mxu0
      %v6198 = vadd.f32 0.0, %v6197
      %v6199 = vpop.f32.mrf.mxu0
      %v6200 = vadd.f32 0.0, %v6199
      %v6201 = vpop.f32.mrf.mxu0
      %v6202 = vadd.f32 0.0, %v6201
      %v6203 = vpop.f32.mrf.mxu0
      %v6204 = vadd.f32 0.0, %v6203
      %6205 = vmatprep.mubr.bf16.mxu0 %v5766
      %6206 = vmatmul.mubr.bf16.gmra.mxu0 %v5764
      %v6207 = vpop.f32.mrf.mxu0
      %v6208 = vadd.f32 0.0, %v6207
      %v6209 = vpop.f32.mrf.mxu0
      %v6210 = vadd.f32 0.0, %v6209
      %v6211 = vpop.f32.mrf.mxu0
      %v6212 = vadd.f32 0.0, %v6211
      %v6213 = vpop.f32.mrf.mxu0
      %v6214 = vadd.f32 0.0, %v6213
      %6215 = vmatprep.mubr.bf16.mxu0 %v5770
      %6216 = vmatmul.mubr.bf16.gmra.mxu0 %v5768
      %v6217 = vpop.f32.mrf.mxu0
      %v6218 = vadd.f32 0.0, %v6217
      %v6219 = vpop.f32.mrf.mxu0
      %v6220 = vadd.f32 0.0, %v6219
      %v6221 = vpop.f32.mrf.mxu0
      %v6222 = vadd.f32 0.0, %v6221
      %v6223 = vpop.f32.mrf.mxu0
      %v6224 = vadd.f32 0.0, %v6223
      %6225 = vmatprep.mubr.bf16.mxu0 %v5774
      %6226 = vmatmul.mubr.bf16.gmra.mxu0 %v5772
      %v6227 = vpop.f32.mrf.mxu0
      %v6228 = vadd.f32 0.0, %v6227
      %v6229 = vpop.f32.mrf.mxu0
      %v6230 = vadd.f32 0.0, %v6229
      %v6231 = vpop.f32.mrf.mxu0
      %v6232 = vadd.f32 0.0, %v6231
      %v6233 = vpop.f32.mrf.mxu0
      %v6234 = vadd.f32 0.0, %v6233
      %6235 = vdwg.mxu0
      %6236 = vmatprep.subr.bf16.mxu0 %v6016
      %6237 = vmatpush1.bf16.msra.mxu0 %v6015
      %6238 = vmatprep.subr.bf16.mxu0 %v6012
      %6239 = vmatpush1.bf16.msra.mxu0 %v6011
      %6240 = vmatprep.subr.bf16.mxu0 %v6008
      %6241 = vmatpush1.bf16.msra.mxu0 %v6007
      %6242 = vmatprep.subr.bf16.mxu0 %v6004
      %6243 = vmatpush1.bf16.msra.mxu0 %v6003
      %6244 = vmatprep.subr.bf16.mxu0 %v6000
      %6245 = vmatpush1.bf16.msra.mxu0 %v5999
      %6246 = vmatprep.subr.bf16.mxu0 %v5996
      %6247 = vmatpush1.bf16.msra.mxu0 %v5995
      %6248 = vmatprep.subr.bf16.mxu0 %v5992
      %6249 = vmatpush1.bf16.msra.mxu0 %v5991
      %6250 = vmatprep.subr.bf16.mxu0 %v5988
      %6251 = vmatpush1.bf16.msra.mxu0 %v5987
      %6252 = vmatprep.subr.bf16.mxu0 %v6048
      %6253 = vmatpush2.bf16.msra.mxu0 %v6047
      %6254 = vmatprep.subr.bf16.mxu0 %v6044
      %6255 = vmatpush2.bf16.msra.mxu0 %v6043
      %6256 = vmatprep.subr.bf16.mxu0 %v6040
      %6257 = vmatpush2.bf16.msra.mxu0 %v6039
      %6258 = vmatprep.subr.bf16.mxu0 %v6036
      %6259 = vmatpush2.bf16.msra.mxu0 %v6035
      %6260 = vmatprep.subr.bf16.mxu0 %v6032
      %6261 = vmatpush2.bf16.msra.mxu0 %v6031
      %6262 = vmatprep.subr.bf16.mxu0 %v6028
      %6263 = vmatpush2.bf16.msra.mxu0 %v6027
      %6264 = vmatprep.subr.bf16.mxu0 %v6024
      %6265 = vmatpush2.bf16.msra.mxu0 %v6023
      %6266 = vmatprep.subr.bf16.mxu0 %v6020
      %6267 = vmatpush2.bf16.msra.mxu0 %v6019
      %6268 = vmatprep.mubr.bf16.mxu0 %v5742
      %6269 = vmatmul.mubr.bf16.gmra.mxu0 %v5739
      %v6270 = vpop.f32.mrf.mxu0
      %v6271 = vadd.f32 0.0, %v6270
      %v6272 = vpop.f32.mrf.mxu0
      %v6273 = vadd.f32 0.0, %v6272
      %v6274 = vpop.f32.mrf.mxu0
      %v6275 = vadd.f32 0.0, %v6274
      %v6276 = vpop.f32.mrf.mxu0
      %v6277 = vadd.f32 0.0, %v6276
      %6278 = vmatprep.mubr.bf16.mxu0 %v5746
      %6279 = vmatmul.mubr.bf16.gmra.mxu0 %v5744
      %v6280 = vpop.f32.mrf.mxu0
      %v6281 = vadd.f32 0.0, %v6280
      %v6282 = vpop.f32.mrf.mxu0
      %v6283 = vadd.f32 0.0, %v6282
      %v6284 = vpop.f32.mrf.mxu0
      %v6285 = vadd.f32 0.0, %v6284
      %v6286 = vpop.f32.mrf.mxu0
      %v6287 = vadd.f32 0.0, %v6286
      %6288 = vmatprep.mubr.bf16.mxu0 %v5750
      %6289 = vmatmul.mubr.bf16.gmra.mxu0 %v5748
      %v6290 = vpop.f32.mrf.mxu0
      %v6291 = vadd.f32 0.0, %v6290
      %v6292 = vpop.f32.mrf.mxu0
      %v6293 = vadd.f32 0.0, %v6292
      %v6294 = vpop.f32.mrf.mxu0
      %v6295 = vadd.f32 0.0, %v6294
      %v6296 = vpop.f32.mrf.mxu0
      %v6297 = vadd.f32 0.0, %v6296
      %6298 = vmatprep.mubr.bf16.mxu0 %v5754
      %6299 = vmatmul.mubr.bf16.gmra.mxu0 %v5752
      %v6300 = vpop.f32.mrf.mxu0
      %v6301 = vadd.f32 0.0, %v6300
      %v6302 = vpop.f32.mrf.mxu0
      %v6303 = vadd.f32 0.0, %v6302
      %v6304 = vpop.f32.mrf.mxu0
      %v6305 = vadd.f32 0.0, %v6304
      %v6306 = vpop.f32.mrf.mxu0
      %v6307 = vadd.f32 0.0, %v6306
      %6308 = vmatprep.mubr.bf16.mxu0 %v5758
      %6309 = vmatmul.mubr.bf16.gmra.mxu0 %v5756
      %v6310 = vpop.f32.mrf.mxu0
      %v6311 = vadd.f32 0.0, %v6310
      %v6312 = vpop.f32.mrf.mxu0
      %v6313 = vadd.f32 0.0, %v6312
      %v6314 = vpop.f32.mrf.mxu0
      %v6315 = vadd.f32 0.0, %v6314
      %v6316 = vpop.f32.mrf.mxu0
      %v6317 = vadd.f32 0.0, %v6316
      %6318 = vmatprep.mubr.bf16.mxu0 %v5762
      %6319 = vmatmul.mubr.bf16.gmra.mxu0 %v5760
      %v6320 = vpop.f32.mrf.mxu0
      %v6321 = vadd.f32 0.0, %v6320
      %v6322 = vpop.f32.mrf.mxu0
      %v6323 = vadd.f32 0.0, %v6322
      %v6324 = vpop.f32.mrf.mxu0
      %v6325 = vadd.f32 0.0, %v6324
      %v6326 = vpop.f32.mrf.mxu0
      %v6327 = vadd.f32 0.0, %v6326
      %6328 = vmatprep.mubr.bf16.mxu0 %v5766
      %6329 = vmatmul.mubr.bf16.gmra.mxu0 %v5764
      %v6330 = vpop.f32.mrf.mxu0
      %v6331 = vadd.f32 0.0, %v6330
      %v6332 = vpop.f32.mrf.mxu0
      %v6333 = vadd.f32 0.0, %v6332
      %v6334 = vpop.f32.mrf.mxu0
      %v6335 = vadd.f32 0.0, %v6334
      %v6336 = vpop.f32.mrf.mxu0
      %v6337 = vadd.f32 0.0, %v6336
      %6338 = vmatprep.mubr.bf16.mxu0 %v5770
      %6339 = vmatmul.mubr.bf16.gmra.mxu0 %v5768
      %v6340 = vpop.f32.mrf.mxu0
      %v6341 = vadd.f32 0.0, %v6340
      %v6342 = vpop.f32.mrf.mxu0
      %v6343 = vadd.f32 0.0, %v6342
      %v6344 = vpop.f32.mrf.mxu0
      %v6345 = vadd.f32 0.0, %v6344
      %v6346 = vpop.f32.mrf.mxu0
      %v6347 = vadd.f32 0.0, %v6346
      %6348 = vmatprep.mubr.bf16.mxu0 %v5774
      %6349 = vmatmul.mubr.bf16.gmra.mxu0 %v5772
      %v6350 = vpop.f32.mrf.mxu0
      %v6351 = vadd.f32 0.0, %v6350
      %v6352 = vpop.f32.mrf.mxu0
      %v6353 = vadd.f32 0.0, %v6352
      %v6354 = vpop.f32.mrf.mxu0
      %v6355 = vadd.f32 0.0, %v6354
      %v6356 = vpop.f32.mrf.mxu0
      %v6357 = vadd.f32 0.0, %v6356
      %6358 = vdwg.mxu0
      %v6359 = vadd.f32 %v5440, %v6148
      %v6360 = vadd.f32 %v5442, %v6150
      %v6361 = vadd.f32 %v5563, %v6271
      %v6362 = vadd.f32 %v5565, %v6273
      %v6363 = vadd.f32 %v5444, %v6152
      %v6364 = vadd.f32 %v5446, %v6154
      %v6365 = vadd.f32 %v5567, %v6275
      %v6366 = vadd.f32 %v5569, %v6277
      %v6367 = vadd.f32 %v5450, %v6158
      %v6368 = vadd.f32 %v5452, %v6160
      %v6369 = vadd.f32 %v5573, %v6281
      %v6370 = vadd.f32 %v5575, %v6283
      %v6371 = vadd.f32 %v5454, %v6162
      %v6372 = vadd.f32 %v5456, %v6164
      %v6373 = vadd.f32 %v5577, %v6285
      %v6374 = vadd.f32 %v5579, %v6287
      %v6375 = vadd.f32 %v5460, %v6168
      %v6376 = vadd.f32 %v5462, %v6170
      %v6377 = vadd.f32 %v5583, %v6291
      %v6378 = vadd.f32 %v5585, %v6293
      %v6379 = vadd.f32 %v5464, %v6172
      %v6380 = vadd.f32 %v5466, %v6174
      %v6381 = vadd.f32 %v5587, %v6295
      %v6382 = vadd.f32 %v5589, %v6297
      %v6383 = vadd.f32 %v5470, %v6178
      %v6384 = vadd.f32 %v5472, %v6180
      %v6385 = vadd.f32 %v5593, %v6301
      %v6386 = vadd.f32 %v5595, %v6303
      %v6387 = vadd.f32 %v5474, %v6182
      %v6388 = vadd.f32 %v5476, %v6184
      %v6389 = vadd.f32 %v5597, %v6305
      %v6390 = vadd.f32 %v5599, %v6307
      %v6391 = vadd.f32 %v5480, %v6188
      %v6392 = vadd.f32 %v5482, %v6190
      %v6393 = vadd.f32 %v5603, %v6311
      %v6394 = vadd.f32 %v5605, %v6313
      %v6395 = vadd.f32 %v5484, %v6192
      %v6396 = vadd.f32 %v5486, %v6194
      %v6397 = vadd.f32 %v5607, %v6315
      %v6398 = vadd.f32 %v5609, %v6317
      %v6399 = vadd.f32 %v5490, %v6198
      %v6400 = vadd.f32 %v5492, %v6200
      %v6401 = vadd.f32 %v5613, %v6321
      %v6402 = vadd.f32 %v5615, %v6323
      %v6403 = vadd.f32 %v5494, %v6202
      %v6404 = vadd.f32 %v5496, %v6204
      %v6405 = vadd.f32 %v5617, %v6325
      %v6406 = vadd.f32 %v5619, %v6327
      %v6407 = vadd.f32 %v5500, %v6208
      %v6408 = vadd.f32 %v5502, %v6210
      %v6409 = vadd.f32 %v5623, %v6331
      %v6410 = vadd.f32 %v5625, %v6333
      %v6411 = vadd.f32 %v5504, %v6212
      %v6412 = vadd.f32 %v5506, %v6214
      %v6413 = vadd.f32 %v5627, %v6335
      %v6414 = vadd.f32 %v5629, %v6337
      %v6415 = vadd.f32 %v5510, %v6218
      %v6416 = vadd.f32 %v5512, %v6220
      %v6417 = vadd.f32 %v5633, %v6341
      %v6418 = vadd.f32 %v5635, %v6343
      %v6419 = vadd.f32 %v5514, %v6222
      %v6420 = vadd.f32 %v5516, %v6224
      %v6421 = vadd.f32 %v5637, %v6345
      %v6422 = vadd.f32 %v5639, %v6347
      %v6423 = vadd.f32 %v5520, %v6228
      %v6424 = vadd.f32 %v5522, %v6230
      %v6425 = vadd.f32 %v5643, %v6351
      %v6426 = vadd.f32 %v5645, %v6353
      %v6427 = vadd.f32 %v5524, %v6232
      %v6428 = vadd.f32 %v5526, %v6234
      %v6429 = vadd.f32 %v5647, %v6355
      %v6430 = vadd.f32 %v5649, %v6357
      %s6431 = scalar_lea.vmem %s4, 1536
      %v6432 = vld [vmem:[%s6431] sm:$0xff]
      %v6433 = vld [vmem:[%s6431 + $0x8] sm:$0xff]
      %v6434 = vld [vmem:[%s6431 + $0x10] sm:$0xff]
      %v6435 = vld [vmem:[%s6431 + $0x18] sm:$0xff]
      %v6436 = vld [vmem:[%s6431 + $0x20] sm:$0xff]
      %v6437 = vld [vmem:[%s6431 + $0x28] sm:$0xff]
      %v6438 = vld [vmem:[%s6431 + $0x30] sm:$0xff]
      %v6439 = vld [vmem:[%s6431 + $0x38] sm:$0xff]
      %v6440 = vld [vmem:[%s6431 + $0x40] sm:$0xff]
      %v6441 = vld [vmem:[%s6431 + $0x48] sm:$0xff]
      %v6442 = vld [vmem:[%s6431 + $0x50] sm:$0xff]
      %v6443 = vld [vmem:[%s6431 + $0x58] sm:$0xff]
      %v6444 = vld [vmem:[%s6431 + $0x60] sm:$0xff]
      %v6445 = vld [vmem:[%s6431 + $0x68] sm:$0xff]
      %v6446 = vld [vmem:[%s6431 + $0x70] sm:$0xff]
      %v6447 = vld [vmem:[%s6431 + $0x78] sm:$0xff]
      %v6448 = vld [vmem:[%s6431 + $0x80] sm:$0xff]
      %v6449 = vld [vmem:[%s6431 + $0x88] sm:$0xff]
      %v6450 = vld [vmem:[%s6431 + $0x90] sm:$0xff]
      %v6451 = vld [vmem:[%s6431 + $0x98] sm:$0xff]
      %v6452 = vld [vmem:[%s6431 + $0xa0] sm:$0xff]
      %v6453 = vld [vmem:[%s6431 + $0xa8] sm:$0xff]
      %v6454 = vld [vmem:[%s6431 + $0xb0] sm:$0xff]
      %v6455 = vld [vmem:[%s6431 + $0xb8] sm:$0xff]
      %v6456 = vld [vmem:[%s6431 + $0xc0] sm:$0xff]
      %v6457 = vld [vmem:[%s6431 + $0xc8] sm:$0xff]
      %v6458 = vld [vmem:[%s6431 + $0xd0] sm:$0xff]
      %v6459 = vld [vmem:[%s6431 + $0xd8] sm:$0xff]
      %v6460 = vld [vmem:[%s6431 + $0xe0] sm:$0xff]
      %v6461 = vld [vmem:[%s6431 + $0xe8] sm:$0xff]
      %v6462 = vld [vmem:[%s6431 + $0xf0] sm:$0xff]
      %v6463 = vld [vmem:[%s6431 + $0xf8] sm:$0xff]
      %v6464 = vld [vmem:[%s6431 + $0x100] sm:$0xff]
      %v6465 = vld [vmem:[%s6431 + $0x108] sm:$0xff]
      %v6466 = vld [vmem:[%s6431 + $0x110] sm:$0xff]
      %v6467 = vld [vmem:[%s6431 + $0x118] sm:$0xff]
      %v6468 = vld [vmem:[%s6431 + $0x120] sm:$0xff]
      %v6469 = vld [vmem:[%s6431 + $0x128] sm:$0xff]
      %v6470 = vld [vmem:[%s6431 + $0x130] sm:$0xff]
      %v6471 = vld [vmem:[%s6431 + $0x138] sm:$0xff]
      %v6472 = vld [vmem:[%s6431 + $0x140] sm:$0xff]
      %v6473 = vld [vmem:[%s6431 + $0x148] sm:$0xff]
      %v6474 = vld [vmem:[%s6431 + $0x150] sm:$0xff]
      %v6475 = vld [vmem:[%s6431 + $0x158] sm:$0xff]
      %v6476 = vld [vmem:[%s6431 + $0x160] sm:$0xff]
      %v6477 = vld [vmem:[%s6431 + $0x168] sm:$0xff]
      %v6478 = vld [vmem:[%s6431 + $0x170] sm:$0xff]
      %v6479 = vld [vmem:[%s6431 + $0x178] sm:$0xff]
      %v6480 = vld [vmem:[%s6431 + $0x180] sm:$0xff]
      %v6481 = vld [vmem:[%s6431 + $0x188] sm:$0xff]
      %v6482 = vld [vmem:[%s6431 + $0x190] sm:$0xff]
      %v6483 = vld [vmem:[%s6431 + $0x198] sm:$0xff]
      %v6484 = vld [vmem:[%s6431 + $0x1a0] sm:$0xff]
      %v6485 = vld [vmem:[%s6431 + $0x1a8] sm:$0xff]
      %v6486 = vld [vmem:[%s6431 + $0x1b0] sm:$0xff]
      %v6487 = vld [vmem:[%s6431 + $0x1b8] sm:$0xff]
      %v6488 = vld [vmem:[%s6431 + $0x1c0] sm:$0xff]
      %v6489 = vld [vmem:[%s6431 + $0x1c8] sm:$0xff]
      %v6490 = vld [vmem:[%s6431 + $0x1d0] sm:$0xff]
      %v6491 = vld [vmem:[%s6431 + $0x1d8] sm:$0xff]
      %v6492 = vld [vmem:[%s6431 + $0x1e0] sm:$0xff]
      %v6493 = vld [vmem:[%s6431 + $0x1e8] sm:$0xff]
      %v6494 = vld [vmem:[%s6431 + $0x1f0] sm:$0xff]
      %v6495 = vld [vmem:[%s6431 + $0x1f8] sm:$0xff]
      %vm6496 = vsmask.f32 1280
      %v6497 = vrot.slane %v4360, 6
      %v6498 = vrot.slane %v4362, 7
      %v6499 = vor.u32 %v6497, %v6498
      %v6500 = vrot.slane %v4383, 6
      %v6501 = vrot.slane %v4367, 7
      %v6502 = vor.u32 %v6500, %v6501
      %v6503 = vsel %vm6496, %v6499, %v6502
      %v6504 = vrot.slane %v4372, 6
      %v6505 = vrot.slane %v4374, 7
      %v6506 = vor.u32 %v6504, %v6505
      %v6507 = vrot.slane %v4391, 6
      %v6508 = vrot.slane %v4379, 7
      %v6509 = vor.u32 %v6507, %v6508
      %v6510 = vsel %vm6496, %v6506, %v6509
      %v6511 = vrot.slane %v4399, 6
      %v6512 = vrot.slane %v4387, 7
      %v6513 = vor.u32 %v6511, %v6512
      %v6514 = vsel %vm6496, %v6502, %v6513
      %v6515 = vrot.slane %v4407, 6
      %v6516 = vrot.slane %v4395, 7
      %v6517 = vor.u32 %v6515, %v6516
      %v6518 = vsel %vm6496, %v6509, %v6517
      %v6519 = vrot.slane %v4415, 6
      %v6520 = vrot.slane %v4403, 7
      %v6521 = vor.u32 %v6519, %v6520
      %v6522 = vsel %vm6496, %v6513, %v6521
      %v6523 = vrot.slane %v4423, 6
      %v6524 = vrot.slane %v4411, 7
      %v6525 = vor.u32 %v6523, %v6524
      %v6526 = vsel %vm6496, %v6517, %v6525
      %v6527 = vrot.slane %v4431, 6
      %v6528 = vrot.slane %v4419, 7
      %v6529 = vor.u32 %v6527, %v6528
      %v6530 = vsel %vm6496, %v6521, %v6529
      %v6531 = vrot.slane %v4439, 6
      %v6532 = vrot.slane %v4427, 7
      %v6533 = vor.u32 %v6531, %v6532
      %v6534 = vsel %vm6496, %v6525, %v6533
      %v6535 = vrot.slane %v4447, 6
      %v6536 = vrot.slane %v4435, 7
      %v6537 = vor.u32 %v6535, %v6536
      %v6538 = vsel %vm6496, %v6529, %v6537
      %v6539 = vrot.slane %v4455, 6
      %v6540 = vrot.slane %v4443, 7
      %v6541 = vor.u32 %v6539, %v6540
      %v6542 = vsel %vm6496, %v6533, %v6541
      %v6543 = vrot.slane %v4463, 6
      %v6544 = vrot.slane %v4451, 7
      %v6545 = vor.u32 %v6543, %v6544
      %v6546 = vsel %vm6496, %v6537, %v6545
      %v6547 = vrot.slane %v4471, 6
      %v6548 = vrot.slane %v4459, 7
      %v6549 = vor.u32 %v6547, %v6548
      %v6550 = vsel %vm6496, %v6541, %v6549
      %v6551 = vrot.slane %v4479, 6
      %v6552 = vrot.slane %v4467, 7
      %v6553 = vor.u32 %v6551, %v6552
      %v6554 = vsel %vm6496, %v6545, %v6553
      %v6555 = vrot.slane %v4487, 6
      %v6556 = vrot.slane %v4475, 7
      %v6557 = vor.u32 %v6555, %v6556
      %v6558 = vsel %vm6496, %v6549, %v6557
      %v6559 = vrot.slane %v4495, 6
      %v6560 = vrot.slane %v4483, 7
      %v6561 = vor.u32 %v6559, %v6560
      %v6562 = vsel %vm6496, %v6553, %v6561
      %v6563 = vrot.slane %v4498, 6
      %v6564 = vrot.slane %v4491, 7
      %v6565 = vor.u32 %v6563, %v6564
      %v6566 = vsel %vm6496, %v6557, %v6565
      %v6568 = vshrl.u32 %v4225, 16
      %v6570 = vrot.slane %v6568, 6
      %v6571 = vshll.u32 %v4225, 16
      %v6573 = vrot.slane %v6571, 7
      %v6574 = vor.u32 %v6570, %v6573
      %v6575 = vsel %vm6496, %v6561, %v6574
      %v6577 = vshrl.u32 %v4226, 16
      %v6579 = vrot.slane %v6577, 6
      %v6580 = vshll.u32 %v4226, 16
      %v6582 = vrot.slane %v6580, 7
      %v6583 = vor.u32 %v6579, %v6582
      %v6584 = vsel %vm6496, %v6565, %v6583
      %v6667 = vunpack.c.l.b16 %v6432
      %v6668 = vunpack.c.h.b16 %v6432
      %v6669 = vunpack.c.l.b16 %v6433
      %v6670 = vunpack.c.h.b16 %v6433
      %v6671 = vunpack.c.l.b16 %v6434
      %v6672 = vunpack.c.h.b16 %v6434
      %v6673 = vunpack.c.l.b16 %v6435
      %v6674 = vunpack.c.h.b16 %v6435
      %v6675 = vunpack.c.l.b16 %v6436
      %v6676 = vunpack.c.h.b16 %v6436
      %v6677 = vunpack.c.l.b16 %v6437
      %v6678 = vunpack.c.h.b16 %v6437
      %v6679 = vunpack.c.l.b16 %v6438
      %v6680 = vunpack.c.h.b16 %v6438
      %v6681 = vunpack.c.l.b16 %v6439
      %v6682 = vunpack.c.h.b16 %v6439
      %v6683 = vunpack.c.l.b16 %v6440
      %v6684 = vunpack.c.h.b16 %v6440
      %v6685 = vunpack.c.l.b16 %v6441
      %v6686 = vunpack.c.h.b16 %v6441
      %v6687 = vunpack.c.l.b16 %v6442
      %v6688 = vunpack.c.h.b16 %v6442
      %v6689 = vunpack.c.l.b16 %v6443
      %v6690 = vunpack.c.h.b16 %v6443
      %v6691 = vunpack.c.l.b16 %v6444
      %v6692 = vunpack.c.h.b16 %v6444
      %v6693 = vunpack.c.l.b16 %v6445
      %v6694 = vunpack.c.h.b16 %v6445
      %v6695 = vunpack.c.l.b16 %v6446
      %v6696 = vunpack.c.h.b16 %v6446
      %v6697 = vunpack.c.l.b16 %v6447
      %v6698 = vunpack.c.h.b16 %v6447
      %v6699 = vunpack.c.l.b16 %v6448
      %v6700 = vunpack.c.h.b16 %v6448
      %v6701 = vunpack.c.l.b16 %v6449
      %v6702 = vunpack.c.h.b16 %v6449
      %v6703 = vunpack.c.l.b16 %v6450
      %v6704 = vunpack.c.h.b16 %v6450
      %v6705 = vunpack.c.l.b16 %v6451
      %v6706 = vunpack.c.h.b16 %v6451
      %v6707 = vunpack.c.l.b16 %v6452
      %v6708 = vunpack.c.h.b16 %v6452
      %v6709 = vunpack.c.l.b16 %v6453
      %v6710 = vunpack.c.h.b16 %v6453
      %v6711 = vunpack.c.l.b16 %v6454
      %v6712 = vunpack.c.h.b16 %v6454
      %v6713 = vunpack.c.l.b16 %v6455
      %v6714 = vunpack.c.h.b16 %v6455
      %v6715 = vunpack.c.l.b16 %v6456
      %v6716 = vunpack.c.h.b16 %v6456
      %v6717 = vunpack.c.l.b16 %v6457
      %v6718 = vunpack.c.h.b16 %v6457
      %v6719 = vunpack.c.l.b16 %v6458
      %v6720 = vunpack.c.h.b16 %v6458
      %v6721 = vunpack.c.l.b16 %v6459
      %v6722 = vunpack.c.h.b16 %v6459
      %v6723 = vunpack.c.l.b16 %v6460
      %v6724 = vunpack.c.h.b16 %v6460
      %v6725 = vunpack.c.l.b16 %v6461
      %v6726 = vunpack.c.h.b16 %v6461
      %v6727 = vunpack.c.l.b16 %v6462
      %v6728 = vunpack.c.h.b16 %v6462
      %v6729 = vunpack.c.l.b16 %v6463
      %v6730 = vunpack.c.h.b16 %v6463
      %v6731 = vunpack.c.l.b16 %v6464
      %v6732 = vunpack.c.h.b16 %v6464
      %v6733 = vunpack.c.l.b16 %v6465
      %v6734 = vunpack.c.h.b16 %v6465
      %v6735 = vunpack.c.l.b16 %v6466
      %v6736 = vunpack.c.h.b16 %v6466
      %v6737 = vunpack.c.l.b16 %v6467
      %v6738 = vunpack.c.h.b16 %v6467
      %v6739 = vunpack.c.l.b16 %v6468
      %v6740 = vunpack.c.h.b16 %v6468
      %v6741 = vunpack.c.l.b16 %v6469
      %v6742 = vunpack.c.h.b16 %v6469
      %v6743 = vunpack.c.l.b16 %v6470
      %v6744 = vunpack.c.h.b16 %v6470
      %v6745 = vunpack.c.l.b16 %v6471
      %v6746 = vunpack.c.h.b16 %v6471
      %v6747 = vunpack.c.l.b16 %v6472
      %v6748 = vunpack.c.h.b16 %v6472
      %v6749 = vunpack.c.l.b16 %v6473
      %v6750 = vunpack.c.h.b16 %v6473
      %v6751 = vunpack.c.l.b16 %v6474
      %v6752 = vunpack.c.h.b16 %v6474
      %v6753 = vunpack.c.l.b16 %v6475
      %v6754 = vunpack.c.h.b16 %v6475
      %v6755 = vunpack.c.l.b16 %v6476
      %v6756 = vunpack.c.h.b16 %v6476
      %v6757 = vunpack.c.l.b16 %v6477
      %v6758 = vunpack.c.h.b16 %v6477
      %v6759 = vunpack.c.l.b16 %v6478
      %v6760 = vunpack.c.h.b16 %v6478
      %v6761 = vunpack.c.l.b16 %v6479
      %v6762 = vunpack.c.h.b16 %v6479
      %v6763 = vunpack.c.l.b16 %v6480
      %v6764 = vunpack.c.h.b16 %v6480
      %v6765 = vunpack.c.l.b16 %v6481
      %v6766 = vunpack.c.h.b16 %v6481
      %v6767 = vunpack.c.l.b16 %v6482
      %v6768 = vunpack.c.h.b16 %v6482
      %v6769 = vunpack.c.l.b16 %v6483
      %v6770 = vunpack.c.h.b16 %v6483
      %v6771 = vunpack.c.l.b16 %v6484
      %v6772 = vunpack.c.h.b16 %v6484
      %v6773 = vunpack.c.l.b16 %v6485
      %v6774 = vunpack.c.h.b16 %v6485
      %v6775 = vunpack.c.l.b16 %v6486
      %v6776 = vunpack.c.h.b16 %v6486
      %v6777 = vunpack.c.l.b16 %v6487
      %v6778 = vunpack.c.h.b16 %v6487
      %v6779 = vunpack.c.l.b16 %v6488
      %v6780 = vunpack.c.h.b16 %v6488
      %v6781 = vunpack.c.l.b16 %v6489
      %v6782 = vunpack.c.h.b16 %v6489
      %v6783 = vunpack.c.l.b16 %v6490
      %v6784 = vunpack.c.h.b16 %v6490
      %v6785 = vunpack.c.l.b16 %v6491
      %v6786 = vunpack.c.h.b16 %v6491
      %v6787 = vunpack.c.l.b16 %v6492
      %v6788 = vunpack.c.h.b16 %v6492
      %v6789 = vunpack.c.l.b16 %v6493
      %v6790 = vunpack.c.h.b16 %v6493
      %v6791 = vunpack.c.l.b16 %v6494
      %v6792 = vunpack.c.h.b16 %v6494
      %v6793 = vunpack.c.l.b16 %v6495
      %v6794 = vunpack.c.h.b16 %v6495
      %v6795 = vpack.c.b16 %v6671, %v6667
      %v6796 = vpack.c.b16 %v6672, %v6668
      %v6797 = vpack.c.b16 %v6673, %v6669
      %v6798 = vpack.c.b16 %v6674, %v6670
      %v6799 = vpack.c.b16 %v6679, %v6675
      %v6800 = vpack.c.b16 %v6680, %v6676
      %v6801 = vpack.c.b16 %v6681, %v6677
      %v6802 = vpack.c.b16 %v6682, %v6678
      %v6803 = vpack.c.b16 %v6687, %v6683
      %v6804 = vpack.c.b16 %v6688, %v6684
      %v6805 = vpack.c.b16 %v6689, %v6685
      %v6806 = vpack.c.b16 %v6690, %v6686
      %v6807 = vpack.c.b16 %v6695, %v6691
      %v6808 = vpack.c.b16 %v6696, %v6692
      %v6809 = vpack.c.b16 %v6697, %v6693
      %v6810 = vpack.c.b16 %v6698, %v6694
      %v6811 = vpack.c.b16 %v6703, %v6699
      %v6812 = vpack.c.b16 %v6704, %v6700
      %v6813 = vpack.c.b16 %v6705, %v6701
      %v6814 = vpack.c.b16 %v6706, %v6702
      %v6815 = vpack.c.b16 %v6711, %v6707
      %v6816 = vpack.c.b16 %v6712, %v6708
      %v6817 = vpack.c.b16 %v6713, %v6709
      %v6818 = vpack.c.b16 %v6714, %v6710
      %v6819 = vpack.c.b16 %v6719, %v6715
      %v6820 = vpack.c.b16 %v6720, %v6716
      %v6821 = vpack.c.b16 %v6721, %v6717
      %v6822 = vpack.c.b16 %v6722, %v6718
      %v6823 = vpack.c.b16 %v6727, %v6723
      %v6824 = vpack.c.b16 %v6728, %v6724
      %v6825 = vpack.c.b16 %v6729, %v6725
      %v6826 = vpack.c.b16 %v6730, %v6726
      %v6827 = vpack.c.b16 %v6735, %v6731
      %v6828 = vpack.c.b16 %v6736, %v6732
      %v6829 = vpack.c.b16 %v6737, %v6733
      %v6830 = vpack.c.b16 %v6738, %v6734
      %v6831 = vpack.c.b16 %v6743, %v6739
      %v6832 = vpack.c.b16 %v6744, %v6740
      %v6833 = vpack.c.b16 %v6745, %v6741
      %v6834 = vpack.c.b16 %v6746, %v6742
      %v6835 = vpack.c.b16 %v6751, %v6747
      %v6836 = vpack.c.b16 %v6752, %v6748
      %v6837 = vpack.c.b16 %v6753, %v6749
      %v6838 = vpack.c.b16 %v6754, %v6750
      %v6839 = vpack.c.b16 %v6759, %v6755
      %v6840 = vpack.c.b16 %v6760, %v6756
      %v6841 = vpack.c.b16 %v6761, %v6757
      %v6842 = vpack.c.b16 %v6762, %v6758
      %v6843 = vpack.c.b16 %v6767, %v6763
      %v6844 = vpack.c.b16 %v6768, %v6764
      %v6845 = vpack.c.b16 %v6769, %v6765
      %v6846 = vpack.c.b16 %v6770, %v6766
      %v6847 = vpack.c.b16 %v6775, %v6771
      %v6848 = vpack.c.b16 %v6776, %v6772
      %v6849 = vpack.c.b16 %v6777, %v6773
      %v6850 = vpack.c.b16 %v6778, %v6774
      %v6851 = vpack.c.b16 %v6783, %v6779
      %v6852 = vpack.c.b16 %v6784, %v6780
      %v6853 = vpack.c.b16 %v6785, %v6781
      %v6854 = vpack.c.b16 %v6786, %v6782
      %v6855 = vpack.c.b16 %v6791, %v6787
      %v6856 = vpack.c.b16 %v6792, %v6788
      %v6857 = vpack.c.b16 %v6793, %v6789
      %v6858 = vpack.c.b16 %v6794, %v6790
      %6923 = vmatprep.subr.bf16.mxu0 %v6824
      %6924 = vmatpush1.bf16.msra.mxu0 %v6823
      %6925 = vmatprep.subr.bf16.mxu0 %v6820
      %6926 = vmatpush1.bf16.msra.mxu0 %v6819
      %6927 = vmatprep.subr.bf16.mxu0 %v6816
      %6928 = vmatpush1.bf16.msra.mxu0 %v6815
      %6929 = vmatprep.subr.bf16.mxu0 %v6812
      %6930 = vmatpush1.bf16.msra.mxu0 %v6811
      %6931 = vmatprep.subr.bf16.mxu0 %v6808
      %6932 = vmatpush1.bf16.msra.mxu0 %v6807
      %6933 = vmatprep.subr.bf16.mxu0 %v6804
      %6934 = vmatpush1.bf16.msra.mxu0 %v6803
      %6935 = vmatprep.subr.bf16.mxu0 %v6800
      %6936 = vmatpush1.bf16.msra.mxu0 %v6799
      %6937 = vmatprep.subr.bf16.mxu0 %v6796
      %6938 = vmatpush1.bf16.msra.mxu0 %v6795
      %6939 = vmatprep.subr.bf16.mxu0 %v6856
      %6940 = vmatpush2.bf16.msra.mxu0 %v6855
      %6941 = vmatprep.subr.bf16.mxu0 %v6852
      %6942 = vmatpush2.bf16.msra.mxu0 %v6851
      %6943 = vmatprep.subr.bf16.mxu0 %v6848
      %6944 = vmatpush2.bf16.msra.mxu0 %v6847
      %6945 = vmatprep.subr.bf16.mxu0 %v6844
      %6946 = vmatpush2.bf16.msra.mxu0 %v6843
      %6947 = vmatprep.subr.bf16.mxu0 %v6840
      %6948 = vmatpush2.bf16.msra.mxu0 %v6839
      %6949 = vmatprep.subr.bf16.mxu0 %v6836
      %6950 = vmatpush2.bf16.msra.mxu0 %v6835
      %6951 = vmatprep.subr.bf16.mxu0 %v6832
      %6952 = vmatpush2.bf16.msra.mxu0 %v6831
      %6953 = vmatprep.subr.bf16.mxu0 %v6828
      %6954 = vmatpush2.bf16.msra.mxu0 %v6827
      %6955 = vmatprep.mubr.bf16.mxu0 %v6510
      %6956 = vmatmul.mubr.bf16.gmra.mxu0 %v6503
      %v6957 = vpop.f32.mrf.mxu0
      %v6958 = vadd.f32 0.0, %v6957
      %v6959 = vpop.f32.mrf.mxu0
      %v6960 = vadd.f32 0.0, %v6959
      %v6961 = vpop.f32.mrf.mxu0
      %v6962 = vadd.f32 0.0, %v6961
      %v6963 = vpop.f32.mrf.mxu0
      %v6964 = vadd.f32 0.0, %v6963
      %6965 = vmatprep.mubr.bf16.mxu0 %v6518
      %6966 = vmatmul.mubr.bf16.gmra.mxu0 %v6514
      %v6967 = vpop.f32.mrf.mxu0
      %v6968 = vadd.f32 0.0, %v6967
      %v6969 = vpop.f32.mrf.mxu0
      %v6970 = vadd.f32 0.0, %v6969
      %v6971 = vpop.f32.mrf.mxu0
      %v6972 = vadd.f32 0.0, %v6971
      %v6973 = vpop.f32.mrf.mxu0
      %v6974 = vadd.f32 0.0, %v6973
      %6975 = vmatprep.mubr.bf16.mxu0 %v6526
      %6976 = vmatmul.mubr.bf16.gmra.mxu0 %v6522
      %v6977 = vpop.f32.mrf.mxu0
      %v6978 = vadd.f32 0.0, %v6977
      %v6979 = vpop.f32.mrf.mxu0
      %v6980 = vadd.f32 0.0, %v6979
      %v6981 = vpop.f32.mrf.mxu0
      %v6982 = vadd.f32 0.0, %v6981
      %v6983 = vpop.f32.mrf.mxu0
      %v6984 = vadd.f32 0.0, %v6983
      %6985 = vmatprep.mubr.bf16.mxu0 %v6534
      %6986 = vmatmul.mubr.bf16.gmra.mxu0 %v6530
      %v6987 = vpop.f32.mrf.mxu0
      %v6988 = vadd.f32 0.0, %v6987
      %v6989 = vpop.f32.mrf.mxu0
      %v6990 = vadd.f32 0.0, %v6989
      %v6991 = vpop.f32.mrf.mxu0
      %v6992 = vadd.f32 0.0, %v6991
      %v6993 = vpop.f32.mrf.mxu0
      %v6994 = vadd.f32 0.0, %v6993
      %6995 = vmatprep.mubr.bf16.mxu0 %v6542
      %6996 = vmatmul.mubr.bf16.gmra.mxu0 %v6538
      %v6997 = vpop.f32.mrf.mxu0
      %v6998 = vadd.f32 0.0, %v6997
      %v6999 = vpop.f32.mrf.mxu0
      %v7000 = vadd.f32 0.0, %v6999
      %v7001 = vpop.f32.mrf.mxu0
      %v7002 = vadd.f32 0.0, %v7001
      %v7003 = vpop.f32.mrf.mxu0
      %v7004 = vadd.f32 0.0, %v7003
      %7005 = vmatprep.mubr.bf16.mxu0 %v6550
      %7006 = vmatmul.mubr.bf16.gmra.mxu0 %v6546
      %v7007 = vpop.f32.mrf.mxu0
      %v7008 = vadd.f32 0.0, %v7007
      %v7009 = vpop.f32.mrf.mxu0
      %v7010 = vadd.f32 0.0, %v7009
      %v7011 = vpop.f32.mrf.mxu0
      %v7012 = vadd.f32 0.0, %v7011
      %v7013 = vpop.f32.mrf.mxu0
      %v7014 = vadd.f32 0.0, %v7013
      %7015 = vmatprep.mubr.bf16.mxu0 %v6558
      %7016 = vmatmul.mubr.bf16.gmra.mxu0 %v6554
      %v7017 = vpop.f32.mrf.mxu0
      %v7018 = vadd.f32 0.0, %v7017
      %v7019 = vpop.f32.mrf.mxu0
      %v7020 = vadd.f32 0.0, %v7019
      %v7021 = vpop.f32.mrf.mxu0
      %v7022 = vadd.f32 0.0, %v7021
      %v7023 = vpop.f32.mrf.mxu0
      %v7024 = vadd.f32 0.0, %v7023
      %7025 = vmatprep.mubr.bf16.mxu0 %v6566
      %7026 = vmatmul.mubr.bf16.gmra.mxu0 %v6562
      %v7027 = vpop.f32.mrf.mxu0
      %v7028 = vadd.f32 0.0, %v7027
      %v7029 = vpop.f32.mrf.mxu0
      %v7030 = vadd.f32 0.0, %v7029
      %v7031 = vpop.f32.mrf.mxu0
      %v7032 = vadd.f32 0.0, %v7031
      %v7033 = vpop.f32.mrf.mxu0
      %v7034 = vadd.f32 0.0, %v7033
      %7035 = vmatprep.mubr.bf16.mxu0 %v6584
      %7036 = vmatmul.mubr.bf16.gmra.mxu0 %v6575
      %v7037 = vpop.f32.mrf.mxu0
      %v7038 = vadd.f32 0.0, %v7037
      %v7039 = vpop.f32.mrf.mxu0
      %v7040 = vadd.f32 0.0, %v7039
      %v7041 = vpop.f32.mrf.mxu0
      %v7042 = vadd.f32 0.0, %v7041
      %v7043 = vpop.f32.mrf.mxu0
      %v7044 = vadd.f32 0.0, %v7043
      %7045 = vdwg.mxu0
      %7046 = vmatprep.subr.bf16.mxu0 %v6826
      %7047 = vmatpush1.bf16.msra.mxu0 %v6825
      %7048 = vmatprep.subr.bf16.mxu0 %v6822
      %7049 = vmatpush1.bf16.msra.mxu0 %v6821
      %7050 = vmatprep.subr.bf16.mxu0 %v6818
      %7051 = vmatpush1.bf16.msra.mxu0 %v6817
      %7052 = vmatprep.subr.bf16.mxu0 %v6814
      %7053 = vmatpush1.bf16.msra.mxu0 %v6813
      %7054 = vmatprep.subr.bf16.mxu0 %v6810
      %7055 = vmatpush1.bf16.msra.mxu0 %v6809
      %7056 = vmatprep.subr.bf16.mxu0 %v6806
      %7057 = vmatpush1.bf16.msra.mxu0 %v6805
      %7058 = vmatprep.subr.bf16.mxu0 %v6802
      %7059 = vmatpush1.bf16.msra.mxu0 %v6801
      %7060 = vmatprep.subr.bf16.mxu0 %v6798
      %7061 = vmatpush1.bf16.msra.mxu0 %v6797
      %7062 = vmatprep.subr.bf16.mxu0 %v6858
      %7063 = vmatpush2.bf16.msra.mxu0 %v6857
      %7064 = vmatprep.subr.bf16.mxu0 %v6854
      %7065 = vmatpush2.bf16.msra.mxu0 %v6853
      %7066 = vmatprep.subr.bf16.mxu0 %v6850
      %7067 = vmatpush2.bf16.msra.mxu0 %v6849
      %7068 = vmatprep.subr.bf16.mxu0 %v6846
      %7069 = vmatpush2.bf16.msra.mxu0 %v6845
      %7070 = vmatprep.subr.bf16.mxu0 %v6842
      %7071 = vmatpush2.bf16.msra.mxu0 %v6841
      %7072 = vmatprep.subr.bf16.mxu0 %v6838
      %7073 = vmatpush2.bf16.msra.mxu0 %v6837
      %7074 = vmatprep.subr.bf16.mxu0 %v6834
      %7075 = vmatpush2.bf16.msra.mxu0 %v6833
      %7076 = vmatprep.subr.bf16.mxu0 %v6830
      %7077 = vmatpush2.bf16.msra.mxu0 %v6829
      %7078 = vmatprep.mubr.bf16.mxu0 %v6510
      %7079 = vmatmul.mubr.bf16.gmra.mxu0 %v6503
      %v7080 = vpop.f32.mrf.mxu0
      %v7081 = vadd.f32 0.0, %v7080
      %v7082 = vpop.f32.mrf.mxu0
      %v7083 = vadd.f32 0.0, %v7082
      %v7084 = vpop.f32.mrf.mxu0
      %v7085 = vadd.f32 0.0, %v7084
      %v7086 = vpop.f32.mrf.mxu0
      %v7087 = vadd.f32 0.0, %v7086
      %7088 = vmatprep.mubr.bf16.mxu0 %v6518
      %7089 = vmatmul.mubr.bf16.gmra.mxu0 %v6514
      %v7090 = vpop.f32.mrf.mxu0
      %v7091 = vadd.f32 0.0, %v7090
      %v7092 = vpop.f32.mrf.mxu0
      %v7093 = vadd.f32 0.0, %v7092
      %v7094 = vpop.f32.mrf.mxu0
      %v7095 = vadd.f32 0.0, %v7094
      %v7096 = vpop.f32.mrf.mxu0
      %v7097 = vadd.f32 0.0, %v7096
      %7098 = vmatprep.mubr.bf16.mxu0 %v6526
      %7099 = vmatmul.mubr.bf16.gmra.mxu0 %v6522
      %v7100 = vpop.f32.mrf.mxu0
      %v7101 = vadd.f32 0.0, %v7100
      %v7102 = vpop.f32.mrf.mxu0
      %v7103 = vadd.f32 0.0, %v7102
      %v7104 = vpop.f32.mrf.mxu0
      %v7105 = vadd.f32 0.0, %v7104
      %v7106 = vpop.f32.mrf.mxu0
      %v7107 = vadd.f32 0.0, %v7106
      %7108 = vmatprep.mubr.bf16.mxu0 %v6534
      %7109 = vmatmul.mubr.bf16.gmra.mxu0 %v6530
      %v7110 = vpop.f32.mrf.mxu0
      %v7111 = vadd.f32 0.0, %v7110
      %v7112 = vpop.f32.mrf.mxu0
      %v7113 = vadd.f32 0.0, %v7112
      %v7114 = vpop.f32.mrf.mxu0
      %v7115 = vadd.f32 0.0, %v7114
      %v7116 = vpop.f32.mrf.mxu0
      %v7117 = vadd.f32 0.0, %v7116
      %7118 = vmatprep.mubr.bf16.mxu0 %v6542
      %7119 = vmatmul.mubr.bf16.gmra.mxu0 %v6538
      %v7120 = vpop.f32.mrf.mxu0
      %v7121 = vadd.f32 0.0, %v7120
      %v7122 = vpop.f32.mrf.mxu0
      %v7123 = vadd.f32 0.0, %v7122
      %v7124 = vpop.f32.mrf.mxu0
      %v7125 = vadd.f32 0.0, %v7124
      %v7126 = vpop.f32.mrf.mxu0
      %v7127 = vadd.f32 0.0, %v7126
      %7128 = vmatprep.mubr.bf16.mxu0 %v6550
      %7129 = vmatmul.mubr.bf16.gmra.mxu0 %v6546
      %v7130 = vpop.f32.mrf.mxu0
      %v7131 = vadd.f32 0.0, %v7130
      %v7132 = vpop.f32.mrf.mxu0
      %v7133 = vadd.f32 0.0, %v7132
      %v7134 = vpop.f32.mrf.mxu0
      %v7135 = vadd.f32 0.0, %v7134
      %v7136 = vpop.f32.mrf.mxu0
      %v7137 = vadd.f32 0.0, %v7136
      %7138 = vmatprep.mubr.bf16.mxu0 %v6558
      %7139 = vmatmul.mubr.bf16.gmra.mxu0 %v6554
      %v7140 = vpop.f32.mrf.mxu0
      %v7141 = vadd.f32 0.0, %v7140
      %v7142 = vpop.f32.mrf.mxu0
      %v7143 = vadd.f32 0.0, %v7142
      %v7144 = vpop.f32.mrf.mxu0
      %v7145 = vadd.f32 0.0, %v7144
      %v7146 = vpop.f32.mrf.mxu0
      %v7147 = vadd.f32 0.0, %v7146
      %7148 = vmatprep.mubr.bf16.mxu0 %v6566
      %7149 = vmatmul.mubr.bf16.gmra.mxu0 %v6562
      %v7150 = vpop.f32.mrf.mxu0
      %v7151 = vadd.f32 0.0, %v7150
      %v7152 = vpop.f32.mrf.mxu0
      %v7153 = vadd.f32 0.0, %v7152
      %v7154 = vpop.f32.mrf.mxu0
      %v7155 = vadd.f32 0.0, %v7154
      %v7156 = vpop.f32.mrf.mxu0
      %v7157 = vadd.f32 0.0, %v7156
      %7158 = vmatprep.mubr.bf16.mxu0 %v6584
      %7159 = vmatmul.mubr.bf16.gmra.mxu0 %v6575
      %v7160 = vpop.f32.mrf.mxu0
      %v7161 = vadd.f32 0.0, %v7160
      %v7162 = vpop.f32.mrf.mxu0
      %v7163 = vadd.f32 0.0, %v7162
      %v7164 = vpop.f32.mrf.mxu0
      %v7165 = vadd.f32 0.0, %v7164
      %v7166 = vpop.f32.mrf.mxu0
      %v7167 = vadd.f32 0.0, %v7166
      %7168 = vdwg.mxu0
      %v7169 = vadd.f32 %v6359, %v6958
      %v7170 = vadd.f32 %v6360, %v6960
      %v7171 = vadd.f32 %v6361, %v7081
      %v7172 = vadd.f32 %v6362, %v7083
      %v7173 = vadd.f32 %v6363, %v6962
      %v7174 = vadd.f32 %v6364, %v6964
      %v7175 = vadd.f32 %v6365, %v7085
      %v7176 = vadd.f32 %v6366, %v7087
      %v7177 = vadd.f32 %v6367, %v6968
      %v7178 = vadd.f32 %v6368, %v6970
      %v7179 = vadd.f32 %v6369, %v7091
      %v7180 = vadd.f32 %v6370, %v7093
      %v7181 = vadd.f32 %v6371, %v6972
      %v7182 = vadd.f32 %v6372, %v6974
      %v7183 = vadd.f32 %v6373, %v7095
      %v7184 = vadd.f32 %v6374, %v7097
      %v7185 = vadd.f32 %v6375, %v6978
      %v7186 = vadd.f32 %v6376, %v6980
      %v7187 = vadd.f32 %v6377, %v7101
      %v7188 = vadd.f32 %v6378, %v7103
      %v7189 = vadd.f32 %v6379, %v6982
      %v7190 = vadd.f32 %v6380, %v6984
      %v7191 = vadd.f32 %v6381, %v7105
      %v7192 = vadd.f32 %v6382, %v7107
      %v7193 = vadd.f32 %v6383, %v6988
      %v7194 = vadd.f32 %v6384, %v6990
      %v7195 = vadd.f32 %v6385, %v7111
      %v7196 = vadd.f32 %v6386, %v7113
      %v7197 = vadd.f32 %v6387, %v6992
      %v7198 = vadd.f32 %v6388, %v6994
      %v7199 = vadd.f32 %v6389, %v7115
      %v7200 = vadd.f32 %v6390, %v7117
      %v7201 = vadd.f32 %v6391, %v6998
      %v7202 = vadd.f32 %v6392, %v7000
      %v7203 = vadd.f32 %v6393, %v7121
      %v7204 = vadd.f32 %v6394, %v7123
      %v7205 = vadd.f32 %v6395, %v7002
      %v7206 = vadd.f32 %v6396, %v7004
      %v7207 = vadd.f32 %v6397, %v7125
      %v7208 = vadd.f32 %v6398, %v7127
      %v7209 = vadd.f32 %v6399, %v7008
      %v7210 = vadd.f32 %v6400, %v7010
      %v7211 = vadd.f32 %v6401, %v7131
      %v7212 = vadd.f32 %v6402, %v7133
      %v7213 = vadd.f32 %v6403, %v7012
      %v7214 = vadd.f32 %v6404, %v7014
      %v7215 = vadd.f32 %v6405, %v7135
      %v7216 = vadd.f32 %v6406, %v7137
      %v7217 = vadd.f32 %v6407, %v7018
      %v7218 = vadd.f32 %v6408, %v7020
      %v7219 = vadd.f32 %v6409, %v7141
      %v7220 = vadd.f32 %v6410, %v7143
      %v7221 = vadd.f32 %v6411, %v7022
      %v7222 = vadd.f32 %v6412, %v7024
      %v7223 = vadd.f32 %v6413, %v7145
      %v7224 = vadd.f32 %v6414, %v7147
      %v7225 = vadd.f32 %v6415, %v7028
      %v7226 = vadd.f32 %v6416, %v7030
      %v7227 = vadd.f32 %v6417, %v7151
      %v7228 = vadd.f32 %v6418, %v7153
      %v7229 = vadd.f32 %v6419, %v7032
      %v7230 = vadd.f32 %v6420, %v7034
      %v7231 = vadd.f32 %v6421, %v7155
      %v7232 = vadd.f32 %v6422, %v7157
      %v7233 = vadd.f32 %v6423, %v7038
      %v7234 = vadd.f32 %v6424, %v7040
      %v7235 = vadd.f32 %v6425, %v7161
      %v7236 = vadd.f32 %v6426, %v7163
      %v7237 = vadd.f32 %v6427, %v7042
      %v7238 = vadd.f32 %v6428, %v7044
      %v7239 = vadd.f32 %v6429, %v7165
      %v7240 = vadd.f32 %v6430, %v7167
      %s7241 = scalar_lea.vmem %s4, 2048
      %v7242 = vld [vmem:[%s7241] sm:$0xff]
      %v7243 = vld [vmem:[%s7241 + $0x8] sm:$0xff]
      %v7244 = vld [vmem:[%s7241 + $0x10] sm:$0xff]
      %v7245 = vld [vmem:[%s7241 + $0x18] sm:$0xff]
      %v7246 = vld [vmem:[%s7241 + $0x20] sm:$0xff]
      %v7247 = vld [vmem:[%s7241 + $0x28] sm:$0xff]
      %v7248 = vld [vmem:[%s7241 + $0x30] sm:$0xff]
      %v7249 = vld [vmem:[%s7241 + $0x38] sm:$0xff]
      %v7250 = vld [vmem:[%s7241 + $0x40] sm:$0xff]
      %v7251 = vld [vmem:[%s7241 + $0x48] sm:$0xff]
      %v7252 = vld [vmem:[%s7241 + $0x50] sm:$0xff]
      %v7253 = vld [vmem:[%s7241 + $0x58] sm:$0xff]
      %v7254 = vld [vmem:[%s7241 + $0x60] sm:$0xff]
      %v7255 = vld [vmem:[%s7241 + $0x68] sm:$0xff]
      %v7256 = vld [vmem:[%s7241 + $0x70] sm:$0xff]
      %v7257 = vld [vmem:[%s7241 + $0x78] sm:$0xff]
      %v7258 = vld [vmem:[%s7241 + $0x80] sm:$0xff]
      %v7259 = vld [vmem:[%s7241 + $0x88] sm:$0xff]
      %v7260 = vld [vmem:[%s7241 + $0x90] sm:$0xff]
      %v7261 = vld [vmem:[%s7241 + $0x98] sm:$0xff]
      %v7262 = vld [vmem:[%s7241 + $0xa0] sm:$0xff]
      %v7263 = vld [vmem:[%s7241 + $0xa8] sm:$0xff]
      %v7264 = vld [vmem:[%s7241 + $0xb0] sm:$0xff]
      %v7265 = vld [vmem:[%s7241 + $0xb8] sm:$0xff]
      %v7266 = vld [vmem:[%s7241 + $0xc0] sm:$0xff]
      %v7267 = vld [vmem:[%s7241 + $0xc8] sm:$0xff]
      %v7268 = vld [vmem:[%s7241 + $0xd0] sm:$0xff]
      %v7269 = vld [vmem:[%s7241 + $0xd8] sm:$0xff]
      %v7270 = vld [vmem:[%s7241 + $0xe0] sm:$0xff]
      %v7271 = vld [vmem:[%s7241 + $0xe8] sm:$0xff]
      %v7272 = vld [vmem:[%s7241 + $0xf0] sm:$0xff]
      %v7273 = vld [vmem:[%s7241 + $0xf8] sm:$0xff]
      %v7274 = vld [vmem:[%s7241 + $0x100] sm:$0xff]
      %v7275 = vld [vmem:[%s7241 + $0x108] sm:$0xff]
      %v7276 = vld [vmem:[%s7241 + $0x110] sm:$0xff]
      %v7277 = vld [vmem:[%s7241 + $0x118] sm:$0xff]
      %v7278 = vld [vmem:[%s7241 + $0x120] sm:$0xff]
      %v7279 = vld [vmem:[%s7241 + $0x128] sm:$0xff]
      %v7280 = vld [vmem:[%s7241 + $0x130] sm:$0xff]
      %v7281 = vld [vmem:[%s7241 + $0x138] sm:$0xff]
      %v7282 = vld [vmem:[%s7241 + $0x140] sm:$0xff]
      %v7283 = vld [vmem:[%s7241 + $0x148] sm:$0xff]
      %v7284 = vld [vmem:[%s7241 + $0x150] sm:$0xff]
      %v7285 = vld [vmem:[%s7241 + $0x158] sm:$0xff]
      %v7286 = vld [vmem:[%s7241 + $0x160] sm:$0xff]
      %v7287 = vld [vmem:[%s7241 + $0x168] sm:$0xff]
      %v7288 = vld [vmem:[%s7241 + $0x170] sm:$0xff]
      %v7289 = vld [vmem:[%s7241 + $0x178] sm:$0xff]
      %v7290 = vld [vmem:[%s7241 + $0x180] sm:$0xff]
      %v7291 = vld [vmem:[%s7241 + $0x188] sm:$0xff]
      %v7292 = vld [vmem:[%s7241 + $0x190] sm:$0xff]
      %v7293 = vld [vmem:[%s7241 + $0x198] sm:$0xff]
      %v7294 = vld [vmem:[%s7241 + $0x1a0] sm:$0xff]
      %v7295 = vld [vmem:[%s7241 + $0x1a8] sm:$0xff]
      %v7296 = vld [vmem:[%s7241 + $0x1b0] sm:$0xff]
      %v7297 = vld [vmem:[%s7241 + $0x1b8] sm:$0xff]
      %v7298 = vld [vmem:[%s7241 + $0x1c0] sm:$0xff]
      %v7299 = vld [vmem:[%s7241 + $0x1c8] sm:$0xff]
      %v7300 = vld [vmem:[%s7241 + $0x1d0] sm:$0xff]
      %v7301 = vld [vmem:[%s7241 + $0x1d8] sm:$0xff]
      %v7302 = vld [vmem:[%s7241 + $0x1e0] sm:$0xff]
      %v7303 = vld [vmem:[%s7241 + $0x1e8] sm:$0xff]
      %v7304 = vld [vmem:[%s7241 + $0x1f0] sm:$0xff]
      %v7305 = vld [vmem:[%s7241 + $0x1f8] sm:$0xff]
      %vm7306 = vcmask 1040384
      %v7307 = vrot.slane %v4207, 7
      %v7308 = vrot.slane %v4209, 7
      %v7309 = vsel %vm7306, %v7307, %v7308
      %v7310 = vrot.slane %v4208, 7
      %v7311 = vrot.slane %v4210, 7
      %v7312 = vsel %vm7306, %v7310, %v7311
      %v7313 = vrot.slane %v4211, 7
      %v7314 = vsel %vm7306, %v7308, %v7313
      %v7315 = vrot.slane %v4212, 7
      %v7316 = vsel %vm7306, %v7311, %v7315
      %v7317 = vrot.slane %v4213, 7
      %v7318 = vsel %vm7306, %v7313, %v7317
      %v7319 = vrot.slane %v4214, 7
      %v7320 = vsel %vm7306, %v7315, %v7319
      %v7321 = vrot.slane %v4215, 7
      %v7322 = vsel %vm7306, %v7317, %v7321
      %v7323 = vrot.slane %v4216, 7
      %v7324 = vsel %vm7306, %v7319, %v7323
      %v7325 = vrot.slane %v4217, 7
      %v7326 = vsel %vm7306, %v7321, %v7325
      %v7327 = vrot.slane %v4218, 7
      %v7328 = vsel %vm7306, %v7323, %v7327
      %v7329 = vrot.slane %v4219, 7
      %v7330 = vsel %vm7306, %v7325, %v7329
      %v7331 = vrot.slane %v4220, 7
      %v7332 = vsel %vm7306, %v7327, %v7331
      %v7333 = vrot.slane %v4221, 7
      %v7334 = vsel %vm7306, %v7329, %v7333
      %v7335 = vrot.slane %v4222, 7
      %v7336 = vsel %vm7306, %v7331, %v7335
      %v7337 = vrot.slane %v4223, 7
      %v7338 = vsel %vm7306, %v7333, %v7337
      %v7339 = vrot.slane %v4224, 7
      %v7340 = vsel %vm7306, %v7335, %v7339
      %v7341 = vrot.slane %v4225, 7
      %v7342 = vsel %vm7306, %v7337, %v7341
      %v7343 = vrot.slane %v4226, 7
      %v7344 = vsel %vm7306, %v7339, %v7343
      %v7427 = vunpack.c.l.b16 %v7242
      %v7428 = vunpack.c.h.b16 %v7242
      %v7429 = vunpack.c.l.b16 %v7243
      %v7430 = vunpack.c.h.b16 %v7243
      %v7431 = vunpack.c.l.b16 %v7244
      %v7432 = vunpack.c.h.b16 %v7244
      %v7433 = vunpack.c.l.b16 %v7245
      %v7434 = vunpack.c.h.b16 %v7245
      %v7435 = vunpack.c.l.b16 %v7246
      %v7436 = vunpack.c.h.b16 %v7246
      %v7437 = vunpack.c.l.b16 %v7247
      %v7438 = vunpack.c.h.b16 %v7247
      %v7439 = vunpack.c.l.b16 %v7248
      %v7440 = vunpack.c.h.b16 %v7248
      %v7441 = vunpack.c.l.b16 %v7249
      %v7442 = vunpack.c.h.b16 %v7249
      %v7443 = vunpack.c.l.b16 %v7250
      %v7444 = vunpack.c.h.b16 %v7250
      %v7445 = vunpack.c.l.b16 %v7251
      %v7446 = vunpack.c.h.b16 %v7251
      %v7447 = vunpack.c.l.b16 %v7252
      %v7448 = vunpack.c.h.b16 %v7252
      %v7449 = vunpack.c.l.b16 %v7253
      %v7450 = vunpack.c.h.b16 %v7253
      %v7451 = vunpack.c.l.b16 %v7254
      %v7452 = vunpack.c.h.b16 %v7254
      %v7453 = vunpack.c.l.b16 %v7255
      %v7454 = vunpack.c.h.b16 %v7255
      %v7455 = vunpack.c.l.b16 %v7256
      %v7456 = vunpack.c.h.b16 %v7256
      %v7457 = vunpack.c.l.b16 %v7257
      %v7458 = vunpack.c.h.b16 %v7257
      %v7459 = vunpack.c.l.b16 %v7258
      %v7460 = vunpack.c.h.b16 %v7258
      %v7461 = vunpack.c.l.b16 %v7259
      %v7462 = vunpack.c.h.b16 %v7259
      %v7463 = vunpack.c.l.b16 %v7260
      %v7464 = vunpack.c.h.b16 %v7260
      %v7465 = vunpack.c.l.b16 %v7261
      %v7466 = vunpack.c.h.b16 %v7261
      %v7467 = vunpack.c.l.b16 %v7262
      %v7468 = vunpack.c.h.b16 %v7262
      %v7469 = vunpack.c.l.b16 %v7263
      %v7470 = vunpack.c.h.b16 %v7263
      %v7471 = vunpack.c.l.b16 %v7264
      %v7472 = vunpack.c.h.b16 %v7264
      %v7473 = vunpack.c.l.b16 %v7265
      %v7474 = vunpack.c.h.b16 %v7265
      %v7475 = vunpack.c.l.b16 %v7266
      %v7476 = vunpack.c.h.b16 %v7266
      %v7477 = vunpack.c.l.b16 %v7267
      %v7478 = vunpack.c.h.b16 %v7267
      %v7479 = vunpack.c.l.b16 %v7268
      %v7480 = vunpack.c.h.b16 %v7268
      %v7481 = vunpack.c.l.b16 %v7269
      %v7482 = vunpack.c.h.b16 %v7269
      %v7483 = vunpack.c.l.b16 %v7270
      %v7484 = vunpack.c.h.b16 %v7270
      %v7485 = vunpack.c.l.b16 %v7271
      %v7486 = vunpack.c.h.b16 %v7271
      %v7487 = vunpack.c.l.b16 %v7272
      %v7488 = vunpack.c.h.b16 %v7272
      %v7489 = vunpack.c.l.b16 %v7273
      %v7490 = vunpack.c.h.b16 %v7273
      %v7491 = vunpack.c.l.b16 %v7274
      %v7492 = vunpack.c.h.b16 %v7274
      %v7493 = vunpack.c.l.b16 %v7275
      %v7494 = vunpack.c.h.b16 %v7275
      %v7495 = vunpack.c.l.b16 %v7276
      %v7496 = vunpack.c.h.b16 %v7276
      %v7497 = vunpack.c.l.b16 %v7277
      %v7498 = vunpack.c.h.b16 %v7277
      %v7499 = vunpack.c.l.b16 %v7278
      %v7500 = vunpack.c.h.b16 %v7278
      %v7501 = vunpack.c.l.b16 %v7279
      %v7502 = vunpack.c.h.b16 %v7279
      %v7503 = vunpack.c.l.b16 %v7280
      %v7504 = vunpack.c.h.b16 %v7280
      %v7505 = vunpack.c.l.b16 %v7281
      %v7506 = vunpack.c.h.b16 %v7281
      %v7507 = vunpack.c.l.b16 %v7282
      %v7508 = vunpack.c.h.b16 %v7282
      %v7509 = vunpack.c.l.b16 %v7283
      %v7510 = vunpack.c.h.b16 %v7283
      %v7511 = vunpack.c.l.b16 %v7284
      %v7512 = vunpack.c.h.b16 %v7284
      %v7513 = vunpack.c.l.b16 %v7285
      %v7514 = vunpack.c.h.b16 %v7285
      %v7515 = vunpack.c.l.b16 %v7286
      %v7516 = vunpack.c.h.b16 %v7286
      %v7517 = vunpack.c.l.b16 %v7287
      %v7518 = vunpack.c.h.b16 %v7287
      %v7519 = vunpack.c.l.b16 %v7288
      %v7520 = vunpack.c.h.b16 %v7288
      %v7521 = vunpack.c.l.b16 %v7289
      %v7522 = vunpack.c.h.b16 %v7289
      %v7523 = vunpack.c.l.b16 %v7290
      %v7524 = vunpack.c.h.b16 %v7290
      %v7525 = vunpack.c.l.b16 %v7291
      %v7526 = vunpack.c.h.b16 %v7291
      %v7527 = vunpack.c.l.b16 %v7292
      %v7528 = vunpack.c.h.b16 %v7292
      %v7529 = vunpack.c.l.b16 %v7293
      %v7530 = vunpack.c.h.b16 %v7293
      %v7531 = vunpack.c.l.b16 %v7294
      %v7532 = vunpack.c.h.b16 %v7294
      %v7533 = vunpack.c.l.b16 %v7295
      %v7534 = vunpack.c.h.b16 %v7295
      %v7535 = vunpack.c.l.b16 %v7296
      %v7536 = vunpack.c.h.b16 %v7296
      %v7537 = vunpack.c.l.b16 %v7297
      %v7538 = vunpack.c.h.b16 %v7297
      %v7539 = vunpack.c.l.b16 %v7298
      %v7540 = vunpack.c.h.b16 %v7298
      %v7541 = vunpack.c.l.b16 %v7299
      %v7542 = vunpack.c.h.b16 %v7299
      %v7543 = vunpack.c.l.b16 %v7300
      %v7544 = vunpack.c.h.b16 %v7300
      %v7545 = vunpack.c.l.b16 %v7301
      %v7546 = vunpack.c.h.b16 %v7301
      %v7547 = vunpack.c.l.b16 %v7302
      %v7548 = vunpack.c.h.b16 %v7302
      %v7549 = vunpack.c.l.b16 %v7303
      %v7550 = vunpack.c.h.b16 %v7303
      %v7551 = vunpack.c.l.b16 %v7304
      %v7552 = vunpack.c.h.b16 %v7304
      %v7553 = vunpack.c.l.b16 %v7305
      %v7554 = vunpack.c.h.b16 %v7305
      %v7555 = vpack.c.b16 %v7431, %v7427
      %v7556 = vpack.c.b16 %v7432, %v7428
      %v7557 = vpack.c.b16 %v7433, %v7429
      %v7558 = vpack.c.b16 %v7434, %v7430
      %v7559 = vpack.c.b16 %v7439, %v7435
      %v7560 = vpack.c.b16 %v7440, %v7436
      %v7561 = vpack.c.b16 %v7441, %v7437
      %v7562 = vpack.c.b16 %v7442, %v7438
      %v7563 = vpack.c.b16 %v7447, %v7443
      %v7564 = vpack.c.b16 %v7448, %v7444
      %v7565 = vpack.c.b16 %v7449, %v7445
      %v7566 = vpack.c.b16 %v7450, %v7446
      %v7567 = vpack.c.b16 %v7455, %v7451
      %v7568 = vpack.c.b16 %v7456, %v7452
      %v7569 = vpack.c.b16 %v7457, %v7453
      %v7570 = vpack.c.b16 %v7458, %v7454
      %v7571 = vpack.c.b16 %v7463, %v7459
      %v7572 = vpack.c.b16 %v7464, %v7460
      %v7573 = vpack.c.b16 %v7465, %v7461
      %v7574 = vpack.c.b16 %v7466, %v7462
      %v7575 = vpack.c.b16 %v7471, %v7467
      %v7576 = vpack.c.b16 %v7472, %v7468
      %v7577 = vpack.c.b16 %v7473, %v7469
      %v7578 = vpack.c.b16 %v7474, %v7470
      %v7579 = vpack.c.b16 %v7479, %v7475
      %v7580 = vpack.c.b16 %v7480, %v7476
      %v7581 = vpack.c.b16 %v7481, %v7477
      %v7582 = vpack.c.b16 %v7482, %v7478
      %v7583 = vpack.c.b16 %v7487, %v7483
      %v7584 = vpack.c.b16 %v7488, %v7484
      %v7585 = vpack.c.b16 %v7489, %v7485
      %v7586 = vpack.c.b16 %v7490, %v7486
      %v7587 = vpack.c.b16 %v7495, %v7491
      %v7588 = vpack.c.b16 %v7496, %v7492
      %v7589 = vpack.c.b16 %v7497, %v7493
      %v7590 = vpack.c.b16 %v7498, %v7494
      %v7591 = vpack.c.b16 %v7503, %v7499
      %v7592 = vpack.c.b16 %v7504, %v7500
      %v7593 = vpack.c.b16 %v7505, %v7501
      %v7594 = vpack.c.b16 %v7506, %v7502
      %v7595 = vpack.c.b16 %v7511, %v7507
      %v7596 = vpack.c.b16 %v7512, %v7508
      %v7597 = vpack.c.b16 %v7513, %v7509
      %v7598 = vpack.c.b16 %v7514, %v7510
      %v7599 = vpack.c.b16 %v7519, %v7515
      %v7600 = vpack.c.b16 %v7520, %v7516
      %v7601 = vpack.c.b16 %v7521, %v7517
      %v7602 = vpack.c.b16 %v7522, %v7518
      %v7603 = vpack.c.b16 %v7527, %v7523
      %v7604 = vpack.c.b16 %v7528, %v7524
      %v7605 = vpack.c.b16 %v7529, %v7525
      %v7606 = vpack.c.b16 %v7530, %v7526
      %v7607 = vpack.c.b16 %v7535, %v7531
      %v7608 = vpack.c.b16 %v7536, %v7532
      %v7609 = vpack.c.b16 %v7537, %v7533
      %v7610 = vpack.c.b16 %v7538, %v7534
      %v7611 = vpack.c.b16 %v7543, %v7539
      %v7612 = vpack.c.b16 %v7544, %v7540
      %v7613 = vpack.c.b16 %v7545, %v7541
      %v7614 = vpack.c.b16 %v7546, %v7542
      %v7615 = vpack.c.b16 %v7551, %v7547
      %v7616 = vpack.c.b16 %v7552, %v7548
      %v7617 = vpack.c.b16 %v7553, %v7549
      %v7618 = vpack.c.b16 %v7554, %v7550
      %7683 = vmatprep.subr.bf16.mxu0 %v7584
      %7684 = vmatpush1.bf16.msra.mxu0 %v7583
      %7685 = vmatprep.subr.bf16.mxu0 %v7580
      %7686 = vmatpush1.bf16.msra.mxu0 %v7579
      %7687 = vmatprep.subr.bf16.mxu0 %v7576
      %7688 = vmatpush1.bf16.msra.mxu0 %v7575
      %7689 = vmatprep.subr.bf16.mxu0 %v7572
      %7690 = vmatpush1.bf16.msra.mxu0 %v7571
      %7691 = vmatprep.subr.bf16.mxu0 %v7568
      %7692 = vmatpush1.bf16.msra.mxu0 %v7567
      %7693 = vmatprep.subr.bf16.mxu0 %v7564
      %7694 = vmatpush1.bf16.msra.mxu0 %v7563
      %7695 = vmatprep.subr.bf16.mxu0 %v7560
      %7696 = vmatpush1.bf16.msra.mxu0 %v7559
      %7697 = vmatprep.subr.bf16.mxu0 %v7556
      %7698 = vmatpush1.bf16.msra.mxu0 %v7555
      %7699 = vmatprep.subr.bf16.mxu0 %v7616
      %7700 = vmatpush2.bf16.msra.mxu0 %v7615
      %7701 = vmatprep.subr.bf16.mxu0 %v7612
      %7702 = vmatpush2.bf16.msra.mxu0 %v7611
      %7703 = vmatprep.subr.bf16.mxu0 %v7608
      %7704 = vmatpush2.bf16.msra.mxu0 %v7607
      %7705 = vmatprep.subr.bf16.mxu0 %v7604
      %7706 = vmatpush2.bf16.msra.mxu0 %v7603
      %7707 = vmatprep.subr.bf16.mxu0 %v7600
      %7708 = vmatpush2.bf16.msra.mxu0 %v7599
      %7709 = vmatprep.subr.bf16.mxu0 %v7596
      %7710 = vmatpush2.bf16.msra.mxu0 %v7595
      %7711 = vmatprep.subr.bf16.mxu0 %v7592
      %7712 = vmatpush2.bf16.msra.mxu0 %v7591
      %7713 = vmatprep.subr.bf16.mxu0 %v7588
      %7714 = vmatpush2.bf16.msra.mxu0 %v7587
      %7715 = vmatprep.mubr.bf16.mxu0 %v7312
      %7716 = vmatmul.mubr.bf16.gmra.mxu0 %v7309
      %v7717 = vpop.f32.mrf.mxu0
      %v7718 = vadd.f32 0.0, %v7717
      %v7719 = vpop.f32.mrf.mxu0
      %v7720 = vadd.f32 0.0, %v7719
      %v7721 = vpop.f32.mrf.mxu0
      %v7722 = vadd.f32 0.0, %v7721
      %v7723 = vpop.f32.mrf.mxu0
      %v7724 = vadd.f32 0.0, %v7723
      %7725 = vmatprep.mubr.bf16.mxu0 %v7316
      %7726 = vmatmul.mubr.bf16.gmra.mxu0 %v7314
      %v7727 = vpop.f32.mrf.mxu0
      %v7728 = vadd.f32 0.0, %v7727
      %v7729 = vpop.f32.mrf.mxu0
      %v7730 = vadd.f32 0.0, %v7729
      %v7731 = vpop.f32.mrf.mxu0
      %v7732 = vadd.f32 0.0, %v7731
      %v7733 = vpop.f32.mrf.mxu0
      %v7734 = vadd.f32 0.0, %v7733
      %7735 = vmatprep.mubr.bf16.mxu0 %v7320
      %7736 = vmatmul.mubr.bf16.gmra.mxu0 %v7318
      %v7737 = vpop.f32.mrf.mxu0
      %v7738 = vadd.f32 0.0, %v7737
      %v7739 = vpop.f32.mrf.mxu0
      %v7740 = vadd.f32 0.0, %v7739
      %v7741 = vpop.f32.mrf.mxu0
      %v7742 = vadd.f32 0.0, %v7741
      %v7743 = vpop.f32.mrf.mxu0
      %v7744 = vadd.f32 0.0, %v7743
      %7745 = vmatprep.mubr.bf16.mxu0 %v7324
      %7746 = vmatmul.mubr.bf16.gmra.mxu0 %v7322
      %v7747 = vpop.f32.mrf.mxu0
      %v7748 = vadd.f32 0.0, %v7747
      %v7749 = vpop.f32.mrf.mxu0
      %v7750 = vadd.f32 0.0, %v7749
      %v7751 = vpop.f32.mrf.mxu0
      %v7752 = vadd.f32 0.0, %v7751
      %v7753 = vpop.f32.mrf.mxu0
      %v7754 = vadd.f32 0.0, %v7753
      %7755 = vmatprep.mubr.bf16.mxu0 %v7328
      %7756 = vmatmul.mubr.bf16.gmra.mxu0 %v7326
      %v7757 = vpop.f32.mrf.mxu0
      %v7758 = vadd.f32 0.0, %v7757
      %v7759 = vpop.f32.mrf.mxu0
      %v7760 = vadd.f32 0.0, %v7759
      %v7761 = vpop.f32.mrf.mxu0
      %v7762 = vadd.f32 0.0, %v7761
      %v7763 = vpop.f32.mrf.mxu0
      %v7764 = vadd.f32 0.0, %v7763
      %7765 = vmatprep.mubr.bf16.mxu0 %v7332
      %7766 = vmatmul.mubr.bf16.gmra.mxu0 %v7330
      %v7767 = vpop.f32.mrf.mxu0
      %v7768 = vadd.f32 0.0, %v7767
      %v7769 = vpop.f32.mrf.mxu0
      %v7770 = vadd.f32 0.0, %v7769
      %v7771 = vpop.f32.mrf.mxu0
      %v7772 = vadd.f32 0.0, %v7771
      %v7773 = vpop.f32.mrf.mxu0
      %v7774 = vadd.f32 0.0, %v7773
      %7775 = vmatprep.mubr.bf16.mxu0 %v7336
      %7776 = vmatmul.mubr.bf16.gmra.mxu0 %v7334
      %v7777 = vpop.f32.mrf.mxu0
      %v7778 = vadd.f32 0.0, %v7777
      %v7779 = vpop.f32.mrf.mxu0
      %v7780 = vadd.f32 0.0, %v7779
      %v7781 = vpop.f32.mrf.mxu0
      %v7782 = vadd.f32 0.0, %v7781
      %v7783 = vpop.f32.mrf.mxu0
      %v7784 = vadd.f32 0.0, %v7783
      %7785 = vmatprep.mubr.bf16.mxu0 %v7340
      %7786 = vmatmul.mubr.bf16.gmra.mxu0 %v7338
      %v7787 = vpop.f32.mrf.mxu0
      %v7788 = vadd.f32 0.0, %v7787
      %v7789 = vpop.f32.mrf.mxu0
      %v7790 = vadd.f32 0.0, %v7789
      %v7791 = vpop.f32.mrf.mxu0
      %v7792 = vadd.f32 0.0, %v7791
      %v7793 = vpop.f32.mrf.mxu0
      %v7794 = vadd.f32 0.0, %v7793
      %7795 = vmatprep.mubr.bf16.mxu0 %v7344
      %7796 = vmatmul.mubr.bf16.gmra.mxu0 %v7342
      %v7797 = vpop.f32.mrf.mxu0
      %v7798 = vadd.f32 0.0, %v7797
      %v7799 = vpop.f32.mrf.mxu0
      %v7800 = vadd.f32 0.0, %v7799
      %v7801 = vpop.f32.mrf.mxu0
      %v7802 = vadd.f32 0.0, %v7801
      %v7803 = vpop.f32.mrf.mxu0
      %v7804 = vadd.f32 0.0, %v7803
      %7805 = vdwg.mxu0
      %7806 = vmatprep.subr.bf16.mxu0 %v7586
      %7807 = vmatpush1.bf16.msra.mxu0 %v7585
      %7808 = vmatprep.subr.bf16.mxu0 %v7582
      %7809 = vmatpush1.bf16.msra.mxu0 %v7581
      %7810 = vmatprep.subr.bf16.mxu0 %v7578
      %7811 = vmatpush1.bf16.msra.mxu0 %v7577
      %7812 = vmatprep.subr.bf16.mxu0 %v7574
      %7813 = vmatpush1.bf16.msra.mxu0 %v7573
      %7814 = vmatprep.subr.bf16.mxu0 %v7570
      %7815 = vmatpush1.bf16.msra.mxu0 %v7569
      %7816 = vmatprep.subr.bf16.mxu0 %v7566
      %7817 = vmatpush1.bf16.msra.mxu0 %v7565
      %7818 = vmatprep.subr.bf16.mxu0 %v7562
      %7819 = vmatpush1.bf16.msra.mxu0 %v7561
      %7820 = vmatprep.subr.bf16.mxu0 %v7558
      %7821 = vmatpush1.bf16.msra.mxu0 %v7557
      %7822 = vmatprep.subr.bf16.mxu0 %v7618
      %7823 = vmatpush2.bf16.msra.mxu0 %v7617
      %7824 = vmatprep.subr.bf16.mxu0 %v7614
      %7825 = vmatpush2.bf16.msra.mxu0 %v7613
      %7826 = vmatprep.subr.bf16.mxu0 %v7610
      %7827 = vmatpush2.bf16.msra.mxu0 %v7609
      %7828 = vmatprep.subr.bf16.mxu0 %v7606
      %7829 = vmatpush2.bf16.msra.mxu0 %v7605
      %7830 = vmatprep.subr.bf16.mxu0 %v7602
      %7831 = vmatpush2.bf16.msra.mxu0 %v7601
      %7832 = vmatprep.subr.bf16.mxu0 %v7598
      %7833 = vmatpush2.bf16.msra.mxu0 %v7597
      %7834 = vmatprep.subr.bf16.mxu0 %v7594
      %7835 = vmatpush2.bf16.msra.mxu0 %v7593
      %7836 = vmatprep.subr.bf16.mxu0 %v7590
      %7837 = vmatpush2.bf16.msra.mxu0 %v7589
      %7838 = vmatprep.mubr.bf16.mxu0 %v7312
      %7839 = vmatmul.mubr.bf16.gmra.mxu0 %v7309
      %v7840 = vpop.f32.mrf.mxu0
      %v7841 = vadd.f32 0.0, %v7840
      %v7842 = vpop.f32.mrf.mxu0
      %v7843 = vadd.f32 0.0, %v7842
      %v7844 = vpop.f32.mrf.mxu0
      %v7845 = vadd.f32 0.0, %v7844
      %v7846 = vpop.f32.mrf.mxu0
      %v7847 = vadd.f32 0.0, %v7846
      %7848 = vmatprep.mubr.bf16.mxu0 %v7316
      %7849 = vmatmul.mubr.bf16.gmra.mxu0 %v7314
      %v7850 = vpop.f32.mrf.mxu0
      %v7851 = vadd.f32 0.0, %v7850
      %v7852 = vpop.f32.mrf.mxu0
      %v7853 = vadd.f32 0.0, %v7852
      %v7854 = vpop.f32.mrf.mxu0
      %v7855 = vadd.f32 0.0, %v7854
      %v7856 = vpop.f32.mrf.mxu0
      %v7857 = vadd.f32 0.0, %v7856
      %7858 = vmatprep.mubr.bf16.mxu0 %v7320
      %7859 = vmatmul.mubr.bf16.gmra.mxu0 %v7318
      %v7860 = vpop.f32.mrf.mxu0
      %v7861 = vadd.f32 0.0, %v7860
      %v7862 = vpop.f32.mrf.mxu0
      %v7863 = vadd.f32 0.0, %v7862
      %v7864 = vpop.f32.mrf.mxu0
      %v7865 = vadd.f32 0.0, %v7864
      %v7866 = vpop.f32.mrf.mxu0
      %v7867 = vadd.f32 0.0, %v7866
      %7868 = vmatprep.mubr.bf16.mxu0 %v7324
      %7869 = vmatmul.mubr.bf16.gmra.mxu0 %v7322
      %v7870 = vpop.f32.mrf.mxu0
      %v7871 = vadd.f32 0.0, %v7870
      %v7872 = vpop.f32.mrf.mxu0
      %v7873 = vadd.f32 0.0, %v7872
      %v7874 = vpop.f32.mrf.mxu0
      %v7875 = vadd.f32 0.0, %v7874
      %v7876 = vpop.f32.mrf.mxu0
      %v7877 = vadd.f32 0.0, %v7876
      %7878 = vmatprep.mubr.bf16.mxu0 %v7328
      %7879 = vmatmul.mubr.bf16.gmra.mxu0 %v7326
      %v7880 = vpop.f32.mrf.mxu0
      %v7881 = vadd.f32 0.0, %v7880
      %v7882 = vpop.f32.mrf.mxu0
      %v7883 = vadd.f32 0.0, %v7882
      %v7884 = vpop.f32.mrf.mxu0
      %v7885 = vadd.f32 0.0, %v7884
      %v7886 = vpop.f32.mrf.mxu0
      %v7887 = vadd.f32 0.0, %v7886
      %7888 = vmatprep.mubr.bf16.mxu0 %v7332
      %7889 = vmatmul.mubr.bf16.gmra.mxu0 %v7330
      %v7890 = vpop.f32.mrf.mxu0
      %v7891 = vadd.f32 0.0, %v7890
      %v7892 = vpop.f32.mrf.mxu0
      %v7893 = vadd.f32 0.0, %v7892
      %v7894 = vpop.f32.mrf.mxu0
      %v7895 = vadd.f32 0.0, %v7894
      %v7896 = vpop.f32.mrf.mxu0
      %v7897 = vadd.f32 0.0, %v7896
      %7898 = vmatprep.mubr.bf16.mxu0 %v7336
      %7899 = vmatmul.mubr.bf16.gmra.mxu0 %v7334
      %v7900 = vpop.f32.mrf.mxu0
      %v7901 = vadd.f32 0.0, %v7900
      %v7902 = vpop.f32.mrf.mxu0
      %v7903 = vadd.f32 0.0, %v7902
      %v7904 = vpop.f32.mrf.mxu0
      %v7905 = vadd.f32 0.0, %v7904
      %v7906 = vpop.f32.mrf.mxu0
      %v7907 = vadd.f32 0.0, %v7906
      %7908 = vmatprep.mubr.bf16.mxu0 %v7340
      %7909 = vmatmul.mubr.bf16.gmra.mxu0 %v7338
      %v7910 = vpop.f32.mrf.mxu0
      %v7911 = vadd.f32 0.0, %v7910
      %v7912 = vpop.f32.mrf.mxu0
      %v7913 = vadd.f32 0.0, %v7912
      %v7914 = vpop.f32.mrf.mxu0
      %v7915 = vadd.f32 0.0, %v7914
      %v7916 = vpop.f32.mrf.mxu0
      %v7917 = vadd.f32 0.0, %v7916
      %7918 = vmatprep.mubr.bf16.mxu0 %v7344
      %7919 = vmatmul.mubr.bf16.gmra.mxu0 %v7342
      %v7920 = vpop.f32.mrf.mxu0
      %v7921 = vadd.f32 0.0, %v7920
      %v7922 = vpop.f32.mrf.mxu0
      %v7923 = vadd.f32 0.0, %v7922
      %v7924 = vpop.f32.mrf.mxu0
      %v7925 = vadd.f32 0.0, %v7924
      %v7926 = vpop.f32.mrf.mxu0
      %v7927 = vadd.f32 0.0, %v7926
      %7928 = vdwg.mxu0
      %v7929 = vadd.f32 %v7169, %v7718
      %v7930 = vadd.f32 %v7170, %v7720
      %v7931 = vadd.f32 %v7171, %v7841
      %v7932 = vadd.f32 %v7172, %v7843
      %v7933 = vadd.f32 %v7173, %v7722
      %v7934 = vadd.f32 %v7174, %v7724
      %v7935 = vadd.f32 %v7175, %v7845
      %v7936 = vadd.f32 %v7176, %v7847
      %v7937 = vadd.f32 %v7177, %v7728
      %v7938 = vadd.f32 %v7178, %v7730
      %v7939 = vadd.f32 %v7179, %v7851
      %v7940 = vadd.f32 %v7180, %v7853
      %v7941 = vadd.f32 %v7181, %v7732
      %v7942 = vadd.f32 %v7182, %v7734
      %v7943 = vadd.f32 %v7183, %v7855
      %v7944 = vadd.f32 %v7184, %v7857
      %v7945 = vadd.f32 %v7185, %v7738
      %v7946 = vadd.f32 %v7186, %v7740
      %v7947 = vadd.f32 %v7187, %v7861
      %v7948 = vadd.f32 %v7188, %v7863
      %v7949 = vadd.f32 %v7189, %v7742
      %v7950 = vadd.f32 %v7190, %v7744
      %v7951 = vadd.f32 %v7191, %v7865
      %v7952 = vadd.f32 %v7192, %v7867
      %v7953 = vadd.f32 %v7193, %v7748
      %v7954 = vadd.f32 %v7194, %v7750
      %v7955 = vadd.f32 %v7195, %v7871
      %v7956 = vadd.f32 %v7196, %v7873
      %v7957 = vadd.f32 %v7197, %v7752
      %v7958 = vadd.f32 %v7198, %v7754
      %v7959 = vadd.f32 %v7199, %v7875
      %v7960 = vadd.f32 %v7200, %v7877
      %v7961 = vadd.f32 %v7201, %v7758
      %v7962 = vadd.f32 %v7202, %v7760
      %v7963 = vadd.f32 %v7203, %v7881
      %v7964 = vadd.f32 %v7204, %v7883
      %v7965 = vadd.f32 %v7205, %v7762
      %v7966 = vadd.f32 %v7206, %v7764
      %v7967 = vadd.f32 %v7207, %v7885
      %v7968 = vadd.f32 %v7208, %v7887
      %v7969 = vadd.f32 %v7209, %v7768
      %v7970 = vadd.f32 %v7210, %v7770
      %v7971 = vadd.f32 %v7211, %v7891
      %v7972 = vadd.f32 %v7212, %v7893
      %v7973 = vadd.f32 %v7213, %v7772
      %v7974 = vadd.f32 %v7214, %v7774
      %v7975 = vadd.f32 %v7215, %v7895
      %v7976 = vadd.f32 %v7216, %v7897
      %v7977 = vadd.f32 %v7217, %v7778
      %v7978 = vadd.f32 %v7218, %v7780
      %v7979 = vadd.f32 %v7219, %v7901
      %v7980 = vadd.f32 %v7220, %v7903
      %v7981 = vadd.f32 %v7221, %v7782
      %v7982 = vadd.f32 %v7222, %v7784
      %v7983 = vadd.f32 %v7223, %v7905
      %v7984 = vadd.f32 %v7224, %v7907
      %v7985 = vadd.f32 %v7225, %v7788
      %v7986 = vadd.f32 %v7226, %v7790
      %v7987 = vadd.f32 %v7227, %v7911
      %v7988 = vadd.f32 %v7228, %v7913
      %v7989 = vadd.f32 %v7229, %v7792
      %v7990 = vadd.f32 %v7230, %v7794
      %v7991 = vadd.f32 %v7231, %v7915
      %v7992 = vadd.f32 %v7232, %v7917
      %v7993 = vadd.f32 %v7233, %v7798
      %v7994 = vadd.f32 %v7234, %v7800
      %v7995 = vadd.f32 %v7235, %v7921
      %v7996 = vadd.f32 %v7236, %v7923
      %v7997 = vadd.f32 %v7237, %v7802
      %v7998 = vadd.f32 %v7238, %v7804
      %v7999 = vadd.f32 %v7239, %v7925
      %v8000 = vadd.f32 %v7240, %v7927
      %s8001 = scalar_lea.vmem %s4, 2560
      %v8002 = vld [vmem:[%s8001] sm:$0xff]
      %v8003 = vld [vmem:[%s8001 + $0x8] sm:$0xff]
      %v8004 = vld [vmem:[%s8001 + $0x10] sm:$0xff]
      %v8005 = vld [vmem:[%s8001 + $0x18] sm:$0xff]
      %v8006 = vld [vmem:[%s8001 + $0x20] sm:$0xff]
      %v8007 = vld [vmem:[%s8001 + $0x28] sm:$0xff]
      %v8008 = vld [vmem:[%s8001 + $0x30] sm:$0xff]
      %v8009 = vld [vmem:[%s8001 + $0x38] sm:$0xff]
      %v8010 = vld [vmem:[%s8001 + $0x40] sm:$0xff]
      %v8011 = vld [vmem:[%s8001 + $0x48] sm:$0xff]
      %v8012 = vld [vmem:[%s8001 + $0x50] sm:$0xff]
      %v8013 = vld [vmem:[%s8001 + $0x58] sm:$0xff]
      %v8014 = vld [vmem:[%s8001 + $0x60] sm:$0xff]
      %v8015 = vld [vmem:[%s8001 + $0x68] sm:$0xff]
      %v8016 = vld [vmem:[%s8001 + $0x70] sm:$0xff]
      %v8017 = vld [vmem:[%s8001 + $0x78] sm:$0xff]
      %v8018 = vld [vmem:[%s8001 + $0x80] sm:$0xff]
      %v8019 = vld [vmem:[%s8001 + $0x88] sm:$0xff]
      %v8020 = vld [vmem:[%s8001 + $0x90] sm:$0xff]
      %v8021 = vld [vmem:[%s8001 + $0x98] sm:$0xff]
      %v8022 = vld [vmem:[%s8001 + $0xa0] sm:$0xff]
      %v8023 = vld [vmem:[%s8001 + $0xa8] sm:$0xff]
      %v8024 = vld [vmem:[%s8001 + $0xb0] sm:$0xff]
      %v8025 = vld [vmem:[%s8001 + $0xb8] sm:$0xff]
      %v8026 = vld [vmem:[%s8001 + $0xc0] sm:$0xff]
      %v8027 = vld [vmem:[%s8001 + $0xc8] sm:$0xff]
      %v8028 = vld [vmem:[%s8001 + $0xd0] sm:$0xff]
      %v8029 = vld [vmem:[%s8001 + $0xd8] sm:$0xff]
      %v8030 = vld [vmem:[%s8001 + $0xe0] sm:$0xff]
      %v8031 = vld [vmem:[%s8001 + $0xe8] sm:$0xff]
      %v8032 = vld [vmem:[%s8001 + $0xf0] sm:$0xff]
      %v8033 = vld [vmem:[%s8001 + $0xf8] sm:$0xff]
      %v8034 = vld [vmem:[%s8001 + $0x100] sm:$0xff]
      %v8035 = vld [vmem:[%s8001 + $0x108] sm:$0xff]
      %v8036 = vld [vmem:[%s8001 + $0x110] sm:$0xff]
      %v8037 = vld [vmem:[%s8001 + $0x118] sm:$0xff]
      %v8038 = vld [vmem:[%s8001 + $0x120] sm:$0xff]
      %v8039 = vld [vmem:[%s8001 + $0x128] sm:$0xff]
      %v8040 = vld [vmem:[%s8001 + $0x130] sm:$0xff]
      %v8041 = vld [vmem:[%s8001 + $0x138] sm:$0xff]
      %v8042 = vld [vmem:[%s8001 + $0x140] sm:$0xff]
      %v8043 = vld [vmem:[%s8001 + $0x148] sm:$0xff]
      %v8044 = vld [vmem:[%s8001 + $0x150] sm:$0xff]
      %v8045 = vld [vmem:[%s8001 + $0x158] sm:$0xff]
      %v8046 = vld [vmem:[%s8001 + $0x160] sm:$0xff]
      %v8047 = vld [vmem:[%s8001 + $0x168] sm:$0xff]
      %v8048 = vld [vmem:[%s8001 + $0x170] sm:$0xff]
      %v8049 = vld [vmem:[%s8001 + $0x178] sm:$0xff]
      %v8050 = vld [vmem:[%s8001 + $0x180] sm:$0xff]
      %v8051 = vld [vmem:[%s8001 + $0x188] sm:$0xff]
      %v8052 = vld [vmem:[%s8001 + $0x190] sm:$0xff]
      %v8053 = vld [vmem:[%s8001 + $0x198] sm:$0xff]
      %v8054 = vld [vmem:[%s8001 + $0x1a0] sm:$0xff]
      %v8055 = vld [vmem:[%s8001 + $0x1a8] sm:$0xff]
      %v8056 = vld [vmem:[%s8001 + $0x1b0] sm:$0xff]
      %v8057 = vld [vmem:[%s8001 + $0x1b8] sm:$0xff]
      %v8058 = vld [vmem:[%s8001 + $0x1c0] sm:$0xff]
      %v8059 = vld [vmem:[%s8001 + $0x1c8] sm:$0xff]
      %v8060 = vld [vmem:[%s8001 + $0x1d0] sm:$0xff]
      %v8061 = vld [vmem:[%s8001 + $0x1d8] sm:$0xff]
      %v8062 = vld [vmem:[%s8001 + $0x1e0] sm:$0xff]
      %v8063 = vld [vmem:[%s8001 + $0x1e8] sm:$0xff]
      %v8064 = vld [vmem:[%s8001 + $0x1f0] sm:$0xff]
      %v8065 = vld [vmem:[%s8001 + $0x1f8] sm:$0xff]
      %vm8066 = vsmask.f32 256
      %v8067 = vrot.slane %v4360, 7
      %v8068 = vrot.slane %v4383, 7
      %v8069 = vor.u32 %v8068, %v4367
      %v8070 = vsel %vm8066, %v8067, %v8069
      %v8071 = vrot.slane %v4372, 7
      %v8072 = vrot.slane %v4391, 7
      %v8073 = vor.u32 %v8072, %v4379
      %v8074 = vsel %vm8066, %v8071, %v8073
      %v8075 = vrot.slane %v4399, 7
      %v8076 = vor.u32 %v8075, %v4387
      %v8077 = vsel %vm8066, %v8068, %v8076
      %v8078 = vrot.slane %v4407, 7
      %v8079 = vor.u32 %v8078, %v4395
      %v8080 = vsel %vm8066, %v8072, %v8079
      %v8081 = vrot.slane %v4415, 7
      %v8082 = vor.u32 %v8081, %v4403
      %v8083 = vsel %vm8066, %v8075, %v8082
      %v8084 = vrot.slane %v4423, 7
      %v8085 = vor.u32 %v8084, %v4411
      %v8086 = vsel %vm8066, %v8078, %v8085
      %v8087 = vrot.slane %v4431, 7
      %v8088 = vor.u32 %v8087, %v4419
      %v8089 = vsel %vm8066, %v8081, %v8088
      %v8090 = vrot.slane %v4439, 7
      %v8091 = vor.u32 %v8090, %v4427
      %v8092 = vsel %vm8066, %v8084, %v8091
      %v8093 = vrot.slane %v4447, 7
      %v8094 = vor.u32 %v8093, %v4435
      %v8095 = vsel %vm8066, %v8087, %v8094
      %v8096 = vrot.slane %v4455, 7
      %v8097 = vor.u32 %v8096, %v4443
      %v8098 = vsel %vm8066, %v8090, %v8097
      %v8099 = vrot.slane %v4463, 7
      %v8100 = vor.u32 %v8099, %v4451
      %v8101 = vsel %vm8066, %v8093, %v8100
      %v8102 = vrot.slane %v4471, 7
      %v8103 = vor.u32 %v8102, %v4459
      %v8104 = vsel %vm8066, %v8096, %v8103
      %v8105 = vrot.slane %v4479, 7
      %v8106 = vor.u32 %v8105, %v4467
      %v8107 = vsel %vm8066, %v8099, %v8106
      %v8108 = vrot.slane %v4487, 7
      %v8109 = vor.u32 %v8108, %v4475
      %v8110 = vsel %vm8066, %v8102, %v8109
      %v8111 = vrot.slane %v4495, 7
      %v8112 = vor.u32 %v8111, %v4483
      %v8113 = vsel %vm8066, %v8105, %v8112
      %v8114 = vrot.slane %v4498, 7
      %v8115 = vor.u32 %v8114, %v4491
      %v8116 = vsel %vm8066, %v8108, %v8115
      %v8117 = vrot.slane %v6568, 7
      %v8118 = vor.u32 %v8117, %v6571
      %v8119 = vsel %vm8066, %v8111, %v8118
      %v8120 = vrot.slane %v6577, 7
      %v8121 = vor.u32 %v8120, %v6580
      %v8122 = vsel %vm8066, %v8114, %v8121
      %v8205 = vunpack.c.l.b16 %v8002
      %v8206 = vunpack.c.h.b16 %v8002
      %v8207 = vunpack.c.l.b16 %v8003
      %v8208 = vunpack.c.h.b16 %v8003
      %v8209 = vunpack.c.l.b16 %v8004
      %v8210 = vunpack.c.h.b16 %v8004
      %v8211 = vunpack.c.l.b16 %v8005
      %v8212 = vunpack.c.h.b16 %v8005
      %v8213 = vunpack.c.l.b16 %v8006
      %v8214 = vunpack.c.h.b16 %v8006
      %v8215 = vunpack.c.l.b16 %v8007
      %v8216 = vunpack.c.h.b16 %v8007
      %v8217 = vunpack.c.l.b16 %v8008
      %v8218 = vunpack.c.h.b16 %v8008
      %v8219 = vunpack.c.l.b16 %v8009
      %v8220 = vunpack.c.h.b16 %v8009
      %v8221 = vunpack.c.l.b16 %v8010
      %v8222 = vunpack.c.h.b16 %v8010
      %v8223 = vunpack.c.l.b16 %v8011
      %v8224 = vunpack.c.h.b16 %v8011
      %v8225 = vunpack.c.l.b16 %v8012
      %v8226 = vunpack.c.h.b16 %v8012
      %v8227 = vunpack.c.l.b16 %v8013
      %v8228 = vunpack.c.h.b16 %v8013
      %v8229 = vunpack.c.l.b16 %v8014
      %v8230 = vunpack.c.h.b16 %v8014
      %v8231 = vunpack.c.l.b16 %v8015
      %v8232 = vunpack.c.h.b16 %v8015
      %v8233 = vunpack.c.l.b16 %v8016
      %v8234 = vunpack.c.h.b16 %v8016
      %v8235 = vunpack.c.l.b16 %v8017
      %v8236 = vunpack.c.h.b16 %v8017
      %v8237 = vunpack.c.l.b16 %v8018
      %v8238 = vunpack.c.h.b16 %v8018
      %v8239 = vunpack.c.l.b16 %v8019
      %v8240 = vunpack.c.h.b16 %v8019
      %v8241 = vunpack.c.l.b16 %v8020
      %v8242 = vunpack.c.h.b16 %v8020
      %v8243 = vunpack.c.l.b16 %v8021
      %v8244 = vunpack.c.h.b16 %v8021
      %v8245 = vunpack.c.l.b16 %v8022
      %v8246 = vunpack.c.h.b16 %v8022
      %v8247 = vunpack.c.l.b16 %v8023
      %v8248 = vunpack.c.h.b16 %v8023
      %v8249 = vunpack.c.l.b16 %v8024
      %v8250 = vunpack.c.h.b16 %v8024
      %v8251 = vunpack.c.l.b16 %v8025
      %v8252 = vunpack.c.h.b16 %v8025
      %v8253 = vunpack.c.l.b16 %v8026
      %v8254 = vunpack.c.h.b16 %v8026
      %v8255 = vunpack.c.l.b16 %v8027
      %v8256 = vunpack.c.h.b16 %v8027
      %v8257 = vunpack.c.l.b16 %v8028
      %v8258 = vunpack.c.h.b16 %v8028
      %v8259 = vunpack.c.l.b16 %v8029
      %v8260 = vunpack.c.h.b16 %v8029
      %v8261 = vunpack.c.l.b16 %v8030
      %v8262 = vunpack.c.h.b16 %v8030
      %v8263 = vunpack.c.l.b16 %v8031
      %v8264 = vunpack.c.h.b16 %v8031
      %v8265 = vunpack.c.l.b16 %v8032
      %v8266 = vunpack.c.h.b16 %v8032
      %v8267 = vunpack.c.l.b16 %v8033
      %v8268 = vunpack.c.h.b16 %v8033
      %v8269 = vunpack.c.l.b16 %v8034
      %v8270 = vunpack.c.h.b16 %v8034
      %v8271 = vunpack.c.l.b16 %v8035
      %v8272 = vunpack.c.h.b16 %v8035
      %v8273 = vunpack.c.l.b16 %v8036
      %v8274 = vunpack.c.h.b16 %v8036
      %v8275 = vunpack.c.l.b16 %v8037
      %v8276 = vunpack.c.h.b16 %v8037
      %v8277 = vunpack.c.l.b16 %v8038
      %v8278 = vunpack.c.h.b16 %v8038
      %v8279 = vunpack.c.l.b16 %v8039
      %v8280 = vunpack.c.h.b16 %v8039
      %v8281 = vunpack.c.l.b16 %v8040
      %v8282 = vunpack.c.h.b16 %v8040
      %v8283 = vunpack.c.l.b16 %v8041
      %v8284 = vunpack.c.h.b16 %v8041
      %v8285 = vunpack.c.l.b16 %v8042
      %v8286 = vunpack.c.h.b16 %v8042
      %v8287 = vunpack.c.l.b16 %v8043
      %v8288 = vunpack.c.h.b16 %v8043
      %v8289 = vunpack.c.l.b16 %v8044
      %v8290 = vunpack.c.h.b16 %v8044
      %v8291 = vunpack.c.l.b16 %v8045
      %v8292 = vunpack.c.h.b16 %v8045
      %v8293 = vunpack.c.l.b16 %v8046
      %v8294 = vunpack.c.h.b16 %v8046
      %v8295 = vunpack.c.l.b16 %v8047
      %v8296 = vunpack.c.h.b16 %v8047
      %v8297 = vunpack.c.l.b16 %v8048
      %v8298 = vunpack.c.h.b16 %v8048
      %v8299 = vunpack.c.l.b16 %v8049
      %v8300 = vunpack.c.h.b16 %v8049
      %v8301 = vunpack.c.l.b16 %v8050
      %v8302 = vunpack.c.h.b16 %v8050
      %v8303 = vunpack.c.l.b16 %v8051
      %v8304 = vunpack.c.h.b16 %v8051
      %v8305 = vunpack.c.l.b16 %v8052
      %v8306 = vunpack.c.h.b16 %v8052
      %v8307 = vunpack.c.l.b16 %v8053
      %v8308 = vunpack.c.h.b16 %v8053
      %v8309 = vunpack.c.l.b16 %v8054
      %v8310 = vunpack.c.h.b16 %v8054
      %v8311 = vunpack.c.l.b16 %v8055
      %v8312 = vunpack.c.h.b16 %v8055
      %v8313 = vunpack.c.l.b16 %v8056
      %v8314 = vunpack.c.h.b16 %v8056
      %v8315 = vunpack.c.l.b16 %v8057
      %v8316 = vunpack.c.h.b16 %v8057
      %v8317 = vunpack.c.l.b16 %v8058
      %v8318 = vunpack.c.h.b16 %v8058
      %v8319 = vunpack.c.l.b16 %v8059
      %v8320 = vunpack.c.h.b16 %v8059
      %v8321 = vunpack.c.l.b16 %v8060
      %v8322 = vunpack.c.h.b16 %v8060
      %v8323 = vunpack.c.l.b16 %v8061
      %v8324 = vunpack.c.h.b16 %v8061
      %v8325 = vunpack.c.l.b16 %v8062
      %v8326 = vunpack.c.h.b16 %v8062
      %v8327 = vunpack.c.l.b16 %v8063
      %v8328 = vunpack.c.h.b16 %v8063
      %v8329 = vunpack.c.l.b16 %v8064
      %v8330 = vunpack.c.h.b16 %v8064
      %v8331 = vunpack.c.l.b16 %v8065
      %v8332 = vunpack.c.h.b16 %v8065
      %v8333 = vpack.c.b16 %v8209, %v8205
      %v8334 = vpack.c.b16 %v8210, %v8206
      %v8335 = vpack.c.b16 %v8211, %v8207
      %v8336 = vpack.c.b16 %v8212, %v8208
      %v8337 = vpack.c.b16 %v8217, %v8213
      %v8338 = vpack.c.b16 %v8218, %v8214
      %v8339 = vpack.c.b16 %v8219, %v8215
      %v8340 = vpack.c.b16 %v8220, %v8216
      %v8341 = vpack.c.b16 %v8225, %v8221
      %v8342 = vpack.c.b16 %v8226, %v8222
      %v8343 = vpack.c.b16 %v8227, %v8223
      %v8344 = vpack.c.b16 %v8228, %v8224
      %v8345 = vpack.c.b16 %v8233, %v8229
      %v8346 = vpack.c.b16 %v8234, %v8230
      %v8347 = vpack.c.b16 %v8235, %v8231
      %v8348 = vpack.c.b16 %v8236, %v8232
      %v8349 = vpack.c.b16 %v8241, %v8237
      %v8350 = vpack.c.b16 %v8242, %v8238
      %v8351 = vpack.c.b16 %v8243, %v8239
      %v8352 = vpack.c.b16 %v8244, %v8240
      %v8353 = vpack.c.b16 %v8249, %v8245
      %v8354 = vpack.c.b16 %v8250, %v8246
      %v8355 = vpack.c.b16 %v8251, %v8247
      %v8356 = vpack.c.b16 %v8252, %v8248
      %v8357 = vpack.c.b16 %v8257, %v8253
      %v8358 = vpack.c.b16 %v8258, %v8254
      %v8359 = vpack.c.b16 %v8259, %v8255
      %v8360 = vpack.c.b16 %v8260, %v8256
      %v8361 = vpack.c.b16 %v8265, %v8261
      %v8362 = vpack.c.b16 %v8266, %v8262
      %v8363 = vpack.c.b16 %v8267, %v8263
      %v8364 = vpack.c.b16 %v8268, %v8264
      %v8365 = vpack.c.b16 %v8273, %v8269
      %v8366 = vpack.c.b16 %v8274, %v8270
      %v8367 = vpack.c.b16 %v8275, %v8271
      %v8368 = vpack.c.b16 %v8276, %v8272
      %v8369 = vpack.c.b16 %v8281, %v8277
      %v8370 = vpack.c.b16 %v8282, %v8278
      %v8371 = vpack.c.b16 %v8283, %v8279
      %v8372 = vpack.c.b16 %v8284, %v8280
      %v8373 = vpack.c.b16 %v8289, %v8285
      %v8374 = vpack.c.b16 %v8290, %v8286
      %v8375 = vpack.c.b16 %v8291, %v8287
      %v8376 = vpack.c.b16 %v8292, %v8288
      %v8377 = vpack.c.b16 %v8297, %v8293
      %v8378 = vpack.c.b16 %v8298, %v8294
      %v8379 = vpack.c.b16 %v8299, %v8295
      %v8380 = vpack.c.b16 %v8300, %v8296
      %v8381 = vpack.c.b16 %v8305, %v8301
      %v8382 = vpack.c.b16 %v8306, %v8302
      %v8383 = vpack.c.b16 %v8307, %v8303
      %v8384 = vpack.c.b16 %v8308, %v8304
      %v8385 = vpack.c.b16 %v8313, %v8309
      %v8386 = vpack.c.b16 %v8314, %v8310
      %v8387 = vpack.c.b16 %v8315, %v8311
      %v8388 = vpack.c.b16 %v8316, %v8312
      %v8389 = vpack.c.b16 %v8321, %v8317
      %v8390 = vpack.c.b16 %v8322, %v8318
      %v8391 = vpack.c.b16 %v8323, %v8319
      %v8392 = vpack.c.b16 %v8324, %v8320
      %v8393 = vpack.c.b16 %v8329, %v8325
      %v8394 = vpack.c.b16 %v8330, %v8326
      %v8395 = vpack.c.b16 %v8331, %v8327
      %v8396 = vpack.c.b16 %v8332, %v8328
      %8461 = vmatprep.subr.bf16.mxu0 %v8362
      %8462 = vmatpush1.bf16.msra.mxu0 %v8361
      %8463 = vmatprep.subr.bf16.mxu0 %v8358
      %8464 = vmatpush1.bf16.msra.mxu0 %v8357
      %8465 = vmatprep.subr.bf16.mxu0 %v8354
      %8466 = vmatpush1.bf16.msra.mxu0 %v8353
      %8467 = vmatprep.subr.bf16.mxu0 %v8350
      %8468 = vmatpush1.bf16.msra.mxu0 %v8349
      %8469 = vmatprep.subr.bf16.mxu0 %v8346
      %8470 = vmatpush1.bf16.msra.mxu0 %v8345
      %8471 = vmatprep.subr.bf16.mxu0 %v8342
      %8472 = vmatpush1.bf16.msra.mxu0 %v8341
      %8473 = vmatprep.subr.bf16.mxu0 %v8338
      %8474 = vmatpush1.bf16.msra.mxu0 %v8337
      %8475 = vmatprep.subr.bf16.mxu0 %v8334
      %8476 = vmatpush1.bf16.msra.mxu0 %v8333
      %8477 = vmatprep.subr.bf16.mxu0 %v8394
      %8478 = vmatpush2.bf16.msra.mxu0 %v8393
      %8479 = vmatprep.subr.bf16.mxu0 %v8390
      %8480 = vmatpush2.bf16.msra.mxu0 %v8389
      %8481 = vmatprep.subr.bf16.mxu0 %v8386
      %8482 = vmatpush2.bf16.msra.mxu0 %v8385
      %8483 = vmatprep.subr.bf16.mxu0 %v8382
      %8484 = vmatpush2.bf16.msra.mxu0 %v8381
      %8485 = vmatprep.subr.bf16.mxu0 %v8378
      %8486 = vmatpush2.bf16.msra.mxu0 %v8377
      %8487 = vmatprep.subr.bf16.mxu0 %v8374
      %8488 = vmatpush2.bf16.msra.mxu0 %v8373
      %8489 = vmatprep.subr.bf16.mxu0 %v8370
      %8490 = vmatpush2.bf16.msra.mxu0 %v8369
      %8491 = vmatprep.subr.bf16.mxu0 %v8366
      %8492 = vmatpush2.bf16.msra.mxu0 %v8365
      %8493 = vmatprep.mubr.bf16.mxu0 %v8074
      %8494 = vmatmul.mubr.bf16.gmra.mxu0 %v8070
      %v8495 = vpop.f32.mrf.mxu0
      %v8496 = vadd.f32 0.0, %v8495
      %v8497 = vpop.f32.mrf.mxu0
      %v8498 = vadd.f32 0.0, %v8497
      %v8499 = vpop.f32.mrf.mxu0
      %v8500 = vadd.f32 0.0, %v8499
      %v8501 = vpop.f32.mrf.mxu0
      %v8502 = vadd.f32 0.0, %v8501
      %8503 = vmatprep.mubr.bf16.mxu0 %v8080
      %8504 = vmatmul.mubr.bf16.gmra.mxu0 %v8077
      %v8505 = vpop.f32.mrf.mxu0
      %v8506 = vadd.f32 0.0, %v8505
      %v8507 = vpop.f32.mrf.mxu0
      %v8508 = vadd.f32 0.0, %v8507
      %v8509 = vpop.f32.mrf.mxu0
      %v8510 = vadd.f32 0.0, %v8509
      %v8511 = vpop.f32.mrf.mxu0
      %v8512 = vadd.f32 0.0, %v8511
      %8513 = vmatprep.mubr.bf16.mxu0 %v8086
      %8514 = vmatmul.mubr.bf16.gmra.mxu0 %v8083
      %v8515 = vpop.f32.mrf.mxu0
      %v8516 = vadd.f32 0.0, %v8515
      %v8517 = vpop.f32.mrf.mxu0
      %v8518 = vadd.f32 0.0, %v8517
      %v8519 = vpop.f32.mrf.mxu0
      %v8520 = vadd.f32 0.0, %v8519
      %v8521 = vpop.f32.mrf.mxu0
      %v8522 = vadd.f32 0.0, %v8521
      %8523 = vmatprep.mubr.bf16.mxu0 %v8092
      %8524 = vmatmul.mubr.bf16.gmra.mxu0 %v8089
      %v8525 = vpop.f32.mrf.mxu0
      %v8526 = vadd.f32 0.0, %v8525
      %v8527 = vpop.f32.mrf.mxu0
      %v8528 = vadd.f32 0.0, %v8527
      %v8529 = vpop.f32.mrf.mxu0
      %v8530 = vadd.f32 0.0, %v8529
      %v8531 = vpop.f32.mrf.mxu0
      %v8532 = vadd.f32 0.0, %v8531
      %8533 = vmatprep.mubr.bf16.mxu0 %v8098
      %8534 = vmatmul.mubr.bf16.gmra.mxu0 %v8095
      %v8535 = vpop.f32.mrf.mxu0
      %v8536 = vadd.f32 0.0, %v8535
      %v8537 = vpop.f32.mrf.mxu0
      %v8538 = vadd.f32 0.0, %v8537
      %v8539 = vpop.f32.mrf.mxu0
      %v8540 = vadd.f32 0.0, %v8539
      %v8541 = vpop.f32.mrf.mxu0
      %v8542 = vadd.f32 0.0, %v8541
      %8543 = vmatprep.mubr.bf16.mxu0 %v8104
      %8544 = vmatmul.mubr.bf16.gmra.mxu0 %v8101
      %v8545 = vpop.f32.mrf.mxu0
      %v8546 = vadd.f32 0.0, %v8545
      %v8547 = vpop.f32.mrf.mxu0
      %v8548 = vadd.f32 0.0, %v8547
      %v8549 = vpop.f32.mrf.mxu0
      %v8550 = vadd.f32 0.0, %v8549
      %v8551 = vpop.f32.mrf.mxu0
      %v8552 = vadd.f32 0.0, %v8551
      %8553 = vmatprep.mubr.bf16.mxu0 %v8110
      %8554 = vmatmul.mubr.bf16.gmra.mxu0 %v8107
      %v8555 = vpop.f32.mrf.mxu0
      %v8556 = vadd.f32 0.0, %v8555
      %v8557 = vpop.f32.mrf.mxu0
      %v8558 = vadd.f32 0.0, %v8557
      %v8559 = vpop.f32.mrf.mxu0
      %v8560 = vadd.f32 0.0, %v8559
      %v8561 = vpop.f32.mrf.mxu0
      %v8562 = vadd.f32 0.0, %v8561
      %8563 = vmatprep.mubr.bf16.mxu0 %v8116
      %8564 = vmatmul.mubr.bf16.gmra.mxu0 %v8113
      %v8565 = vpop.f32.mrf.mxu0
      %v8566 = vadd.f32 0.0, %v8565
      %v8567 = vpop.f32.mrf.mxu0
      %v8568 = vadd.f32 0.0, %v8567
      %v8569 = vpop.f32.mrf.mxu0
      %v8570 = vadd.f32 0.0, %v8569
      %v8571 = vpop.f32.mrf.mxu0
      %v8572 = vadd.f32 0.0, %v8571
      %8573 = vmatprep.mubr.bf16.mxu0 %v8122
      %8574 = vmatmul.mubr.bf16.gmra.mxu0 %v8119
      %v8575 = vpop.f32.mrf.mxu0
      %v8576 = vadd.f32 0.0, %v8575
      %v8577 = vpop.f32.mrf.mxu0
      %v8578 = vadd.f32 0.0, %v8577
      %v8579 = vpop.f32.mrf.mxu0
      %v8580 = vadd.f32 0.0, %v8579
      %v8581 = vpop.f32.mrf.mxu0
      %v8582 = vadd.f32 0.0, %v8581
      %8583 = vdwg.mxu0
      %8584 = vmatprep.subr.bf16.mxu0 %v8364
      %8585 = vmatpush1.bf16.msra.mxu0 %v8363
      %8586 = vmatprep.subr.bf16.mxu0 %v8360
      %8587 = vmatpush1.bf16.msra.mxu0 %v8359
      %8588 = vmatprep.subr.bf16.mxu0 %v8356
      %8589 = vmatpush1.bf16.msra.mxu0 %v8355
      %8590 = vmatprep.subr.bf16.mxu0 %v8352
      %8591 = vmatpush1.bf16.msra.mxu0 %v8351
      %8592 = vmatprep.subr.bf16.mxu0 %v8348
      %8593 = vmatpush1.bf16.msra.mxu0 %v8347
      %8594 = vmatprep.subr.bf16.mxu0 %v8344
      %8595 = vmatpush1.bf16.msra.mxu0 %v8343
      %8596 = vmatprep.subr.bf16.mxu0 %v8340
      %8597 = vmatpush1.bf16.msra.mxu0 %v8339
      %8598 = vmatprep.subr.bf16.mxu0 %v8336
      %8599 = vmatpush1.bf16.msra.mxu0 %v8335
      %8600 = vmatprep.subr.bf16.mxu0 %v8396
      %8601 = vmatpush2.bf16.msra.mxu0 %v8395
      %8602 = vmatprep.subr.bf16.mxu0 %v8392
      %8603 = vmatpush2.bf16.msra.mxu0 %v8391
      %8604 = vmatprep.subr.bf16.mxu0 %v8388
      %8605 = vmatpush2.bf16.msra.mxu0 %v8387
      %8606 = vmatprep.subr.bf16.mxu0 %v8384
      %8607 = vmatpush2.bf16.msra.mxu0 %v8383
      %8608 = vmatprep.subr.bf16.mxu0 %v8380
      %8609 = vmatpush2.bf16.msra.mxu0 %v8379
      %8610 = vmatprep.subr.bf16.mxu0 %v8376
      %8611 = vmatpush2.bf16.msra.mxu0 %v8375
      %8612 = vmatprep.subr.bf16.mxu0 %v8372
      %8613 = vmatpush2.bf16.msra.mxu0 %v8371
      %8614 = vmatprep.subr.bf16.mxu0 %v8368
      %8615 = vmatpush2.bf16.msra.mxu0 %v8367
      %8616 = vmatprep.mubr.bf16.mxu0 %v8074
      %8617 = vmatmul.mubr.bf16.gmra.mxu0 %v8070
      %v8618 = vpop.f32.mrf.mxu0
      %v8619 = vadd.f32 0.0, %v8618
      %v8620 = vpop.f32.mrf.mxu0
      %v8621 = vadd.f32 0.0, %v8620
      %v8622 = vpop.f32.mrf.mxu0
      %v8623 = vadd.f32 0.0, %v8622
      %v8624 = vpop.f32.mrf.mxu0
      %v8625 = vadd.f32 0.0, %v8624
      %8626 = vmatprep.mubr.bf16.mxu0 %v8080
      %8627 = vmatmul.mubr.bf16.gmra.mxu0 %v8077
      %v8628 = vpop.f32.mrf.mxu0
      %v8629 = vadd.f32 0.0, %v8628
      %v8630 = vpop.f32.mrf.mxu0
      %v8631 = vadd.f32 0.0, %v8630
      %v8632 = vpop.f32.mrf.mxu0
      %v8633 = vadd.f32 0.0, %v8632
      %v8634 = vpop.f32.mrf.mxu0
      %v8635 = vadd.f32 0.0, %v8634
      %8636 = vmatprep.mubr.bf16.mxu0 %v8086
      %8637 = vmatmul.mubr.bf16.gmra.mxu0 %v8083
      %v8638 = vpop.f32.mrf.mxu0
      %v8639 = vadd.f32 0.0, %v8638
      %v8640 = vpop.f32.mrf.mxu0
      %v8641 = vadd.f32 0.0, %v8640
      %v8642 = vpop.f32.mrf.mxu0
      %v8643 = vadd.f32 0.0, %v8642
      %v8644 = vpop.f32.mrf.mxu0
      %v8645 = vadd.f32 0.0, %v8644
      %8646 = vmatprep.mubr.bf16.mxu0 %v8092
      %8647 = vmatmul.mubr.bf16.gmra.mxu0 %v8089
      %v8648 = vpop.f32.mrf.mxu0
      %v8649 = vadd.f32 0.0, %v8648
      %v8650 = vpop.f32.mrf.mxu0
      %v8651 = vadd.f32 0.0, %v8650
      %v8652 = vpop.f32.mrf.mxu0
      %v8653 = vadd.f32 0.0, %v8652
      %v8654 = vpop.f32.mrf.mxu0
      %v8655 = vadd.f32 0.0, %v8654
      %8656 = vmatprep.mubr.bf16.mxu0 %v8098
      %8657 = vmatmul.mubr.bf16.gmra.mxu0 %v8095
      %v8658 = vpop.f32.mrf.mxu0
      %v8659 = vadd.f32 0.0, %v8658
      %v8660 = vpop.f32.mrf.mxu0
      %v8661 = vadd.f32 0.0, %v8660
      %v8662 = vpop.f32.mrf.mxu0
      %v8663 = vadd.f32 0.0, %v8662
      %v8664 = vpop.f32.mrf.mxu0
      %v8665 = vadd.f32 0.0, %v8664
      %8666 = vmatprep.mubr.bf16.mxu0 %v8104
      %8667 = vmatmul.mubr.bf16.gmra.mxu0 %v8101
      %v8668 = vpop.f32.mrf.mxu0
      %v8669 = vadd.f32 0.0, %v8668
      %v8670 = vpop.f32.mrf.mxu0
      %v8671 = vadd.f32 0.0, %v8670
      %v8672 = vpop.f32.mrf.mxu0
      %v8673 = vadd.f32 0.0, %v8672
      %v8674 = vpop.f32.mrf.mxu0
      %v8675 = vadd.f32 0.0, %v8674
      %8676 = vmatprep.mubr.bf16.mxu0 %v8110
      %8677 = vmatmul.mubr.bf16.gmra.mxu0 %v8107
      %v8678 = vpop.f32.mrf.mxu0
      %v8679 = vadd.f32 0.0, %v8678
      %v8680 = vpop.f32.mrf.mxu0
      %v8681 = vadd.f32 0.0, %v8680
      %v8682 = vpop.f32.mrf.mxu0
      %v8683 = vadd.f32 0.0, %v8682
      %v8684 = vpop.f32.mrf.mxu0
      %v8685 = vadd.f32 0.0, %v8684
      %8686 = vmatprep.mubr.bf16.mxu0 %v8116
      %8687 = vmatmul.mubr.bf16.gmra.mxu0 %v8113
      %v8688 = vpop.f32.mrf.mxu0
      %v8689 = vadd.f32 0.0, %v8688
      %v8690 = vpop.f32.mrf.mxu0
      %v8691 = vadd.f32 0.0, %v8690
      %v8692 = vpop.f32.mrf.mxu0
      %v8693 = vadd.f32 0.0, %v8692
      %v8694 = vpop.f32.mrf.mxu0
      %v8695 = vadd.f32 0.0, %v8694
      %8696 = vmatprep.mubr.bf16.mxu0 %v8122
      %8697 = vmatmul.mubr.bf16.gmra.mxu0 %v8119
      %v8698 = vpop.f32.mrf.mxu0
      %v8699 = vadd.f32 0.0, %v8698
      %v8700 = vpop.f32.mrf.mxu0
      %v8701 = vadd.f32 0.0, %v8700
      %v8702 = vpop.f32.mrf.mxu0
      %v8703 = vadd.f32 0.0, %v8702
      %v8704 = vpop.f32.mrf.mxu0
      %v8705 = vadd.f32 0.0, %v8704
      %8706 = vdwg.mxu0
      %v8707 = vadd.f32 %v7929, %v8496
      %v8708 = vadd.f32 %v7930, %v8498
      %v8709 = vadd.f32 %v7931, %v8619
      %v8710 = vadd.f32 %v7932, %v8621
      %v8711 = vadd.f32 %v7933, %v8500
      %v8712 = vadd.f32 %v7934, %v8502
      %v8713 = vadd.f32 %v7935, %v8623
      %v8714 = vadd.f32 %v7936, %v8625
      %v8715 = vadd.f32 %v7937, %v8506
      %v8716 = vadd.f32 %v7938, %v8508
      %v8717 = vadd.f32 %v7939, %v8629
      %v8718 = vadd.f32 %v7940, %v8631
      %v8719 = vadd.f32 %v7941, %v8510
      %v8720 = vadd.f32 %v7942, %v8512
      %v8721 = vadd.f32 %v7943, %v8633
      %v8722 = vadd.f32 %v7944, %v8635
      %v8723 = vadd.f32 %v7945, %v8516
      %v8724 = vadd.f32 %v7946, %v8518
      %v8725 = vadd.f32 %v7947, %v8639
      %v8726 = vadd.f32 %v7948, %v8641
      %v8727 = vadd.f32 %v7949, %v8520
      %v8728 = vadd.f32 %v7950, %v8522
      %v8729 = vadd.f32 %v7951, %v8643
      %v8730 = vadd.f32 %v7952, %v8645
      %v8731 = vadd.f32 %v7953, %v8526
      %v8732 = vadd.f32 %v7954, %v8528
      %v8733 = vadd.f32 %v7955, %v8649
      %v8734 = vadd.f32 %v7956, %v8651
      %v8735 = vadd.f32 %v7957, %v8530
      %v8736 = vadd.f32 %v7958, %v8532
      %v8737 = vadd.f32 %v7959, %v8653
      %v8738 = vadd.f32 %v7960, %v8655
      %v8739 = vadd.f32 %v7961, %v8536
      %v8740 = vadd.f32 %v7962, %v8538
      %v8741 = vadd.f32 %v7963, %v8659
      %v8742 = vadd.f32 %v7964, %v8661
      %v8743 = vadd.f32 %v7965, %v8540
      %v8744 = vadd.f32 %v7966, %v8542
      %v8745 = vadd.f32 %v7967, %v8663
      %v8746 = vadd.f32 %v7968, %v8665
      %v8747 = vadd.f32 %v7969, %v8546
      %v8748 = vadd.f32 %v7970, %v8548
      %v8749 = vadd.f32 %v7971, %v8669
      %v8750 = vadd.f32 %v7972, %v8671
      %v8751 = vadd.f32 %v7973, %v8550
      %v8752 = vadd.f32 %v7974, %v8552
      %v8753 = vadd.f32 %v7975, %v8673
      %v8754 = vadd.f32 %v7976, %v8675
      %v8755 = vadd.f32 %v7977, %v8556
      %v8756 = vadd.f32 %v7978, %v8558
      %v8757 = vadd.f32 %v7979, %v8679
      %v8758 = vadd.f32 %v7980, %v8681
      %v8759 = vadd.f32 %v7981, %v8560
      %v8760 = vadd.f32 %v7982, %v8562
      %v8761 = vadd.f32 %v7983, %v8683
      %v8762 = vadd.f32 %v7984, %v8685
      %v8763 = vadd.f32 %v7985, %v8566
      %v8764 = vadd.f32 %v7986, %v8568
      %v8765 = vadd.f32 %v7987, %v8689
      %v8766 = vadd.f32 %v7988, %v8691
      %v8767 = vadd.f32 %v7989, %v8570
      %v8768 = vadd.f32 %v7990, %v8572
      %v8769 = vadd.f32 %v7991, %v8693
      %v8770 = vadd.f32 %v7992, %v8695
      %v8771 = vadd.f32 %v7993, %v8576
      %v8772 = vadd.f32 %v7994, %v8578
      %v8773 = vadd.f32 %v7995, %v8699
      %v8774 = vadd.f32 %v7996, %v8701
      %v8775 = vadd.f32 %v7997, %v8580
      %v8776 = vadd.f32 %v7998, %v8582
      %v8777 = vadd.f32 %v7999, %v8703
      %v8778 = vadd.f32 %v8000, %v8705
      %s8779 = scalar_lea.vmem %s4, 3072
      %v8780 = vld [vmem:[%s8779] sm:$0xff]
      %v8781 = vld [vmem:[%s8779 + $0x8] sm:$0xff]
      %v8782 = vld [vmem:[%s8779 + $0x10] sm:$0xff]
      %v8783 = vld [vmem:[%s8779 + $0x18] sm:$0xff]
      %v8784 = vld [vmem:[%s8779 + $0x20] sm:$0xff]
      %v8785 = vld [vmem:[%s8779 + $0x28] sm:$0xff]
      %v8786 = vld [vmem:[%s8779 + $0x30] sm:$0xff]
      %v8787 = vld [vmem:[%s8779 + $0x38] sm:$0xff]
      %v8788 = vld [vmem:[%s8779 + $0x40] sm:$0xff]
      %v8789 = vld [vmem:[%s8779 + $0x48] sm:$0xff]
      %v8790 = vld [vmem:[%s8779 + $0x50] sm:$0xff]
      %v8791 = vld [vmem:[%s8779 + $0x58] sm:$0xff]
      %v8792 = vld [vmem:[%s8779 + $0x60] sm:$0xff]
      %v8793 = vld [vmem:[%s8779 + $0x68] sm:$0xff]
      %v8794 = vld [vmem:[%s8779 + $0x70] sm:$0xff]
      %v8795 = vld [vmem:[%s8779 + $0x78] sm:$0xff]
      %v8796 = vld [vmem:[%s8779 + $0x80] sm:$0xff]
      %v8797 = vld [vmem:[%s8779 + $0x88] sm:$0xff]
      %v8798 = vld [vmem:[%s8779 + $0x90] sm:$0xff]
      %v8799 = vld [vmem:[%s8779 + $0x98] sm:$0xff]
      %v8800 = vld [vmem:[%s8779 + $0xa0] sm:$0xff]
      %v8801 = vld [vmem:[%s8779 + $0xa8] sm:$0xff]
      %v8802 = vld [vmem:[%s8779 + $0xb0] sm:$0xff]
      %v8803 = vld [vmem:[%s8779 + $0xb8] sm:$0xff]
      %v8804 = vld [vmem:[%s8779 + $0xc0] sm:$0xff]
      %v8805 = vld [vmem:[%s8779 + $0xc8] sm:$0xff]
      %v8806 = vld [vmem:[%s8779 + $0xd0] sm:$0xff]
      %v8807 = vld [vmem:[%s8779 + $0xd8] sm:$0xff]
      %v8808 = vld [vmem:[%s8779 + $0xe0] sm:$0xff]
      %v8809 = vld [vmem:[%s8779 + $0xe8] sm:$0xff]
      %v8810 = vld [vmem:[%s8779 + $0xf0] sm:$0xff]
      %v8811 = vld [vmem:[%s8779 + $0xf8] sm:$0xff]
      %v8812 = vld [vmem:[%s8779 + $0x100] sm:$0xff]
      %v8813 = vld [vmem:[%s8779 + $0x108] sm:$0xff]
      %v8814 = vld [vmem:[%s8779 + $0x110] sm:$0xff]
      %v8815 = vld [vmem:[%s8779 + $0x118] sm:$0xff]
      %v8816 = vld [vmem:[%s8779 + $0x120] sm:$0xff]
      %v8817 = vld [vmem:[%s8779 + $0x128] sm:$0xff]
      %v8818 = vld [vmem:[%s8779 + $0x130] sm:$0xff]
      %v8819 = vld [vmem:[%s8779 + $0x138] sm:$0xff]
      %v8820 = vld [vmem:[%s8779 + $0x140] sm:$0xff]
      %v8821 = vld [vmem:[%s8779 + $0x148] sm:$0xff]
      %v8822 = vld [vmem:[%s8779 + $0x150] sm:$0xff]
      %v8823 = vld [vmem:[%s8779 + $0x158] sm:$0xff]
      %v8824 = vld [vmem:[%s8779 + $0x160] sm:$0xff]
      %v8825 = vld [vmem:[%s8779 + $0x168] sm:$0xff]
      %v8826 = vld [vmem:[%s8779 + $0x170] sm:$0xff]
      %v8827 = vld [vmem:[%s8779 + $0x178] sm:$0xff]
      %v8828 = vld [vmem:[%s8779 + $0x180] sm:$0xff]
      %v8829 = vld [vmem:[%s8779 + $0x188] sm:$0xff]
      %v8830 = vld [vmem:[%s8779 + $0x190] sm:$0xff]
      %v8831 = vld [vmem:[%s8779 + $0x198] sm:$0xff]
      %v8832 = vld [vmem:[%s8779 + $0x1a0] sm:$0xff]
      %v8833 = vld [vmem:[%s8779 + $0x1a8] sm:$0xff]
      %v8834 = vld [vmem:[%s8779 + $0x1b0] sm:$0xff]
      %v8835 = vld [vmem:[%s8779 + $0x1b8] sm:$0xff]
      %v8836 = vld [vmem:[%s8779 + $0x1c0] sm:$0xff]
      %v8837 = vld [vmem:[%s8779 + $0x1c8] sm:$0xff]
      %v8838 = vld [vmem:[%s8779 + $0x1d0] sm:$0xff]
      %v8839 = vld [vmem:[%s8779 + $0x1d8] sm:$0xff]
      %v8840 = vld [vmem:[%s8779 + $0x1e0] sm:$0xff]
      %v8841 = vld [vmem:[%s8779 + $0x1e8] sm:$0xff]
      %v8842 = vld [vmem:[%s8779 + $0x1f0] sm:$0xff]
      %v8843 = vld [vmem:[%s8779 + $0x1f8] sm:$0xff]
      %vm8846 = vcmask 1042432
      %v8847 = vrot.slane %v4209, 5
      %v8848 = vrot.slane %v4211, 5
      %v8849 = vsel %vm8846, %v8847, %v8848
      %v8850 = vrot.slane %v4210, 5
      %v8851 = vrot.slane %v4212, 5
      %v8852 = vsel %vm8846, %v8850, %v8851
      %v8853 = vrot.slane %v4213, 5
      %v8854 = vsel %vm8846, %v8848, %v8853
      %v8855 = vrot.slane %v4214, 5
      %v8856 = vsel %vm8846, %v8851, %v8855
      %v8857 = vrot.slane %v4215, 5
      %v8858 = vsel %vm8846, %v8853, %v8857
      %v8859 = vrot.slane %v4216, 5
      %v8860 = vsel %vm8846, %v8855, %v8859
      %v8861 = vrot.slane %v4217, 5
      %v8862 = vsel %vm8846, %v8857, %v8861
      %v8863 = vrot.slane %v4218, 5
      %v8864 = vsel %vm8846, %v8859, %v8863
      %v8865 = vrot.slane %v4219, 5
      %v8866 = vsel %vm8846, %v8861, %v8865
      %v8867 = vrot.slane %v4220, 5
      %v8868 = vsel %vm8846, %v8863, %v8867
      %v8869 = vrot.slane %v4221, 5
      %v8870 = vsel %vm8846, %v8865, %v8869
      %v8871 = vrot.slane %v4222, 5
      %v8872 = vsel %vm8846, %v8867, %v8871
      %v8873 = vrot.slane %v4223, 5
      %v8874 = vsel %vm8846, %v8869, %v8873
      %v8875 = vrot.slane %v4224, 5
      %v8876 = vsel %vm8846, %v8871, %v8875
      %v8877 = vrot.slane %v4225, 5
      %v8878 = vsel %vm8846, %v8873, %v8877
      %v8879 = vrot.slane %v4226, 5
      %v8880 = vsel %vm8846, %v8875, %v8879
      %v8881 = vrot.slane %v4227, 5
      %v8882 = vsel %vm8846, %v8877, %v8881
      %v8883 = vrot.slane %v4228, 5
      %v8884 = vsel %vm8846, %v8879, %v8883
      %v8967 = vunpack.c.l.b16 %v8780
      %v8968 = vunpack.c.h.b16 %v8780
      %v8969 = vunpack.c.l.b16 %v8781
      %v8970 = vunpack.c.h.b16 %v8781
      %v8971 = vunpack.c.l.b16 %v8782
      %v8972 = vunpack.c.h.b16 %v8782
      %v8973 = vunpack.c.l.b16 %v8783
      %v8974 = vunpack.c.h.b16 %v8783
      %v8975 = vunpack.c.l.b16 %v8784
      %v8976 = vunpack.c.h.b16 %v8784
      %v8977 = vunpack.c.l.b16 %v8785
      %v8978 = vunpack.c.h.b16 %v8785
      %v8979 = vunpack.c.l.b16 %v8786
      %v8980 = vunpack.c.h.b16 %v8786
      %v8981 = vunpack.c.l.b16 %v8787
      %v8982 = vunpack.c.h.b16 %v8787
      %v8983 = vunpack.c.l.b16 %v8788
      %v8984 = vunpack.c.h.b16 %v8788
      %v8985 = vunpack.c.l.b16 %v8789
      %v8986 = vunpack.c.h.b16 %v8789
      %v8987 = vunpack.c.l.b16 %v8790
      %v8988 = vunpack.c.h.b16 %v8790
      %v8989 = vunpack.c.l.b16 %v8791
      %v8990 = vunpack.c.h.b16 %v8791
      %v8991 = vunpack.c.l.b16 %v8792
      %v8992 = vunpack.c.h.b16 %v8792
      %v8993 = vunpack.c.l.b16 %v8793
      %v8994 = vunpack.c.h.b16 %v8793
      %v8995 = vunpack.c.l.b16 %v8794
      %v8996 = vunpack.c.h.b16 %v8794
      %v8997 = vunpack.c.l.b16 %v8795
      %v8998 = vunpack.c.h.b16 %v8795
      %v8999 = vunpack.c.l.b16 %v8796
      %v9000 = vunpack.c.h.b16 %v8796
      %v9001 = vunpack.c.l.b16 %v8797
      %v9002 = vunpack.c.h.b16 %v8797
      %v9003 = vunpack.c.l.b16 %v8798
      %v9004 = vunpack.c.h.b16 %v8798
      %v9005 = vunpack.c.l.b16 %v8799
      %v9006 = vunpack.c.h.b16 %v8799
      %v9007 = vunpack.c.l.b16 %v8800
      %v9008 = vunpack.c.h.b16 %v8800
      %v9009 = vunpack.c.l.b16 %v8801
      %v9010 = vunpack.c.h.b16 %v8801
      %v9011 = vunpack.c.l.b16 %v8802
      %v9012 = vunpack.c.h.b16 %v8802
      %v9013 = vunpack.c.l.b16 %v8803
      %v9014 = vunpack.c.h.b16 %v8803
      %v9015 = vunpack.c.l.b16 %v8804
      %v9016 = vunpack.c.h.b16 %v8804
      %v9017 = vunpack.c.l.b16 %v8805
      %v9018 = vunpack.c.h.b16 %v8805
      %v9019 = vunpack.c.l.b16 %v8806
      %v9020 = vunpack.c.h.b16 %v8806
      %v9021 = vunpack.c.l.b16 %v8807
      %v9022 = vunpack.c.h.b16 %v8807
      %v9023 = vunpack.c.l.b16 %v8808
      %v9024 = vunpack.c.h.b16 %v8808
      %v9025 = vunpack.c.l.b16 %v8809
      %v9026 = vunpack.c.h.b16 %v8809
      %v9027 = vunpack.c.l.b16 %v8810
      %v9028 = vunpack.c.h.b16 %v8810
      %v9029 = vunpack.c.l.b16 %v8811
      %v9030 = vunpack.c.h.b16 %v8811
      %v9031 = vunpack.c.l.b16 %v8812
      %v9032 = vunpack.c.h.b16 %v8812
      %v9033 = vunpack.c.l.b16 %v8813
      %v9034 = vunpack.c.h.b16 %v8813
      %v9035 = vunpack.c.l.b16 %v8814
      %v9036 = vunpack.c.h.b16 %v8814
      %v9037 = vunpack.c.l.b16 %v8815
      %v9038 = vunpack.c.h.b16 %v8815
      %v9039 = vunpack.c.l.b16 %v8816
      %v9040 = vunpack.c.h.b16 %v8816
      %v9041 = vunpack.c.l.b16 %v8817
      %v9042 = vunpack.c.h.b16 %v8817
      %v9043 = vunpack.c.l.b16 %v8818
      %v9044 = vunpack.c.h.b16 %v8818
      %v9045 = vunpack.c.l.b16 %v8819
      %v9046 = vunpack.c.h.b16 %v8819
      %v9047 = vunpack.c.l.b16 %v8820
      %v9048 = vunpack.c.h.b16 %v8820
      %v9049 = vunpack.c.l.b16 %v8821
      %v9050 = vunpack.c.h.b16 %v8821
      %v9051 = vunpack.c.l.b16 %v8822
      %v9052 = vunpack.c.h.b16 %v8822
      %v9053 = vunpack.c.l.b16 %v8823
      %v9054 = vunpack.c.h.b16 %v8823
      %v9055 = vunpack.c.l.b16 %v8824
      %v9056 = vunpack.c.h.b16 %v8824
      %v9057 = vunpack.c.l.b16 %v8825
      %v9058 = vunpack.c.h.b16 %v8825
      %v9059 = vunpack.c.l.b16 %v8826
      %v9060 = vunpack.c.h.b16 %v8826
      %v9061 = vunpack.c.l.b16 %v8827
      %v9062 = vunpack.c.h.b16 %v8827
      %v9063 = vunpack.c.l.b16 %v8828
      %v9064 = vunpack.c.h.b16 %v8828
      %v9065 = vunpack.c.l.b16 %v8829
      %v9066 = vunpack.c.h.b16 %v8829
      %v9067 = vunpack.c.l.b16 %v8830
      %v9068 = vunpack.c.h.b16 %v8830
      %v9069 = vunpack.c.l.b16 %v8831
      %v9070 = vunpack.c.h.b16 %v8831
      %v9071 = vunpack.c.l.b16 %v8832
      %v9072 = vunpack.c.h.b16 %v8832
      %v9073 = vunpack.c.l.b16 %v8833
      %v9074 = vunpack.c.h.b16 %v8833
      %v9075 = vunpack.c.l.b16 %v8834
      %v9076 = vunpack.c.h.b16 %v8834
      %v9077 = vunpack.c.l.b16 %v8835
      %v9078 = vunpack.c.h.b16 %v8835
      %v9079 = vunpack.c.l.b16 %v8836
      %v9080 = vunpack.c.h.b16 %v8836
      %v9081 = vunpack.c.l.b16 %v8837
      %v9082 = vunpack.c.h.b16 %v8837
      %v9083 = vunpack.c.l.b16 %v8838
      %v9084 = vunpack.c.h.b16 %v8838
      %v9085 = vunpack.c.l.b16 %v8839
      %v9086 = vunpack.c.h.b16 %v8839
      %v9087 = vunpack.c.l.b16 %v8840
      %v9088 = vunpack.c.h.b16 %v8840
      %v9089 = vunpack.c.l.b16 %v8841
      %v9090 = vunpack.c.h.b16 %v8841
      %v9091 = vunpack.c.l.b16 %v8842
      %v9092 = vunpack.c.h.b16 %v8842
      %v9093 = vunpack.c.l.b16 %v8843
      %v9094 = vunpack.c.h.b16 %v8843
      %v9095 = vpack.c.b16 %v8971, %v8967
      %v9096 = vpack.c.b16 %v8972, %v8968
      %v9097 = vpack.c.b16 %v8973, %v8969
      %v9098 = vpack.c.b16 %v8974, %v8970
      %v9099 = vpack.c.b16 %v8979, %v8975
      %v9100 = vpack.c.b16 %v8980, %v8976
      %v9101 = vpack.c.b16 %v8981, %v8977
      %v9102 = vpack.c.b16 %v8982, %v8978
      %v9103 = vpack.c.b16 %v8987, %v8983
      %v9104 = vpack.c.b16 %v8988, %v8984
      %v9105 = vpack.c.b16 %v8989, %v8985
      %v9106 = vpack.c.b16 %v8990, %v8986
      %v9107 = vpack.c.b16 %v8995, %v8991
      %v9108 = vpack.c.b16 %v8996, %v8992
      %v9109 = vpack.c.b16 %v8997, %v8993
      %v9110 = vpack.c.b16 %v8998, %v8994
      %v9111 = vpack.c.b16 %v9003, %v8999
      %v9112 = vpack.c.b16 %v9004, %v9000
      %v9113 = vpack.c.b16 %v9005, %v9001
      %v9114 = vpack.c.b16 %v9006, %v9002
      %v9115 = vpack.c.b16 %v9011, %v9007
      %v9116 = vpack.c.b16 %v9012, %v9008
      %v9117 = vpack.c.b16 %v9013, %v9009
      %v9118 = vpack.c.b16 %v9014, %v9010
      %v9119 = vpack.c.b16 %v9019, %v9015
      %v9120 = vpack.c.b16 %v9020, %v9016
      %v9121 = vpack.c.b16 %v9021, %v9017
      %v9122 = vpack.c.b16 %v9022, %v9018
      %v9123 = vpack.c.b16 %v9027, %v9023
      %v9124 = vpack.c.b16 %v9028, %v9024
      %v9125 = vpack.c.b16 %v9029, %v9025
      %v9126 = vpack.c.b16 %v9030, %v9026
      %v9127 = vpack.c.b16 %v9035, %v9031
      %v9128 = vpack.c.b16 %v9036, %v9032
      %v9129 = vpack.c.b16 %v9037, %v9033
      %v9130 = vpack.c.b16 %v9038, %v9034
      %v9131 = vpack.c.b16 %v9043, %v9039
      %v9132 = vpack.c.b16 %v9044, %v9040
      %v9133 = vpack.c.b16 %v9045, %v9041
      %v9134 = vpack.c.b16 %v9046, %v9042
      %v9135 = vpack.c.b16 %v9051, %v9047
      %v9136 = vpack.c.b16 %v9052, %v9048
      %v9137 = vpack.c.b16 %v9053, %v9049
      %v9138 = vpack.c.b16 %v9054, %v9050
      %v9139 = vpack.c.b16 %v9059, %v9055
      %v9140 = vpack.c.b16 %v9060, %v9056
      %v9141 = vpack.c.b16 %v9061, %v9057
      %v9142 = vpack.c.b16 %v9062, %v9058
      %v9143 = vpack.c.b16 %v9067, %v9063
      %v9144 = vpack.c.b16 %v9068, %v9064
      %v9145 = vpack.c.b16 %v9069, %v9065
      %v9146 = vpack.c.b16 %v9070, %v9066
      %v9147 = vpack.c.b16 %v9075, %v9071
      %v9148 = vpack.c.b16 %v9076, %v9072
      %v9149 = vpack.c.b16 %v9077, %v9073
      %v9150 = vpack.c.b16 %v9078, %v9074
      %v9151 = vpack.c.b16 %v9083, %v9079
      %v9152 = vpack.c.b16 %v9084, %v9080
      %v9153 = vpack.c.b16 %v9085, %v9081
      %v9154 = vpack.c.b16 %v9086, %v9082
      %v9155 = vpack.c.b16 %v9091, %v9087
      %v9156 = vpack.c.b16 %v9092, %v9088
      %v9157 = vpack.c.b16 %v9093, %v9089
      %v9158 = vpack.c.b16 %v9094, %v9090
      %9223 = vmatprep.subr.bf16.mxu0 %v9124
      %9224 = vmatpush1.bf16.msra.mxu0 %v9123
      %9225 = vmatprep.subr.bf16.mxu0 %v9120
      %9226 = vmatpush1.bf16.msra.mxu0 %v9119
      %9227 = vmatprep.subr.bf16.mxu0 %v9116
      %9228 = vmatpush1.bf16.msra.mxu0 %v9115
      %9229 = vmatprep.subr.bf16.mxu0 %v9112
      %9230 = vmatpush1.bf16.msra.mxu0 %v9111
      %9231 = vmatprep.subr.bf16.mxu0 %v9108
      %9232 = vmatpush1.bf16.msra.mxu0 %v9107
      %9233 = vmatprep.subr.bf16.mxu0 %v9104
      %9234 = vmatpush1.bf16.msra.mxu0 %v9103
      %9235 = vmatprep.subr.bf16.mxu0 %v9100
      %9236 = vmatpush1.bf16.msra.mxu0 %v9099
      %9237 = vmatprep.subr.bf16.mxu0 %v9096
      %9238 = vmatpush1.bf16.msra.mxu0 %v9095
      %9239 = vmatprep.subr.bf16.mxu0 %v9156
      %9240 = vmatpush2.bf16.msra.mxu0 %v9155
      %9241 = vmatprep.subr.bf16.mxu0 %v9152
      %9242 = vmatpush2.bf16.msra.mxu0 %v9151
      %9243 = vmatprep.subr.bf16.mxu0 %v9148
      %9244 = vmatpush2.bf16.msra.mxu0 %v9147
      %9245 = vmatprep.subr.bf16.mxu0 %v9144
      %9246 = vmatpush2.bf16.msra.mxu0 %v9143
      %9247 = vmatprep.subr.bf16.mxu0 %v9140
      %9248 = vmatpush2.bf16.msra.mxu0 %v9139
      %9249 = vmatprep.subr.bf16.mxu0 %v9136
      %9250 = vmatpush2.bf16.msra.mxu0 %v9135
      %9251 = vmatprep.subr.bf16.mxu0 %v9132
      %9252 = vmatpush2.bf16.msra.mxu0 %v9131
      %9253 = vmatprep.subr.bf16.mxu0 %v9128
      %9254 = vmatpush2.bf16.msra.mxu0 %v9127
      %9255 = vmatprep.mubr.bf16.mxu0 %v8852
      %9256 = vmatmul.mubr.bf16.gmra.mxu0 %v8849
      %v9257 = vpop.f32.mrf.mxu0
      %v9258 = vadd.f32 0.0, %v9257
      %v9259 = vpop.f32.mrf.mxu0
      %v9260 = vadd.f32 0.0, %v9259
      %v9261 = vpop.f32.mrf.mxu0
      %v9262 = vadd.f32 0.0, %v9261
      %v9263 = vpop.f32.mrf.mxu0
      %v9264 = vadd.f32 0.0, %v9263
      %9265 = vmatprep.mubr.bf16.mxu0 %v8856
      %9266 = vmatmul.mubr.bf16.gmra.mxu0 %v8854
      %v9267 = vpop.f32.mrf.mxu0
      %v9268 = vadd.f32 0.0, %v9267
      %v9269 = vpop.f32.mrf.mxu0
      %v9270 = vadd.f32 0.0, %v9269
      %v9271 = vpop.f32.mrf.mxu0
      %v9272 = vadd.f32 0.0, %v9271
      %v9273 = vpop.f32.mrf.mxu0
      %v9274 = vadd.f32 0.0, %v9273
      %9275 = vmatprep.mubr.bf16.mxu0 %v8860
      %9276 = vmatmul.mubr.bf16.gmra.mxu0 %v8858
      %v9277 = vpop.f32.mrf.mxu0
      %v9278 = vadd.f32 0.0, %v9277
      %v9279 = vpop.f32.mrf.mxu0
      %v9280 = vadd.f32 0.0, %v9279
      %v9281 = vpop.f32.mrf.mxu0
      %v9282 = vadd.f32 0.0, %v9281
      %v9283 = vpop.f32.mrf.mxu0
      %v9284 = vadd.f32 0.0, %v9283
      %9285 = vmatprep.mubr.bf16.mxu0 %v8864
      %9286 = vmatmul.mubr.bf16.gmra.mxu0 %v8862
      %v9287 = vpop.f32.mrf.mxu0
      %v9288 = vadd.f32 0.0, %v9287
      %v9289 = vpop.f32.mrf.mxu0
      %v9290 = vadd.f32 0.0, %v9289
      %v9291 = vpop.f32.mrf.mxu0
      %v9292 = vadd.f32 0.0, %v9291
      %v9293 = vpop.f32.mrf.mxu0
      %v9294 = vadd.f32 0.0, %v9293
      %9295 = vmatprep.mubr.bf16.mxu0 %v8868
      %9296 = vmatmul.mubr.bf16.gmra.mxu0 %v8866
      %v9297 = vpop.f32.mrf.mxu0
      %v9298 = vadd.f32 0.0, %v9297
      %v9299 = vpop.f32.mrf.mxu0
      %v9300 = vadd.f32 0.0, %v9299
      %v9301 = vpop.f32.mrf.mxu0
      %v9302 = vadd.f32 0.0, %v9301
      %v9303 = vpop.f32.mrf.mxu0
      %v9304 = vadd.f32 0.0, %v9303
      %9305 = vmatprep.mubr.bf16.mxu0 %v8872
      %9306 = vmatmul.mubr.bf16.gmra.mxu0 %v8870
      %v9307 = vpop.f32.mrf.mxu0
      %v9308 = vadd.f32 0.0, %v9307
      %v9309 = vpop.f32.mrf.mxu0
      %v9310 = vadd.f32 0.0, %v9309
      %v9311 = vpop.f32.mrf.mxu0
      %v9312 = vadd.f32 0.0, %v9311
      %v9313 = vpop.f32.mrf.mxu0
      %v9314 = vadd.f32 0.0, %v9313
      %9315 = vmatprep.mubr.bf16.mxu0 %v8876
      %9316 = vmatmul.mubr.bf16.gmra.mxu0 %v8874
      %v9317 = vpop.f32.mrf.mxu0
      %v9318 = vadd.f32 0.0, %v9317
      %v9319 = vpop.f32.mrf.mxu0
      %v9320 = vadd.f32 0.0, %v9319
      %v9321 = vpop.f32.mrf.mxu0
      %v9322 = vadd.f32 0.0, %v9321
      %v9323 = vpop.f32.mrf.mxu0
      %v9324 = vadd.f32 0.0, %v9323
      %9325 = vmatprep.mubr.bf16.mxu0 %v8880
      %9326 = vmatmul.mubr.bf16.gmra.mxu0 %v8878
      %v9327 = vpop.f32.mrf.mxu0
      %v9328 = vadd.f32 0.0, %v9327
      %v9329 = vpop.f32.mrf.mxu0
      %v9330 = vadd.f32 0.0, %v9329
      %v9331 = vpop.f32.mrf.mxu0
      %v9332 = vadd.f32 0.0, %v9331
      %v9333 = vpop.f32.mrf.mxu0
      %v9334 = vadd.f32 0.0, %v9333
      %9335 = vmatprep.mubr.bf16.mxu0 %v8884
      %9336 = vmatmul.mubr.bf16.gmra.mxu0 %v8882
      %v9337 = vpop.f32.mrf.mxu0
      %v9338 = vadd.f32 0.0, %v9337
      %v9339 = vpop.f32.mrf.mxu0
      %v9340 = vadd.f32 0.0, %v9339
      %v9341 = vpop.f32.mrf.mxu0
      %v9342 = vadd.f32 0.0, %v9341
      %v9343 = vpop.f32.mrf.mxu0
      %v9344 = vadd.f32 0.0, %v9343
      %9345 = vdwg.mxu0
      %9346 = vmatprep.subr.bf16.mxu0 %v9126
      %9347 = vmatpush1.bf16.msra.mxu0 %v9125
      %9348 = vmatprep.subr.bf16.mxu0 %v9122
      %9349 = vmatpush1.bf16.msra.mxu0 %v9121
      %9350 = vmatprep.subr.bf16.mxu0 %v9118
      %9351 = vmatpush1.bf16.msra.mxu0 %v9117
      %9352 = vmatprep.subr.bf16.mxu0 %v9114
      %9353 = vmatpush1.bf16.msra.mxu0 %v9113
      %9354 = vmatprep.subr.bf16.mxu0 %v9110
      %9355 = vmatpush1.bf16.msra.mxu0 %v9109
      %9356 = vmatprep.subr.bf16.mxu0 %v9106
      %9357 = vmatpush1.bf16.msra.mxu0 %v9105
      %9358 = vmatprep.subr.bf16.mxu0 %v9102
      %9359 = vmatpush1.bf16.msra.mxu0 %v9101
      %9360 = vmatprep.subr.bf16.mxu0 %v9098
      %9361 = vmatpush1.bf16.msra.mxu0 %v9097
      %9362 = vmatprep.subr.bf16.mxu0 %v9158
      %9363 = vmatpush2.bf16.msra.mxu0 %v9157
      %9364 = vmatprep.subr.bf16.mxu0 %v9154
      %9365 = vmatpush2.bf16.msra.mxu0 %v9153
      %9366 = vmatprep.subr.bf16.mxu0 %v9150
      %9367 = vmatpush2.bf16.msra.mxu0 %v9149
      %9368 = vmatprep.subr.bf16.mxu0 %v9146
      %9369 = vmatpush2.bf16.msra.mxu0 %v9145
      %9370 = vmatprep.subr.bf16.mxu0 %v9142
      %9371 = vmatpush2.bf16.msra.mxu0 %v9141
      %9372 = vmatprep.subr.bf16.mxu0 %v9138
      %9373 = vmatpush2.bf16.msra.mxu0 %v9137
      %9374 = vmatprep.subr.bf16.mxu0 %v9134
      %9375 = vmatpush2.bf16.msra.mxu0 %v9133
      %9376 = vmatprep.subr.bf16.mxu0 %v9130
      %9377 = vmatpush2.bf16.msra.mxu0 %v9129
      %9378 = vmatprep.mubr.bf16.mxu0 %v8852
      %9379 = vmatmul.mubr.bf16.gmra.mxu0 %v8849
      %v9380 = vpop.f32.mrf.mxu0
      %v9381 = vadd.f32 0.0, %v9380
      %v9382 = vpop.f32.mrf.mxu0
      %v9383 = vadd.f32 0.0, %v9382
      %v9384 = vpop.f32.mrf.mxu0
      %v9385 = vadd.f32 0.0, %v9384
      %v9386 = vpop.f32.mrf.mxu0
      %v9387 = vadd.f32 0.0, %v9386
      %9388 = vmatprep.mubr.bf16.mxu0 %v8856
      %9389 = vmatmul.mubr.bf16.gmra.mxu0 %v8854
      %v9390 = vpop.f32.mrf.mxu0
      %v9391 = vadd.f32 0.0, %v9390
      %v9392 = vpop.f32.mrf.mxu0
      %v9393 = vadd.f32 0.0, %v9392
      %v9394 = vpop.f32.mrf.mxu0
      %v9395 = vadd.f32 0.0, %v9394
      %v9396 = vpop.f32.mrf.mxu0
      %v9397 = vadd.f32 0.0, %v9396
      %9398 = vmatprep.mubr.bf16.mxu0 %v8860
      %9399 = vmatmul.mubr.bf16.gmra.mxu0 %v8858
      %v9400 = vpop.f32.mrf.mxu0
      %v9401 = vadd.f32 0.0, %v9400
      %v9402 = vpop.f32.mrf.mxu0
      %v9403 = vadd.f32 0.0, %v9402
      %v9404 = vpop.f32.mrf.mxu0
      %v9405 = vadd.f32 0.0, %v9404
      %v9406 = vpop.f32.mrf.mxu0
      %v9407 = vadd.f32 0.0, %v9406
      %9408 = vmatprep.mubr.bf16.mxu0 %v8864
      %9409 = vmatmul.mubr.bf16.gmra.mxu0 %v8862
      %v9410 = vpop.f32.mrf.mxu0
      %v9411 = vadd.f32 0.0, %v9410
      %v9412 = vpop.f32.mrf.mxu0
      %v9413 = vadd.f32 0.0, %v9412
      %v9414 = vpop.f32.mrf.mxu0
      %v9415 = vadd.f32 0.0, %v9414
      %v9416 = vpop.f32.mrf.mxu0
      %v9417 = vadd.f32 0.0, %v9416
      %9418 = vmatprep.mubr.bf16.mxu0 %v8868
      %9419 = vmatmul.mubr.bf16.gmra.mxu0 %v8866
      %v9420 = vpop.f32.mrf.mxu0
      %v9421 = vadd.f32 0.0, %v9420
      %v9422 = vpop.f32.mrf.mxu0
      %v9423 = vadd.f32 0.0, %v9422
      %v9424 = vpop.f32.mrf.mxu0
      %v9425 = vadd.f32 0.0, %v9424
      %v9426 = vpop.f32.mrf.mxu0
      %v9427 = vadd.f32 0.0, %v9426
      %9428 = vmatprep.mubr.bf16.mxu0 %v8872
      %9429 = vmatmul.mubr.bf16.gmra.mxu0 %v8870
      %v9430 = vpop.f32.mrf.mxu0
      %v9431 = vadd.f32 0.0, %v9430
      %v9432 = vpop.f32.mrf.mxu0
      %v9433 = vadd.f32 0.0, %v9432
      %v9434 = vpop.f32.mrf.mxu0
      %v9435 = vadd.f32 0.0, %v9434
      %v9436 = vpop.f32.mrf.mxu0
      %v9437 = vadd.f32 0.0, %v9436
      %9438 = vmatprep.mubr.bf16.mxu0 %v8876
      %9439 = vmatmul.mubr.bf16.gmra.mxu0 %v8874
      %v9440 = vpop.f32.mrf.mxu0
      %v9441 = vadd.f32 0.0, %v9440
      %v9442 = vpop.f32.mrf.mxu0
      %v9443 = vadd.f32 0.0, %v9442
      %v9444 = vpop.f32.mrf.mxu0
      %v9445 = vadd.f32 0.0, %v9444
      %v9446 = vpop.f32.mrf.mxu0
      %v9447 = vadd.f32 0.0, %v9446
      %9448 = vmatprep.mubr.bf16.mxu0 %v8880
      %9449 = vmatmul.mubr.bf16.gmra.mxu0 %v8878
      %v9450 = vpop.f32.mrf.mxu0
      %v9451 = vadd.f32 0.0, %v9450
      %v9452 = vpop.f32.mrf.mxu0
      %v9453 = vadd.f32 0.0, %v9452
      %v9454 = vpop.f32.mrf.mxu0
      %v9455 = vadd.f32 0.0, %v9454
      %v9456 = vpop.f32.mrf.mxu0
      %v9457 = vadd.f32 0.0, %v9456
      %9458 = vmatprep.mubr.bf16.mxu0 %v8884
      %9459 = vmatmul.mubr.bf16.gmra.mxu0 %v8882
      %v9460 = vpop.f32.mrf.mxu0
      %v9461 = vadd.f32 0.0, %v9460
      %v9462 = vpop.f32.mrf.mxu0
      %v9463 = vadd.f32 0.0, %v9462
      %v9464 = vpop.f32.mrf.mxu0
      %v9465 = vadd.f32 0.0, %v9464
      %v9466 = vpop.f32.mrf.mxu0
      %v9467 = vadd.f32 0.0, %v9466
      %9468 = vdwg.mxu0
      %v9469 = vadd.f32 %v8707, %v9258
      %v9470 = vadd.f32 %v8708, %v9260
      %v9471 = vadd.f32 %v8709, %v9381
      %v9472 = vadd.f32 %v8710, %v9383
      %v9473 = vadd.f32 %v8711, %v9262
      %v9474 = vadd.f32 %v8712, %v9264
      %v9475 = vadd.f32 %v8713, %v9385
      %v9476 = vadd.f32 %v8714, %v9387
      %v9477 = vadd.f32 %v8715, %v9268
      %v9478 = vadd.f32 %v8716, %v9270
      %v9479 = vadd.f32 %v8717, %v9391
      %v9480 = vadd.f32 %v8718, %v9393
      %v9481 = vadd.f32 %v8719, %v9272
      %v9482 = vadd.f32 %v8720, %v9274
      %v9483 = vadd.f32 %v8721, %v9395
      %v9484 = vadd.f32 %v8722, %v9397
      %v9485 = vadd.f32 %v8723, %v9278
      %v9486 = vadd.f32 %v8724, %v9280
      %v9487 = vadd.f32 %v8725, %v9401
      %v9488 = vadd.f32 %v8726, %v9403
      %v9489 = vadd.f32 %v8727, %v9282
      %v9490 = vadd.f32 %v8728, %v9284
      %v9491 = vadd.f32 %v8729, %v9405
      %v9492 = vadd.f32 %v8730, %v9407
      %v9493 = vadd.f32 %v8731, %v9288
      %v9494 = vadd.f32 %v8732, %v9290
      %v9495 = vadd.f32 %v8733, %v9411
      %v9496 = vadd.f32 %v8734, %v9413
      %v9497 = vadd.f32 %v8735, %v9292
      %v9498 = vadd.f32 %v8736, %v9294
      %v9499 = vadd.f32 %v8737, %v9415
      %v9500 = vadd.f32 %v8738, %v9417
      %v9501 = vadd.f32 %v8739, %v9298
      %v9502 = vadd.f32 %v8740, %v9300
      %v9503 = vadd.f32 %v8741, %v9421
      %v9504 = vadd.f32 %v8742, %v9423
      %v9505 = vadd.f32 %v8743, %v9302
      %v9506 = vadd.f32 %v8744, %v9304
      %v9507 = vadd.f32 %v8745, %v9425
      %v9508 = vadd.f32 %v8746, %v9427
      %v9509 = vadd.f32 %v8747, %v9308
      %v9510 = vadd.f32 %v8748, %v9310
      %v9511 = vadd.f32 %v8749, %v9431
      %v9512 = vadd.f32 %v8750, %v9433
      %v9513 = vadd.f32 %v8751, %v9312
      %v9514 = vadd.f32 %v8752, %v9314
      %v9515 = vadd.f32 %v8753, %v9435
      %v9516 = vadd.f32 %v8754, %v9437
      %v9517 = vadd.f32 %v8755, %v9318
      %v9518 = vadd.f32 %v8756, %v9320
      %v9519 = vadd.f32 %v8757, %v9441
      %v9520 = vadd.f32 %v8758, %v9443
      %v9521 = vadd.f32 %v8759, %v9322
      %v9522 = vadd.f32 %v8760, %v9324
      %v9523 = vadd.f32 %v8761, %v9445
      %v9524 = vadd.f32 %v8762, %v9447
      %v9525 = vadd.f32 %v8763, %v9328
      %v9526 = vadd.f32 %v8764, %v9330
      %v9527 = vadd.f32 %v8765, %v9451
      %v9528 = vadd.f32 %v8766, %v9453
      %v9529 = vadd.f32 %v8767, %v9332
      %v9530 = vadd.f32 %v8768, %v9334
      %v9531 = vadd.f32 %v8769, %v9455
      %v9532 = vadd.f32 %v8770, %v9457
      %v9533 = vadd.f32 %v8771, %v9338
      %v9534 = vadd.f32 %v8772, %v9340
      %v9535 = vadd.f32 %v8773, %v9461
      %v9536 = vadd.f32 %v8774, %v9463
      %v9537 = vadd.f32 %v8775, %v9342
      %v9538 = vadd.f32 %v8776, %v9344
      %v9539 = vadd.f32 %v8777, %v9465
      %v9540 = vadd.f32 %v8778, %v9467
      %s9541 = scalar_lea.vmem %s4, 3584
      %v9542 = vld [vmem:[%s9541] sm:$0xff]
      %v9543 = vld [vmem:[%s9541 + $0x8] sm:$0xff]
      %v9544 = vld [vmem:[%s9541 + $0x10] sm:$0xff]
      %v9545 = vld [vmem:[%s9541 + $0x18] sm:$0xff]
      %v9546 = vld [vmem:[%s9541 + $0x20] sm:$0xff]
      %v9547 = vld [vmem:[%s9541 + $0x28] sm:$0xff]
      %v9548 = vld [vmem:[%s9541 + $0x30] sm:$0xff]
      %v9549 = vld [vmem:[%s9541 + $0x38] sm:$0xff]
      %v9550 = vld [vmem:[%s9541 + $0x40] sm:$0xff]
      %v9551 = vld [vmem:[%s9541 + $0x48] sm:$0xff]
      %v9552 = vld [vmem:[%s9541 + $0x50] sm:$0xff]
      %v9553 = vld [vmem:[%s9541 + $0x58] sm:$0xff]
      %v9554 = vld [vmem:[%s9541 + $0x60] sm:$0xff]
      %v9555 = vld [vmem:[%s9541 + $0x68] sm:$0xff]
      %v9556 = vld [vmem:[%s9541 + $0x70] sm:$0xff]
      %v9557 = vld [vmem:[%s9541 + $0x78] sm:$0xff]
      %v9558 = vld [vmem:[%s9541 + $0x80] sm:$0xff]
      %v9559 = vld [vmem:[%s9541 + $0x88] sm:$0xff]
      %v9560 = vld [vmem:[%s9541 + $0x90] sm:$0xff]
      %v9561 = vld [vmem:[%s9541 + $0x98] sm:$0xff]
      %v9562 = vld [vmem:[%s9541 + $0xa0] sm:$0xff]
      %v9563 = vld [vmem:[%s9541 + $0xa8] sm:$0xff]
      %v9564 = vld [vmem:[%s9541 + $0xb0] sm:$0xff]
      %v9565 = vld [vmem:[%s9541 + $0xb8] sm:$0xff]
      %v9566 = vld [vmem:[%s9541 + $0xc0] sm:$0xff]
      %v9567 = vld [vmem:[%s9541 + $0xc8] sm:$0xff]
      %v9568 = vld [vmem:[%s9541 + $0xd0] sm:$0xff]
      %v9569 = vld [vmem:[%s9541 + $0xd8] sm:$0xff]
      %v9570 = vld [vmem:[%s9541 + $0xe0] sm:$0xff]
      %v9571 = vld [vmem:[%s9541 + $0xe8] sm:$0xff]
      %v9572 = vld [vmem:[%s9541 + $0xf0] sm:$0xff]
      %v9573 = vld [vmem:[%s9541 + $0xf8] sm:$0xff]
      %v9574 = vld [vmem:[%s9541 + $0x100] sm:$0xff]
      %v9575 = vld [vmem:[%s9541 + $0x108] sm:$0xff]
      %v9576 = vld [vmem:[%s9541 + $0x110] sm:$0xff]
      %v9577 = vld [vmem:[%s9541 + $0x118] sm:$0xff]
      %v9578 = vld [vmem:[%s9541 + $0x120] sm:$0xff]
      %v9579 = vld [vmem:[%s9541 + $0x128] sm:$0xff]
      %v9580 = vld [vmem:[%s9541 + $0x130] sm:$0xff]
      %v9581 = vld [vmem:[%s9541 + $0x138] sm:$0xff]
      %v9582 = vld [vmem:[%s9541 + $0x140] sm:$0xff]
      %v9583 = vld [vmem:[%s9541 + $0x148] sm:$0xff]
      %v9584 = vld [vmem:[%s9541 + $0x150] sm:$0xff]
      %v9585 = vld [vmem:[%s9541 + $0x158] sm:$0xff]
      %v9586 = vld [vmem:[%s9541 + $0x160] sm:$0xff]
      %v9587 = vld [vmem:[%s9541 + $0x168] sm:$0xff]
      %v9588 = vld [vmem:[%s9541 + $0x170] sm:$0xff]
      %v9589 = vld [vmem:[%s9541 + $0x178] sm:$0xff]
      %v9590 = vld [vmem:[%s9541 + $0x180] sm:$0xff]
      %v9591 = vld [vmem:[%s9541 + $0x188] sm:$0xff]
      %v9592 = vld [vmem:[%s9541 + $0x190] sm:$0xff]
      %v9593 = vld [vmem:[%s9541 + $0x198] sm:$0xff]
      %v9594 = vld [vmem:[%s9541 + $0x1a0] sm:$0xff]
      %v9595 = vld [vmem:[%s9541 + $0x1a8] sm:$0xff]
      %v9596 = vld [vmem:[%s9541 + $0x1b0] sm:$0xff]
      %v9597 = vld [vmem:[%s9541 + $0x1b8] sm:$0xff]
      %v9598 = vld [vmem:[%s9541 + $0x1c0] sm:$0xff]
      %v9599 = vld [vmem:[%s9541 + $0x1c8] sm:$0xff]
      %v9600 = vld [vmem:[%s9541 + $0x1d0] sm:$0xff]
      %v9601 = vld [vmem:[%s9541 + $0x1d8] sm:$0xff]
      %v9602 = vld [vmem:[%s9541 + $0x1e0] sm:$0xff]
      %v9603 = vld [vmem:[%s9541 + $0x1e8] sm:$0xff]
      %v9604 = vld [vmem:[%s9541 + $0x1f0] sm:$0xff]
      %v9605 = vld [vmem:[%s9541 + $0x1f8] sm:$0xff]
      %vm9606 = vsmask.f32 2304
      %v9607 = vrot.slane %v4383, 5
      %v9608 = vrot.slane %v4367, 6
      %v9609 = vor.u32 %v9607, %v9608
      %v9610 = vrot.slane %v4399, 5
      %v9611 = vrot.slane %v4387, 6
      %v9612 = vor.u32 %v9610, %v9611
      %v9613 = vsel %vm9606, %v9609, %v9612
      %v9614 = vrot.slane %v4391, 5
      %v9615 = vrot.slane %v4379, 6
      %v9616 = vor.u32 %v9614, %v9615
      %v9617 = vrot.slane %v4407, 5
      %v9618 = vrot.slane %v4395, 6
      %v9619 = vor.u32 %v9617, %v9618
      %v9620 = vsel %vm9606, %v9616, %v9619
      %v9621 = vrot.slane %v4415, 5
      %v9622 = vrot.slane %v4403, 6
      %v9623 = vor.u32 %v9621, %v9622
      %v9624 = vsel %vm9606, %v9612, %v9623
      %v9625 = vrot.slane %v4423, 5
      %v9626 = vrot.slane %v4411, 6
      %v9627 = vor.u32 %v9625, %v9626
      %v9628 = vsel %vm9606, %v9619, %v9627
      %v9629 = vrot.slane %v4431, 5
      %v9630 = vrot.slane %v4419, 6
      %v9631 = vor.u32 %v9629, %v9630
      %v9632 = vsel %vm9606, %v9623, %v9631
      %v9633 = vrot.slane %v4439, 5
      %v9634 = vrot.slane %v4427, 6
      %v9635 = vor.u32 %v9633, %v9634
      %v9636 = vsel %vm9606, %v9627, %v9635
      %v9637 = vrot.slane %v4447, 5
      %v9638 = vrot.slane %v4435, 6
      %v9639 = vor.u32 %v9637, %v9638
      %v9640 = vsel %vm9606, %v9631, %v9639
      %v9641 = vrot.slane %v4455, 5
      %v9642 = vrot.slane %v4443, 6
      %v9643 = vor.u32 %v9641, %v9642
      %v9644 = vsel %vm9606, %v9635, %v9643
      %v9645 = vrot.slane %v4463, 5
      %v9646 = vrot.slane %v4451, 6
      %v9647 = vor.u32 %v9645, %v9646
      %v9648 = vsel %vm9606, %v9639, %v9647
      %v9649 = vrot.slane %v4471, 5
      %v9650 = vrot.slane %v4459, 6
      %v9651 = vor.u32 %v9649, %v9650
      %v9652 = vsel %vm9606, %v9643, %v9651
      %v9653 = vrot.slane %v4479, 5
      %v9654 = vrot.slane %v4467, 6
      %v9655 = vor.u32 %v9653, %v9654
      %v9656 = vsel %vm9606, %v9647, %v9655
      %v9657 = vrot.slane %v4487, 5
      %v9658 = vrot.slane %v4475, 6
      %v9659 = vor.u32 %v9657, %v9658
      %v9660 = vsel %vm9606, %v9651, %v9659
      %v9661 = vrot.slane %v4495, 5
      %v9662 = vrot.slane %v4483, 6
      %v9663 = vor.u32 %v9661, %v9662
      %v9664 = vsel %vm9606, %v9655, %v9663
      %v9665 = vrot.slane %v4498, 5
      %v9666 = vrot.slane %v4491, 6
      %v9667 = vor.u32 %v9665, %v9666
      %v9668 = vsel %vm9606, %v9659, %v9667
      %v9669 = vrot.slane %v6568, 5
      %v9670 = vrot.slane %v6571, 6
      %v9671 = vor.u32 %v9669, %v9670
      %v9672 = vsel %vm9606, %v9663, %v9671
      %v9673 = vrot.slane %v6577, 5
      %v9674 = vrot.slane %v6580, 6
      %v9675 = vor.u32 %v9673, %v9674
      %v9676 = vsel %vm9606, %v9667, %v9675
      %v9678 = vshrl.u32 %v4227, 16
      %v9680 = vrot.slane %v9678, 5
      %v9681 = vshll.u32 %v4227, 16
      %v9683 = vrot.slane %v9681, 6
      %v9684 = vor.u32 %v9680, %v9683
      %v9685 = vsel %vm9606, %v9671, %v9684
      %v9687 = vshrl.u32 %v4228, 16
      %v9689 = vrot.slane %v9687, 5
      %v9690 = vshll.u32 %v4228, 16
      %v9692 = vrot.slane %v9690, 6
      %v9693 = vor.u32 %v9689, %v9692
      %v9694 = vsel %vm9606, %v9675, %v9693
      %v9777 = vunpack.c.l.b16 %v9542
      %v9778 = vunpack.c.h.b16 %v9542
      %v9779 = vunpack.c.l.b16 %v9543
      %v9780 = vunpack.c.h.b16 %v9543
      %v9781 = vunpack.c.l.b16 %v9544
      %v9782 = vunpack.c.h.b16 %v9544
      %v9783 = vunpack.c.l.b16 %v9545
      %v9784 = vunpack.c.h.b16 %v9545
      %v9785 = vunpack.c.l.b16 %v9546
      %v9786 = vunpack.c.h.b16 %v9546
      %v9787 = vunpack.c.l.b16 %v9547
      %v9788 = vunpack.c.h.b16 %v9547
      %v9789 = vunpack.c.l.b16 %v9548
      %v9790 = vunpack.c.h.b16 %v9548
      %v9791 = vunpack.c.l.b16 %v9549
      %v9792 = vunpack.c.h.b16 %v9549
      %v9793 = vunpack.c.l.b16 %v9550
      %v9794 = vunpack.c.h.b16 %v9550
      %v9795 = vunpack.c.l.b16 %v9551
      %v9796 = vunpack.c.h.b16 %v9551
      %v9797 = vunpack.c.l.b16 %v9552
      %v9798 = vunpack.c.h.b16 %v9552
      %v9799 = vunpack.c.l.b16 %v9553
      %v9800 = vunpack.c.h.b16 %v9553
      %v9801 = vunpack.c.l.b16 %v9554
      %v9802 = vunpack.c.h.b16 %v9554
      %v9803 = vunpack.c.l.b16 %v9555
      %v9804 = vunpack.c.h.b16 %v9555
      %v9805 = vunpack.c.l.b16 %v9556
      %v9806 = vunpack.c.h.b16 %v9556
      %v9807 = vunpack.c.l.b16 %v9557
      %v9808 = vunpack.c.h.b16 %v9557
      %v9809 = vunpack.c.l.b16 %v9558
      %v9810 = vunpack.c.h.b16 %v9558
      %v9811 = vunpack.c.l.b16 %v9559
      %v9812 = vunpack.c.h.b16 %v9559
      %v9813 = vunpack.c.l.b16 %v9560
      %v9814 = vunpack.c.h.b16 %v9560
      %v9815 = vunpack.c.l.b16 %v9561
      %v9816 = vunpack.c.h.b16 %v9561
      %v9817 = vunpack.c.l.b16 %v9562
      %v9818 = vunpack.c.h.b16 %v9562
      %v9819 = vunpack.c.l.b16 %v9563
      %v9820 = vunpack.c.h.b16 %v9563
      %v9821 = vunpack.c.l.b16 %v9564
      %v9822 = vunpack.c.h.b16 %v9564
      %v9823 = vunpack.c.l.b16 %v9565
      %v9824 = vunpack.c.h.b16 %v9565
      %v9825 = vunpack.c.l.b16 %v9566
      %v9826 = vunpack.c.h.b16 %v9566
      %v9827 = vunpack.c.l.b16 %v9567
      %v9828 = vunpack.c.h.b16 %v9567
      %v9829 = vunpack.c.l.b16 %v9568
      %v9830 = vunpack.c.h.b16 %v9568
      %v9831 = vunpack.c.l.b16 %v9569
      %v9832 = vunpack.c.h.b16 %v9569
      %v9833 = vunpack.c.l.b16 %v9570
      %v9834 = vunpack.c.h.b16 %v9570
      %v9835 = vunpack.c.l.b16 %v9571
      %v9836 = vunpack.c.h.b16 %v9571
      %v9837 = vunpack.c.l.b16 %v9572
      %v9838 = vunpack.c.h.b16 %v9572
      %v9839 = vunpack.c.l.b16 %v9573
      %v9840 = vunpack.c.h.b16 %v9573
      %v9841 = vunpack.c.l.b16 %v9574
      %v9842 = vunpack.c.h.b16 %v9574
      %v9843 = vunpack.c.l.b16 %v9575
      %v9844 = vunpack.c.h.b16 %v9575
      %v9845 = vunpack.c.l.b16 %v9576
      %v9846 = vunpack.c.h.b16 %v9576
      %v9847 = vunpack.c.l.b16 %v9577
      %v9848 = vunpack.c.h.b16 %v9577
      %v9849 = vunpack.c.l.b16 %v9578
      %v9850 = vunpack.c.h.b16 %v9578
      %v9851 = vunpack.c.l.b16 %v9579
      %v9852 = vunpack.c.h.b16 %v9579
      %v9853 = vunpack.c.l.b16 %v9580
      %v9854 = vunpack.c.h.b16 %v9580
      %v9855 = vunpack.c.l.b16 %v9581
      %v9856 = vunpack.c.h.b16 %v9581
      %v9857 = vunpack.c.l.b16 %v9582
      %v9858 = vunpack.c.h.b16 %v9582
      %v9859 = vunpack.c.l.b16 %v9583
      %v9860 = vunpack.c.h.b16 %v9583
      %v9861 = vunpack.c.l.b16 %v9584
      %v9862 = vunpack.c.h.b16 %v9584
      %v9863 = vunpack.c.l.b16 %v9585
      %v9864 = vunpack.c.h.b16 %v9585
      %v9865 = vunpack.c.l.b16 %v9586
      %v9866 = vunpack.c.h.b16 %v9586
      %v9867 = vunpack.c.l.b16 %v9587
      %v9868 = vunpack.c.h.b16 %v9587
      %v9869 = vunpack.c.l.b16 %v9588
      %v9870 = vunpack.c.h.b16 %v9588
      %v9871 = vunpack.c.l.b16 %v9589
      %v9872 = vunpack.c.h.b16 %v9589
      %v9873 = vunpack.c.l.b16 %v9590
      %v9874 = vunpack.c.h.b16 %v9590
      %v9875 = vunpack.c.l.b16 %v9591
      %v9876 = vunpack.c.h.b16 %v9591
      %v9877 = vunpack.c.l.b16 %v9592
      %v9878 = vunpack.c.h.b16 %v9592
      %v9879 = vunpack.c.l.b16 %v9593
      %v9880 = vunpack.c.h.b16 %v9593
      %v9881 = vunpack.c.l.b16 %v9594
      %v9882 = vunpack.c.h.b16 %v9594
      %v9883 = vunpack.c.l.b16 %v9595
      %v9884 = vunpack.c.h.b16 %v9595
      %v9885 = vunpack.c.l.b16 %v9596
      %v9886 = vunpack.c.h.b16 %v9596
      %v9887 = vunpack.c.l.b16 %v9597
      %v9888 = vunpack.c.h.b16 %v9597
      %v9889 = vunpack.c.l.b16 %v9598
      %v9890 = vunpack.c.h.b16 %v9598
      %v9891 = vunpack.c.l.b16 %v9599
      %v9892 = vunpack.c.h.b16 %v9599
      %v9893 = vunpack.c.l.b16 %v9600
      %v9894 = vunpack.c.h.b16 %v9600
      %v9895 = vunpack.c.l.b16 %v9601
      %v9896 = vunpack.c.h.b16 %v9601
      %v9897 = vunpack.c.l.b16 %v9602
      %v9898 = vunpack.c.h.b16 %v9602
      %v9899 = vunpack.c.l.b16 %v9603
      %v9900 = vunpack.c.h.b16 %v9603
      %v9901 = vunpack.c.l.b16 %v9604
      %v9902 = vunpack.c.h.b16 %v9604
      %v9903 = vunpack.c.l.b16 %v9605
      %v9904 = vunpack.c.h.b16 %v9605
      %v9905 = vpack.c.b16 %v9781, %v9777
      %v9906 = vpack.c.b16 %v9782, %v9778
      %v9907 = vpack.c.b16 %v9783, %v9779
      %v9908 = vpack.c.b16 %v9784, %v9780
      %v9909 = vpack.c.b16 %v9789, %v9785
      %v9910 = vpack.c.b16 %v9790, %v9786
      %v9911 = vpack.c.b16 %v9791, %v9787
      %v9912 = vpack.c.b16 %v9792, %v9788
      %v9913 = vpack.c.b16 %v9797, %v9793
      %v9914 = vpack.c.b16 %v9798, %v9794
      %v9915 = vpack.c.b16 %v9799, %v9795
      %v9916 = vpack.c.b16 %v9800, %v9796
      %v9917 = vpack.c.b16 %v9805, %v9801
      %v9918 = vpack.c.b16 %v9806, %v9802
      %v9919 = vpack.c.b16 %v9807, %v9803
      %v9920 = vpack.c.b16 %v9808, %v9804
      %v9921 = vpack.c.b16 %v9813, %v9809
      %v9922 = vpack.c.b16 %v9814, %v9810
      %v9923 = vpack.c.b16 %v9815, %v9811
      %v9924 = vpack.c.b16 %v9816, %v9812
      %v9925 = vpack.c.b16 %v9821, %v9817
      %v9926 = vpack.c.b16 %v9822, %v9818
      %v9927 = vpack.c.b16 %v9823, %v9819
      %v9928 = vpack.c.b16 %v9824, %v9820
      %v9929 = vpack.c.b16 %v9829, %v9825
      %v9930 = vpack.c.b16 %v9830, %v9826
      %v9931 = vpack.c.b16 %v9831, %v9827
      %v9932 = vpack.c.b16 %v9832, %v9828
      %v9933 = vpack.c.b16 %v9837, %v9833
      %v9934 = vpack.c.b16 %v9838, %v9834
      %v9935 = vpack.c.b16 %v9839, %v9835
      %v9936 = vpack.c.b16 %v9840, %v9836
      %v9937 = vpack.c.b16 %v9845, %v9841
      %v9938 = vpack.c.b16 %v9846, %v9842
      %v9939 = vpack.c.b16 %v9847, %v9843
      %v9940 = vpack.c.b16 %v9848, %v9844
      %v9941 = vpack.c.b16 %v9853, %v9849
      %v9942 = vpack.c.b16 %v9854, %v9850
      %v9943 = vpack.c.b16 %v9855, %v9851
      %v9944 = vpack.c.b16 %v9856, %v9852
      %v9945 = vpack.c.b16 %v9861, %v9857
      %v9946 = vpack.c.b16 %v9862, %v9858
      %v9947 = vpack.c.b16 %v9863, %v9859
      %v9948 = vpack.c.b16 %v9864, %v9860
      %v9949 = vpack.c.b16 %v9869, %v9865
      %v9950 = vpack.c.b16 %v9870, %v9866
      %v9951 = vpack.c.b16 %v9871, %v9867
      %v9952 = vpack.c.b16 %v9872, %v9868
      %v9953 = vpack.c.b16 %v9877, %v9873
      %v9954 = vpack.c.b16 %v9878, %v9874
      %v9955 = vpack.c.b16 %v9879, %v9875
      %v9956 = vpack.c.b16 %v9880, %v9876
      %v9957 = vpack.c.b16 %v9885, %v9881
      %v9958 = vpack.c.b16 %v9886, %v9882
      %v9959 = vpack.c.b16 %v9887, %v9883
      %v9960 = vpack.c.b16 %v9888, %v9884
      %v9961 = vpack.c.b16 %v9893, %v9889
      %v9962 = vpack.c.b16 %v9894, %v9890
      %v9963 = vpack.c.b16 %v9895, %v9891
      %v9964 = vpack.c.b16 %v9896, %v9892
      %v9965 = vpack.c.b16 %v9901, %v9897
      %v9966 = vpack.c.b16 %v9902, %v9898
      %v9967 = vpack.c.b16 %v9903, %v9899
      %v9968 = vpack.c.b16 %v9904, %v9900
      %10033 = vmatprep.subr.bf16.mxu0 %v9934
      %10034 = vmatpush1.bf16.msra.mxu0 %v9933
      %10035 = vmatprep.subr.bf16.mxu0 %v9930
      %10036 = vmatpush1.bf16.msra.mxu0 %v9929
      %10037 = vmatprep.subr.bf16.mxu0 %v9926
      %10038 = vmatpush1.bf16.msra.mxu0 %v9925
      %10039 = vmatprep.subr.bf16.mxu0 %v9922
      %10040 = vmatpush1.bf16.msra.mxu0 %v9921
      %10041 = vmatprep.subr.bf16.mxu0 %v9918
      %10042 = vmatpush1.bf16.msra.mxu0 %v9917
      %10043 = vmatprep.subr.bf16.mxu0 %v9914
      %10044 = vmatpush1.bf16.msra.mxu0 %v9913
      %10045 = vmatprep.subr.bf16.mxu0 %v9910
      %10046 = vmatpush1.bf16.msra.mxu0 %v9909
      %10047 = vmatprep.subr.bf16.mxu0 %v9906
      %10048 = vmatpush1.bf16.msra.mxu0 %v9905
      %10049 = vmatprep.subr.bf16.mxu0 %v9966
      %10050 = vmatpush2.bf16.msra.mxu0 %v9965
      %10051 = vmatprep.subr.bf16.mxu0 %v9962
      %10052 = vmatpush2.bf16.msra.mxu0 %v9961
      %10053 = vmatprep.subr.bf16.mxu0 %v9958
      %10054 = vmatpush2.bf16.msra.mxu0 %v9957
      %10055 = vmatprep.subr.bf16.mxu0 %v9954
      %10056 = vmatpush2.bf16.msra.mxu0 %v9953
      %10057 = vmatprep.subr.bf16.mxu0 %v9950
      %10058 = vmatpush2.bf16.msra.mxu0 %v9949
      %10059 = vmatprep.subr.bf16.mxu0 %v9946
      %10060 = vmatpush2.bf16.msra.mxu0 %v9945
      %10061 = vmatprep.subr.bf16.mxu0 %v9942
      %10062 = vmatpush2.bf16.msra.mxu0 %v9941
      %10063 = vmatprep.subr.bf16.mxu0 %v9938
      %10064 = vmatpush2.bf16.msra.mxu0 %v9937
      %10065 = vmatprep.mubr.bf16.mxu0 %v9620
      %10066 = vmatmul.mubr.bf16.gmra.mxu0 %v9613
      %v10067 = vpop.f32.mrf.mxu0
      %v10068 = vadd.f32 0.0, %v10067
      %v10069 = vpop.f32.mrf.mxu0
      %v10070 = vadd.f32 0.0, %v10069
      %v10071 = vpop.f32.mrf.mxu0
      %v10072 = vadd.f32 0.0, %v10071
      %v10073 = vpop.f32.mrf.mxu0
      %v10074 = vadd.f32 0.0, %v10073
      %10075 = vmatprep.mubr.bf16.mxu0 %v9628
      %10076 = vmatmul.mubr.bf16.gmra.mxu0 %v9624
      %v10077 = vpop.f32.mrf.mxu0
      %v10078 = vadd.f32 0.0, %v10077
      %v10079 = vpop.f32.mrf.mxu0
      %v10080 = vadd.f32 0.0, %v10079
      %v10081 = vpop.f32.mrf.mxu0
      %v10082 = vadd.f32 0.0, %v10081
      %v10083 = vpop.f32.mrf.mxu0
      %v10084 = vadd.f32 0.0, %v10083
      %10085 = vmatprep.mubr.bf16.mxu0 %v9636
      %10086 = vmatmul.mubr.bf16.gmra.mxu0 %v9632
      %v10087 = vpop.f32.mrf.mxu0
      %v10088 = vadd.f32 0.0, %v10087
      %v10089 = vpop.f32.mrf.mxu0
      %v10090 = vadd.f32 0.0, %v10089
      %v10091 = vpop.f32.mrf.mxu0
      %v10092 = vadd.f32 0.0, %v10091
      %v10093 = vpop.f32.mrf.mxu0
      %v10094 = vadd.f32 0.0, %v10093
      %10095 = vmatprep.mubr.bf16.mxu0 %v9644
      %10096 = vmatmul.mubr.bf16.gmra.mxu0 %v9640
      %v10097 = vpop.f32.mrf.mxu0
      %v10098 = vadd.f32 0.0, %v10097
      %v10099 = vpop.f32.mrf.mxu0
      %v10100 = vadd.f32 0.0, %v10099
      %v10101 = vpop.f32.mrf.mxu0
      %v10102 = vadd.f32 0.0, %v10101
      %v10103 = vpop.f32.mrf.mxu0
      %v10104 = vadd.f32 0.0, %v10103
      %10105 = vmatprep.mubr.bf16.mxu0 %v9652
      %10106 = vmatmul.mubr.bf16.gmra.mxu0 %v9648
      %v10107 = vpop.f32.mrf.mxu0
      %v10108 = vadd.f32 0.0, %v10107
      %v10109 = vpop.f32.mrf.mxu0
      %v10110 = vadd.f32 0.0, %v10109
      %v10111 = vpop.f32.mrf.mxu0
      %v10112 = vadd.f32 0.0, %v10111
      %v10113 = vpop.f32.mrf.mxu0
      %v10114 = vadd.f32 0.0, %v10113
      %10115 = vmatprep.mubr.bf16.mxu0 %v9660
      %10116 = vmatmul.mubr.bf16.gmra.mxu0 %v9656
      %v10117 = vpop.f32.mrf.mxu0
      %v10118 = vadd.f32 0.0, %v10117
      %v10119 = vpop.f32.mrf.mxu0
      %v10120 = vadd.f32 0.0, %v10119
      %v10121 = vpop.f32.mrf.mxu0
      %v10122 = vadd.f32 0.0, %v10121
      %v10123 = vpop.f32.mrf.mxu0
      %v10124 = vadd.f32 0.0, %v10123
      %10125 = vmatprep.mubr.bf16.mxu0 %v9668
      %10126 = vmatmul.mubr.bf16.gmra.mxu0 %v9664
      %v10127 = vpop.f32.mrf.mxu0
      %v10128 = vadd.f32 0.0, %v10127
      %v10129 = vpop.f32.mrf.mxu0
      %v10130 = vadd.f32 0.0, %v10129
      %v10131 = vpop.f32.mrf.mxu0
      %v10132 = vadd.f32 0.0, %v10131
      %v10133 = vpop.f32.mrf.mxu0
      %v10134 = vadd.f32 0.0, %v10133
      %10135 = vmatprep.mubr.bf16.mxu0 %v9676
      %10136 = vmatmul.mubr.bf16.gmra.mxu0 %v9672
      %v10137 = vpop.f32.mrf.mxu0
      %v10138 = vadd.f32 0.0, %v10137
      %v10139 = vpop.f32.mrf.mxu0
      %v10140 = vadd.f32 0.0, %v10139
      %v10141 = vpop.f32.mrf.mxu0
      %v10142 = vadd.f32 0.0, %v10141
      %v10143 = vpop.f32.mrf.mxu0
      %v10144 = vadd.f32 0.0, %v10143
      %10145 = vmatprep.mubr.bf16.mxu0 %v9694
      %10146 = vmatmul.mubr.bf16.gmra.mxu0 %v9685
      %v10147 = vpop.f32.mrf.mxu0
      %v10148 = vadd.f32 0.0, %v10147
      %v10149 = vpop.f32.mrf.mxu0
      %v10150 = vadd.f32 0.0, %v10149
      %v10151 = vpop.f32.mrf.mxu0
      %v10152 = vadd.f32 0.0, %v10151
      %v10153 = vpop.f32.mrf.mxu0
      %v10154 = vadd.f32 0.0, %v10153
      %10155 = vdwg.mxu0
      %10156 = vmatprep.subr.bf16.mxu0 %v9936
      %10157 = vmatpush1.bf16.msra.mxu0 %v9935
      %10158 = vmatprep.subr.bf16.mxu0 %v9932
      %10159 = vmatpush1.bf16.msra.mxu0 %v9931
      %10160 = vmatprep.subr.bf16.mxu0 %v9928
      %10161 = vmatpush1.bf16.msra.mxu0 %v9927
      %10162 = vmatprep.subr.bf16.mxu0 %v9924
      %10163 = vmatpush1.bf16.msra.mxu0 %v9923
      %10164 = vmatprep.subr.bf16.mxu0 %v9920
      %10165 = vmatpush1.bf16.msra.mxu0 %v9919
      %10166 = vmatprep.subr.bf16.mxu0 %v9916
      %10167 = vmatpush1.bf16.msra.mxu0 %v9915
      %10168 = vmatprep.subr.bf16.mxu0 %v9912
      %10169 = vmatpush1.bf16.msra.mxu0 %v9911
      %10170 = vmatprep.subr.bf16.mxu0 %v9908
      %10171 = vmatpush1.bf16.msra.mxu0 %v9907
      %10172 = vmatprep.subr.bf16.mxu0 %v9968
      %10173 = vmatpush2.bf16.msra.mxu0 %v9967
      %10174 = vmatprep.subr.bf16.mxu0 %v9964
      %10175 = vmatpush2.bf16.msra.mxu0 %v9963
      %10176 = vmatprep.subr.bf16.mxu0 %v9960
      %10177 = vmatpush2.bf16.msra.mxu0 %v9959
      %10178 = vmatprep.subr.bf16.mxu0 %v9956
      %10179 = vmatpush2.bf16.msra.mxu0 %v9955
      %10180 = vmatprep.subr.bf16.mxu0 %v9952
      %10181 = vmatpush2.bf16.msra.mxu0 %v9951
      %10182 = vmatprep.subr.bf16.mxu0 %v9948
      %10183 = vmatpush2.bf16.msra.mxu0 %v9947
      %10184 = vmatprep.subr.bf16.mxu0 %v9944
      %10185 = vmatpush2.bf16.msra.mxu0 %v9943
      %10186 = vmatprep.subr.bf16.mxu0 %v9940
      %10187 = vmatpush2.bf16.msra.mxu0 %v9939
      %10188 = vmatprep.mubr.bf16.mxu0 %v9620
      %10189 = vmatmul.mubr.bf16.gmra.mxu0 %v9613
      %v10190 = vpop.f32.mrf.mxu0
      %v10191 = vadd.f32 0.0, %v10190
      %v10192 = vpop.f32.mrf.mxu0
      %v10193 = vadd.f32 0.0, %v10192
      %v10194 = vpop.f32.mrf.mxu0
      %v10195 = vadd.f32 0.0, %v10194
      %v10196 = vpop.f32.mrf.mxu0
      %v10197 = vadd.f32 0.0, %v10196
      %10198 = vmatprep.mubr.bf16.mxu0 %v9628
      %10199 = vmatmul.mubr.bf16.gmra.mxu0 %v9624
      %v10200 = vpop.f32.mrf.mxu0
      %v10201 = vadd.f32 0.0, %v10200
      %v10202 = vpop.f32.mrf.mxu0
      %v10203 = vadd.f32 0.0, %v10202
      %v10204 = vpop.f32.mrf.mxu0
      %v10205 = vadd.f32 0.0, %v10204
      %v10206 = vpop.f32.mrf.mxu0
      %v10207 = vadd.f32 0.0, %v10206
      %10208 = vmatprep.mubr.bf16.mxu0 %v9636
      %10209 = vmatmul.mubr.bf16.gmra.mxu0 %v9632
      %v10210 = vpop.f32.mrf.mxu0
      %v10211 = vadd.f32 0.0, %v10210
      %v10212 = vpop.f32.mrf.mxu0
      %v10213 = vadd.f32 0.0, %v10212
      %v10214 = vpop.f32.mrf.mxu0
      %v10215 = vadd.f32 0.0, %v10214
      %v10216 = vpop.f32.mrf.mxu0
      %v10217 = vadd.f32 0.0, %v10216
      %10218 = vmatprep.mubr.bf16.mxu0 %v9644
      %10219 = vmatmul.mubr.bf16.gmra.mxu0 %v9640
      %v10220 = vpop.f32.mrf.mxu0
      %v10221 = vadd.f32 0.0, %v10220
      %v10222 = vpop.f32.mrf.mxu0
      %v10223 = vadd.f32 0.0, %v10222
      %v10224 = vpop.f32.mrf.mxu0
      %v10225 = vadd.f32 0.0, %v10224
      %v10226 = vpop.f32.mrf.mxu0
      %v10227 = vadd.f32 0.0, %v10226
      %10228 = vmatprep.mubr.bf16.mxu0 %v9652
      %10229 = vmatmul.mubr.bf16.gmra.mxu0 %v9648
      %v10230 = vpop.f32.mrf.mxu0
      %v10231 = vadd.f32 0.0, %v10230
      %v10232 = vpop.f32.mrf.mxu0
      %v10233 = vadd.f32 0.0, %v10232
      %v10234 = vpop.f32.mrf.mxu0
      %v10235 = vadd.f32 0.0, %v10234
      %v10236 = vpop.f32.mrf.mxu0
      %v10237 = vadd.f32 0.0, %v10236
      %10238 = vmatprep.mubr.bf16.mxu0 %v9660
      %10239 = vmatmul.mubr.bf16.gmra.mxu0 %v9656
      %v10240 = vpop.f32.mrf.mxu0
      %v10241 = vadd.f32 0.0, %v10240
      %v10242 = vpop.f32.mrf.mxu0
      %v10243 = vadd.f32 0.0, %v10242
      %v10244 = vpop.f32.mrf.mxu0
      %v10245 = vadd.f32 0.0, %v10244
      %v10246 = vpop.f32.mrf.mxu0
      %v10247 = vadd.f32 0.0, %v10246
      %10248 = vmatprep.mubr.bf16.mxu0 %v9668
      %10249 = vmatmul.mubr.bf16.gmra.mxu0 %v9664
      %v10250 = vpop.f32.mrf.mxu0
      %v10251 = vadd.f32 0.0, %v10250
      %v10252 = vpop.f32.mrf.mxu0
      %v10253 = vadd.f32 0.0, %v10252
      %v10254 = vpop.f32.mrf.mxu0
      %v10255 = vadd.f32 0.0, %v10254
      %v10256 = vpop.f32.mrf.mxu0
      %v10257 = vadd.f32 0.0, %v10256
      %10258 = vmatprep.mubr.bf16.mxu0 %v9676
      %10259 = vmatmul.mubr.bf16.gmra.mxu0 %v9672
      %v10260 = vpop.f32.mrf.mxu0
      %v10261 = vadd.f32 0.0, %v10260
      %v10262 = vpop.f32.mrf.mxu0
      %v10263 = vadd.f32 0.0, %v10262
      %v10264 = vpop.f32.mrf.mxu0
      %v10265 = vadd.f32 0.0, %v10264
      %v10266 = vpop.f32.mrf.mxu0
      %v10267 = vadd.f32 0.0, %v10266
      %10268 = vmatprep.mubr.bf16.mxu0 %v9694
      %10269 = vmatmul.mubr.bf16.gmra.mxu0 %v9685
      %v10270 = vpop.f32.mrf.mxu0
      %v10271 = vadd.f32 0.0, %v10270
      %v10272 = vpop.f32.mrf.mxu0
      %v10273 = vadd.f32 0.0, %v10272
      %v10274 = vpop.f32.mrf.mxu0
      %v10275 = vadd.f32 0.0, %v10274
      %v10276 = vpop.f32.mrf.mxu0
      %v10277 = vadd.f32 0.0, %v10276
      %10278 = vdwg.mxu0
      %v10279 = vadd.f32 %v9469, %v10068
      %v10280 = vadd.f32 %v9470, %v10070
      %v10281 = vadd.f32 %v9471, %v10191
      %v10282 = vadd.f32 %v9472, %v10193
      %v10283 = vadd.f32 %v9473, %v10072
      %v10284 = vadd.f32 %v9474, %v10074
      %v10285 = vadd.f32 %v9475, %v10195
      %v10286 = vadd.f32 %v9476, %v10197
      %v10287 = vadd.f32 %v9477, %v10078
      %v10288 = vadd.f32 %v9478, %v10080
      %v10289 = vadd.f32 %v9479, %v10201
      %v10290 = vadd.f32 %v9480, %v10203
      %v10291 = vadd.f32 %v9481, %v10082
      %v10292 = vadd.f32 %v9482, %v10084
      %v10293 = vadd.f32 %v9483, %v10205
      %v10294 = vadd.f32 %v9484, %v10207
      %v10295 = vadd.f32 %v9485, %v10088
      %v10296 = vadd.f32 %v9486, %v10090
      %v10297 = vadd.f32 %v9487, %v10211
      %v10298 = vadd.f32 %v9488, %v10213
      %v10299 = vadd.f32 %v9489, %v10092
      %v10300 = vadd.f32 %v9490, %v10094
      %v10301 = vadd.f32 %v9491, %v10215
      %v10302 = vadd.f32 %v9492, %v10217
      %v10303 = vadd.f32 %v9493, %v10098
      %v10304 = vadd.f32 %v9494, %v10100
      %v10305 = vadd.f32 %v9495, %v10221
      %v10306 = vadd.f32 %v9496, %v10223
      %v10307 = vadd.f32 %v9497, %v10102
      %v10308 = vadd.f32 %v9498, %v10104
      %v10309 = vadd.f32 %v9499, %v10225
      %v10310 = vadd.f32 %v9500, %v10227
      %v10311 = vadd.f32 %v9501, %v10108
      %v10312 = vadd.f32 %v9502, %v10110
      %v10313 = vadd.f32 %v9503, %v10231
      %v10314 = vadd.f32 %v9504, %v10233
      %v10315 = vadd.f32 %v9505, %v10112
      %v10316 = vadd.f32 %v9506, %v10114
      %v10317 = vadd.f32 %v9507, %v10235
      %v10318 = vadd.f32 %v9508, %v10237
      %v10319 = vadd.f32 %v9509, %v10118
      %v10320 = vadd.f32 %v9510, %v10120
      %v10321 = vadd.f32 %v9511, %v10241
      %v10322 = vadd.f32 %v9512, %v10243
      %v10323 = vadd.f32 %v9513, %v10122
      %v10324 = vadd.f32 %v9514, %v10124
      %v10325 = vadd.f32 %v9515, %v10245
      %v10326 = vadd.f32 %v9516, %v10247
      %v10327 = vadd.f32 %v9517, %v10128
      %v10328 = vadd.f32 %v9518, %v10130
      %v10329 = vadd.f32 %v9519, %v10251
      %v10330 = vadd.f32 %v9520, %v10253
      %v10331 = vadd.f32 %v9521, %v10132
      %v10332 = vadd.f32 %v9522, %v10134
      %v10333 = vadd.f32 %v9523, %v10255
      %v10334 = vadd.f32 %v9524, %v10257
      %v10335 = vadd.f32 %v9525, %v10138
      %v10336 = vadd.f32 %v9526, %v10140
      %v10337 = vadd.f32 %v9527, %v10261
      %v10338 = vadd.f32 %v9528, %v10263
      %v10339 = vadd.f32 %v9529, %v10142
      %v10340 = vadd.f32 %v9530, %v10144
      %v10341 = vadd.f32 %v9531, %v10265
      %v10342 = vadd.f32 %v9532, %v10267
      %v10343 = vadd.f32 %v9533, %v10148
      %v10344 = vadd.f32 %v9534, %v10150
      %v10345 = vadd.f32 %v9535, %v10271
      %v10346 = vadd.f32 %v9536, %v10273
      %v10347 = vadd.f32 %v9537, %v10152
      %v10348 = vadd.f32 %v9538, %v10154
      %v10349 = vadd.f32 %v9539, %v10275
      %v10350 = vadd.f32 %v9540, %v10277
      %s10351 = scalar_lea.vmem %s4, 4096
      %v10352 = vld [vmem:[%s10351] sm:$0xff]
      %v10353 = vld [vmem:[%s10351 + $0x8] sm:$0xff]
      %v10354 = vld [vmem:[%s10351 + $0x10] sm:$0xff]
      %v10355 = vld [vmem:[%s10351 + $0x18] sm:$0xff]
      %v10356 = vld [vmem:[%s10351 + $0x20] sm:$0xff]
      %v10357 = vld [vmem:[%s10351 + $0x28] sm:$0xff]
      %v10358 = vld [vmem:[%s10351 + $0x30] sm:$0xff]
      %v10359 = vld [vmem:[%s10351 + $0x38] sm:$0xff]
      %v10360 = vld [vmem:[%s10351 + $0x40] sm:$0xff]
      %v10361 = vld [vmem:[%s10351 + $0x48] sm:$0xff]
      %v10362 = vld [vmem:[%s10351 + $0x50] sm:$0xff]
      %v10363 = vld [vmem:[%s10351 + $0x58] sm:$0xff]
      %v10364 = vld [vmem:[%s10351 + $0x60] sm:$0xff]
      %v10365 = vld [vmem:[%s10351 + $0x68] sm:$0xff]
      %v10366 = vld [vmem:[%s10351 + $0x70] sm:$0xff]
      %v10367 = vld [vmem:[%s10351 + $0x78] sm:$0xff]
      %v10368 = vld [vmem:[%s10351 + $0x80] sm:$0xff]
      %v10369 = vld [vmem:[%s10351 + $0x88] sm:$0xff]
      %v10370 = vld [vmem:[%s10351 + $0x90] sm:$0xff]
      %v10371 = vld [vmem:[%s10351 + $0x98] sm:$0xff]
      %v10372 = vld [vmem:[%s10351 + $0xa0] sm:$0xff]
      %v10373 = vld [vmem:[%s10351 + $0xa8] sm:$0xff]
      %v10374 = vld [vmem:[%s10351 + $0xb0] sm:$0xff]
      %v10375 = vld [vmem:[%s10351 + $0xb8] sm:$0xff]
      %v10376 = vld [vmem:[%s10351 + $0xc0] sm:$0xff]
      %v10377 = vld [vmem:[%s10351 + $0xc8] sm:$0xff]
      %v10378 = vld [vmem:[%s10351 + $0xd0] sm:$0xff]
      %v10379 = vld [vmem:[%s10351 + $0xd8] sm:$0xff]
      %v10380 = vld [vmem:[%s10351 + $0xe0] sm:$0xff]
      %v10381 = vld [vmem:[%s10351 + $0xe8] sm:$0xff]
      %v10382 = vld [vmem:[%s10351 + $0xf0] sm:$0xff]
      %v10383 = vld [vmem:[%s10351 + $0xf8] sm:$0xff]
      %v10384 = vld [vmem:[%s10351 + $0x100] sm:$0xff]
      %v10385 = vld [vmem:[%s10351 + $0x108] sm:$0xff]
      %v10386 = vld [vmem:[%s10351 + $0x110] sm:$0xff]
      %v10387 = vld [vmem:[%s10351 + $0x118] sm:$0xff]
      %v10388 = vld [vmem:[%s10351 + $0x120] sm:$0xff]
      %v10389 = vld [vmem:[%s10351 + $0x128] sm:$0xff]
      %v10390 = vld [vmem:[%s10351 + $0x130] sm:$0xff]
      %v10391 = vld [vmem:[%s10351 + $0x138] sm:$0xff]
      %v10392 = vld [vmem:[%s10351 + $0x140] sm:$0xff]
      %v10393 = vld [vmem:[%s10351 + $0x148] sm:$0xff]
      %v10394 = vld [vmem:[%s10351 + $0x150] sm:$0xff]
      %v10395 = vld [vmem:[%s10351 + $0x158] sm:$0xff]
      %v10396 = vld [vmem:[%s10351 + $0x160] sm:$0xff]
      %v10397 = vld [vmem:[%s10351 + $0x168] sm:$0xff]
      %v10398 = vld [vmem:[%s10351 + $0x170] sm:$0xff]
      %v10399 = vld [vmem:[%s10351 + $0x178] sm:$0xff]
      %v10400 = vld [vmem:[%s10351 + $0x180] sm:$0xff]
      %v10401 = vld [vmem:[%s10351 + $0x188] sm:$0xff]
      %v10402 = vld [vmem:[%s10351 + $0x190] sm:$0xff]
      %v10403 = vld [vmem:[%s10351 + $0x198] sm:$0xff]
      %v10404 = vld [vmem:[%s10351 + $0x1a0] sm:$0xff]
      %v10405 = vld [vmem:[%s10351 + $0x1a8] sm:$0xff]
      %v10406 = vld [vmem:[%s10351 + $0x1b0] sm:$0xff]
      %v10407 = vld [vmem:[%s10351 + $0x1b8] sm:$0xff]
      %v10408 = vld [vmem:[%s10351 + $0x1c0] sm:$0xff]
      %v10409 = vld [vmem:[%s10351 + $0x1c8] sm:$0xff]
      %v10410 = vld [vmem:[%s10351 + $0x1d0] sm:$0xff]
      %v10411 = vld [vmem:[%s10351 + $0x1d8] sm:$0xff]
      %v10412 = vld [vmem:[%s10351 + $0x1e0] sm:$0xff]
      %v10413 = vld [vmem:[%s10351 + $0x1e8] sm:$0xff]
      %v10414 = vld [vmem:[%s10351 + $0x1f0] sm:$0xff]
      %v10415 = vld [vmem:[%s10351 + $0x1f8] sm:$0xff]
      %vm10416 = vcmask 1041408
      %v10417 = vrot.slane %v4209, 6
      %v10418 = vrot.slane %v4211, 6
      %v10419 = vsel %vm10416, %v10417, %v10418
      %v10420 = vrot.slane %v4210, 6
      %v10421 = vrot.slane %v4212, 6
      %v10422 = vsel %vm10416, %v10420, %v10421
      %v10423 = vrot.slane %v4213, 6
      %v10424 = vsel %vm10416, %v10418, %v10423
      %v10425 = vrot.slane %v4214, 6
      %v10426 = vsel %vm10416, %v10421, %v10425
      %v10427 = vrot.slane %v4215, 6
      %v10428 = vsel %vm10416, %v10423, %v10427
      %v10429 = vrot.slane %v4216, 6
      %v10430 = vsel %vm10416, %v10425, %v10429
      %v10431 = vrot.slane %v4217, 6
      %v10432 = vsel %vm10416, %v10427, %v10431
      %v10433 = vrot.slane %v4218, 6
      %v10434 = vsel %vm10416, %v10429, %v10433
      %v10435 = vrot.slane %v4219, 6
      %v10436 = vsel %vm10416, %v10431, %v10435
      %v10437 = vrot.slane %v4220, 6
      %v10438 = vsel %vm10416, %v10433, %v10437
      %v10439 = vrot.slane %v4221, 6
      %v10440 = vsel %vm10416, %v10435, %v10439
      %v10441 = vrot.slane %v4222, 6
      %v10442 = vsel %vm10416, %v10437, %v10441
      %v10443 = vrot.slane %v4223, 6
      %v10444 = vsel %vm10416, %v10439, %v10443
      %v10445 = vrot.slane %v4224, 6
      %v10446 = vsel %vm10416, %v10441, %v10445
      %v10447 = vrot.slane %v4225, 6
      %v10448 = vsel %vm10416, %v10443, %v10447
      %v10449 = vrot.slane %v4226, 6
      %v10450 = vsel %vm10416, %v10445, %v10449
      %v10451 = vrot.slane %v4227, 6
      %v10452 = vsel %vm10416, %v10447, %v10451
      %v10453 = vrot.slane %v4228, 6
      %v10454 = vsel %vm10416, %v10449, %v10453
      %v10537 = vunpack.c.l.b16 %v10352
      %v10538 = vunpack.c.h.b16 %v10352
      %v10539 = vunpack.c.l.b16 %v10353
      %v10540 = vunpack.c.h.b16 %v10353
      %v10541 = vunpack.c.l.b16 %v10354
      %v10542 = vunpack.c.h.b16 %v10354
      %v10543 = vunpack.c.l.b16 %v10355
      %v10544 = vunpack.c.h.b16 %v10355
      %v10545 = vunpack.c.l.b16 %v10356
      %v10546 = vunpack.c.h.b16 %v10356
      %v10547 = vunpack.c.l.b16 %v10357
      %v10548 = vunpack.c.h.b16 %v10357
      %v10549 = vunpack.c.l.b16 %v10358
      %v10550 = vunpack.c.h.b16 %v10358
      %v10551 = vunpack.c.l.b16 %v10359
      %v10552 = vunpack.c.h.b16 %v10359
      %v10553 = vunpack.c.l.b16 %v10360
      %v10554 = vunpack.c.h.b16 %v10360
      %v10555 = vunpack.c.l.b16 %v10361
      %v10556 = vunpack.c.h.b16 %v10361
      %v10557 = vunpack.c.l.b16 %v10362
      %v10558 = vunpack.c.h.b16 %v10362
      %v10559 = vunpack.c.l.b16 %v10363
      %v10560 = vunpack.c.h.b16 %v10363
      %v10561 = vunpack.c.l.b16 %v10364
      %v10562 = vunpack.c.h.b16 %v10364
      %v10563 = vunpack.c.l.b16 %v10365
      %v10564 = vunpack.c.h.b16 %v10365
      %v10565 = vunpack.c.l.b16 %v10366
      %v10566 = vunpack.c.h.b16 %v10366
      %v10567 = vunpack.c.l.b16 %v10367
      %v10568 = vunpack.c.h.b16 %v10367
      %v10569 = vunpack.c.l.b16 %v10368
      %v10570 = vunpack.c.h.b16 %v10368
      %v10571 = vunpack.c.l.b16 %v10369
      %v10572 = vunpack.c.h.b16 %v10369
      %v10573 = vunpack.c.l.b16 %v10370
      %v10574 = vunpack.c.h.b16 %v10370
      %v10575 = vunpack.c.l.b16 %v10371
      %v10576 = vunpack.c.h.b16 %v10371
      %v10577 = vunpack.c.l.b16 %v10372
      %v10578 = vunpack.c.h.b16 %v10372
      %v10579 = vunpack.c.l.b16 %v10373
      %v10580 = vunpack.c.h.b16 %v10373
      %v10581 = vunpack.c.l.b16 %v10374
      %v10582 = vunpack.c.h.b16 %v10374
      %v10583 = vunpack.c.l.b16 %v10375
      %v10584 = vunpack.c.h.b16 %v10375
      %v10585 = vunpack.c.l.b16 %v10376
      %v10586 = vunpack.c.h.b16 %v10376
      %v10587 = vunpack.c.l.b16 %v10377
      %v10588 = vunpack.c.h.b16 %v10377
      %v10589 = vunpack.c.l.b16 %v10378
      %v10590 = vunpack.c.h.b16 %v10378
      %v10591 = vunpack.c.l.b16 %v10379
      %v10592 = vunpack.c.h.b16 %v10379
      %v10593 = vunpack.c.l.b16 %v10380
      %v10594 = vunpack.c.h.b16 %v10380
      %v10595 = vunpack.c.l.b16 %v10381
      %v10596 = vunpack.c.h.b16 %v10381
      %v10597 = vunpack.c.l.b16 %v10382
      %v10598 = vunpack.c.h.b16 %v10382
      %v10599 = vunpack.c.l.b16 %v10383
      %v10600 = vunpack.c.h.b16 %v10383
      %v10601 = vunpack.c.l.b16 %v10384
      %v10602 = vunpack.c.h.b16 %v10384
      %v10603 = vunpack.c.l.b16 %v10385
      %v10604 = vunpack.c.h.b16 %v10385
      %v10605 = vunpack.c.l.b16 %v10386
      %v10606 = vunpack.c.h.b16 %v10386
      %v10607 = vunpack.c.l.b16 %v10387
      %v10608 = vunpack.c.h.b16 %v10387
      %v10609 = vunpack.c.l.b16 %v10388
      %v10610 = vunpack.c.h.b16 %v10388
      %v10611 = vunpack.c.l.b16 %v10389
      %v10612 = vunpack.c.h.b16 %v10389
      %v10613 = vunpack.c.l.b16 %v10390
      %v10614 = vunpack.c.h.b16 %v10390
      %v10615 = vunpack.c.l.b16 %v10391
      %v10616 = vunpack.c.h.b16 %v10391
      %v10617 = vunpack.c.l.b16 %v10392
      %v10618 = vunpack.c.h.b16 %v10392
      %v10619 = vunpack.c.l.b16 %v10393
      %v10620 = vunpack.c.h.b16 %v10393
      %v10621 = vunpack.c.l.b16 %v10394
      %v10622 = vunpack.c.h.b16 %v10394
      %v10623 = vunpack.c.l.b16 %v10395
      %v10624 = vunpack.c.h.b16 %v10395
      %v10625 = vunpack.c.l.b16 %v10396
      %v10626 = vunpack.c.h.b16 %v10396
      %v10627 = vunpack.c.l.b16 %v10397
      %v10628 = vunpack.c.h.b16 %v10397
      %v10629 = vunpack.c.l.b16 %v10398
      %v10630 = vunpack.c.h.b16 %v10398
      %v10631 = vunpack.c.l.b16 %v10399
      %v10632 = vunpack.c.h.b16 %v10399
      %v10633 = vunpack.c.l.b16 %v10400
      %v10634 = vunpack.c.h.b16 %v10400
      %v10635 = vunpack.c.l.b16 %v10401
      %v10636 = vunpack.c.h.b16 %v10401
      %v10637 = vunpack.c.l.b16 %v10402
      %v10638 = vunpack.c.h.b16 %v10402
      %v10639 = vunpack.c.l.b16 %v10403
      %v10640 = vunpack.c.h.b16 %v10403
      %v10641 = vunpack.c.l.b16 %v10404
      %v10642 = vunpack.c.h.b16 %v10404
      %v10643 = vunpack.c.l.b16 %v10405
      %v10644 = vunpack.c.h.b16 %v10405
      %v10645 = vunpack.c.l.b16 %v10406
      %v10646 = vunpack.c.h.b16 %v10406
      %v10647 = vunpack.c.l.b16 %v10407
      %v10648 = vunpack.c.h.b16 %v10407
      %v10649 = vunpack.c.l.b16 %v10408
      %v10650 = vunpack.c.h.b16 %v10408
      %v10651 = vunpack.c.l.b16 %v10409
      %v10652 = vunpack.c.h.b16 %v10409
      %v10653 = vunpack.c.l.b16 %v10410
      %v10654 = vunpack.c.h.b16 %v10410
      %v10655 = vunpack.c.l.b16 %v10411
      %v10656 = vunpack.c.h.b16 %v10411
      %v10657 = vunpack.c.l.b16 %v10412
      %v10658 = vunpack.c.h.b16 %v10412
      %v10659 = vunpack.c.l.b16 %v10413
      %v10660 = vunpack.c.h.b16 %v10413
      %v10661 = vunpack.c.l.b16 %v10414
      %v10662 = vunpack.c.h.b16 %v10414
      %v10663 = vunpack.c.l.b16 %v10415
      %v10664 = vunpack.c.h.b16 %v10415
      %v10665 = vpack.c.b16 %v10541, %v10537
      %v10666 = vpack.c.b16 %v10542, %v10538
      %v10667 = vpack.c.b16 %v10543, %v10539
      %v10668 = vpack.c.b16 %v10544, %v10540
      %v10669 = vpack.c.b16 %v10549, %v10545
      %v10670 = vpack.c.b16 %v10550, %v10546
      %v10671 = vpack.c.b16 %v10551, %v10547
      %v10672 = vpack.c.b16 %v10552, %v10548
      %v10673 = vpack.c.b16 %v10557, %v10553
      %v10674 = vpack.c.b16 %v10558, %v10554
      %v10675 = vpack.c.b16 %v10559, %v10555
      %v10676 = vpack.c.b16 %v10560, %v10556
      %v10677 = vpack.c.b16 %v10565, %v10561
      %v10678 = vpack.c.b16 %v10566, %v10562
      %v10679 = vpack.c.b16 %v10567, %v10563
      %v10680 = vpack.c.b16 %v10568, %v10564
      %v10681 = vpack.c.b16 %v10573, %v10569
      %v10682 = vpack.c.b16 %v10574, %v10570
      %v10683 = vpack.c.b16 %v10575, %v10571
      %v10684 = vpack.c.b16 %v10576, %v10572
      %v10685 = vpack.c.b16 %v10581, %v10577
      %v10686 = vpack.c.b16 %v10582, %v10578
      %v10687 = vpack.c.b16 %v10583, %v10579
      %v10688 = vpack.c.b16 %v10584, %v10580
      %v10689 = vpack.c.b16 %v10589, %v10585
      %v10690 = vpack.c.b16 %v10590, %v10586
      %v10691 = vpack.c.b16 %v10591, %v10587
      %v10692 = vpack.c.b16 %v10592, %v10588
      %v10693 = vpack.c.b16 %v10597, %v10593
      %v10694 = vpack.c.b16 %v10598, %v10594
      %v10695 = vpack.c.b16 %v10599, %v10595
      %v10696 = vpack.c.b16 %v10600, %v10596
      %v10697 = vpack.c.b16 %v10605, %v10601
      %v10698 = vpack.c.b16 %v10606, %v10602
      %v10699 = vpack.c.b16 %v10607, %v10603
      %v10700 = vpack.c.b16 %v10608, %v10604
      %v10701 = vpack.c.b16 %v10613, %v10609
      %v10702 = vpack.c.b16 %v10614, %v10610
      %v10703 = vpack.c.b16 %v10615, %v10611
      %v10704 = vpack.c.b16 %v10616, %v10612
      %v10705 = vpack.c.b16 %v10621, %v10617
      %v10706 = vpack.c.b16 %v10622, %v10618
      %v10707 = vpack.c.b16 %v10623, %v10619
      %v10708 = vpack.c.b16 %v10624, %v10620
      %v10709 = vpack.c.b16 %v10629, %v10625
      %v10710 = vpack.c.b16 %v10630, %v10626
      %v10711 = vpack.c.b16 %v10631, %v10627
      %v10712 = vpack.c.b16 %v10632, %v10628
      %v10713 = vpack.c.b16 %v10637, %v10633
      %v10714 = vpack.c.b16 %v10638, %v10634
      %v10715 = vpack.c.b16 %v10639, %v10635
      %v10716 = vpack.c.b16 %v10640, %v10636
      %v10717 = vpack.c.b16 %v10645, %v10641
      %v10718 = vpack.c.b16 %v10646, %v10642
      %v10719 = vpack.c.b16 %v10647, %v10643
      %v10720 = vpack.c.b16 %v10648, %v10644
      %v10721 = vpack.c.b16 %v10653, %v10649
      %v10722 = vpack.c.b16 %v10654, %v10650
      %v10723 = vpack.c.b16 %v10655, %v10651
      %v10724 = vpack.c.b16 %v10656, %v10652
      %v10725 = vpack.c.b16 %v10661, %v10657
      %v10726 = vpack.c.b16 %v10662, %v10658
      %v10727 = vpack.c.b16 %v10663, %v10659
      %v10728 = vpack.c.b16 %v10664, %v10660
      %10793 = vmatprep.subr.bf16.mxu0 %v10694
      %10794 = vmatpush1.bf16.msra.mxu0 %v10693
      %10795 = vmatprep.subr.bf16.mxu0 %v10690
      %10796 = vmatpush1.bf16.msra.mxu0 %v10689
      %10797 = vmatprep.subr.bf16.mxu0 %v10686
      %10798 = vmatpush1.bf16.msra.mxu0 %v10685
      %10799 = vmatprep.subr.bf16.mxu0 %v10682
      %10800 = vmatpush1.bf16.msra.mxu0 %v10681
      %10801 = vmatprep.subr.bf16.mxu0 %v10678
      %10802 = vmatpush1.bf16.msra.mxu0 %v10677
      %10803 = vmatprep.subr.bf16.mxu0 %v10674
      %10804 = vmatpush1.bf16.msra.mxu0 %v10673
      %10805 = vmatprep.subr.bf16.mxu0 %v10670
      %10806 = vmatpush1.bf16.msra.mxu0 %v10669
      %10807 = vmatprep.subr.bf16.mxu0 %v10666
      %10808 = vmatpush1.bf16.msra.mxu0 %v10665
      %10809 = vmatprep.subr.bf16.mxu0 %v10726
      %10810 = vmatpush2.bf16.msra.mxu0 %v10725
      %10811 = vmatprep.subr.bf16.mxu0 %v10722
      %10812 = vmatpush2.bf16.msra.mxu0 %v10721
      %10813 = vmatprep.subr.bf16.mxu0 %v10718
      %10814 = vmatpush2.bf16.msra.mxu0 %v10717
      %10815 = vmatprep.subr.bf16.mxu0 %v10714
      %10816 = vmatpush2.bf16.msra.mxu0 %v10713
      %10817 = vmatprep.subr.bf16.mxu0 %v10710
      %10818 = vmatpush2.bf16.msra.mxu0 %v10709
      %10819 = vmatprep.subr.bf16.mxu0 %v10706
      %10820 = vmatpush2.bf16.msra.mxu0 %v10705
      %10821 = vmatprep.subr.bf16.mxu0 %v10702
      %10822 = vmatpush2.bf16.msra.mxu0 %v10701
      %10823 = vmatprep.subr.bf16.mxu0 %v10698
      %10824 = vmatpush2.bf16.msra.mxu0 %v10697
      %10825 = vmatprep.mubr.bf16.mxu0 %v10422
      %10826 = vmatmul.mubr.bf16.gmra.mxu0 %v10419
      %v10827 = vpop.f32.mrf.mxu0
      %v10828 = vadd.f32 0.0, %v10827
      %v10829 = vpop.f32.mrf.mxu0
      %v10830 = vadd.f32 0.0, %v10829
      %v10831 = vpop.f32.mrf.mxu0
      %v10832 = vadd.f32 0.0, %v10831
      %v10833 = vpop.f32.mrf.mxu0
      %v10834 = vadd.f32 0.0, %v10833
      %10835 = vmatprep.mubr.bf16.mxu0 %v10426
      %10836 = vmatmul.mubr.bf16.gmra.mxu0 %v10424
      %v10837 = vpop.f32.mrf.mxu0
      %v10838 = vadd.f32 0.0, %v10837
      %v10839 = vpop.f32.mrf.mxu0
      %v10840 = vadd.f32 0.0, %v10839
      %v10841 = vpop.f32.mrf.mxu0
      %v10842 = vadd.f32 0.0, %v10841
      %v10843 = vpop.f32.mrf.mxu0
      %v10844 = vadd.f32 0.0, %v10843
      %10845 = vmatprep.mubr.bf16.mxu0 %v10430
      %10846 = vmatmul.mubr.bf16.gmra.mxu0 %v10428
      %v10847 = vpop.f32.mrf.mxu0
      %v10848 = vadd.f32 0.0, %v10847
      %v10849 = vpop.f32.mrf.mxu0
      %v10850 = vadd.f32 0.0, %v10849
      %v10851 = vpop.f32.mrf.mxu0
      %v10852 = vadd.f32 0.0, %v10851
      %v10853 = vpop.f32.mrf.mxu0
      %v10854 = vadd.f32 0.0, %v10853
      %10855 = vmatprep.mubr.bf16.mxu0 %v10434
      %10856 = vmatmul.mubr.bf16.gmra.mxu0 %v10432
      %v10857 = vpop.f32.mrf.mxu0
      %v10858 = vadd.f32 0.0, %v10857
      %v10859 = vpop.f32.mrf.mxu0
      %v10860 = vadd.f32 0.0, %v10859
      %v10861 = vpop.f32.mrf.mxu0
      %v10862 = vadd.f32 0.0, %v10861
      %v10863 = vpop.f32.mrf.mxu0
      %v10864 = vadd.f32 0.0, %v10863
      %10865 = vmatprep.mubr.bf16.mxu0 %v10438
      %10866 = vmatmul.mubr.bf16.gmra.mxu0 %v10436
      %v10867 = vpop.f32.mrf.mxu0
      %v10868 = vadd.f32 0.0, %v10867
      %v10869 = vpop.f32.mrf.mxu0
      %v10870 = vadd.f32 0.0, %v10869
      %v10871 = vpop.f32.mrf.mxu0
      %v10872 = vadd.f32 0.0, %v10871
      %v10873 = vpop.f32.mrf.mxu0
      %v10874 = vadd.f32 0.0, %v10873
      %10875 = vmatprep.mubr.bf16.mxu0 %v10442
      %10876 = vmatmul.mubr.bf16.gmra.mxu0 %v10440
      %v10877 = vpop.f32.mrf.mxu0
      %v10878 = vadd.f32 0.0, %v10877
      %v10879 = vpop.f32.mrf.mxu0
      %v10880 = vadd.f32 0.0, %v10879
      %v10881 = vpop.f32.mrf.mxu0
      %v10882 = vadd.f32 0.0, %v10881
      %v10883 = vpop.f32.mrf.mxu0
      %v10884 = vadd.f32 0.0, %v10883
      %10885 = vmatprep.mubr.bf16.mxu0 %v10446
      %10886 = vmatmul.mubr.bf16.gmra.mxu0 %v10444
      %v10887 = vpop.f32.mrf.mxu0
      %v10888 = vadd.f32 0.0, %v10887
      %v10889 = vpop.f32.mrf.mxu0
      %v10890 = vadd.f32 0.0, %v10889
      %v10891 = vpop.f32.mrf.mxu0
      %v10892 = vadd.f32 0.0, %v10891
      %v10893 = vpop.f32.mrf.mxu0
      %v10894 = vadd.f32 0.0, %v10893
      %10895 = vmatprep.mubr.bf16.mxu0 %v10450
      %10896 = vmatmul.mubr.bf16.gmra.mxu0 %v10448
      %v10897 = vpop.f32.mrf.mxu0
      %v10898 = vadd.f32 0.0, %v10897
      %v10899 = vpop.f32.mrf.mxu0
      %v10900 = vadd.f32 0.0, %v10899
      %v10901 = vpop.f32.mrf.mxu0
      %v10902 = vadd.f32 0.0, %v10901
      %v10903 = vpop.f32.mrf.mxu0
      %v10904 = vadd.f32 0.0, %v10903
      %10905 = vmatprep.mubr.bf16.mxu0 %v10454
      %10906 = vmatmul.mubr.bf16.gmra.mxu0 %v10452
      %v10907 = vpop.f32.mrf.mxu0
      %v10908 = vadd.f32 0.0, %v10907
      %v10909 = vpop.f32.mrf.mxu0
      %v10910 = vadd.f32 0.0, %v10909
      %v10911 = vpop.f32.mrf.mxu0
      %v10912 = vadd.f32 0.0, %v10911
      %v10913 = vpop.f32.mrf.mxu0
      %v10914 = vadd.f32 0.0, %v10913
      %10915 = vdwg.mxu0
      %10916 = vmatprep.subr.bf16.mxu0 %v10696
      %10917 = vmatpush1.bf16.msra.mxu0 %v10695
      %10918 = vmatprep.subr.bf16.mxu0 %v10692
      %10919 = vmatpush1.bf16.msra.mxu0 %v10691
      %10920 = vmatprep.subr.bf16.mxu0 %v10688
      %10921 = vmatpush1.bf16.msra.mxu0 %v10687
      %10922 = vmatprep.subr.bf16.mxu0 %v10684
      %10923 = vmatpush1.bf16.msra.mxu0 %v10683
      %10924 = vmatprep.subr.bf16.mxu0 %v10680
      %10925 = vmatpush1.bf16.msra.mxu0 %v10679
      %10926 = vmatprep.subr.bf16.mxu0 %v10676
      %10927 = vmatpush1.bf16.msra.mxu0 %v10675
      %10928 = vmatprep.subr.bf16.mxu0 %v10672
      %10929 = vmatpush1.bf16.msra.mxu0 %v10671
      %10930 = vmatprep.subr.bf16.mxu0 %v10668
      %10931 = vmatpush1.bf16.msra.mxu0 %v10667
      %10932 = vmatprep.subr.bf16.mxu0 %v10728
      %10933 = vmatpush2.bf16.msra.mxu0 %v10727
      %10934 = vmatprep.subr.bf16.mxu0 %v10724
      %10935 = vmatpush2.bf16.msra.mxu0 %v10723
      %10936 = vmatprep.subr.bf16.mxu0 %v10720
      %10937 = vmatpush2.bf16.msra.mxu0 %v10719
      %10938 = vmatprep.subr.bf16.mxu0 %v10716
      %10939 = vmatpush2.bf16.msra.mxu0 %v10715
      %10940 = vmatprep.subr.bf16.mxu0 %v10712
      %10941 = vmatpush2.bf16.msra.mxu0 %v10711
      %10942 = vmatprep.subr.bf16.mxu0 %v10708
      %10943 = vmatpush2.bf16.msra.mxu0 %v10707
      %10944 = vmatprep.subr.bf16.mxu0 %v10704
      %10945 = vmatpush2.bf16.msra.mxu0 %v10703
      %10946 = vmatprep.subr.bf16.mxu0 %v10700
      %10947 = vmatpush2.bf16.msra.mxu0 %v10699
      %10948 = vmatprep.mubr.bf16.mxu0 %v10422
      %10949 = vmatmul.mubr.bf16.gmra.mxu0 %v10419
      %v10950 = vpop.f32.mrf.mxu0
      %v10951 = vadd.f32 0.0, %v10950
      %v10952 = vpop.f32.mrf.mxu0
      %v10953 = vadd.f32 0.0, %v10952
      %v10954 = vpop.f32.mrf.mxu0
      %v10955 = vadd.f32 0.0, %v10954
      %v10956 = vpop.f32.mrf.mxu0
      %v10957 = vadd.f32 0.0, %v10956
      %10958 = vmatprep.mubr.bf16.mxu0 %v10426
      %10959 = vmatmul.mubr.bf16.gmra.mxu0 %v10424
      %v10960 = vpop.f32.mrf.mxu0
      %v10961 = vadd.f32 0.0, %v10960
      %v10962 = vpop.f32.mrf.mxu0
      %v10963 = vadd.f32 0.0, %v10962
      %v10964 = vpop.f32.mrf.mxu0
      %v10965 = vadd.f32 0.0, %v10964
      %v10966 = vpop.f32.mrf.mxu0
      %v10967 = vadd.f32 0.0, %v10966
      %10968 = vmatprep.mubr.bf16.mxu0 %v10430
      %10969 = vmatmul.mubr.bf16.gmra.mxu0 %v10428
      %v10970 = vpop.f32.mrf.mxu0
      %v10971 = vadd.f32 0.0, %v10970
      %v10972 = vpop.f32.mrf.mxu0
      %v10973 = vadd.f32 0.0, %v10972
      %v10974 = vpop.f32.mrf.mxu0
      %v10975 = vadd.f32 0.0, %v10974
      %v10976 = vpop.f32.mrf.mxu0
      %v10977 = vadd.f32 0.0, %v10976
      %10978 = vmatprep.mubr.bf16.mxu0 %v10434
      %10979 = vmatmul.mubr.bf16.gmra.mxu0 %v10432
      %v10980 = vpop.f32.mrf.mxu0
      %v10981 = vadd.f32 0.0, %v10980
      %v10982 = vpop.f32.mrf.mxu0
      %v10983 = vadd.f32 0.0, %v10982
      %v10984 = vpop.f32.mrf.mxu0
      %v10985 = vadd.f32 0.0, %v10984
      %v10986 = vpop.f32.mrf.mxu0
      %v10987 = vadd.f32 0.0, %v10986
      %10988 = vmatprep.mubr.bf16.mxu0 %v10438
      %10989 = vmatmul.mubr.bf16.gmra.mxu0 %v10436
      %v10990 = vpop.f32.mrf.mxu0
      %v10991 = vadd.f32 0.0, %v10990
      %v10992 = vpop.f32.mrf.mxu0
      %v10993 = vadd.f32 0.0, %v10992
      %v10994 = vpop.f32.mrf.mxu0
      %v10995 = vadd.f32 0.0, %v10994
      %v10996 = vpop.f32.mrf.mxu0
      %v10997 = vadd.f32 0.0, %v10996
      %10998 = vmatprep.mubr.bf16.mxu0 %v10442
      %10999 = vmatmul.mubr.bf16.gmra.mxu0 %v10440
      %v11000 = vpop.f32.mrf.mxu0
      %v11001 = vadd.f32 0.0, %v11000
      %v11002 = vpop.f32.mrf.mxu0
      %v11003 = vadd.f32 0.0, %v11002
      %v11004 = vpop.f32.mrf.mxu0
      %v11005 = vadd.f32 0.0, %v11004
      %v11006 = vpop.f32.mrf.mxu0
      %v11007 = vadd.f32 0.0, %v11006
      %11008 = vmatprep.mubr.bf16.mxu0 %v10446
      %11009 = vmatmul.mubr.bf16.gmra.mxu0 %v10444
      %v11010 = vpop.f32.mrf.mxu0
      %v11011 = vadd.f32 0.0, %v11010
      %v11012 = vpop.f32.mrf.mxu0
      %v11013 = vadd.f32 0.0, %v11012
      %v11014 = vpop.f32.mrf.mxu0
      %v11015 = vadd.f32 0.0, %v11014
      %v11016 = vpop.f32.mrf.mxu0
      %v11017 = vadd.f32 0.0, %v11016
      %11018 = vmatprep.mubr.bf16.mxu0 %v10450
      %11019 = vmatmul.mubr.bf16.gmra.mxu0 %v10448
      %v11020 = vpop.f32.mrf.mxu0
      %v11021 = vadd.f32 0.0, %v11020
      %v11022 = vpop.f32.mrf.mxu0
      %v11023 = vadd.f32 0.0, %v11022
      %v11024 = vpop.f32.mrf.mxu0
      %v11025 = vadd.f32 0.0, %v11024
      %v11026 = vpop.f32.mrf.mxu0
      %v11027 = vadd.f32 0.0, %v11026
      %11028 = vmatprep.mubr.bf16.mxu0 %v10454
      %11029 = vmatmul.mubr.bf16.gmra.mxu0 %v10452
      %v11030 = vpop.f32.mrf.mxu0
      %v11031 = vadd.f32 0.0, %v11030
      %v11032 = vpop.f32.mrf.mxu0
      %v11033 = vadd.f32 0.0, %v11032
      %v11034 = vpop.f32.mrf.mxu0
      %v11035 = vadd.f32 0.0, %v11034
      %v11036 = vpop.f32.mrf.mxu0
      %v11037 = vadd.f32 0.0, %v11036
      %11038 = vdwg.mxu0
      %v11039 = vadd.f32 %v10279, %v10828
      %v11040 = vadd.f32 %v10280, %v10830
      %v11041 = vadd.f32 %v10281, %v10951
      %v11042 = vadd.f32 %v10282, %v10953
      %v11043 = vadd.f32 %v10283, %v10832
      %v11044 = vadd.f32 %v10284, %v10834
      %v11045 = vadd.f32 %v10285, %v10955
      %v11046 = vadd.f32 %v10286, %v10957
      %v11047 = vadd.f32 %v10287, %v10838
      %v11048 = vadd.f32 %v10288, %v10840
      %v11049 = vadd.f32 %v10289, %v10961
      %v11050 = vadd.f32 %v10290, %v10963
      %v11051 = vadd.f32 %v10291, %v10842
      %v11052 = vadd.f32 %v10292, %v10844
      %v11053 = vadd.f32 %v10293, %v10965
      %v11054 = vadd.f32 %v10294, %v10967
      %v11055 = vadd.f32 %v10295, %v10848
      %v11056 = vadd.f32 %v10296, %v10850
      %v11057 = vadd.f32 %v10297, %v10971
      %v11058 = vadd.f32 %v10298, %v10973
      %v11059 = vadd.f32 %v10299, %v10852
      %v11060 = vadd.f32 %v10300, %v10854
      %v11061 = vadd.f32 %v10301, %v10975
      %v11062 = vadd.f32 %v10302, %v10977
      %v11063 = vadd.f32 %v10303, %v10858
      %v11064 = vadd.f32 %v10304, %v10860
      %v11065 = vadd.f32 %v10305, %v10981
      %v11066 = vadd.f32 %v10306, %v10983
      %v11067 = vadd.f32 %v10307, %v10862
      %v11068 = vadd.f32 %v10308, %v10864
      %v11069 = vadd.f32 %v10309, %v10985
      %v11070 = vadd.f32 %v10310, %v10987
      %v11071 = vadd.f32 %v10311, %v10868
      %v11072 = vadd.f32 %v10312, %v10870
      %v11073 = vadd.f32 %v10313, %v10991
      %v11074 = vadd.f32 %v10314, %v10993
      %v11075 = vadd.f32 %v10315, %v10872
      %v11076 = vadd.f32 %v10316, %v10874
      %v11077 = vadd.f32 %v10317, %v10995
      %v11078 = vadd.f32 %v10318, %v10997
      %v11079 = vadd.f32 %v10319, %v10878
      %v11080 = vadd.f32 %v10320, %v10880
      %v11081 = vadd.f32 %v10321, %v11001
      %v11082 = vadd.f32 %v10322, %v11003
      %v11083 = vadd.f32 %v10323, %v10882
      %v11084 = vadd.f32 %v10324, %v10884
      %v11085 = vadd.f32 %v10325, %v11005
      %v11086 = vadd.f32 %v10326, %v11007
      %v11087 = vadd.f32 %v10327, %v10888
      %v11088 = vadd.f32 %v10328, %v10890
      %v11089 = vadd.f32 %v10329, %v11011
      %v11090 = vadd.f32 %v10330, %v11013
      %v11091 = vadd.f32 %v10331, %v10892
      %v11092 = vadd.f32 %v10332, %v10894
      %v11093 = vadd.f32 %v10333, %v11015
      %v11094 = vadd.f32 %v10334, %v11017
      %v11095 = vadd.f32 %v10335, %v10898
      %v11096 = vadd.f32 %v10336, %v10900
      %v11097 = vadd.f32 %v10337, %v11021
      %v11098 = vadd.f32 %v10338, %v11023
      %v11099 = vadd.f32 %v10339, %v10902
      %v11100 = vadd.f32 %v10340, %v10904
      %v11101 = vadd.f32 %v10341, %v11025
      %v11102 = vadd.f32 %v10342, %v11027
      %v11103 = vadd.f32 %v10343, %v10908
      %v11104 = vadd.f32 %v10344, %v10910
      %v11105 = vadd.f32 %v10345, %v11031
      %v11106 = vadd.f32 %v10346, %v11033
      %v11107 = vadd.f32 %v10347, %v10912
      %v11108 = vadd.f32 %v10348, %v10914
      %v11109 = vadd.f32 %v10349, %v11035
      %v11110 = vadd.f32 %v10350, %v11037
      %v11111 = vld [vmem:[%s5] sm:$0xf]
      %v11113 = vlaneseq
      %v11114 = vshrl.u32 %v11113, 7
      %v11115 = vsub.s32 0, %v11114
      %v11116 = vrot.slane %v11111, %v11115
      %v11117 = vlaneseq
      %v11118 = vshrl.u32 %v11117, 7
      %v11119 = vsub.s32 1, %v11118
      %v11120 = vrot.slane %v11111, %v11119
      %v11121 = vlaneseq
      %v11122 = vshrl.u32 %v11121, 7
      %v11123 = vsub.s32 2, %v11122
      %v11124 = vrot.slane %v11111, %v11123
      %v11125 = vlaneseq
      %v11126 = vshrl.u32 %v11125, 7
      %v11127 = vsub.s32 3, %v11126
      %v11128 = vrot.slane %v11111, %v11127
      %v11133 = vadd.f32 %v11039, %v11116
      %v11134 = vadd.f32 %v11040, %v11120
      %v11135 = vadd.f32 %v11041, %v11124
      %v11136 = vadd.f32 %v11042, %v11128
      %v11137 = vadd.f32 %v11043, %v11116
      %v11138 = vadd.f32 %v11044, %v11120
      %v11139 = vadd.f32 %v11045, %v11124
      %v11140 = vadd.f32 %v11046, %v11128
      %v11141 = vadd.f32 %v11047, %v11116
      %v11142 = vadd.f32 %v11048, %v11120
      %v11143 = vadd.f32 %v11049, %v11124
      %v11144 = vadd.f32 %v11050, %v11128
      %v11145 = vadd.f32 %v11051, %v11116
      %v11146 = vadd.f32 %v11052, %v11120
      %v11147 = vadd.f32 %v11053, %v11124
      %v11148 = vadd.f32 %v11054, %v11128
      %v11149 = vadd.f32 %v11055, %v11116
      %v11150 = vadd.f32 %v11056, %v11120
      %v11151 = vadd.f32 %v11057, %v11124
      %v11152 = vadd.f32 %v11058, %v11128
      %v11153 = vadd.f32 %v11059, %v11116
      %v11154 = vadd.f32 %v11060, %v11120
      %v11155 = vadd.f32 %v11061, %v11124
      %v11156 = vadd.f32 %v11062, %v11128
      %v11157 = vadd.f32 %v11063, %v11116
      %v11158 = vadd.f32 %v11064, %v11120
      %v11159 = vadd.f32 %v11065, %v11124
      %v11160 = vadd.f32 %v11066, %v11128
      %v11161 = vadd.f32 %v11067, %v11116
      %v11162 = vadd.f32 %v11068, %v11120
      %v11163 = vadd.f32 %v11069, %v11124
      %v11164 = vadd.f32 %v11070, %v11128
      %v11165 = vadd.f32 %v11071, %v11116
      %v11166 = vadd.f32 %v11072, %v11120
      %v11167 = vadd.f32 %v11073, %v11124
      %v11168 = vadd.f32 %v11074, %v11128
      %v11169 = vadd.f32 %v11075, %v11116
      %v11170 = vadd.f32 %v11076, %v11120
      %v11171 = vadd.f32 %v11077, %v11124
      %v11172 = vadd.f32 %v11078, %v11128
      %v11173 = vadd.f32 %v11079, %v11116
      %v11174 = vadd.f32 %v11080, %v11120
      %v11175 = vadd.f32 %v11081, %v11124
      %v11176 = vadd.f32 %v11082, %v11128
      %v11177 = vadd.f32 %v11083, %v11116
      %v11178 = vadd.f32 %v11084, %v11120
      %v11179 = vadd.f32 %v11085, %v11124
      %v11180 = vadd.f32 %v11086, %v11128
      %v11181 = vadd.f32 %v11087, %v11116
      %v11182 = vadd.f32 %v11088, %v11120
      %v11183 = vadd.f32 %v11089, %v11124
      %v11184 = vadd.f32 %v11090, %v11128
      %v11185 = vadd.f32 %v11091, %v11116
      %v11186 = vadd.f32 %v11092, %v11120
      %v11187 = vadd.f32 %v11093, %v11124
      %v11188 = vadd.f32 %v11094, %v11128
      %v11189 = vadd.f32 %v11095, %v11116
      %v11190 = vadd.f32 %v11096, %v11120
      %v11191 = vadd.f32 %v11097, %v11124
      %v11192 = vadd.f32 %v11098, %v11128
      %v11193 = vadd.f32 %v11099, %v11116
      %v11194 = vadd.f32 %v11100, %v11120
      %v11195 = vadd.f32 %v11101, %v11124
      %v11196 = vadd.f32 %v11102, %v11128
      %v11197 = vadd.f32 %v11103, %v11116
      %v11198 = vadd.f32 %v11104, %v11120
      %v11199 = vadd.f32 %v11105, %v11124
      %v11200 = vadd.f32 %v11106, %v11128
      %v11201 = vadd.f32 %v11107, %v11116
      %v11202 = vadd.f32 %v11108, %v11120
      %v11203 = vadd.f32 %v11109, %v11124
      %v11204 = vadd.f32 %v11110, %v11128
      %v11205 = vmax.f32 %v11133, 0.0
      %v11206 = vmax.f32 %v11134, 0.0
      %v11207 = vmax.f32 %v11135, 0.0
      %v11208 = vmax.f32 %v11136, 0.0
      %v11209 = vmax.f32 %v11137, 0.0
      %v11210 = vmax.f32 %v11138, 0.0
      %v11211 = vmax.f32 %v11139, 0.0
      %v11212 = vmax.f32 %v11140, 0.0
      %v11213 = vmax.f32 %v11141, 0.0
      %v11214 = vmax.f32 %v11142, 0.0
      %v11215 = vmax.f32 %v11143, 0.0
      %v11216 = vmax.f32 %v11144, 0.0
      %v11217 = vmax.f32 %v11145, 0.0
      %v11218 = vmax.f32 %v11146, 0.0
      %v11219 = vmax.f32 %v11147, 0.0
      %v11220 = vmax.f32 %v11148, 0.0
      %v11221 = vmax.f32 %v11149, 0.0
      %v11222 = vmax.f32 %v11150, 0.0
      %v11223 = vmax.f32 %v11151, 0.0
      %v11224 = vmax.f32 %v11152, 0.0
      %v11225 = vmax.f32 %v11153, 0.0
      %v11226 = vmax.f32 %v11154, 0.0
      %v11227 = vmax.f32 %v11155, 0.0
      %v11228 = vmax.f32 %v11156, 0.0
      %v11229 = vmax.f32 %v11157, 0.0
      %v11230 = vmax.f32 %v11158, 0.0
      %v11231 = vmax.f32 %v11159, 0.0
      %v11232 = vmax.f32 %v11160, 0.0
      %v11233 = vmax.f32 %v11161, 0.0
      %v11234 = vmax.f32 %v11162, 0.0
      %v11235 = vmax.f32 %v11163, 0.0
      %v11236 = vmax.f32 %v11164, 0.0
      %v11237 = vmax.f32 %v11165, 0.0
      %v11238 = vmax.f32 %v11166, 0.0
      %v11239 = vmax.f32 %v11167, 0.0
      %v11240 = vmax.f32 %v11168, 0.0
      %v11241 = vmax.f32 %v11169, 0.0
      %v11242 = vmax.f32 %v11170, 0.0
      %v11243 = vmax.f32 %v11171, 0.0
      %v11244 = vmax.f32 %v11172, 0.0
      %v11245 = vmax.f32 %v11173, 0.0
      %v11246 = vmax.f32 %v11174, 0.0
      %v11247 = vmax.f32 %v11175, 0.0
      %v11248 = vmax.f32 %v11176, 0.0
      %v11249 = vmax.f32 %v11177, 0.0
      %v11250 = vmax.f32 %v11178, 0.0
      %v11251 = vmax.f32 %v11179, 0.0
      %v11252 = vmax.f32 %v11180, 0.0
      %v11253 = vmax.f32 %v11181, 0.0
      %v11254 = vmax.f32 %v11182, 0.0
      %v11255 = vmax.f32 %v11183, 0.0
      %v11256 = vmax.f32 %v11184, 0.0
      %v11257 = vmax.f32 %v11185, 0.0
      %v11258 = vmax.f32 %v11186, 0.0
      %v11259 = vmax.f32 %v11187, 0.0
      %v11260 = vmax.f32 %v11188, 0.0
      %v11261 = vmax.f32 %v11189, 0.0
      %v11262 = vmax.f32 %v11190, 0.0
      %v11263 = vmax.f32 %v11191, 0.0
      %v11264 = vmax.f32 %v11192, 0.0
      %v11265 = vmax.f32 %v11193, 0.0
      %v11266 = vmax.f32 %v11194, 0.0
      %v11267 = vmax.f32 %v11195, 0.0
      %v11268 = vmax.f32 %v11196, 0.0
      %v11269 = vmax.f32 %v11197, 0.0
      %v11270 = vmax.f32 %v11198, 0.0
      %v11271 = vmax.f32 %v11199, 0.0
      %v11272 = vmax.f32 %v11200, 0.0
      %v11273 = vmax.f32 %v11201, 0.0
      %v11274 = vmax.f32 %v11202, 0.0
      %v11275 = vmax.f32 %v11203, 0.0
      %v11276 = vmax.f32 %v11204, 0.0
      %v11349 = vrot.slane %v11205, 1
      %v11350 = vrot.slane %v11209, 1
      %v11351 = vsel %vm1655, %v11349, %v11350
      %v11352 = vrot.slane %v11206, 1
      %v11353 = vrot.slane %v11210, 1
      %v11354 = vsel %vm1655, %v11352, %v11353
      %v11355 = vrot.slane %v11207, 1
      %v11356 = vrot.slane %v11211, 1
      %v11357 = vsel %vm1655, %v11355, %v11356
      %v11358 = vrot.slane %v11208, 1
      %v11359 = vrot.slane %v11212, 1
      %v11360 = vsel %vm1655, %v11358, %v11359
      %v11361 = vrot.slane %v11213, 1
      %v11362 = vsel %vm1655, %v11350, %v11361
      %v11363 = vrot.slane %v11214, 1
      %v11364 = vsel %vm1655, %v11353, %v11363
      %v11365 = vrot.slane %v11215, 1
      %v11366 = vsel %vm1655, %v11356, %v11365
      %v11367 = vrot.slane %v11216, 1
      %v11368 = vsel %vm1655, %v11359, %v11367
      %v11369 = vrot.slane %v11217, 1
      %v11370 = vsel %vm1655, %v11361, %v11369
      %v11371 = vrot.slane %v11218, 1
      %v11372 = vsel %vm1655, %v11363, %v11371
      %v11373 = vrot.slane %v11219, 1
      %v11374 = vsel %vm1655, %v11365, %v11373
      %v11375 = vrot.slane %v11220, 1
      %v11376 = vsel %vm1655, %v11367, %v11375
      %v11377 = vrot.slane %v11221, 1
      %v11378 = vsel %vm1655, %v11369, %v11377
      %v11379 = vrot.slane %v11222, 1
      %v11380 = vsel %vm1655, %v11371, %v11379
      %v11381 = vrot.slane %v11223, 1
      %v11382 = vsel %vm1655, %v11373, %v11381
      %v11383 = vrot.slane %v11224, 1
      %v11384 = vsel %vm1655, %v11375, %v11383
      %v11385 = vrot.slane %v11225, 1
      %v11386 = vsel %vm1655, %v11377, %v11385
      %v11387 = vrot.slane %v11226, 1
      %v11388 = vsel %vm1655, %v11379, %v11387
      %v11389 = vrot.slane %v11227, 1
      %v11390 = vsel %vm1655, %v11381, %v11389
      %v11391 = vrot.slane %v11228, 1
      %v11392 = vsel %vm1655, %v11383, %v11391
      %v11393 = vrot.slane %v11229, 1
      %v11394 = vsel %vm1655, %v11385, %v11393
      %v11395 = vrot.slane %v11230, 1
      %v11396 = vsel %vm1655, %v11387, %v11395
      %v11397 = vrot.slane %v11231, 1
      %v11398 = vsel %vm1655, %v11389, %v11397
      %v11399 = vrot.slane %v11232, 1
      %v11400 = vsel %vm1655, %v11391, %v11399
      %v11401 = vrot.slane %v11233, 1
      %v11402 = vsel %vm1655, %v11393, %v11401
      %v11403 = vrot.slane %v11234, 1
      %v11404 = vsel %vm1655, %v11395, %v11403
      %v11405 = vrot.slane %v11235, 1
      %v11406 = vsel %vm1655, %v11397, %v11405
      %v11407 = vrot.slane %v11236, 1
      %v11408 = vsel %vm1655, %v11399, %v11407
      %v11409 = vrot.slane %v11237, 1
      %v11410 = vsel %vm1655, %v11401, %v11409
      %v11411 = vrot.slane %v11238, 1
      %v11412 = vsel %vm1655, %v11403, %v11411
      %v11413 = vrot.slane %v11239, 1
      %v11414 = vsel %vm1655, %v11405, %v11413
      %v11415 = vrot.slane %v11240, 1
      %v11416 = vsel %vm1655, %v11407, %v11415
      %v11417 = vrot.slane %v11241, 1
      %v11418 = vsel %vm1655, %v11409, %v11417
      %v11419 = vrot.slane %v11242, 1
      %v11420 = vsel %vm1655, %v11411, %v11419
      %v11421 = vrot.slane %v11243, 1
      %v11422 = vsel %vm1655, %v11413, %v11421
      %v11423 = vrot.slane %v11244, 1
      %v11424 = vsel %vm1655, %v11415, %v11423
      %v11425 = vrot.slane %v11245, 1
      %v11426 = vsel %vm1655, %v11417, %v11425
      %v11427 = vrot.slane %v11246, 1
      %v11428 = vsel %vm1655, %v11419, %v11427
      %v11429 = vrot.slane %v11247, 1
      %v11430 = vsel %vm1655, %v11421, %v11429
      %v11431 = vrot.slane %v11248, 1
      %v11432 = vsel %vm1655, %v11423, %v11431
      %v11433 = vrot.slane %v11249, 1
      %v11434 = vsel %vm1655, %v11425, %v11433
      %v11435 = vrot.slane %v11250, 1
      %v11436 = vsel %vm1655, %v11427, %v11435
      %v11437 = vrot.slane %v11251, 1
      %v11438 = vsel %vm1655, %v11429, %v11437
      %v11439 = vrot.slane %v11252, 1
      %v11440 = vsel %vm1655, %v11431, %v11439
      %v11441 = vrot.slane %v11253, 1
      %v11442 = vsel %vm1655, %v11433, %v11441
      %v11443 = vrot.slane %v11254, 1
      %v11444 = vsel %vm1655, %v11435, %v11443
      %v11445 = vrot.slane %v11255, 1
      %v11446 = vsel %vm1655, %v11437, %v11445
      %v11447 = vrot.slane %v11256, 1
      %v11448 = vsel %vm1655, %v11439, %v11447
      %v11449 = vrot.slane %v11257, 1
      %v11450 = vsel %vm1655, %v11441, %v11449
      %v11451 = vrot.slane %v11258, 1
      %v11452 = vsel %vm1655, %v11443, %v11451
      %v11453 = vrot.slane %v11259, 1
      %v11454 = vsel %vm1655, %v11445, %v11453
      %v11455 = vrot.slane %v11260, 1
      %v11456 = vsel %vm1655, %v11447, %v11455
      %v11457 = vrot.slane %v11261, 1
      %v11458 = vsel %vm1655, %v11449, %v11457
      %v11459 = vrot.slane %v11262, 1
      %v11460 = vsel %vm1655, %v11451, %v11459
      %v11461 = vrot.slane %v11263, 1
      %v11462 = vsel %vm1655, %v11453, %v11461
      %v11463 = vrot.slane %v11264, 1
      %v11464 = vsel %vm1655, %v11455, %v11463
      %v11465 = vrot.slane %v11265, 1
      %v11466 = vsel %vm1655, %v11457, %v11465
      %v11467 = vrot.slane %v11266, 1
      %v11468 = vsel %vm1655, %v11459, %v11467
      %v11469 = vrot.slane %v11267, 1
      %v11470 = vsel %vm1655, %v11461, %v11469
      %v11471 = vrot.slane %v11268, 1
      %v11472 = vsel %vm1655, %v11463, %v11471
      %v11473 = vrot.slane %v11269, 1
      %v11474 = vsel %vm1655, %v11465, %v11473
      %v11475 = vrot.slane %v11270, 1
      %v11476 = vsel %vm1655, %v11467, %v11475
      %v11477 = vrot.slane %v11271, 1
      %v11478 = vsel %vm1655, %v11469, %v11477
      %v11479 = vrot.slane %v11272, 1
      %v11480 = vsel %vm1655, %v11471, %v11479
      %v11481 = vrot.slane %v11273, 1
      %v11482 = vsel %vm1655, %v11473, %v11481
      %v11483 = vrot.slane %v11274, 1
      %v11484 = vsel %vm1655, %v11475, %v11483
      %v11485 = vrot.slane %v11275, 1
      %v11486 = vsel %vm1655, %v11477, %v11485
      %v11487 = vrot.slane %v11276, 1
      %v11488 = vsel %vm1655, %v11479, %v11487
      %v11561 = vmax.f32 %v11205, %v11351
      %v11562 = vmax.f32 %v11206, %v11354
      %v11563 = vmax.f32 %v11207, %v11357
      %v11564 = vmax.f32 %v11208, %v11360
      %v11565 = vmax.f32 %v11209, %v11362
      %v11566 = vmax.f32 %v11210, %v11364
      %v11567 = vmax.f32 %v11211, %v11366
      %v11568 = vmax.f32 %v11212, %v11368
      %v11569 = vmax.f32 %v11213, %v11370
      %v11570 = vmax.f32 %v11214, %v11372
      %v11571 = vmax.f32 %v11215, %v11374
      %v11572 = vmax.f32 %v11216, %v11376
      %v11573 = vmax.f32 %v11217, %v11378
      %v11574 = vmax.f32 %v11218, %v11380
      %v11575 = vmax.f32 %v11219, %v11382
      %v11576 = vmax.f32 %v11220, %v11384
      %v11577 = vmax.f32 %v11221, %v11386
      %v11578 = vmax.f32 %v11222, %v11388
      %v11579 = vmax.f32 %v11223, %v11390
      %v11580 = vmax.f32 %v11224, %v11392
      %v11581 = vmax.f32 %v11225, %v11394
      %v11582 = vmax.f32 %v11226, %v11396
      %v11583 = vmax.f32 %v11227, %v11398
      %v11584 = vmax.f32 %v11228, %v11400
      %v11585 = vmax.f32 %v11229, %v11402
      %v11586 = vmax.f32 %v11230, %v11404
      %v11587 = vmax.f32 %v11231, %v11406
      %v11588 = vmax.f32 %v11232, %v11408
      %v11589 = vmax.f32 %v11233, %v11410
      %v11590 = vmax.f32 %v11234, %v11412
      %v11591 = vmax.f32 %v11235, %v11414
      %v11592 = vmax.f32 %v11236, %v11416
      %v11593 = vmax.f32 %v11237, %v11418
      %v11594 = vmax.f32 %v11238, %v11420
      %v11595 = vmax.f32 %v11239, %v11422
      %v11596 = vmax.f32 %v11240, %v11424
      %v11597 = vmax.f32 %v11241, %v11426
      %v11598 = vmax.f32 %v11242, %v11428
      %v11599 = vmax.f32 %v11243, %v11430
      %v11600 = vmax.f32 %v11244, %v11432
      %v11601 = vmax.f32 %v11245, %v11434
      %v11602 = vmax.f32 %v11246, %v11436
      %v11603 = vmax.f32 %v11247, %v11438
      %v11604 = vmax.f32 %v11248, %v11440
      %v11605 = vmax.f32 %v11249, %v11442
      %v11606 = vmax.f32 %v11250, %v11444
      %v11607 = vmax.f32 %v11251, %v11446
      %v11608 = vmax.f32 %v11252, %v11448
      %v11609 = vmax.f32 %v11253, %v11450
      %v11610 = vmax.f32 %v11254, %v11452
      %v11611 = vmax.f32 %v11255, %v11454
      %v11612 = vmax.f32 %v11256, %v11456
      %v11613 = vmax.f32 %v11257, %v11458
      %v11614 = vmax.f32 %v11258, %v11460
      %v11615 = vmax.f32 %v11259, %v11462
      %v11616 = vmax.f32 %v11260, %v11464
      %v11617 = vmax.f32 %v11261, %v11466
      %v11618 = vmax.f32 %v11262, %v11468
      %v11619 = vmax.f32 %v11263, %v11470
      %v11620 = vmax.f32 %v11264, %v11472
      %v11621 = vmax.f32 %v11265, %v11474
      %v11622 = vmax.f32 %v11266, %v11476
      %v11623 = vmax.f32 %v11267, %v11478
      %v11624 = vmax.f32 %v11268, %v11480
      %v11625 = vmax.f32 %v11269, %v11482
      %v11626 = vmax.f32 %v11270, %v11484
      %v11627 = vmax.f32 %v11271, %v11486
      %v11628 = vmax.f32 %v11272, %v11488
      %v11629 = vmax.f32 %v11273, %v11481
      %v11630 = vmax.f32 %v11274, %v11483
      %v11631 = vmax.f32 %v11275, %v11485
      %v11632 = vmax.f32 %v11276, %v11487
      %vm11701 = vcmask 1042432
      %v11702 = vrot.slane %v11565, 5
      %v11703 = vrot.slane %v11569, 5
      %v11704 = vsel %vm11701, %v11702, %v11703
      %v11705 = vrot.slane %v11566, 5
      %v11706 = vrot.slane %v11570, 5
      %v11707 = vsel %vm11701, %v11705, %v11706
      %v11708 = vrot.slane %v11567, 5
      %v11709 = vrot.slane %v11571, 5
      %v11710 = vsel %vm11701, %v11708, %v11709
      %v11711 = vrot.slane %v11568, 5
      %v11712 = vrot.slane %v11572, 5
      %v11713 = vsel %vm11701, %v11711, %v11712
      %v11714 = vrot.slane %v11573, 5
      %v11715 = vsel %vm11701, %v11703, %v11714
      %v11716 = vrot.slane %v11574, 5
      %v11717 = vsel %vm11701, %v11706, %v11716
      %v11718 = vrot.slane %v11575, 5
      %v11719 = vsel %vm11701, %v11709, %v11718
      %v11720 = vrot.slane %v11576, 5
      %v11721 = vsel %vm11701, %v11712, %v11720
      %v11722 = vrot.slane %v11577, 5
      %v11723 = vsel %vm11701, %v11714, %v11722
      %v11724 = vrot.slane %v11578, 5
      %v11725 = vsel %vm11701, %v11716, %v11724
      %v11726 = vrot.slane %v11579, 5
      %v11727 = vsel %vm11701, %v11718, %v11726
      %v11728 = vrot.slane %v11580, 5
      %v11729 = vsel %vm11701, %v11720, %v11728
      %v11730 = vrot.slane %v11581, 5
      %v11731 = vsel %vm11701, %v11722, %v11730
      %v11732 = vrot.slane %v11582, 5
      %v11733 = vsel %vm11701, %v11724, %v11732
      %v11734 = vrot.slane %v11583, 5
      %v11735 = vsel %vm11701, %v11726, %v11734
      %v11736 = vrot.slane %v11584, 5
      %v11737 = vsel %vm11701, %v11728, %v11736
      %v11738 = vrot.slane %v11585, 5
      %v11739 = vsel %vm11701, %v11730, %v11738
      %v11740 = vrot.slane %v11586, 5
      %v11741 = vsel %vm11701, %v11732, %v11740
      %v11742 = vrot.slane %v11587, 5
      %v11743 = vsel %vm11701, %v11734, %v11742
      %v11744 = vrot.slane %v11588, 5
      %v11745 = vsel %vm11701, %v11736, %v11744
      %v11746 = vrot.slane %v11589, 5
      %v11747 = vsel %vm11701, %v11738, %v11746
      %v11748 = vrot.slane %v11590, 5
      %v11749 = vsel %vm11701, %v11740, %v11748
      %v11750 = vrot.slane %v11591, 5
      %v11751 = vsel %vm11701, %v11742, %v11750
      %v11752 = vrot.slane %v11592, 5
      %v11753 = vsel %vm11701, %v11744, %v11752
      %v11754 = vrot.slane %v11593, 5
      %v11755 = vsel %vm11701, %v11746, %v11754
      %v11756 = vrot.slane %v11594, 5
      %v11757 = vsel %vm11701, %v11748, %v11756
      %v11758 = vrot.slane %v11595, 5
      %v11759 = vsel %vm11701, %v11750, %v11758
      %v11760 = vrot.slane %v11596, 5
      %v11761 = vsel %vm11701, %v11752, %v11760
      %v11762 = vrot.slane %v11597, 5
      %v11763 = vsel %vm11701, %v11754, %v11762
      %v11764 = vrot.slane %v11598, 5
      %v11765 = vsel %vm11701, %v11756, %v11764
      %v11766 = vrot.slane %v11599, 5
      %v11767 = vsel %vm11701, %v11758, %v11766
      %v11768 = vrot.slane %v11600, 5
      %v11769 = vsel %vm11701, %v11760, %v11768
      %v11770 = vrot.slane %v11601, 5
      %v11771 = vsel %vm11701, %v11762, %v11770
      %v11772 = vrot.slane %v11602, 5
      %v11773 = vsel %vm11701, %v11764, %v11772
      %v11774 = vrot.slane %v11603, 5
      %v11775 = vsel %vm11701, %v11766, %v11774
      %v11776 = vrot.slane %v11604, 5
      %v11777 = vsel %vm11701, %v11768, %v11776
      %v11778 = vrot.slane %v11605, 5
      %v11779 = vsel %vm11701, %v11770, %v11778
      %v11780 = vrot.slane %v11606, 5
      %v11781 = vsel %vm11701, %v11772, %v11780
      %v11782 = vrot.slane %v11607, 5
      %v11783 = vsel %vm11701, %v11774, %v11782
      %v11784 = vrot.slane %v11608, 5
      %v11785 = vsel %vm11701, %v11776, %v11784
      %v11786 = vrot.slane %v11609, 5
      %v11787 = vsel %vm11701, %v11778, %v11786
      %v11788 = vrot.slane %v11610, 5
      %v11789 = vsel %vm11701, %v11780, %v11788
      %v11790 = vrot.slane %v11611, 5
      %v11791 = vsel %vm11701, %v11782, %v11790
      %v11792 = vrot.slane %v11612, 5
      %v11793 = vsel %vm11701, %v11784, %v11792
      %v11794 = vrot.slane %v11613, 5
      %v11795 = vsel %vm11701, %v11786, %v11794
      %v11796 = vrot.slane %v11614, 5
      %v11797 = vsel %vm11701, %v11788, %v11796
      %v11798 = vrot.slane %v11615, 5
      %v11799 = vsel %vm11701, %v11790, %v11798
      %v11800 = vrot.slane %v11616, 5
      %v11801 = vsel %vm11701, %v11792, %v11800
      %v11802 = vrot.slane %v11617, 5
      %v11803 = vsel %vm11701, %v11794, %v11802
      %v11804 = vrot.slane %v11618, 5
      %v11805 = vsel %vm11701, %v11796, %v11804
      %v11806 = vrot.slane %v11619, 5
      %v11807 = vsel %vm11701, %v11798, %v11806
      %v11808 = vrot.slane %v11620, 5
      %v11809 = vsel %vm11701, %v11800, %v11808
      %v11810 = vrot.slane %v11621, 5
      %v11811 = vsel %vm11701, %v11802, %v11810
      %v11812 = vrot.slane %v11622, 5
      %v11813 = vsel %vm11701, %v11804, %v11812
      %v11814 = vrot.slane %v11623, 5
      %v11815 = vsel %vm11701, %v11806, %v11814
      %v11816 = vrot.slane %v11624, 5
      %v11817 = vsel %vm11701, %v11808, %v11816
      %v11818 = vrot.slane %v11625, 5
      %v11819 = vsel %vm11701, %v11810, %v11818
      %v11820 = vrot.slane %v11626, 5
      %v11821 = vsel %vm11701, %v11812, %v11820
      %v11822 = vrot.slane %v11627, 5
      %v11823 = vsel %vm11701, %v11814, %v11822
      %v11824 = vrot.slane %v11628, 5
      %v11825 = vsel %vm11701, %v11816, %v11824
      %v11826 = vrot.slane %v11629, 5
      %v11827 = vsel %vm11701, %v11818, %v11826
      %v11828 = vrot.slane %v11630, 5
      %v11829 = vsel %vm11701, %v11820, %v11828
      %v11830 = vrot.slane %v11631, 5
      %v11831 = vsel %vm11701, %v11822, %v11830
      %v11832 = vrot.slane %v11632, 5
      %v11833 = vsel %vm11701, %v11824, %v11832
      %v11902 = vmax.f32 %v11561, %v11704
      %v11903 = vmax.f32 %v11562, %v11707
      %v11904 = vmax.f32 %v11563, %v11710
      %v11905 = vmax.f32 %v11564, %v11713
      %v11906 = vmax.f32 %v11565, %v11715
      %v11907 = vmax.f32 %v11566, %v11717
      %v11908 = vmax.f32 %v11567, %v11719
      %v11909 = vmax.f32 %v11568, %v11721
      %v11910 = vmax.f32 %v11569, %v11723
      %v11911 = vmax.f32 %v11570, %v11725
      %v11912 = vmax.f32 %v11571, %v11727
      %v11913 = vmax.f32 %v11572, %v11729
      %v11914 = vmax.f32 %v11573, %v11731
      %v11915 = vmax.f32 %v11574, %v11733
      %v11916 = vmax.f32 %v11575, %v11735
      %v11917 = vmax.f32 %v11576, %v11737
      %v11918 = vmax.f32 %v11577, %v11739
      %v11919 = vmax.f32 %v11578, %v11741
      %v11920 = vmax.f32 %v11579, %v11743
      %v11921 = vmax.f32 %v11580, %v11745
      %v11922 = vmax.f32 %v11581, %v11747
      %v11923 = vmax.f32 %v11582, %v11749
      %v11924 = vmax.f32 %v11583, %v11751
      %v11925 = vmax.f32 %v11584, %v11753
      %v11926 = vmax.f32 %v11585, %v11755
      %v11927 = vmax.f32 %v11586, %v11757
      %v11928 = vmax.f32 %v11587, %v11759
      %v11929 = vmax.f32 %v11588, %v11761
      %v11930 = vmax.f32 %v11589, %v11763
      %v11931 = vmax.f32 %v11590, %v11765
      %v11932 = vmax.f32 %v11591, %v11767
      %v11933 = vmax.f32 %v11592, %v11769
      %v11934 = vmax.f32 %v11593, %v11771
      %v11935 = vmax.f32 %v11594, %v11773
      %v11936 = vmax.f32 %v11595, %v11775
      %v11937 = vmax.f32 %v11596, %v11777
      %v11938 = vmax.f32 %v11597, %v11779
      %v11939 = vmax.f32 %v11598, %v11781
      %v11940 = vmax.f32 %v11599, %v11783
      %v11941 = vmax.f32 %v11600, %v11785
      %v11942 = vmax.f32 %v11601, %v11787
      %v11943 = vmax.f32 %v11602, %v11789
      %v11944 = vmax.f32 %v11603, %v11791
      %v11945 = vmax.f32 %v11604, %v11793
      %v11946 = vmax.f32 %v11605, %v11795
      %v11947 = vmax.f32 %v11606, %v11797
      %v11948 = vmax.f32 %v11607, %v11799
      %v11949 = vmax.f32 %v11608, %v11801
      %v11950 = vmax.f32 %v11609, %v11803
      %v11951 = vmax.f32 %v11610, %v11805
      %v11952 = vmax.f32 %v11611, %v11807
      %v11953 = vmax.f32 %v11612, %v11809
      %v11954 = vmax.f32 %v11613, %v11811
      %v11955 = vmax.f32 %v11614, %v11813
      %v11956 = vmax.f32 %v11615, %v11815
      %v11957 = vmax.f32 %v11616, %v11817
      %v11958 = vmax.f32 %v11617, %v11819
      %v11959 = vmax.f32 %v11618, %v11821
      %v11960 = vmax.f32 %v11619, %v11823
      %v11961 = vmax.f32 %v11620, %v11825
      %v11962 = vmax.f32 %v11621, %v11827
      %v11963 = vmax.f32 %v11622, %v11829
      %v11964 = vmax.f32 %v11623, %v11831
      %v11965 = vmax.f32 %v11624, %v11833
      %v11966 = vmax.f32 %v11625, %v11826
      %v11967 = vmax.f32 %v11626, %v11828
      %v11968 = vmax.f32 %v11627, %v11830
      %v11969 = vmax.f32 %v11628, %v11832
      %v11970 = vld [vmem:[%s6] sm:$0xff]
      %v11971 = vld [vmem:[%s6 + $0x8] sm:$0xff]
      %v11972 = vld [vmem:[%s6 + $0x10] sm:$0xff]
      %v11973 = vld [vmem:[%s6 + $0x18] sm:$0xff]
      %v11974 = vld [vmem:[%s6 + $0x20] sm:$0xff]
      %v11975 = vld [vmem:[%s6 + $0x28] sm:$0xff]
      %v11976 = vld [vmem:[%s6 + $0x30] sm:$0xff]
      %v11977 = vld [vmem:[%s6 + $0x38] sm:$0xff]
      %vm11978 = vcmask 7168
      %v11980 = vsel %vm11978, %v11971, 0
      %v11983 = vsel %vm11978, %v11973, 0
      %v11986 = vsel %vm11978, %v11975, 0
      %v11989 = vsel %vm11978, %v11977, 0
      %vm11991 = vcmask 1040384
      %v11993 = vsel %vm11991, %v11966, 0
      %v11996 = vsel %vm11991, %v11967, 0
      %v11999 = vsel %vm11991, %v11968, 0
      %v12002 = vsel %vm11991, %v11969, 0
      %12004 = vmatprep.subr.mxu0 %v11963
      %12005 = vmatpush1.msra.mxu0 %v11962
      %12006 = vmatprep.subr.mxu0 %v11959
      %12007 = vmatpush1.msra.mxu0 %v11958
      %12008 = vmatprep.subr.mxu0 %v11955
      %12009 = vmatpush1.msra.mxu0 %v11954
      %12010 = vmatprep.subr.mxu0 %v11951
      %12011 = vmatpush1.msra.mxu0 %v11950
      %12012 = vmatprep.subr.mxu0 %v11947
      %12013 = vmatpush1.msra.mxu0 %v11946
      %12014 = vmatprep.subr.mxu0 %v11943
      %12015 = vmatpush1.msra.mxu0 %v11942
      %12016 = vmatprep.subr.mxu0 %v11939
      %12017 = vmatpush1.msra.mxu0 %v11938
      %12018 = vmatprep.subr.mxu0 %v11935
      %12019 = vmatpush1.msra.mxu0 %v11934
      %12020 = vmatprep.subr.mxu0 %v11931
      %12021 = vmatpush1.msra.mxu0 %v11930
      %12022 = vmatprep.subr.mxu0 %v11927
      %12023 = vmatpush1.msra.mxu0 %v11926
      %12024 = vmatprep.subr.mxu0 %v11923
      %12025 = vmatpush1.msra.mxu0 %v11922
      %12026 = vmatprep.subr.mxu0 %v11919
      %12027 = vmatpush1.msra.mxu0 %v11918
      %12028 = vmatprep.subr.mxu0 %v11915
      %12029 = vmatpush1.msra.mxu0 %v11914
      %12030 = vmatprep.subr.mxu0 %v11911
      %12031 = vmatpush1.msra.mxu0 %v11910
      %12032 = vmatprep.subr.mxu0 %v11907
      %12033 = vmatpush1.msra.mxu0 %v11906
      %12034 = vmatprep.subr.mxu0 %v11903
      %12035 = vmatpush1.msra.mxu0 %v11902
      %12036 = vmatprep.subr.mxu0 0.0
      %12037 = vmatpush2.msra.mxu0 0.0
      %12038 = vmatprep.subr.mxu0 0.0
      %12039 = vmatpush2.msra.mxu0 0.0
      %12040 = vmatprep.subr.mxu0 0.0
      %12041 = vmatpush2.msra.mxu0 0.0
      %12042 = vmatprep.subr.mxu0 0.0
      %12043 = vmatpush2.msra.mxu0 0.0
      %12044 = vmatprep.subr.mxu0 0.0
      %12045 = vmatpush2.msra.mxu0 0.0
      %12046 = vmatprep.subr.mxu0 0.0
      %12047 = vmatpush2.msra.mxu0 0.0
      %12048 = vmatprep.subr.mxu0 0.0
      %12049 = vmatpush2.msra.mxu0 0.0
      %12050 = vmatprep.subr.mxu0 0.0
      %12051 = vmatpush2.msra.mxu0 0.0
      %12052 = vmatprep.subr.mxu0 0.0
      %12053 = vmatpush2.msra.mxu0 0.0
      %12054 = vmatprep.subr.mxu0 0.0
      %12055 = vmatpush2.msra.mxu0 0.0
      %12056 = vmatprep.subr.mxu0 0.0
      %12057 = vmatpush2.msra.mxu0 0.0
      %12058 = vmatprep.subr.mxu0 0.0
      %12059 = vmatpush2.msra.mxu0 0.0
      %12060 = vmatprep.subr.mxu0 0.0
      %12061 = vmatpush2.msra.mxu0 0.0
      %12062 = vmatprep.subr.mxu0 0.0
      %12063 = vmatpush2.msra.mxu0 0.0
      %12064 = vmatprep.subr.mxu0 0.0
      %12065 = vmatpush2.msra.mxu0 0.0
      %12066 = vmatprep.subr.mxu0 %v11996
      %12067 = vmatpush2.msra.mxu0 %v11993
      %12068 = vmatprep.mubr.f32.mxu0 %v11980
      %12069 = vmatmul.mubr.f32.gmra.mxu0 %v11970
      %v12070 = vpop.f32.mrf.mxu0
      %v12071 = vadd.f32 0.0, %v12070
      %v12072 = vpop.f32.mrf.mxu0
      %v12073 = vadd.f32 0.0, %v12072
      %12074 = vmatprep.mubr.f32.mxu0 %v11983
      %12075 = vmatmul.mubr.f32.gmra.mxu0 %v11972
      %v12076 = vpop.f32.mrf.mxu0
      %v12077 = vadd.f32 0.0, %v12076
      %v12078 = vpop.f32.mrf.mxu0
      %v12079 = vadd.f32 0.0, %v12078
      %12080 = vmatprep.mubr.f32.mxu0 %v11986
      %12081 = vmatmul.mubr.f32.gmra.mxu0 %v11974
      %v12082 = vpop.f32.mrf.mxu0
      %v12083 = vadd.f32 0.0, %v12082
      %v12084 = vpop.f32.mrf.mxu0
      %v12085 = vadd.f32 0.0, %v12084
      %12086 = vmatprep.mubr.f32.mxu0 %v11989
      %12087 = vmatmul.mubr.f32.gmra.mxu0 %v11976
      %v12088 = vpop.f32.mrf.mxu0
      %v12089 = vadd.f32 0.0, %v12088
      %v12090 = vpop.f32.mrf.mxu0
      %v12091 = vadd.f32 0.0, %v12090
      %12092 = vdwg.mxu0
      %12093 = vmatprep.subr.mxu0 %v11965
      %12094 = vmatpush1.msra.mxu0 %v11964
      %12095 = vmatprep.subr.mxu0 %v11961
      %12096 = vmatpush1.msra.mxu0 %v11960
      %12097 = vmatprep.subr.mxu0 %v11957
      %12098 = vmatpush1.msra.mxu0 %v11956
      %12099 = vmatprep.subr.mxu0 %v11953
      %12100 = vmatpush1.msra.mxu0 %v11952
      %12101 = vmatprep.subr.mxu0 %v11949
      %12102 = vmatpush1.msra.mxu0 %v11948
      %12103 = vmatprep.subr.mxu0 %v11945
      %12104 = vmatpush1.msra.mxu0 %v11944
      %12105 = vmatprep.subr.mxu0 %v11941
      %12106 = vmatpush1.msra.mxu0 %v11940
      %12107 = vmatprep.subr.mxu0 %v11937
      %12108 = vmatpush1.msra.mxu0 %v11936
      %12109 = vmatprep.subr.mxu0 %v11933
      %12110 = vmatpush1.msra.mxu0 %v11932
      %12111 = vmatprep.subr.mxu0 %v11929
      %12112 = vmatpush1.msra.mxu0 %v11928
      %12113 = vmatprep.subr.mxu0 %v11925
      %12114 = vmatpush1.msra.mxu0 %v11924
      %12115 = vmatprep.subr.mxu0 %v11921
      %12116 = vmatpush1.msra.mxu0 %v11920
      %12117 = vmatprep.subr.mxu0 %v11917
      %12118 = vmatpush1.msra.mxu0 %v11916
      %12119 = vmatprep.subr.mxu0 %v11913
      %12120 = vmatpush1.msra.mxu0 %v11912
      %12121 = vmatprep.subr.mxu0 %v11909
      %12122 = vmatpush1.msra.mxu0 %v11908
      %12123 = vmatprep.subr.mxu0 %v11905
      %12124 = vmatpush1.msra.mxu0 %v11904
      %12125 = vmatprep.subr.mxu0 0.0
      %12126 = vmatpush2.msra.mxu0 0.0
      %12127 = vmatprep.subr.mxu0 0.0
      %12128 = vmatpush2.msra.mxu0 0.0
      %12129 = vmatprep.subr.mxu0 0.0
      %12130 = vmatpush2.msra.mxu0 0.0
      %12131 = vmatprep.subr.mxu0 0.0
      %12132 = vmatpush2.msra.mxu0 0.0
      %12133 = vmatprep.subr.mxu0 0.0
      %12134 = vmatpush2.msra.mxu0 0.0
      %12135 = vmatprep.subr.mxu0 0.0
      %12136 = vmatpush2.msra.mxu0 0.0
      %12137 = vmatprep.subr.mxu0 0.0
      %12138 = vmatpush2.msra.mxu0 0.0
      %12139 = vmatprep.subr.mxu0 0.0
      %12140 = vmatpush2.msra.mxu0 0.0
      %12141 = vmatprep.subr.mxu0 0.0
      %12142 = vmatpush2.msra.mxu0 0.0
      %12143 = vmatprep.subr.mxu0 0.0
      %12144 = vmatpush2.msra.mxu0 0.0
      %12145 = vmatprep.subr.mxu0 0.0
      %12146 = vmatpush2.msra.mxu0 0.0
      %12147 = vmatprep.subr.mxu0 0.0
      %12148 = vmatpush2.msra.mxu0 0.0
      %12149 = vmatprep.subr.mxu0 0.0
      %12150 = vmatpush2.msra.mxu0 0.0
      %12151 = vmatprep.subr.mxu0 0.0
      %12152 = vmatpush2.msra.mxu0 0.0
      %12153 = vmatprep.subr.mxu0 0.0
      %12154 = vmatpush2.msra.mxu0 0.0
      %12155 = vmatprep.subr.mxu0 %v12002
      %12156 = vmatpush2.msra.mxu0 %v11999
      %12157 = vmatprep.mubr.f32.mxu0 %v11980
      %12158 = vmatmul.mubr.f32.gmra.mxu0 %v11970
      %v12159 = vpop.f32.mrf.mxu0
      %v12160 = vadd.f32 0.0, %v12159
      %v12161 = vpop.f32.mrf.mxu0
      %v12162 = vadd.f32 0.0, %v12161
      %12163 = vmatprep.mubr.f32.mxu0 %v11983
      %12164 = vmatmul.mubr.f32.gmra.mxu0 %v11972
      %v12165 = vpop.f32.mrf.mxu0
      %v12166 = vadd.f32 0.0, %v12165
      %v12167 = vpop.f32.mrf.mxu0
      %v12168 = vadd.f32 0.0, %v12167
      %12169 = vmatprep.mubr.f32.mxu0 %v11986
      %12170 = vmatmul.mubr.f32.gmra.mxu0 %v11974
      %v12171 = vpop.f32.mrf.mxu0
      %v12172 = vadd.f32 0.0, %v12171
      %v12173 = vpop.f32.mrf.mxu0
      %v12174 = vadd.f32 0.0, %v12173
      %12175 = vmatprep.mubr.f32.mxu0 %v11989
      %12176 = vmatmul.mubr.f32.gmra.mxu0 %v11976
      %v12177 = vpop.f32.mrf.mxu0
      %v12178 = vadd.f32 0.0, %v12177
      %v12179 = vpop.f32.mrf.mxu0
      %v12180 = vadd.f32 0.0, %v12179
      %12181 = vdwg.mxu0
      %12182 = vst [vmem:[%s282] sm:$0xff] %v12071
      %12183 = vst [vmem:[%s282 + $0x8] sm:$0xff] %v12073
      %12184 = vst [vmem:[%s282 + $0x10] sm:$0xff] %v12160
      %12185 = vst [vmem:[%s282 + $0x18] sm:$0xff] %v12162
      %12186 = vst [vmem:[%s282 + $0x20] sm:$0xff] %v12077
      %12187 = vst [vmem:[%s282 + $0x28] sm:$0xff] %v12079
      %12188 = vst [vmem:[%s282 + $0x30] sm:$0xff] %v12166
      %12189 = vst [vmem:[%s282 + $0x38] sm:$0xff] %v12168
      %12190 = vst [vmem:[%s282 + $0x40] sm:$0xff] %v12083
      %12191 = vst [vmem:[%s282 + $0x48] sm:$0xff] %v12085
      %12192 = vst [vmem:[%s282 + $0x50] sm:$0xff] %v12172
      %12193 = vst [vmem:[%s282 + $0x58] sm:$0xff] %v12174
      %12194 = vst [vmem:[%s282 + $0x60] sm:$0xff] %v12089
      %12195 = vst [vmem:[%s282 + $0x68] sm:$0xff] %v12091
      %12196 = vst [vmem:[%s282 + $0x70] sm:$0xff] %v12178
      %12197 = vst [vmem:[%s282 + $0x78] sm:$0xff] %v12180
      %s12198 = smul.u32 4, %s18
      %p12199 = scmp.lt.s32.totalorder %s12198, 7
      %s12200 = scalar_select %p12199, %s12198, 7
      %s12201 = smul.addr %s12200, 4
      %s12202 = smul.addr %s12201, 8
      %s12203 = scalar_lea.vmem %s7, %s12202
      // Predicated region
      $region49: #{neural_network_forward.2} parent=47 // pred_check
        %p12204 = pneg %p188
      $region50: #{neural_network_forward.2} parent=47 // pred_check_branch
        %12206 = sbr.rel (%p12204) target = $region52
      $region51: #{neural_network_forward.2} parent=47 // pred_region
        %s12207 = smul.u32 4, %s18
      $region52: #{neural_network_forward.2} parent=47 // pred_fallthru
        _
    $region48: #{neural_network_forward.2} parent=5 // pred_fallthru
      _
    %p12208 = scmp.le.s32.totalorder 2, %s13
    // Predicated region
    $region53: #{neural_network_forward.2} parent=5 // pred_check
      %p12209 = pneg %p12208
    $region54: #{neural_network_forward.2} parent=5 // pred_check_branch
      %12211 = sbr.rel (%p12209) target = $region56
    $region55: #{neural_network_forward.2} parent=5 // pred_region
      %s12212 = ssub.s32 %s13, 2
      // Predicated region
      $region57: #{neural_network_forward.2} parent=55 // pred_check
        %p12213 = pneg %p194
      $region58: #{neural_network_forward.2} parent=55 // pred_check_branch
        %12215 = sbr.rel (%p12213) target = $region60
      $region59: #{neural_network_forward.2} parent=55 // pred_region
        %s12216 = smul.u32 4, %s19
        %p12217 = scmp.lt.s32.totalorder %s12216, 7
        %s12218 = scalar_select %p12217, %s12216, 7
        %s12219 = smul.addr %s12218, 4
        %s12220 = smul.addr %s12219, 8
        %s12221 = scalar_lea.vmem %s7, %s12220
      $region60: #{neural_network_forward.2} parent=55 // pred_fallthru
        _
    $region56: #{neural_network_forward.2} parent=5 // pred_fallthru
      _
  $region6: #{neural_network_forward.2} parent=0 // loop_footer
    %s17 = sadd.s32 1, %s13
  $region7: #{neural_network_forward.2} parent=0 // loop_footer_branch
    %12 = sbr.rel target = $region3
  $region8: #{neural_network_forward.2} parent=0 // loop_exit
    _

</llo_original>
